<compile_context>
chip_gen: v7x
topology: tpu7x:2x2x1
jax: 0.10.0
libtpu: 0.0.40
codegen_flags: <defaults>
</compile_context>

<pallas_src>
import functools

import numpy as np
import jax
import jax.numpy as jnp
from jax import lax
from jax.experimental import pallas as pl
from jax.experimental.pallas import tpu as pltpu


# ---------------------------------------------------------------------------
# Fused kernel
# ---------------------------------------------------------------------------
def _fused_net_kernel(x_ref, t1_ref, b1_ref, t2_ref, b2_ref,
                      wfc1_ref, bfc1_ref, wfc2_ref, bfc2_ref, out_ref):
    t1 = t1_ref[...]          # (224, 1024) banded conv1 weight
    b1 = b1_ref[...]          # (1, 128)
    b2 = b2_ref[...]          # (1, 128)

    # ---- Stage 1: conv1 + 2x2 max-pool + ReLU -----------------------------
    # x_ref[u]: rows = images of the tile, 224 lanes = input rows 4u..4u+7 (x28 cols).
    # z1 column group g = (output-row parity, pool dy, pool dx); max over (dy,dx) = pool.
    a1 = {}
    for u in range(6):
        z1 = jnp.dot(x_ref[u], t1, preferred_element_type=jnp.float32)   # (tb, 1024)
        for par in range(2):
            g0 = 4 * par
            m = z1[:, g0 * 128:(g0 + 1) * 128]
            for g in range(g0 + 1, g0 + 4):
                m = jnp.maximum(m, z1[:, g * 128:(g + 1) * 128])
            # a1[(par, u)] = pooled conv1 row ph = 2*u + par; lanes = pw*10 + oc (rest 0).
            a1[(par, u)] = jnp.maximum(m + b1, 0.0)                       # (tb, 128)

    # ---- Stage 2: conv2 + 2x2 max-pool + ReLU -----------------------------
    # TODO(synk): nn.Dropout2d after conv2 is training-mode RNG; eval mode => identity.
    z2 = [None] * 4
    for m2 in range(6):                      # m2 = dy2 + i2 (a1-row offset); weight-stationary
        t2_m = t2_ref[m2]                    # (128, 512)
        par, q = m2 & 1, m2 >> 1
        for p2h in range(4):
            t = jnp.dot(a1[(par, p2h + q)], t2_m, preferred_element_type=jnp.float32)
            z2[p2h] = t if z2[p2h] is None else z2[p2h] + t               # (tb, 512)
    a2 = []
    for p2h in range(4):
        m = z2[p2h][:, 0:128]
        for g in range(1, 4):
            m = jnp.maximum(m, z2[p2h][:, g * 128:(g + 1) * 128])
        a2.append(jnp.maximum(m + b2, 0.0))  # (tb, 128); lanes = p2w*20 + oc2 (rest 0)

    # ---- Stage 3: fc1 (320 -> 50, padded to 128 lanes) + ReLU -------------
    h = None
    for p2h in range(4):
        t = jnp.dot(a2[p2h], wfc1_ref[p2h], preferred_element_type=jnp.float32)
        h = t if h is None else h + t
    h = jnp.maximum(h + bfc1_ref[...], 0.0)  # (tb, 128)
    # TODO(synk): F.dropout before fc2 is training-mode RNG; eval mode => identity.

    # ---- Stage 4: fc2 (50 -> 10) + log_softmax ----------------------------
    # Padded class lanes carry a -1e30 bias so exp() underflows to 0 exactly.
    logits = jnp.dot(h, wfc2_ref[...], preferred_element_type=jnp.float32) + bfc2_ref[...]
    mx = jnp.max(logits, axis=-1, keepdims=True)
    z = logits - mx
    lse = jnp.log(jnp.sum(jnp.exp(z), axis=-1, keepdims=True))
    out_ref[...] = z - lse


# ---------------------------------------------------------------------------
# One-time weight packing (PyTorch layout -> lane-dense banded slabs)
# ---------------------------------------------------------------------------
def pack_params(params):
    w1 = np.asarray(params["conv1_w"], np.float32)   # (10, 1, 5, 5)
    b1 = np.asarray(params["conv1_b"], np.float32)   # (10,)
    w2 = np.asarray(params["conv2_w"], np.float32)   # (20, 10, 5, 5)
    b2 = np.asarray(params["conv2_b"], np.float32)   # (20,)
    wf1 = np.asarray(params["fc1_w"], np.float32)    # (50, 320)
    bf1 = np.asarray(params["fc1_b"], np.float32)    # (50,)
    wf2 = np.asarray(params["fc2_w"], np.float32)    # (10, 50)
    bf2 = np.asarray(params["fc2_b"], np.float32)    # (10,)

    # conv1: rows = (m, w_in) of an 8x28 input window; cols = 8 groups of 128:
    # group g = par*4 + dy*2 + dx (output-row parity, pool offsets), lanes pw*10+oc.
    t1 = np.zeros((224, 8 * 128), np.float32)
    for par in range(2):
        for dy in range(2):
            for dx in range(2):
                g = par * 4 + dy * 2 + dx
                for i in range(5):
                    for j in range(5):
                        m = 2 * par + dy + i
                        for pw in range(12):
                            w_in = 2 * pw + dx + j
                            col = g * 128 + pw * 10
                            t1[m * 28 + w_in, col:col + 10] = w1[:, 0, i, j]
    b1t = np.zeros((1, 128), np.float32)
    for pw in range(12):
        b1t[0, pw * 10:pw * 10 + 10] = b1

    # conv2: t2[m2] maps a1 row (2*p2h + m2) [lanes pw*10+c] to 4 groups of 128:
    # group g2 = dy2*2 + dx2, lanes p2w*20 + oc2.
    t2 = np.zeros((6, 128, 4 * 128), np.float32)
    for m2 in range(6):
        for dy2 in range(2):
            i2 = m2 - dy2
            if not (0 <= i2 <= 4):
                continue
            for dx2 in range(2):
                g2 = dy2 * 2 + dx2
                for j2 in range(5):
                    for p2w in range(4):
                        pw = 2 * p2w + dx2 + j2
                        col = g2 * 128 + p2w * 20
                        for c in range(10):
                            t2[m2, pw * 10 + c, col:col + 20] = w2[:, c, i2, j2]
    b2t = np.zeros((1, 128), np.float32)
    for p2w in range(4):
        b2t[0, p2w * 20:p2w * 20 + 20] = b2

    # fc1: contraction split over p2h; rows = p2w*20 + oc2 (a2 lanes), cols padded to 128.
    # PyTorch x.view(-1, 320) flattens NCHW -> index oc2*16 + p2h*4 + p2w.
    wfc1 = np.zeros((4, 128, 128), np.float32)
    for p2h in range(4):
        for p2w in range(4):
            for oc2 in range(20):
                wfc1[p2h, p2w * 20 + oc2, :50] = wf1[:, oc2 * 16 + p2h * 4 + p2w]
    bfc1 = np.zeros((1, 128), np.float32)
    bfc1[0, :50] = bf1

    wfc2 = np.zeros((128, 128), np.float32)
    wfc2[:50, :10] = wf2.T
    bfc2 = np.full((1, 128), -1e30, np.float32)   # padded classes vanish from softmax
    bfc2[0, :10] = bf2

    return {k: jnp.asarray(v) for k, v in dict(
        t1=t1, b1=b1t, t2=t2, b2=b2t, wfc1=wfc1, bfc1=bfc1, wfc2=wfc2, bfc2=bfc2).items()}


# ---------------------------------------------------------------------------
# Wrapper
# ---------------------------------------------------------------------------
def _const_spec(arr):
    zeros = (0,) * arr.ndim
    return pl.BlockSpec(arr.shape, lambda i, _z=zeros: _z)


def _pack_input(x, block_batch):
    """Raw-ish input layout: 8-row windows starting at rows 4u (u=0..5), 224 lanes."""
    n = x.shape[0]
    npad = -(-n // block_batch) * block_batch
    xs = jnp.pad(x[:, 0], ((0, npad - n), (0, 0), (0, 0)))               # (npad, 28, 28)
    win = jnp.stack([xs[:, 4 * u:4 * u + 8, :] for u in range(6)], 0)    # (6, npad, 8, 28)
    return win.reshape(6, npad, 224), npad


@functools.partial(jax.jit, static_argnames=("block_batch",))
def net_forward(packed, x, block_batch=8):
    """Inference-mode forward of the PyTorch `Net` as one fused Pallas kernel."""
    assert block_batch % 8 == 0
    n = x.shape[0]
    x1, npad = _pack_input(x, block_batch)
    grid = (npad // block_batch,)

    in_specs = [pl.BlockSpec((6, block_batch, 224), lambda i: (0, i, 0))] + [
        _const_spec(packed[k])
        for k in ("t1", "b1", "t2", "b2", "wfc1", "bfc1", "wfc2", "bfc2")
    ]
    out_specs = pl.BlockSpec((block_batch, 128), lambda i: (i, 0))

    per_img_flops = 2 * (6 * 224 * 1024 + 24 * 128 * 512 + 4 * 128 * 128 + 128 * 128)
    weight_bytes = sum(int(np.prod(packed[k].shape)) * 4
                       for k in ("t1", "b1", "t2", "b2", "wfc1", "bfc1", "wfc2", "bfc2"))
    cost = pl.CostEstimate(
        flops=int(npad * per_img_flops),
        transcendentals=int(npad * 129),
        bytes_accessed=int(x1.size * 4 + npad * 128 * 4 + weight_bytes),
    )

    out = pl.pallas_call(
        _fused_net_kernel,
        out_shape=jax.ShapeDtypeStruct((npad, 128), jnp.float32),
        grid_spec=pltpu.PrefetchScalarGridSpec(
            num_scalar_prefetch=0,
            grid=grid,
            in_specs=in_specs,
            out_specs=out_specs,
        ),
        compiler_params=pltpu.CompilerParams(
            dimension_semantics=("parallel",),
            vmem_limit_bytes=32 * 1024 * 1024,
        ),
        cost_estimate=cost,
    )(x1, packed["t1"], packed["b1"], packed["t2"], packed["b2"],
      packed["wfc1"], packed["bfc1"], packed["wfc2"], packed["bfc2"])
    return out[:n, :10]


# ---------------------------------------------------------------------------
# Params + pure-JAX reference for numerical cross-check
# ---------------------------------------------------------------------------
def init_params(key):
    ks = jax.random.split(key, 8)

    def w(k, shape, fan_in):
        return (jax.random.normal(k, shape, jnp.float32) / np.sqrt(fan_in)).astype(jnp.float32)

    return {
        "conv1_w": w(ks[0], (10, 1, 5, 5), 25),
        "conv1_b": w(ks[1], (10,), 25),
        "conv2_w": w(ks[2], (20, 10, 5, 5), 250),
        "conv2_b": w(ks[3], (20,), 250),
        "fc1_w": w(ks[4], (50, 320), 320),
        "fc1_b": w(ks[5], (50,), 320),
        "fc2_w": w(ks[6], (10, 50), 50),
        "fc2_b": w(ks[7], (10,), 50),
    }


def net_forward_reference(params, x):
    dn1 = lax.conv_dimension_numbers(x.shape, params["conv1_w"].shape, ("NCHW", "OIHW", "NCHW"))
    y = lax.conv_general_dilated(x, params["conv1_w"], (1, 1), "VALID", dimension_numbers=dn1)
    y = y + params["conv1_b"][None, :, None, None]
    y = lax.reduce_window(y, -jnp.inf, lax.max, (1, 1, 2, 2), (1, 1, 2, 2), "VALID")
    y = jnp.maximum(y, 0.0)
    dn2 = lax.conv_dimension_numbers(y.shape, params["conv2_w"].shape, ("NCHW", "OIHW", "NCHW"))
    y = lax.conv_general_dilated(y, params["conv2_w"], (1, 1), "VALID", dimension_numbers=dn2)
    y = y + params["conv2_b"][None, :, None, None]
    y = lax.reduce_window(y, -jnp.inf, lax.max, (1, 1, 2, 2), (1, 1, 2, 2), "VALID")
    y = jnp.maximum(y, 0.0)
    y = y.reshape(y.shape[0], -1)
    y = jnp.maximum(jnp.dot(y, params["fc1_w"].T) + params["fc1_b"], 0.0)
    y = jnp.dot(y, params["fc2_w"].T) + params["fc2_b"]
    return jax.nn.log_softmax(y, axis=1)


if __name__ == "__main__":
    key = jax.random.PRNGKey(0)
    pkey, xkey = jax.random.split(key)
    params = init_params(pkey)
    packed = pack_params(params)
    x = jax.random.normal(xkey, (2, 1, 28, 28), jnp.float32)   # MNIST-shaped NCHW input

    out = jax.block_until_ready(net_forward(packed, x))
    assert out.shape == (2, 10) and out.dtype == jnp.float32

    ref = jax.block_until_ready(net_forward_reference(params, x))
    # DEFAULT (bf16-pass) MXU precision in the kernel per the perf review -> 2e-2 tolerance.
    np.testing.assert_allclose(np.asarray(out), np.asarray(ref), atol=2e-2, rtol=2e-2)

    print("KERNEL_OK")
</pallas_src>

<mosaic_0001>
module attributes {stable_mosaic.version = 11 : i64} {
  func.func @_fused_net_kernel(%arg0: i32, %arg1: memref<6x8x224xf32, #tpu.memory_space<vmem>>, %arg2: memref<224x1024xf32, #tpu.memory_space<vmem>>, %arg3: memref<1x128xf32, #tpu.memory_space<vmem>>, %arg4: memref<6x128x512xf32, #tpu.memory_space<vmem>>, %arg5: memref<1x128xf32, #tpu.memory_space<vmem>>, %arg6: memref<4x128x128xf32, #tpu.memory_space<vmem>>, %arg7: memref<1x128xf32, #tpu.memory_space<vmem>>, %arg8: memref<128x128xf32, #tpu.memory_space<vmem>>, %arg9: memref<1x128xf32, #tpu.memory_space<vmem>>, %arg10: memref<8x128xf32, #tpu.memory_space<vmem>>) attributes {dimension_semantics = [#tpu.dimension_semantics<parallel>], iteration_bounds = array<i64: 1>, scalar_prefetch = 0 : i64, scratch_operands = 0 : i64, tpu.core_type = #tpu.core_type<tc>, window_params = [{transform_indices = @transform_0, window_bounds = array<i64: 6, 8, 224>}, {pipeline_mode = #tpu.pipeline_mode<synchronous>, transform_indices = @transform_1, window_bounds = array<i64: 224, 1024>}, {pipeline_mode = #tpu.pipeline_mode<synchronous>, transform_indices = @transform_2, window_bounds = array<i64: 1, 128>}, {pipeline_mode = #tpu.pipeline_mode<synchronous>, transform_indices = @transform_3, window_bounds = array<i64: 6, 128, 512>}, {pipeline_mode = #tpu.pipeline_mode<synchronous>, transform_indices = @transform_4, window_bounds = array<i64: 1, 128>}, {pipeline_mode = #tpu.pipeline_mode<synchronous>, transform_indices = @transform_5, window_bounds = array<i64: 4, 128, 128>}, {pipeline_mode = #tpu.pipeline_mode<synchronous>, transform_indices = @transform_6, window_bounds = array<i64: 1, 128>}, {pipeline_mode = #tpu.pipeline_mode<synchronous>, transform_indices = @transform_7, window_bounds = array<i64: 128, 128>}, {pipeline_mode = #tpu.pipeline_mode<synchronous>, transform_indices = @transform_8, window_bounds = array<i64: 1, 128>}, {transform_indices = @transform_9, window_bounds = array<i64: 8, 128>}]} {
    %c0 = arith.constant 0 : index
    %c0_0 = arith.constant 0 : index
    %0 = vector.load %arg2[%c0, %c0_0] : memref<224x1024xf32, #tpu.memory_space<vmem>>, vector<224x1024xf32>
    %c0_1 = arith.constant 0 : index
    %c0_2 = arith.constant 0 : index
    %1 = vector.load %arg3[%c0_1, %c0_2] : memref<1x128xf32, #tpu.memory_space<vmem>>, vector<1x128xf32>
    %c0_3 = arith.constant 0 : index
    %c0_4 = arith.constant 0 : index
    %2 = vector.load %arg5[%c0_3, %c0_4] : memref<1x128xf32, #tpu.memory_space<vmem>>, vector<1x128xf32>
    %c0_5 = arith.constant 0 : index
    %c0_6 = arith.constant 0 : index
    %c0_7 = arith.constant 0 : index
    %3 = vector.load %arg1[%c0_5, %c0_6, %c0_7] : memref<6x8x224xf32, #tpu.memory_space<vmem>>, vector<1x8x224xf32>
    %4 = vector.shape_cast %3 : vector<1x8x224xf32> to vector<8x224xf32>
    %cst = arith.constant dense<0.000000e+00> : vector<8x1024xf32>
    %5 = tpu.matmul %4, %0, %cst {dimension_numbers = #tpu.dot_dimension_numbers<[1], [0], [0], [1], [0, 0, 1, 1], [], []>} : vector<8x224xf32>, vector<224x1024xf32>, vector<8x1024xf32> -> vector<8x1024xf32>
    %6 = vector.extract_strided_slice %5 {offsets = [0, 0], sizes = [8, 128], strides = [1, 1]} : vector<8x1024xf32> to vector<8x128xf32>
    %7 = vector.extract_strided_slice %5 {offsets = [0, 128], sizes = [8, 128], strides = [1, 1]} : vector<8x1024xf32> to vector<8x128xf32>
    %8 = arith.maximumf %6, %7 : vector<8x128xf32>
    %9 = vector.extract_strided_slice %5 {offsets = [0, 256], sizes = [8, 128], strides = [1, 1]} : vector<8x1024xf32> to vector<8x128xf32>
    %10 = arith.maximumf %8, %9 : vector<8x128xf32>
    %11 = vector.extract_strided_slice %5 {offsets = [0, 384], sizes = [8, 128], strides = [1, 1]} : vector<8x1024xf32> to vector<8x128xf32>
    %12 = arith.maximumf %10, %11 : vector<8x128xf32>
    %13 = vector.broadcast %1 : vector<1x128xf32> to vector<8x128xf32>
    %14 = arith.addf %12, %13 : vector<8x128xf32>
    %cst_8 = arith.constant 0.000000e+00 : f32
    %15 = vector.broadcast %cst_8 : f32 to vector<8x128xf32>
    %16 = arith.maximumf %14, %15 : vector<8x128xf32>
    %17 = vector.extract_strided_slice %5 {offsets = [0, 512], sizes = [8, 128], strides = [1, 1]} : vector<8x1024xf32> to vector<8x128xf32>
    %18 = vector.extract_strided_slice %5 {offsets = [0, 640], sizes = [8, 128], strides = [1, 1]} : vector<8x1024xf32> to vector<8x128xf32>
    %19 = arith.maximumf %17, %18 : vector<8x128xf32>
    %20 = vector.extract_strided_slice %5 {offsets = [0, 768], sizes = [8, 128], strides = [1, 1]} : vector<8x1024xf32> to vector<8x128xf32>
    %21 = arith.maximumf %19, %20 : vector<8x128xf32>
    %22 = vector.extract_strided_slice %5 {offsets = [0, 896], sizes = [8, 128], strides = [1, 1]} : vector<8x1024xf32> to vector<8x128xf32>
    %23 = arith.maximumf %21, %22 : vector<8x128xf32>
    %24 = vector.broadcast %1 : vector<1x128xf32> to vector<8x128xf32>
    %25 = arith.addf %23, %24 : vector<8x128xf32>
    %cst_9 = arith.constant 0.000000e+00 : f32
    %26 = vector.broadcast %cst_9 : f32 to vector<8x128xf32>
    %27 = arith.maximumf %25, %26 : vector<8x128xf32>
    %c1 = arith.constant 1 : index
    %c0_10 = arith.constant 0 : index
    %c0_11 = arith.constant 0 : index
    %28 = vector.load %arg1[%c1, %c0_10, %c0_11] : memref<6x8x224xf32, #tpu.memory_space<vmem>>, vector<1x8x224xf32>
    %29 = vector.shape_cast %28 : vector<1x8x224xf32> to vector<8x224xf32>
    %cst_12 = arith.constant dense<0.000000e+00> : vector<8x1024xf32>
    %30 = tpu.matmul %29, %0, %cst_12 {dimension_numbers = #tpu.dot_dimension_numbers<[1], [0], [0], [1], [0, 0, 1, 1], [], []>} : vector<8x224xf32>, vector<224x1024xf32>, vector<8x1024xf32> -> vector<8x1024xf32>
    %31 = vector.extract_strided_slice %30 {offsets = [0, 0], sizes = [8, 128], strides = [1, 1]} : vector<8x1024xf32> to vector<8x128xf32>
    %32 = vector.extract_strided_slice %30 {offsets = [0, 128], sizes = [8, 128], strides = [1, 1]} : vector<8x1024xf32> to vector<8x128xf32>
    %33 = arith.maximumf %31, %32 : vector<8x128xf32>
    %34 = vector.extract_strided_slice %30 {offsets = [0, 256], sizes = [8, 128], strides = [1, 1]} : vector<8x1024xf32> to vector<8x128xf32>
    %35 = arith.maximumf %33, %34 : vector<8x128xf32>
    %36 = vector.extract_strided_slice %30 {offsets = [0, 384], sizes = [8, 128], strides = [1, 1]} : vector<8x1024xf32> to vector<8x128xf32>
    %37 = arith.maximumf %35, %36 : vector<8x128xf32>
    %38 = vector.broadcast %1 : vector<1x128xf32> to vector<8x128xf32>
    %39 = arith.addf %37, %38 : vector<8x128xf32>
    %cst_13 = arith.constant 0.000000e+00 : f32
    %40 = vector.broadcast %cst_13 : f32 to vector<8x128xf32>
    %41 = arith.maximumf %39, %40 : vector<8x128xf32>
    %42 = vector.extract_strided_slice %30 {offsets = [0, 512], sizes = [8, 128], strides = [1, 1]} : vector<8x1024xf32> to vector<8x128xf32>
    %43 = vector.extract_strided_slice %30 {offsets = [0, 640], sizes = [8, 128], strides = [1, 1]} : vector<8x1024xf32> to vector<8x128xf32>
    %44 = arith.maximumf %42, %43 : vector<8x128xf32>
    %45 = vector.extract_strided_slice %30 {offsets = [0, 768], sizes = [8, 128], strides = [1, 1]} : vector<8x1024xf32> to vector<8x128xf32>
    %46 = arith.maximumf %44, %45 : vector<8x128xf32>
    %47 = vector.extract_strided_slice %30 {offsets = [0, 896], sizes = [8, 128], strides = [1, 1]} : vector<8x1024xf32> to vector<8x128xf32>
    %48 = arith.maximumf %46, %47 : vector<8x128xf32>
    %49 = vector.broadcast %1 : vector<1x128xf32> to vector<8x128xf32>
    %50 = arith.addf %48, %49 : vector<8x128xf32>
    %cst_14 = arith.constant 0.000000e+00 : f32
    %51 = vector.broadcast %cst_14 : f32 to vector<8x128xf32>
    %52 = arith.maximumf %50, %51 : vector<8x128xf32>
    %c2 = arith.constant 2 : index
    %c0_15 = arith.constant 0 : index
    %c0_16 = arith.constant 0 : index
    %53 = vector.load %arg1[%c2, %c0_15, %c0_16] : memref<6x8x224xf32, #tpu.memory_space<vmem>>, vector<1x8x224xf32>
    %54 = vector.shape_cast %53 : vector<1x8x224xf32> to vector<8x224xf32>
    %cst_17 = arith.constant dense<0.000000e+00> : vector<8x1024xf32>
    %55 = tpu.matmul %54, %0, %cst_17 {dimension_numbers = #tpu.dot_dimension_numbers<[1], [0], [0], [1], [0, 0, 1, 1], [], []>} : vector<8x224xf32>, vector<224x1024xf32>, vector<8x1024xf32> -> vector<8x1024xf32>
    %56 = vector.extract_strided_slice %55 {offsets = [0, 0], sizes = [8, 128], strides = [1, 1]} : vector<8x1024xf32> to vector<8x128xf32>
    %57 = vector.extract_strided_slice %55 {offsets = [0, 128], sizes = [8, 128], strides = [1, 1]} : vector<8x1024xf32> to vector<8x128xf32>
    %58 = arith.maximumf %56, %57 : vector<8x128xf32>
    %59 = vector.extract_strided_slice %55 {offsets = [0, 256], sizes = [8, 128], strides = [1, 1]} : vector<8x1024xf32> to vector<8x128xf32>
    %60 = arith.maximumf %58, %59 : vector<8x128xf32>
    %61 = vector.extract_strided_slice %55 {offsets = [0, 384], sizes = [8, 128], strides = [1, 1]} : vector<8x1024xf32> to vector<8x128xf32>
    %62 = arith.maximumf %60, %61 : vector<8x128xf32>
    %63 = vector.broadcast %1 : vector<1x128xf32> to vector<8x128xf32>
    %64 = arith.addf %62, %63 : vector<8x128xf32>
    %cst_18 = arith.constant 0.000000e+00 : f32
    %65 = vector.broadcast %cst_18 : f32 to vector<8x128xf32>
    %66 = arith.maximumf %64, %65 : vector<8x128xf32>
    %67 = vector.extract_strided_slice %55 {offsets = [0, 512], sizes = [8, 128], strides = [1, 1]} : vector<8x1024xf32> to vector<8x128xf32>
    %68 = vector.extract_strided_slice %55 {offsets = [0, 640], sizes = [8, 128], strides = [1, 1]} : vector<8x1024xf32> to vector<8x128xf32>
    %69 = arith.maximumf %67, %68 : vector<8x128xf32>
    %70 = vector.extract_strided_slice %55 {offsets = [0, 768], sizes = [8, 128], strides = [1, 1]} : vector<8x1024xf32> to vector<8x128xf32>
    %71 = arith.maximumf %69, %70 : vector<8x128xf32>
    %72 = vector.extract_strided_slice %55 {offsets = [0, 896], sizes = [8, 128], strides = [1, 1]} : vector<8x1024xf32> to vector<8x128xf32>
    %73 = arith.maximumf %71, %72 : vector<8x128xf32>
    %74 = vector.broadcast %1 : vector<1x128xf32> to vector<8x128xf32>
    %75 = arith.addf %73, %74 : vector<8x128xf32>
    %cst_19 = arith.constant 0.000000e+00 : f32
    %76 = vector.broadcast %cst_19 : f32 to vector<8x128xf32>
    %77 = arith.maximumf %75, %76 : vector<8x128xf32>
    %c3 = arith.constant 3 : index
    %c0_20 = arith.constant 0 : index
    %c0_21 = arith.constant 0 : index
    %78 = vector.load %arg1[%c3, %c0_20, %c0_21] : memref<6x8x224xf32, #tpu.memory_space<vmem>>, vector<1x8x224xf32>
    %79 = vector.shape_cast %78 : vector<1x8x224xf32> to vector<8x224xf32>
    %cst_22 = arith.constant dense<0.000000e+00> : vector<8x1024xf32>
    %80 = tpu.matmul %79, %0, %cst_22 {dimension_numbers = #tpu.dot_dimension_numbers<[1], [0], [0], [1], [0, 0, 1, 1], [], []>} : vector<8x224xf32>, vector<224x1024xf32>, vector<8x1024xf32> -> vector<8x1024xf32>
    %81 = vector.extract_strided_slice %80 {offsets = [0, 0], sizes = [8, 128], strides = [1, 1]} : vector<8x1024xf32> to vector<8x128xf32>
    %82 = vector.extract_strided_slice %80 {offsets = [0, 128], sizes = [8, 128], strides = [1, 1]} : vector<8x1024xf32> to vector<8x128xf32>
    %83 = arith.maximumf %81, %82 : vector<8x128xf32>
    %84 = vector.extract_strided_slice %80 {offsets = [0, 256], sizes = [8, 128], strides = [1, 1]} : vector<8x1024xf32> to vector<8x128xf32>
    %85 = arith.maximumf %83, %84 : vector<8x128xf32>
    %86 = vector.extract_strided_slice %80 {offsets = [0, 384], sizes = [8, 128], strides = [1, 1]} : vector<8x1024xf32> to vector<8x128xf32>
    %87 = arith.maximumf %85, %86 : vector<8x128xf32>
    %88 = vector.broadcast %1 : vector<1x128xf32> to vector<8x128xf32>
    %89 = arith.addf %87, %88 : vector<8x128xf32>
    %cst_23 = arith.constant 0.000000e+00 : f32
    %90 = vector.broadcast %cst_23 : f32 to vector<8x128xf32>
    %91 = arith.maximumf %89, %90 : vector<8x128xf32>
    %92 = vector.extract_strided_slice %80 {offsets = [0, 512], sizes = [8, 128], strides = [1, 1]} : vector<8x1024xf32> to vector<8x128xf32>
    %93 = vector.extract_strided_slice %80 {offsets = [0, 640], sizes = [8, 128], strides = [1, 1]} : vector<8x1024xf32> to vector<8x128xf32>
    %94 = arith.maximumf %92, %93 : vector<8x128xf32>
    %95 = vector.extract_strided_slice %80 {offsets = [0, 768], sizes = [8, 128], strides = [1, 1]} : vector<8x1024xf32> to vector<8x128xf32>
    %96 = arith.maximumf %94, %95 : vector<8x128xf32>
    %97 = vector.extract_strided_slice %80 {offsets = [0, 896], sizes = [8, 128], strides = [1, 1]} : vector<8x1024xf32> to vector<8x128xf32>
    %98 = arith.maximumf %96, %97 : vector<8x128xf32>
    %99 = vector.broadcast %1 : vector<1x128xf32> to vector<8x128xf32>
    %100 = arith.addf %98, %99 : vector<8x128xf32>
    %cst_24 = arith.constant 0.000000e+00 : f32
    %101 = vector.broadcast %cst_24 : f32 to vector<8x128xf32>
    %102 = arith.maximumf %100, %101 : vector<8x128xf32>
    %c4 = arith.constant 4 : index
    %c0_25 = arith.constant 0 : index
    %c0_26 = arith.constant 0 : index
    %103 = vector.load %arg1[%c4, %c0_25, %c0_26] : memref<6x8x224xf32, #tpu.memory_space<vmem>>, vector<1x8x224xf32>
    %104 = vector.shape_cast %103 : vector<1x8x224xf32> to vector<8x224xf32>
    %cst_27 = arith.constant dense<0.000000e+00> : vector<8x1024xf32>
    %105 = tpu.matmul %104, %0, %cst_27 {dimension_numbers = #tpu.dot_dimension_numbers<[1], [0], [0], [1], [0, 0, 1, 1], [], []>} : vector<8x224xf32>, vector<224x1024xf32>, vector<8x1024xf32> -> vector<8x1024xf32>
    %106 = vector.extract_strided_slice %105 {offsets = [0, 0], sizes = [8, 128], strides = [1, 1]} : vector<8x1024xf32> to vector<8x128xf32>
    %107 = vector.extract_strided_slice %105 {offsets = [0, 128], sizes = [8, 128], strides = [1, 1]} : vector<8x1024xf32> to vector<8x128xf32>
    %108 = arith.maximumf %106, %107 : vector<8x128xf32>
    %109 = vector.extract_strided_slice %105 {offsets = [0, 256], sizes = [8, 128], strides = [1, 1]} : vector<8x1024xf32> to vector<8x128xf32>
    %110 = arith.maximumf %108, %109 : vector<8x128xf32>
    %111 = vector.extract_strided_slice %105 {offsets = [0, 384], sizes = [8, 128], strides = [1, 1]} : vector<8x1024xf32> to vector<8x128xf32>
    %112 = arith.maximumf %110, %111 : vector<8x128xf32>
    %113 = vector.broadcast %1 : vector<1x128xf32> to vector<8x128xf32>
    %114 = arith.addf %112, %113 : vector<8x128xf32>
    %cst_28 = arith.constant 0.000000e+00 : f32
    %115 = vector.broadcast %cst_28 : f32 to vector<8x128xf32>
    %116 = arith.maximumf %114, %115 : vector<8x128xf32>
    %117 = vector.extract_strided_slice %105 {offsets = [0, 512], sizes = [8, 128], strides = [1, 1]} : vector<8x1024xf32> to vector<8x128xf32>
    %118 = vector.extract_strided_slice %105 {offsets = [0, 640], sizes = [8, 128], strides = [1, 1]} : vector<8x1024xf32> to vector<8x128xf32>
    %119 = arith.maximumf %117, %118 : vector<8x128xf32>
    %120 = vector.extract_strided_slice %105 {offsets = [0, 768], sizes = [8, 128], strides = [1, 1]} : vector<8x1024xf32> to vector<8x128xf32>
    %121 = arith.maximumf %119, %120 : vector<8x128xf32>
    %122 = vector.extract_strided_slice %105 {offsets = [0, 896], sizes = [8, 128], strides = [1, 1]} : vector<8x1024xf32> to vector<8x128xf32>
    %123 = arith.maximumf %121, %122 : vector<8x128xf32>
    %124 = vector.broadcast %1 : vector<1x128xf32> to vector<8x128xf32>
    %125 = arith.addf %123, %124 : vector<8x128xf32>
    %cst_29 = arith.constant 0.000000e+00 : f32
    %126 = vector.broadcast %cst_29 : f32 to vector<8x128xf32>
    %127 = arith.maximumf %125, %126 : vector<8x128xf32>
    %c5 = arith.constant 5 : index
    %c0_30 = arith.constant 0 : index
    %c0_31 = arith.constant 0 : index
    %128 = vector.load %arg1[%c5, %c0_30, %c0_31] : memref<6x8x224xf32, #tpu.memory_space<vmem>>, vector<1x8x224xf32>
    %129 = vector.shape_cast %128 : vector<1x8x224xf32> to vector<8x224xf32>
    %cst_32 = arith.constant dense<0.000000e+00> : vector<8x1024xf32>
    %130 = tpu.matmul %129, %0, %cst_32 {dimension_numbers = #tpu.dot_dimension_numbers<[1], [0], [0], [1], [0, 0, 1, 1], [], []>} : vector<8x224xf32>, vector<224x1024xf32>, vector<8x1024xf32> -> vector<8x1024xf32>
    %131 = vector.extract_strided_slice %130 {offsets = [0, 0], sizes = [8, 128], strides = [1, 1]} : vector<8x1024xf32> to vector<8x128xf32>
    %132 = vector.extract_strided_slice %130 {offsets = [0, 128], sizes = [8, 128], strides = [1, 1]} : vector<8x1024xf32> to vector<8x128xf32>
    %133 = arith.maximumf %131, %132 : vector<8x128xf32>
    %134 = vector.extract_strided_slice %130 {offsets = [0, 256], sizes = [8, 128], strides = [1, 1]} : vector<8x1024xf32> to vector<8x128xf32>
    %135 = arith.maximumf %133, %134 : vector<8x128xf32>
    %136 = vector.extract_strided_slice %130 {offsets = [0, 384], sizes = [8, 128], strides = [1, 1]} : vector<8x1024xf32> to vector<8x128xf32>
    %137 = arith.maximumf %135, %136 : vector<8x128xf32>
    %138 = vector.broadcast %1 : vector<1x128xf32> to vector<8x128xf32>
    %139 = arith.addf %137, %138 : vector<8x128xf32>
    %cst_33 = arith.constant 0.000000e+00 : f32
    %140 = vector.broadcast %cst_33 : f32 to vector<8x128xf32>
    %141 = arith.maximumf %139, %140 : vector<8x128xf32>
    %142 = vector.extract_strided_slice %130 {offsets = [0, 512], sizes = [8, 128], strides = [1, 1]} : vector<8x1024xf32> to vector<8x128xf32>
    %143 = vector.extract_strided_slice %130 {offsets = [0, 640], sizes = [8, 128], strides = [1, 1]} : vector<8x1024xf32> to vector<8x128xf32>
    %144 = arith.maximumf %142, %143 : vector<8x128xf32>
    %145 = vector.extract_strided_slice %130 {offsets = [0, 768], sizes = [8, 128], strides = [1, 1]} : vector<8x1024xf32> to vector<8x128xf32>
    %146 = arith.maximumf %144, %145 : vector<8x128xf32>
    %147 = vector.extract_strided_slice %130 {offsets = [0, 896], sizes = [8, 128], strides = [1, 1]} : vector<8x1024xf32> to vector<8x128xf32>
    %148 = arith.maximumf %146, %147 : vector<8x128xf32>
    %149 = vector.broadcast %1 : vector<1x128xf32> to vector<8x128xf32>
    %150 = arith.addf %148, %149 : vector<8x128xf32>
    %cst_34 = arith.constant 0.000000e+00 : f32
    %151 = vector.broadcast %cst_34 : f32 to vector<8x128xf32>
    %152 = arith.maximumf %150, %151 : vector<8x128xf32>
    %c0_35 = arith.constant 0 : index
    %c0_36 = arith.constant 0 : index
    %c0_37 = arith.constant 0 : index
    %153 = vector.load %arg4[%c0_35, %c0_36, %c0_37] : memref<6x128x512xf32, #tpu.memory_space<vmem>>, vector<1x128x512xf32>
    %154 = vector.shape_cast %153 : vector<1x128x512xf32> to vector<128x512xf32>
    %cst_38 = arith.constant dense<0.000000e+00> : vector<8x512xf32>
    %155 = tpu.matmul %16, %154, %cst_38 {dimension_numbers = #tpu.dot_dimension_numbers<[1], [0], [0], [1], [0, 0, 1, 1], [], []>} : vector<8x128xf32>, vector<128x512xf32>, vector<8x512xf32> -> vector<8x512xf32>
    %cst_39 = arith.constant dense<0.000000e+00> : vector<8x512xf32>
    %156 = tpu.matmul %41, %154, %cst_39 {dimension_numbers = #tpu.dot_dimension_numbers<[1], [0], [0], [1], [0, 0, 1, 1], [], []>} : vector<8x128xf32>, vector<128x512xf32>, vector<8x512xf32> -> vector<8x512xf32>
    %cst_40 = arith.constant dense<0.000000e+00> : vector<8x512xf32>
    %157 = tpu.matmul %66, %154, %cst_40 {dimension_numbers = #tpu.dot_dimension_numbers<[1], [0], [0], [1], [0, 0, 1, 1], [], []>} : vector<8x128xf32>, vector<128x512xf32>, vector<8x512xf32> -> vector<8x512xf32>
    %cst_41 = arith.constant dense<0.000000e+00> : vector<8x512xf32>
    %158 = tpu.matmul %91, %154, %cst_41 {dimension_numbers = #tpu.dot_dimension_numbers<[1], [0], [0], [1], [0, 0, 1, 1], [], []>} : vector<8x128xf32>, vector<128x512xf32>, vector<8x512xf32> -> vector<8x512xf32>
    %c1_42 = arith.constant 1 : index
    %c0_43 = arith.constant 0 : index
    %c0_44 = arith.constant 0 : index
    %159 = vector.load %arg4[%c1_42, %c0_43, %c0_44] : memref<6x128x512xf32, #tpu.memory_space<vmem>>, vector<1x128x512xf32>
    %160 = vector.shape_cast %159 : vector<1x128x512xf32> to vector<128x512xf32>
    %cst_45 = arith.constant dense<0.000000e+00> : vector<8x512xf32>
    %161 = tpu.matmul %27, %160, %cst_45 {dimension_numbers = #tpu.dot_dimension_numbers<[1], [0], [0], [1], [0, 0, 1, 1], [], []>} : vector<8x128xf32>, vector<128x512xf32>, vector<8x512xf32> -> vector<8x512xf32>
    %162 = arith.addf %155, %161 : vector<8x512xf32>
    %cst_46 = arith.constant dense<0.000000e+00> : vector<8x512xf32>
    %163 = tpu.matmul %52, %160, %cst_46 {dimension_numbers = #tpu.dot_dimension_numbers<[1], [0], [0], [1], [0, 0, 1, 1], [], []>} : vector<8x128xf32>, vector<128x512xf32>, vector<8x512xf32> -> vector<8x512xf32>
    %164 = arith.addf %156, %163 : vector<8x512xf32>
    %cst_47 = arith.constant dense<0.000000e+00> : vector<8x512xf32>
    %165 = tpu.matmul %77, %160, %cst_47 {dimension_numbers = #tpu.dot_dimension_numbers<[1], [0], [0], [1], [0, 0, 1, 1], [], []>} : vector<8x128xf32>, vector<128x512xf32>, vector<8x512xf32> -> vector<8x512xf32>
    %166 = arith.addf %157, %165 : vector<8x512xf32>
    %cst_48 = arith.constant dense<0.000000e+00> : vector<8x512xf32>
    %167 = tpu.matmul %102, %160, %cst_48 {dimension_numbers = #tpu.dot_dimension_numbers<[1], [0], [0], [1], [0, 0, 1, 1], [], []>} : vector<8x128xf32>, vector<128x512xf32>, vector<8x512xf32> -> vector<8x512xf32>
    %168 = arith.addf %158, %167 : vector<8x512xf32>
    %c2_49 = arith.constant 2 : index
    %c0_50 = arith.constant 0 : index
    %c0_51 = arith.constant 0 : index
    %169 = vector.load %arg4[%c2_49, %c0_50, %c0_51] : memref<6x128x512xf32, #tpu.memory_space<vmem>>, vector<1x128x512xf32>
    %170 = vector.shape_cast %169 : vector<1x128x512xf32> to vector<128x512xf32>
    %cst_52 = arith.constant dense<0.000000e+00> : vector<8x512xf32>
    %171 = tpu.matmul %41, %170, %cst_52 {dimension_numbers = #tpu.dot_dimension_numbers<[1], [0], [0], [1], [0, 0, 1, 1], [], []>} : vector<8x128xf32>, vector<128x512xf32>, vector<8x512xf32> -> vector<8x512xf32>
    %172 = arith.addf %162, %171 : vector<8x512xf32>
    %cst_53 = arith.constant dense<0.000000e+00> : vector<8x512xf32>
    %173 = tpu.matmul %66, %170, %cst_53 {dimension_numbers = #tpu.dot_dimension_numbers<[1], [0], [0], [1], [0, 0, 1, 1], [], []>} : vector<8x128xf32>, vector<128x512xf32>, vector<8x512xf32> -> vector<8x512xf32>
    %174 = arith.addf %164, %173 : vector<8x512xf32>
    %cst_54 = arith.constant dense<0.000000e+00> : vector<8x512xf32>
    %175 = tpu.matmul %91, %170, %cst_54 {dimension_numbers = #tpu.dot_dimension_numbers<[1], [0], [0], [1], [0, 0, 1, 1], [], []>} : vector<8x128xf32>, vector<128x512xf32>, vector<8x512xf32> -> vector<8x512xf32>
    %176 = arith.addf %166, %175 : vector<8x512xf32>
    %cst_55 = arith.constant dense<0.000000e+00> : vector<8x512xf32>
    %177 = tpu.matmul %116, %170, %cst_55 {dimension_numbers = #tpu.dot_dimension_numbers<[1], [0], [0], [1], [0, 0, 1, 1], [], []>} : vector<8x128xf32>, vector<128x512xf32>, vector<8x512xf32> -> vector<8x512xf32>
    %178 = arith.addf %168, %177 : vector<8x512xf32>
    %c3_56 = arith.constant 3 : index
    %c0_57 = arith.constant 0 : index
    %c0_58 = arith.constant 0 : index
    %179 = vector.load %arg4[%c3_56, %c0_57, %c0_58] : memref<6x128x512xf32, #tpu.memory_space<vmem>>, vector<1x128x512xf32>
    %180 = vector.shape_cast %179 : vector<1x128x512xf32> to vector<128x512xf32>
    %cst_59 = arith.constant dense<0.000000e+00> : vector<8x512xf32>
    %181 = tpu.matmul %52, %180, %cst_59 {dimension_numbers = #tpu.dot_dimension_numbers<[1], [0], [0], [1], [0, 0, 1, 1], [], []>} : vector<8x128xf32>, vector<128x512xf32>, vector<8x512xf32> -> vector<8x512xf32>
    %182 = arith.addf %172, %181 : vector<8x512xf32>
    %cst_60 = arith.constant dense<0.000000e+00> : vector<8x512xf32>
    %183 = tpu.matmul %77, %180, %cst_60 {dimension_numbers = #tpu.dot_dimension_numbers<[1], [0], [0], [1], [0, 0, 1, 1], [], []>} : vector<8x128xf32>, vector<128x512xf32>, vector<8x512xf32> -> vector<8x512xf32>
    %184 = arith.addf %174, %183 : vector<8x512xf32>
    %cst_61 = arith.constant dense<0.000000e+00> : vector<8x512xf32>
    %185 = tpu.matmul %102, %180, %cst_61 {dimension_numbers = #tpu.dot_dimension_numbers<[1], [0], [0], [1], [0, 0, 1, 1], [], []>} : vector<8x128xf32>, vector<128x512xf32>, vector<8x512xf32> -> vector<8x512xf32>
    %186 = arith.addf %176, %185 : vector<8x512xf32>
    %cst_62 = arith.constant dense<0.000000e+00> : vector<8x512xf32>
    %187 = tpu.matmul %127, %180, %cst_62 {dimension_numbers = #tpu.dot_dimension_numbers<[1], [0], [0], [1], [0, 0, 1, 1], [], []>} : vector<8x128xf32>, vector<128x512xf32>, vector<8x512xf32> -> vector<8x512xf32>
    %188 = arith.addf %178, %187 : vector<8x512xf32>
    %c4_63 = arith.constant 4 : index
    %c0_64 = arith.constant 0 : index
    %c0_65 = arith.constant 0 : index
    %189 = vector.load %arg4[%c4_63, %c0_64, %c0_65] : memref<6x128x512xf32, #tpu.memory_space<vmem>>, vector<1x128x512xf32>
    %190 = vector.shape_cast %189 : vector<1x128x512xf32> to vector<128x512xf32>
    %cst_66 = arith.constant dense<0.000000e+00> : vector<8x512xf32>
    %191 = tpu.matmul %66, %190, %cst_66 {dimension_numbers = #tpu.dot_dimension_numbers<[1], [0], [0], [1], [0, 0, 1, 1], [], []>} : vector<8x128xf32>, vector<128x512xf32>, vector<8x512xf32> -> vector<8x512xf32>
    %192 = arith.addf %182, %191 : vector<8x512xf32>
    %cst_67 = arith.constant dense<0.000000e+00> : vector<8x512xf32>
    %193 = tpu.matmul %91, %190, %cst_67 {dimension_numbers = #tpu.dot_dimension_numbers<[1], [0], [0], [1], [0, 0, 1, 1], [], []>} : vector<8x128xf32>, vector<128x512xf32>, vector<8x512xf32> -> vector<8x512xf32>
    %194 = arith.addf %184, %193 : vector<8x512xf32>
    %cst_68 = arith.constant dense<0.000000e+00> : vector<8x512xf32>
    %195 = tpu.matmul %116, %190, %cst_68 {dimension_numbers = #tpu.dot_dimension_numbers<[1], [0], [0], [1], [0, 0, 1, 1], [], []>} : vector<8x128xf32>, vector<128x512xf32>, vector<8x512xf32> -> vector<8x512xf32>
    %196 = arith.addf %186, %195 : vector<8x512xf32>
    %cst_69 = arith.constant dense<0.000000e+00> : vector<8x512xf32>
    %197 = tpu.matmul %141, %190, %cst_69 {dimension_numbers = #tpu.dot_dimension_numbers<[1], [0], [0], [1], [0, 0, 1, 1], [], []>} : vector<8x128xf32>, vector<128x512xf32>, vector<8x512xf32> -> vector<8x512xf32>
    %198 = arith.addf %188, %197 : vector<8x512xf32>
    %c5_70 = arith.constant 5 : index
    %c0_71 = arith.constant 0 : index
    %c0_72 = arith.constant 0 : index
    %199 = vector.load %arg4[%c5_70, %c0_71, %c0_72] : memref<6x128x512xf32, #tpu.memory_space<vmem>>, vector<1x128x512xf32>
    %200 = vector.shape_cast %199 : vector<1x128x512xf32> to vector<128x512xf32>
    %cst_73 = arith.constant dense<0.000000e+00> : vector<8x512xf32>
    %201 = tpu.matmul %77, %200, %cst_73 {dimension_numbers = #tpu.dot_dimension_numbers<[1], [0], [0], [1], [0, 0, 1, 1], [], []>} : vector<8x128xf32>, vector<128x512xf32>, vector<8x512xf32> -> vector<8x512xf32>
    %202 = arith.addf %192, %201 : vector<8x512xf32>
    %cst_74 = arith.constant dense<0.000000e+00> : vector<8x512xf32>
    %203 = tpu.matmul %102, %200, %cst_74 {dimension_numbers = #tpu.dot_dimension_numbers<[1], [0], [0], [1], [0, 0, 1, 1], [], []>} : vector<8x128xf32>, vector<128x512xf32>, vector<8x512xf32> -> vector<8x512xf32>
    %204 = arith.addf %194, %203 : vector<8x512xf32>
    %cst_75 = arith.constant dense<0.000000e+00> : vector<8x512xf32>
    %205 = tpu.matmul %127, %200, %cst_75 {dimension_numbers = #tpu.dot_dimension_numbers<[1], [0], [0], [1], [0, 0, 1, 1], [], []>} : vector<8x128xf32>, vector<128x512xf32>, vector<8x512xf32> -> vector<8x512xf32>
    %206 = arith.addf %196, %205 : vector<8x512xf32>
    %cst_76 = arith.constant dense<0.000000e+00> : vector<8x512xf32>
    %207 = tpu.matmul %152, %200, %cst_76 {dimension_numbers = #tpu.dot_dimension_numbers<[1], [0], [0], [1], [0, 0, 1, 1], [], []>} : vector<8x128xf32>, vector<128x512xf32>, vector<8x512xf32> -> vector<8x512xf32>
    %208 = arith.addf %198, %207 : vector<8x512xf32>
    %209 = vector.extract_strided_slice %202 {offsets = [0, 0], sizes = [8, 128], strides = [1, 1]} : vector<8x512xf32> to vector<8x128xf32>
    %210 = vector.extract_strided_slice %202 {offsets = [0, 128], sizes = [8, 128], strides = [1, 1]} : vector<8x512xf32> to vector<8x128xf32>
    %211 = arith.maximumf %209, %210 : vector<8x128xf32>
    %212 = vector.extract_strided_slice %202 {offsets = [0, 256], sizes = [8, 128], strides = [1, 1]} : vector<8x512xf32> to vector<8x128xf32>
    %213 = arith.maximumf %211, %212 : vector<8x128xf32>
    %214 = vector.extract_strided_slice %202 {offsets = [0, 384], sizes = [8, 128], strides = [1, 1]} : vector<8x512xf32> to vector<8x128xf32>
    %215 = arith.maximumf %213, %214 : vector<8x128xf32>
    %216 = vector.broadcast %2 : vector<1x128xf32> to vector<8x128xf32>
    %217 = arith.addf %215, %216 : vector<8x128xf32>
    %cst_77 = arith.constant 0.000000e+00 : f32
    %218 = vector.broadcast %cst_77 : f32 to vector<8x128xf32>
    %219 = arith.maximumf %217, %218 : vector<8x128xf32>
    %220 = vector.extract_strided_slice %204 {offsets = [0, 0], sizes = [8, 128], strides = [1, 1]} : vector<8x512xf32> to vector<8x128xf32>
    %221 = vector.extract_strided_slice %204 {offsets = [0, 128], sizes = [8, 128], strides = [1, 1]} : vector<8x512xf32> to vector<8x128xf32>
    %222 = arith.maximumf %220, %221 : vector<8x128xf32>
    %223 = vector.extract_strided_slice %204 {offsets = [0, 256], sizes = [8, 128], strides = [1, 1]} : vector<8x512xf32> to vector<8x128xf32>
    %224 = arith.maximumf %222, %223 : vector<8x128xf32>
    %225 = vector.extract_strided_slice %204 {offsets = [0, 384], sizes = [8, 128], strides = [1, 1]} : vector<8x512xf32> to vector<8x128xf32>
    %226 = arith.maximumf %224, %225 : vector<8x128xf32>
    %227 = vector.broadcast %2 : vector<1x128xf32> to vector<8x128xf32>
    %228 = arith.addf %226, %227 : vector<8x128xf32>
    %cst_78 = arith.constant 0.000000e+00 : f32
    %229 = vector.broadcast %cst_78 : f32 to vector<8x128xf32>
    %230 = arith.maximumf %228, %229 : vector<8x128xf32>
    %231 = vector.extract_strided_slice %206 {offsets = [0, 0], sizes = [8, 128], strides = [1, 1]} : vector<8x512xf32> to vector<8x128xf32>
    %232 = vector.extract_strided_slice %206 {offsets = [0, 128], sizes = [8, 128], strides = [1, 1]} : vector<8x512xf32> to vector<8x128xf32>
    %233 = arith.maximumf %231, %232 : vector<8x128xf32>
    %234 = vector.extract_strided_slice %206 {offsets = [0, 256], sizes = [8, 128], strides = [1, 1]} : vector<8x512xf32> to vector<8x128xf32>
    %235 = arith.maximumf %233, %234 : vector<8x128xf32>
    %236 = vector.extract_strided_slice %206 {offsets = [0, 384], sizes = [8, 128], strides = [1, 1]} : vector<8x512xf32> to vector<8x128xf32>
    %237 = arith.maximumf %235, %236 : vector<8x128xf32>
    %238 = vector.broadcast %2 : vector<1x128xf32> to vector<8x128xf32>
    %239 = arith.addf %237, %238 : vector<8x128xf32>
    %cst_79 = arith.constant 0.000000e+00 : f32
    %240 = vector.broadcast %cst_79 : f32 to vector<8x128xf32>
    %241 = arith.maximumf %239, %240 : vector<8x128xf32>
    %242 = vector.extract_strided_slice %208 {offsets = [0, 0], sizes = [8, 128], strides = [1, 1]} : vector<8x512xf32> to vector<8x128xf32>
    %243 = vector.extract_strided_slice %208 {offsets = [0, 128], sizes = [8, 128], strides = [1, 1]} : vector<8x512xf32> to vector<8x128xf32>
    %244 = arith.maximumf %242, %243 : vector<8x128xf32>
    %245 = vector.extract_strided_slice %208 {offsets = [0, 256], sizes = [8, 128], strides = [1, 1]} : vector<8x512xf32> to vector<8x128xf32>
    %246 = arith.maximumf %244, %245 : vector<8x128xf32>
    %247 = vector.extract_strided_slice %208 {offsets = [0, 384], sizes = [8, 128], strides = [1, 1]} : vector<8x512xf32> to vector<8x128xf32>
    %248 = arith.maximumf %246, %247 : vector<8x128xf32>
    %249 = vector.broadcast %2 : vector<1x128xf32> to vector<8x128xf32>
    %250 = arith.addf %248, %249 : vector<8x128xf32>
    %cst_80 = arith.constant 0.000000e+00 : f32
    %251 = vector.broadcast %cst_80 : f32 to vector<8x128xf32>
    %252 = arith.maximumf %250, %251 : vector<8x128xf32>
    %c0_81 = arith.constant 0 : index
    %c0_82 = arith.constant 0 : index
    %c0_83 = arith.constant 0 : index
    %253 = vector.load %arg6[%c0_81, %c0_82, %c0_83] : memref<4x128x128xf32, #tpu.memory_space<vmem>>, vector<1x128x128xf32>
    %254 = vector.shape_cast %253 : vector<1x128x128xf32> to vector<128x128xf32>
    %cst_84 = arith.constant dense<0.000000e+00> : vector<8x128xf32>
    %255 = tpu.matmul %219, %254, %cst_84 {dimension_numbers = #tpu.dot_dimension_numbers<[1], [0], [0], [1], [0, 0, 1, 1], [], []>} : vector<8x128xf32>, vector<128x128xf32>, vector<8x128xf32> -> vector<8x128xf32>
    %c1_85 = arith.constant 1 : index
    %c0_86 = arith.constant 0 : index
    %c0_87 = arith.constant 0 : index
    %256 = vector.load %arg6[%c1_85, %c0_86, %c0_87] : memref<4x128x128xf32, #tpu.memory_space<vmem>>, vector<1x128x128xf32>
    %257 = vector.shape_cast %256 : vector<1x128x128xf32> to vector<128x128xf32>
    %cst_88 = arith.constant dense<0.000000e+00> : vector<8x128xf32>
    %258 = tpu.matmul %230, %257, %cst_88 {dimension_numbers = #tpu.dot_dimension_numbers<[1], [0], [0], [1], [0, 0, 1, 1], [], []>} : vector<8x128xf32>, vector<128x128xf32>, vector<8x128xf32> -> vector<8x128xf32>
    %259 = arith.addf %255, %258 : vector<8x128xf32>
    %c2_89 = arith.constant 2 : index
    %c0_90 = arith.constant 0 : index
    %c0_91 = arith.constant 0 : index
    %260 = vector.load %arg6[%c2_89, %c0_90, %c0_91] : memref<4x128x128xf32, #tpu.memory_space<vmem>>, vector<1x128x128xf32>
    %261 = vector.shape_cast %260 : vector<1x128x128xf32> to vector<128x128xf32>
    %cst_92 = arith.constant dense<0.000000e+00> : vector<8x128xf32>
    %262 = tpu.matmul %241, %261, %cst_92 {dimension_numbers = #tpu.dot_dimension_numbers<[1], [0], [0], [1], [0, 0, 1, 1], [], []>} : vector<8x128xf32>, vector<128x128xf32>, vector<8x128xf32> -> vector<8x128xf32>
    %263 = arith.addf %259, %262 : vector<8x128xf32>
    %c3_93 = arith.constant 3 : index
    %c0_94 = arith.constant 0 : index
    %c0_95 = arith.constant 0 : index
    %264 = vector.load %arg6[%c3_93, %c0_94, %c0_95] : memref<4x128x128xf32, #tpu.memory_space<vmem>>, vector<1x128x128xf32>
    %265 = vector.shape_cast %264 : vector<1x128x128xf32> to vector<128x128xf32>
    %cst_96 = arith.constant dense<0.000000e+00> : vector<8x128xf32>
    %266 = tpu.matmul %252, %265, %cst_96 {dimension_numbers = #tpu.dot_dimension_numbers<[1], [0], [0], [1], [0, 0, 1, 1], [], []>} : vector<8x128xf32>, vector<128x128xf32>, vector<8x128xf32> -> vector<8x128xf32>
    %267 = arith.addf %263, %266 : vector<8x128xf32>
    %c0_97 = arith.constant 0 : index
    %c0_98 = arith.constant 0 : index
    %268 = vector.load %arg7[%c0_97, %c0_98] : memref<1x128xf32, #tpu.memory_space<vmem>>, vector<1x128xf32>
    %269 = vector.broadcast %268 : vector<1x128xf32> to vector<8x128xf32>
    %270 = arith.addf %267, %269 : vector<8x128xf32>
    %cst_99 = arith.constant 0.000000e+00 : f32
    %271 = vector.broadcast %cst_99 : f32 to vector<8x128xf32>
    %272 = arith.maximumf %270, %271 : vector<8x128xf32>
    %c0_100 = arith.constant 0 : index
    %c0_101 = arith.constant 0 : index
    %273 = vector.load %arg8[%c0_100, %c0_101] : memref<128x128xf32, #tpu.memory_space<vmem>>, vector<128x128xf32>
    %cst_102 = arith.constant dense<0.000000e+00> : vector<8x128xf32>
    %274 = tpu.matmul %272, %273, %cst_102 {dimension_numbers = #tpu.dot_dimension_numbers<[1], [0], [0], [1], [0, 0, 1, 1], [], []>} : vector<8x128xf32>, vector<128x128xf32>, vector<8x128xf32> -> vector<8x128xf32>
    %c0_103 = arith.constant 0 : index
    %c0_104 = arith.constant 0 : index
    %275 = vector.load %arg9[%c0_103, %c0_104] : memref<1x128xf32, #tpu.memory_space<vmem>>, vector<1x128xf32>
    %276 = vector.broadcast %275 : vector<1x128xf32> to vector<8x128xf32>
    %277 = arith.addf %274, %276 : vector<8x128xf32>
    %cst_105 = arith.constant dense<0xFF800000> : vector<8xf32>
    %278 = vector.multi_reduction <maximumf>, %277, %cst_105 [1] : vector<8x128xf32> to vector<8xf32>
    %279 = vector.shape_cast %278 : vector<8xf32> to vector<8x1xf32>
    %280 = vector.broadcast %279 : vector<8x1xf32> to vector<8x128xf32>
    %281 = arith.subf %277, %280 : vector<8x128xf32>
    %282 = math.exp %281 : vector<8x128xf32>
    %cst_106 = arith.constant dense<0.000000e+00> : vector<8xf32>
    %283 = vector.multi_reduction <add>, %282, %cst_106 [1] : vector<8x128xf32> to vector<8xf32>
    %284 = vector.shape_cast %283 : vector<8xf32> to vector<8x1xf32>
    %285 = math.log %284 : vector<8x1xf32>
    %286 = vector.broadcast %285 : vector<8x1xf32> to vector<8x128xf32>
    %287 = arith.subf %281, %286 : vector<8x128xf32>
    %c0_107 = arith.constant 0 : index
    %c0_108 = arith.constant 0 : index
    %288 = vector.load %arg10[%c0_107, %c0_108] : memref<8x128xf32, #tpu.memory_space<vmem>>, vector<8x128xf32>
    tpu.vector_store %arg10[%c0_107, %c0_108], %287 {strides = array<i32>} : memref<8x128xf32, #tpu.memory_space<vmem>>, vector<8x128xf32>,
    return
  }
  func.func @transform_0(%arg0: i32) -> (i32, i32, i32) {
    %c0_i32 = arith.constant 0 : i32
    %c0_i32_0 = arith.constant 0 : i32
    %c0_i32_1 = arith.constant 0 : i32
    return %c0_i32, %arg0, %c0_i32_0 : i32, i32, i32
  }
  func.func @transform_1(%arg0: i32) -> (i32, i32) {
    %c0_i32 = arith.constant 0 : i32
    %c0_i32_0 = arith.constant 0 : i32
    %c0_i32_1 = arith.constant 0 : i32
    return %c0_i32, %c0_i32_0 : i32, i32
  }
  func.func @transform_2(%arg0: i32) -> (i32, i32) {
    %c0_i32 = arith.constant 0 : i32
    %c0_i32_0 = arith.constant 0 : i32
    %c0_i32_1 = arith.constant 0 : i32
    return %c0_i32, %c0_i32_0 : i32, i32
  }
  func.func @transform_3(%arg0: i32) -> (i32, i32, i32) {
    %c0_i32 = arith.constant 0 : i32
    %c0_i32_0 = arith.constant 0 : i32
    %c0_i32_1 = arith.constant 0 : i32
    %c0_i32_2 = arith.constant 0 : i32
    return %c0_i32, %c0_i32_0, %c0_i32_1 : i32, i32, i32
  }
  func.func @transform_4(%arg0: i32) -> (i32, i32) {
    %c0_i32 = arith.constant 0 : i32
    %c0_i32_0 = arith.constant 0 : i32
    %c0_i32_1 = arith.constant 0 : i32
    return %c0_i32, %c0_i32_0 : i32, i32
  }
  func.func @transform_5(%arg0: i32) -> (i32, i32, i32) {
    %c0_i32 = arith.constant 0 : i32
    %c0_i32_0 = arith.constant 0 : i32
    %c0_i32_1 = arith.constant 0 : i32
    %c0_i32_2 = arith.constant 0 : i32
    return %c0_i32, %c0_i32_0, %c0_i32_1 : i32, i32, i32
  }
  func.func @transform_6(%arg0: i32) -> (i32, i32) {
    %c0_i32 = arith.constant 0 : i32
    %c0_i32_0 = arith.constant 0 : i32
    %c0_i32_1 = arith.constant 0 : i32
    return %c0_i32, %c0_i32_0 : i32, i32
  }
  func.func @transform_7(%arg0: i32) -> (i32, i32) {
    %c0_i32 = arith.constant 0 : i32
    %c0_i32_0 = arith.constant 0 : i32
    %c0_i32_1 = arith.constant 0 : i32
    return %c0_i32, %c0_i32_0 : i32, i32
  }
  func.func @transform_8(%arg0: i32) -> (i32, i32) {
    %c0_i32 = arith.constant 0 : i32
    %c0_i32_0 = arith.constant 0 : i32
    %c0_i32_1 = arith.constant 0 : i32
    return %c0_i32, %c0_i32_0 : i32, i32
  }
  func.func @transform_9(%arg0: i32) -> (i32, i32) {
    %c0_i32 = arith.constant 0 : i32
    %c0_i32_0 = arith.constant 0 : i32
    return %arg0, %c0_i32 : i32, i32
  }
}

</mosaic_0001>

<llo_original>
// kernel: net_forward.1
$region0: #{net_forward.1}
  #allocation0 [shape = 'u32[]', space=smem, size = 0x4, offset = 0x4, fixed_abs, tag = 'smem constant byte address 0x4 - core index']
  #allocation1 [shape = 'u32[144,128]{1,0:T(1,128)}', space=vmem, size = 0x12000, scoped, tag = 'internal scratch']
  %s0 = inlined_call_operand.vmem [shape: f32[6,8,224], index: 0, kind: input, shape index: {}]
  %s1 = inlined_call_operand.vmem [shape: f32[224,1024], index: 1, kind: input, shape index: {}]
  %s2 = inlined_call_operand.hbm [shape: f32[1,128], index: 2, kind: input, shape index: {}]
  %s3 = inlined_call_operand.hbm [shape: f32[6,128,512], index: 3, kind: input, shape index: {}]
  %s4 = inlined_call_operand.hbm [shape: f32[1,128], index: 4, kind: input, shape index: {}]
  %s5 = inlined_call_operand.hbm [shape: f32[4,128,128], index: 5, kind: input, shape index: {}]
  %s6 = inlined_call_operand.hbm [shape: f32[1,128], index: 6, kind: input, shape index: {}]
  %s7 = inlined_call_operand.hbm [shape: f32[128,128], index: 7, kind: input, shape index: {}]
  %s8 = inlined_call_operand.hbm [shape: f32[1,128], index: 8, kind: input, shape index: {}]
  %s9 = inlined_call_operand.vmem [shape: f32[8,128], index: 9, kind: output, shape index: {}]
  %s10 = sld [smem:[#allocation0]]
  $region74: #{net_forward.1} parent=0
    _
  %s12 = ssub.s32 1, %s10
  %s13 = scalar_select 0, %s12, %s10
  $region1: #{net_forward.1} parent=0
    #allocation2 [shape = 'u8[512]{0}', space=vmem, size = 0x400, scoped, tag = 'input window, operand 2, single buffered']
    #allocation3 [shape = 's32[1]{0}', space=sflag, size = 0x4, scoped, tag = 'scoped memory for net_forward.1']
    #allocation4 [shape = 'u8[1572864]{0}', space=vmem, size = 0x180000, scoped, tag = 'input window, operand 3, single buffered']
    #allocation5 [shape = 's32[1]{0}', space=sflag, size = 0x4, scoped, tag = 'scoped memory for net_forward.1']
    #allocation6 [shape = 'u8[512]{0}', space=vmem, size = 0x400, scoped, tag = 'input window, operand 4, single buffered']
    #allocation7 [shape = 'u8[262144]{0}', space=vmem, size = 0x40000, scoped, tag = 'input window, operand 5, single buffered']
    #allocation8 [shape = 's32[1]{0}', space=sflag, size = 0x4, scoped, tag = 'scoped memory for net_forward.1']
    #allocation9 [shape = 'u8[512]{0}', space=vmem, size = 0x400, scoped, tag = 'input window, operand 6, single buffered']
    #allocation10 [shape = 'u8[65536]{0}', space=vmem, size = 0x10000, scoped, tag = 'input window, operand 7, single buffered']
    #allocation11 [shape = 's32[1]{0}', space=sflag, size = 0x4, scoped, tag = 'scoped memory for net_forward.1']
    #allocation12 [shape = 'u8[512]{0}', space=vmem, size = 0x400, scoped, tag = 'input window, operand 8, single buffered']
    %14 = vsyncpa [#allocation3], 0
    %15 = vsyncpa [#allocation5], 0
    %16 = vsyncpa [#allocation8], 0
    %17 = vsyncpa [#allocation11], 0
    // Predicated region
    $region2: #{net_forward.1} parent=1 // pred_check
      _
    $region3: #{net_forward.1} parent=1 // pred_check_branch
      %19 = sbr.rel (0) target = $region5
    $region4: #{net_forward.1} parent=1 // pred_region
      _
    $region5: #{net_forward.1} parent=1 // pred_fallthru
      _
    // Predicated region
    $region6: #{net_forward.1} parent=1 // pred_check
      _
    $region7: #{net_forward.1} parent=1 // pred_check_branch
      %21 = sbr.rel (0) target = $region9
    $region8: #{net_forward.1} parent=1 // pred_region
      _
    $region9: #{net_forward.1} parent=1 // pred_fallthru
      _
    // Predicated region
    $region10: #{net_forward.1} parent=1 // pred_check
      _
    $region11: #{net_forward.1} parent=1 // pred_check_branch
      %23 = sbr.rel (0) target = $region13
    $region12: #{net_forward.1} parent=1 // pred_region
      %s25 = ssub.s32 16, 16
      %26 = vsyncadd [#allocation3], %s25
      %s28 = sshll.u32 [#allocation2], 4
      %s29 = int_to_ptr.vmem [resolvable:$true] %s28
      %31 = dma.hbm_to_vmem [thread:$0]  %s2, 16, %s29, [#allocation3]
    $region13: #{net_forward.1} parent=1 // pred_fallthru
      _
    // Predicated region
    $region14: #{net_forward.1} parent=1 // pred_check
      _
    $region15: #{net_forward.1} parent=1 // pred_check_branch
      %33 = sbr.rel (0) target = $region17
    $region16: #{net_forward.1} parent=1 // pred_region
      %s35 = ssub.s32 49152, 49152
      %36 = vsyncadd [#allocation5], %s35
      %s37 = sshll.u32 [#allocation4], 4
      %s38 = int_to_ptr.vmem [resolvable:$true] %s37
      %43 = dma.hbm_to_vmem [thread:$0]  %s3, 49152, %s38, [#allocation5], 512, 512, 32
    $region17: #{net_forward.1} parent=1 // pred_fallthru
      _
    // Predicated region
    $region18: #{net_forward.1} parent=1 // pred_check
      _
    $region19: #{net_forward.1} parent=1 // pred_check_branch
      %45 = sbr.rel (0) target = $region21
    $region20: #{net_forward.1} parent=1 // pred_region
      %s47 = ssub.s32 16, 16
      %48 = vsyncadd [#allocation5], %s47
      %s50 = sshll.u32 [#allocation6], 4
      %s51 = int_to_ptr.vmem [resolvable:$true] %s50
      %53 = dma.hbm_to_vmem [thread:$0]  %s4, 16, %s51, [#allocation5]
    $region21: #{net_forward.1} parent=1 // pred_fallthru
      _
    // Predicated region
    $region22: #{net_forward.1} parent=1 // pred_check
      _
    $region23: #{net_forward.1} parent=1 // pred_check_branch
      %55 = sbr.rel (0) target = $region25
    $region24: #{net_forward.1} parent=1 // pred_region
      %s57 = ssub.s32 8192, 8192
      %58 = vsyncadd [#allocation8], %s57
      %s59 = sshll.u32 [#allocation7], 4
      %s60 = int_to_ptr.vmem [resolvable:$true] %s59
      %65 = dma.hbm_to_vmem [thread:$0]  %s5, 8192, %s60, [#allocation8], 128, 128, 8
    $region25: #{net_forward.1} parent=1 // pred_fallthru
      _
    // Predicated region
    $region26: #{net_forward.1} parent=1 // pred_check
      _
    $region27: #{net_forward.1} parent=1 // pred_check_branch
      %67 = sbr.rel (0) target = $region29
    $region28: #{net_forward.1} parent=1 // pred_region
      %s69 = ssub.s32 16, 16
      %70 = vsyncadd [#allocation8], %s69
      %s72 = sshll.u32 [#allocation9], 4
      %s73 = int_to_ptr.vmem [resolvable:$true] %s72
      %75 = dma.hbm_to_vmem [thread:$0]  %s6, 16, %s73, [#allocation8]
    $region29: #{net_forward.1} parent=1 // pred_fallthru
      _
    // Predicated region
    $region30: #{net_forward.1} parent=1 // pred_check
      _
    $region31: #{net_forward.1} parent=1 // pred_check_branch
      %77 = sbr.rel (0) target = $region33
    $region32: #{net_forward.1} parent=1 // pred_region
      %s79 = ssub.s32 2048, 2048
      %80 = vsyncadd [#allocation11], %s79
      %s81 = sshll.u32 [#allocation10], 4
      %s82 = int_to_ptr.vmem [resolvable:$true] %s81
      %87 = dma.hbm_to_vmem [thread:$0]  %s7, 2048, %s82, [#allocation11], 128, 128, 8
    $region33: #{net_forward.1} parent=1 // pred_fallthru
      _
    // Predicated region
    $region34: #{net_forward.1} parent=1 // pred_check
      _
    $region35: #{net_forward.1} parent=1 // pred_check_branch
      %89 = sbr.rel (0) target = $region37
    $region36: #{net_forward.1} parent=1 // pred_region
      %s91 = ssub.s32 16, 16
      %92 = vsyncadd [#allocation11], %s91
      %s94 = sshll.u32 [#allocation12], 4
      %s95 = int_to_ptr.vmem [resolvable:$true] %s94
      %97 = dma.hbm_to_vmem [thread:$0]  %s8, 16, %s95, [#allocation11]
    $region37: #{net_forward.1} parent=1 // pred_fallthru
      _
    // Predicated region
    $region38: #{net_forward.1} parent=1 // pred_check
      _
    $region39: #{net_forward.1} parent=1 // pred_check_branch
      %99 = sbr.rel (0) target = $region41
    $region40: #{net_forward.1} parent=1 // pred_region
      %100 = dma.done [#allocation3], 16
    $region41: #{net_forward.1} parent=1 // pred_fallthru
      _
    // Predicated region
    $region42: #{net_forward.1} parent=1 // pred_check
      _
    $region43: #{net_forward.1} parent=1 // pred_check_branch
      %102 = sbr.rel (0) target = $region45
    $region44: #{net_forward.1} parent=1 // pred_region
      %103 = dma.done [#allocation5], 49152
    $region45: #{net_forward.1} parent=1 // pred_fallthru
      _
    // Predicated region
    $region46: #{net_forward.1} parent=1 // pred_check
      _
    $region47: #{net_forward.1} parent=1 // pred_check_branch
      %105 = sbr.rel (0) target = $region49
    $region48: #{net_forward.1} parent=1 // pred_region
      %106 = dma.done [#allocation5], 16
    $region49: #{net_forward.1} parent=1 // pred_fallthru
      _
    // Predicated region
    $region50: #{net_forward.1} parent=1 // pred_check
      _
    $region51: #{net_forward.1} parent=1 // pred_check_branch
      %108 = sbr.rel (0) target = $region53
    $region52: #{net_forward.1} parent=1 // pred_region
      %109 = dma.done [#allocation8], 8192
    $region53: #{net_forward.1} parent=1 // pred_fallthru
      _
    // Predicated region
    $region54: #{net_forward.1} parent=1 // pred_check
      _
    $region55: #{net_forward.1} parent=1 // pred_check_branch
      %111 = sbr.rel (0) target = $region57
    $region56: #{net_forward.1} parent=1 // pred_region
      %112 = dma.done [#allocation8], 16
    $region57: #{net_forward.1} parent=1 // pred_fallthru
      _
    // Predicated region
    $region58: #{net_forward.1} parent=1 // pred_check
      _
    $region59: #{net_forward.1} parent=1 // pred_check_branch
      %114 = sbr.rel (0) target = $region61
    $region60: #{net_forward.1} parent=1 // pred_region
      %115 = dma.done [#allocation11], 2048
    $region61: #{net_forward.1} parent=1 // pred_fallthru
      _
    // Predicated region
    $region62: #{net_forward.1} parent=1 // pred_check
      _
    $region63: #{net_forward.1} parent=1 // pred_check_branch
      %117 = sbr.rel (0) target = $region65
    $region64: #{net_forward.1} parent=1 // pred_region
      %118 = dma.done [#allocation11], 16
    $region65: #{net_forward.1} parent=1 // pred_fallthru
      _
    %v119 = vld [vmem:[%s1] sm:$0xff]
    %v120 = vld [vmem:[%s1 + $0x8] sm:$0xff]
    %v121 = vld [vmem:[%s1 + $0x10] sm:$0xff]
    %v122 = vld [vmem:[%s1 + $0x18] sm:$0xff]
    %v123 = vld [vmem:[%s1 + $0x20] sm:$0xff]
    %v124 = vld [vmem:[%s1 + $0x28] sm:$0xff]
    %v125 = vld [vmem:[%s1 + $0x30] sm:$0xff]
    %v126 = vld [vmem:[%s1 + $0x38] sm:$0xff]
    %v127 = vld [vmem:[%s1 + $0x40] sm:$0xff]
    %v128 = vld [vmem:[%s1 + $0x48] sm:$0xff]
    %v129 = vld [vmem:[%s1 + $0x50] sm:$0xff]
    %v130 = vld [vmem:[%s1 + $0x58] sm:$0xff]
    %v131 = vld [vmem:[%s1 + $0x60] sm:$0xff]
    %v132 = vld [vmem:[%s1 + $0x68] sm:$0xff]
    %v133 = vld [vmem:[%s1 + $0x70] sm:$0xff]
    %v134 = vld [vmem:[%s1 + $0x78] sm:$0xff]
    %v135 = vld [vmem:[%s1 + $0x80] sm:$0xff]
    %v136 = vld [vmem:[%s1 + $0x88] sm:$0xff]
    %v137 = vld [vmem:[%s1 + $0x90] sm:$0xff]
    %v138 = vld [vmem:[%s1 + $0x98] sm:$0xff]
    %v139 = vld [vmem:[%s1 + $0xa0] sm:$0xff]
    %v140 = vld [vmem:[%s1 + $0xa8] sm:$0xff]
    %v141 = vld [vmem:[%s1 + $0xb0] sm:$0xff]
    %v142 = vld [vmem:[%s1 + $0xb8] sm:$0xff]
    %v143 = vld [vmem:[%s1 + $0xc0] sm:$0xff]
    %v144 = vld [vmem:[%s1 + $0xc8] sm:$0xff]
    %v145 = vld [vmem:[%s1 + $0xd0] sm:$0xff]
    %v146 = vld [vmem:[%s1 + $0xd8] sm:$0xff]
    %v147 = vld [vmem:[%s1 + $0xe0] sm:$0xff]
    %v148 = vld [vmem:[%s1 + $0xe8] sm:$0xff]
    %v149 = vld [vmem:[%s1 + $0xf0] sm:$0xff]
    %v150 = vld [vmem:[%s1 + $0xf8] sm:$0xff]
    %v151 = vld [vmem:[%s1 + $0x100] sm:$0xff]
    %v152 = vld [vmem:[%s1 + $0x108] sm:$0xff]
    %v153 = vld [vmem:[%s1 + $0x110] sm:$0xff]
    %v154 = vld [vmem:[%s1 + $0x118] sm:$0xff]
    %v155 = vld [vmem:[%s1 + $0x120] sm:$0xff]
    %v156 = vld [vmem:[%s1 + $0x128] sm:$0xff]
    %v157 = vld [vmem:[%s1 + $0x130] sm:$0xff]
    %v158 = vld [vmem:[%s1 + $0x138] sm:$0xff]
    %v159 = vld [vmem:[%s1 + $0x140] sm:$0xff]
    %v160 = vld [vmem:[%s1 + $0x148] sm:$0xff]
    %v161 = vld [vmem:[%s1 + $0x150] sm:$0xff]
    %v162 = vld [vmem:[%s1 + $0x158] sm:$0xff]
    %v163 = vld [vmem:[%s1 + $0x160] sm:$0xff]
    %v164 = vld [vmem:[%s1 + $0x168] sm:$0xff]
    %v165 = vld [vmem:[%s1 + $0x170] sm:$0xff]
    %v166 = vld [vmem:[%s1 + $0x178] sm:$0xff]
    %v167 = vld [vmem:[%s1 + $0x180] sm:$0xff]
    %v168 = vld [vmem:[%s1 + $0x188] sm:$0xff]
    %v169 = vld [vmem:[%s1 + $0x190] sm:$0xff]
    %v170 = vld [vmem:[%s1 + $0x198] sm:$0xff]
    %v171 = vld [vmem:[%s1 + $0x1a0] sm:$0xff]
    %v172 = vld [vmem:[%s1 + $0x1a8] sm:$0xff]
    %v173 = vld [vmem:[%s1 + $0x1b0] sm:$0xff]
    %v174 = vld [vmem:[%s1 + $0x1b8] sm:$0xff]
    %v175 = vld [vmem:[%s1 + $0x1c0] sm:$0xff]
    %v176 = vld [vmem:[%s1 + $0x1c8] sm:$0xff]
    %v177 = vld [vmem:[%s1 + $0x1d0] sm:$0xff]
    %v178 = vld [vmem:[%s1 + $0x1d8] sm:$0xff]
    %v179 = vld [vmem:[%s1 + $0x1e0] sm:$0xff]
    %v180 = vld [vmem:[%s1 + $0x1e8] sm:$0xff]
    %v181 = vld [vmem:[%s1 + $0x1f0] sm:$0xff]
    %v182 = vld [vmem:[%s1 + $0x1f8] sm:$0xff]
    %v183 = vld [vmem:[%s1 + $0x200] sm:$0xff]
    %v184 = vld [vmem:[%s1 + $0x208] sm:$0xff]
    %v185 = vld [vmem:[%s1 + $0x210] sm:$0xff]
    %v186 = vld [vmem:[%s1 + $0x218] sm:$0xff]
    %v187 = vld [vmem:[%s1 + $0x220] sm:$0xff]
    %v188 = vld [vmem:[%s1 + $0x228] sm:$0xff]
    %v189 = vld [vmem:[%s1 + $0x230] sm:$0xff]
    %v190 = vld [vmem:[%s1 + $0x238] sm:$0xff]
    %v191 = vld [vmem:[%s1 + $0x240] sm:$0xff]
    %v192 = vld [vmem:[%s1 + $0x248] sm:$0xff]
    %v193 = vld [vmem:[%s1 + $0x250] sm:$0xff]
    %v194 = vld [vmem:[%s1 + $0x258] sm:$0xff]
    %v195 = vld [vmem:[%s1 + $0x260] sm:$0xff]
    %v196 = vld [vmem:[%s1 + $0x268] sm:$0xff]
    %v197 = vld [vmem:[%s1 + $0x270] sm:$0xff]
    %v198 = vld [vmem:[%s1 + $0x278] sm:$0xff]
    %v199 = vld [vmem:[%s1 + $0x280] sm:$0xff]
    %v200 = vld [vmem:[%s1 + $0x288] sm:$0xff]
    %v201 = vld [vmem:[%s1 + $0x290] sm:$0xff]
    %v202 = vld [vmem:[%s1 + $0x298] sm:$0xff]
    %v203 = vld [vmem:[%s1 + $0x2a0] sm:$0xff]
    %v204 = vld [vmem:[%s1 + $0x2a8] sm:$0xff]
    %v205 = vld [vmem:[%s1 + $0x2b0] sm:$0xff]
    %v206 = vld [vmem:[%s1 + $0x2b8] sm:$0xff]
    %v207 = vld [vmem:[%s1 + $0x2c0] sm:$0xff]
    %v208 = vld [vmem:[%s1 + $0x2c8] sm:$0xff]
    %v209 = vld [vmem:[%s1 + $0x2d0] sm:$0xff]
    %v210 = vld [vmem:[%s1 + $0x2d8] sm:$0xff]
    %v211 = vld [vmem:[%s1 + $0x2e0] sm:$0xff]
    %v212 = vld [vmem:[%s1 + $0x2e8] sm:$0xff]
    %v213 = vld [vmem:[%s1 + $0x2f0] sm:$0xff]
    %v214 = vld [vmem:[%s1 + $0x2f8] sm:$0xff]
    %v215 = vld [vmem:[%s1 + $0x300] sm:$0xff]
    %v216 = vld [vmem:[%s1 + $0x308] sm:$0xff]
    %v217 = vld [vmem:[%s1 + $0x310] sm:$0xff]
    %v218 = vld [vmem:[%s1 + $0x318] sm:$0xff]
    %v219 = vld [vmem:[%s1 + $0x320] sm:$0xff]
    %v220 = vld [vmem:[%s1 + $0x328] sm:$0xff]
    %v221 = vld [vmem:[%s1 + $0x330] sm:$0xff]
    %v222 = vld [vmem:[%s1 + $0x338] sm:$0xff]
    %v223 = vld [vmem:[%s1 + $0x340] sm:$0xff]
    %v224 = vld [vmem:[%s1 + $0x348] sm:$0xff]
    %v225 = vld [vmem:[%s1 + $0x350] sm:$0xff]
    %v226 = vld [vmem:[%s1 + $0x358] sm:$0xff]
    %v227 = vld [vmem:[%s1 + $0x360] sm:$0xff]
    %v228 = vld [vmem:[%s1 + $0x368] sm:$0xff]
    %v229 = vld [vmem:[%s1 + $0x370] sm:$0xff]
    %v230 = vld [vmem:[%s1 + $0x378] sm:$0xff]
    %v231 = vld [vmem:[%s1 + $0x380] sm:$0xff]
    %v232 = vld [vmem:[%s1 + $0x388] sm:$0xff]
    %v233 = vld [vmem:[%s1 + $0x390] sm:$0xff]
    %v234 = vld [vmem:[%s1 + $0x398] sm:$0xff]
    %v235 = vld [vmem:[%s1 + $0x3a0] sm:$0xff]
    %v236 = vld [vmem:[%s1 + $0x3a8] sm:$0xff]
    %v237 = vld [vmem:[%s1 + $0x3b0] sm:$0xff]
    %v238 = vld [vmem:[%s1 + $0x3b8] sm:$0xff]
    %v239 = vld [vmem:[%s1 + $0x3c0] sm:$0xff]
    %v240 = vld [vmem:[%s1 + $0x3c8] sm:$0xff]
    %v241 = vld [vmem:[%s1 + $0x3d0] sm:$0xff]
    %v242 = vld [vmem:[%s1 + $0x3d8] sm:$0xff]
    %v243 = vld [vmem:[%s1 + $0x3e0] sm:$0xff]
    %v244 = vld [vmem:[%s1 + $0x3e8] sm:$0xff]
    %v245 = vld [vmem:[%s1 + $0x3f0] sm:$0xff]
    %v246 = vld [vmem:[%s1 + $0x3f8] sm:$0xff]
    %v247 = vld [vmem:[%s1 + $0x400] sm:$0xff]
    %v248 = vld [vmem:[%s1 + $0x408] sm:$0xff]
    %v249 = vld [vmem:[%s1 + $0x410] sm:$0xff]
    %v250 = vld [vmem:[%s1 + $0x418] sm:$0xff]
    %v251 = vld [vmem:[%s1 + $0x420] sm:$0xff]
    %v252 = vld [vmem:[%s1 + $0x428] sm:$0xff]
    %v253 = vld [vmem:[%s1 + $0x430] sm:$0xff]
    %v254 = vld [vmem:[%s1 + $0x438] sm:$0xff]
    %v255 = vld [vmem:[%s1 + $0x440] sm:$0xff]
    %v256 = vld [vmem:[%s1 + $0x448] sm:$0xff]
    %v257 = vld [vmem:[%s1 + $0x450] sm:$0xff]
    %v258 = vld [vmem:[%s1 + $0x458] sm:$0xff]
    %v259 = vld [vmem:[%s1 + $0x460] sm:$0xff]
    %v260 = vld [vmem:[%s1 + $0x468] sm:$0xff]
    %v261 = vld [vmem:[%s1 + $0x470] sm:$0xff]
    %v262 = vld [vmem:[%s1 + $0x478] sm:$0xff]
    %v263 = vld [vmem:[%s1 + $0x480] sm:$0xff]
    %v264 = vld [vmem:[%s1 + $0x488] sm:$0xff]
    %v265 = vld [vmem:[%s1 + $0x490] sm:$0xff]
    %v266 = vld [vmem:[%s1 + $0x498] sm:$0xff]
    %v267 = vld [vmem:[%s1 + $0x4a0] sm:$0xff]
    %v268 = vld [vmem:[%s1 + $0x4a8] sm:$0xff]
    %v269 = vld [vmem:[%s1 + $0x4b0] sm:$0xff]
    %v270 = vld [vmem:[%s1 + $0x4b8] sm:$0xff]
    %v271 = vld [vmem:[%s1 + $0x4c0] sm:$0xff]
    %v272 = vld [vmem:[%s1 + $0x4c8] sm:$0xff]
    %v273 = vld [vmem:[%s1 + $0x4d0] sm:$0xff]
    %v274 = vld [vmem:[%s1 + $0x4d8] sm:$0xff]
    %v275 = vld [vmem:[%s1 + $0x4e0] sm:$0xff]
    %v276 = vld [vmem:[%s1 + $0x4e8] sm:$0xff]
    %v277 = vld [vmem:[%s1 + $0x4f0] sm:$0xff]
    %v278 = vld [vmem:[%s1 + $0x4f8] sm:$0xff]
    %v279 = vld [vmem:[%s1 + $0x500] sm:$0xff]
    %v280 = vld [vmem:[%s1 + $0x508] sm:$0xff]
    %v281 = vld [vmem:[%s1 + $0x510] sm:$0xff]
    %v282 = vld [vmem:[%s1 + $0x518] sm:$0xff]
    %v283 = vld [vmem:[%s1 + $0x520] sm:$0xff]
    %v284 = vld [vmem:[%s1 + $0x528] sm:$0xff]
    %v285 = vld [vmem:[%s1 + $0x530] sm:$0xff]
    %v286 = vld [vmem:[%s1 + $0x538] sm:$0xff]
    %v287 = vld [vmem:[%s1 + $0x540] sm:$0xff]
    %v288 = vld [vmem:[%s1 + $0x548] sm:$0xff]
    %v289 = vld [vmem:[%s1 + $0x550] sm:$0xff]
    %v290 = vld [vmem:[%s1 + $0x558] sm:$0xff]
    %v291 = vld [vmem:[%s1 + $0x560] sm:$0xff]
    %v292 = vld [vmem:[%s1 + $0x568] sm:$0xff]
    %v293 = vld [vmem:[%s1 + $0x570] sm:$0xff]
    %v294 = vld [vmem:[%s1 + $0x578] sm:$0xff]
    %v295 = vld [vmem:[%s1 + $0x580] sm:$0xff]
    %v296 = vld [vmem:[%s1 + $0x588] sm:$0xff]
    %v297 = vld [vmem:[%s1 + $0x590] sm:$0xff]
    %v298 = vld [vmem:[%s1 + $0x598] sm:$0xff]
    %v299 = vld [vmem:[%s1 + $0x5a0] sm:$0xff]
    %v300 = vld [vmem:[%s1 + $0x5a8] sm:$0xff]
    %v301 = vld [vmem:[%s1 + $0x5b0] sm:$0xff]
    %v302 = vld [vmem:[%s1 + $0x5b8] sm:$0xff]
    %v303 = vld [vmem:[%s1 + $0x5c0] sm:$0xff]
    %v304 = vld [vmem:[%s1 + $0x5c8] sm:$0xff]
    %v305 = vld [vmem:[%s1 + $0x5d0] sm:$0xff]
    %v306 = vld [vmem:[%s1 + $0x5d8] sm:$0xff]
    %v307 = vld [vmem:[%s1 + $0x5e0] sm:$0xff]
    %v308 = vld [vmem:[%s1 + $0x5e8] sm:$0xff]
    %v309 = vld [vmem:[%s1 + $0x5f0] sm:$0xff]
    %v310 = vld [vmem:[%s1 + $0x5f8] sm:$0xff]
    %v311 = vld [vmem:[%s1 + $0x600] sm:$0xff]
    %v312 = vld [vmem:[%s1 + $0x608] sm:$0xff]
    %v313 = vld [vmem:[%s1 + $0x610] sm:$0xff]
    %v314 = vld [vmem:[%s1 + $0x618] sm:$0xff]
    %v315 = vld [vmem:[%s1 + $0x620] sm:$0xff]
    %v316 = vld [vmem:[%s1 + $0x628] sm:$0xff]
    %v317 = vld [vmem:[%s1 + $0x630] sm:$0xff]
    %v318 = vld [vmem:[%s1 + $0x638] sm:$0xff]
    %v319 = vld [vmem:[%s1 + $0x640] sm:$0xff]
    %v320 = vld [vmem:[%s1 + $0x648] sm:$0xff]
    %v321 = vld [vmem:[%s1 + $0x650] sm:$0xff]
    %v322 = vld [vmem:[%s1 + $0x658] sm:$0xff]
    %v323 = vld [vmem:[%s1 + $0x660] sm:$0xff]
    %v324 = vld [vmem:[%s1 + $0x668] sm:$0xff]
    %v325 = vld [vmem:[%s1 + $0x670] sm:$0xff]
    %v326 = vld [vmem:[%s1 + $0x678] sm:$0xff]
    %v327 = vld [vmem:[%s1 + $0x680] sm:$0xff]
    %v328 = vld [vmem:[%s1 + $0x688] sm:$0xff]
    %v329 = vld [vmem:[%s1 + $0x690] sm:$0xff]
    %v330 = vld [vmem:[%s1 + $0x698] sm:$0xff]
    %v331 = vld [vmem:[%s1 + $0x6a0] sm:$0xff]
    %v332 = vld [vmem:[%s1 + $0x6a8] sm:$0xff]
    %v333 = vld [vmem:[%s1 + $0x6b0] sm:$0xff]
    %v334 = vld [vmem:[%s1 + $0x6b8] sm:$0xff]
    %v335 = vld [vmem:[%s1 + $0x6c0] sm:$0xff]
    %v336 = vld [vmem:[%s1 + $0x6c8] sm:$0xff]
    %v337 = vld [vmem:[%s1 + $0x6d0] sm:$0xff]
    %v338 = vld [vmem:[%s1 + $0x6d8] sm:$0xff]
    %v339 = vld [vmem:[%s1 + $0x6e0] sm:$0xff]
    %v340 = vld [vmem:[%s1 + $0x6e8] sm:$0xff]
    %v341 = vld [vmem:[%s1 + $0x6f0] sm:$0xff]
    %v342 = vld [vmem:[%s1 + $0x6f8] sm:$0xff]
    %v343 = vld [vmem:[#allocation2] sm:$0x1]
    %v344 = vld [vmem:[#allocation6] sm:$0x1]
    %v345 = vld [vmem:[%s0] sm:$0xff]
    %v346 = vld [vmem:[%s0 + $0x8] sm:$0xff]
    %vm347 = vcmask 785408
    %v349 = vsel %vm347, %v346, 0
    %351 = vmatprep.subr.mxu0 %v120
    %352 = vmatpush1.msra.mxu0 %v119
    %353 = vmatprep.subr.mxu0 %v128
    %354 = vmatpush1.msra.mxu0 %v127
    %355 = vmatprep.subr.mxu0 %v136
    %356 = vmatpush1.msra.mxu0 %v135
    %357 = vmatprep.subr.mxu0 %v144
    %358 = vmatpush1.msra.mxu0 %v143
    %359 = vmatprep.subr.mxu0 %v152
    %360 = vmatpush1.msra.mxu0 %v151
    %361 = vmatprep.subr.mxu0 %v160
    %362 = vmatpush1.msra.mxu0 %v159
    %363 = vmatprep.subr.mxu0 %v168
    %364 = vmatpush1.msra.mxu0 %v167
    %365 = vmatprep.subr.mxu0 %v176
    %366 = vmatpush1.msra.mxu0 %v175
    %367 = vmatprep.subr.mxu0 %v184
    %368 = vmatpush1.msra.mxu0 %v183
    %369 = vmatprep.subr.mxu0 %v192
    %370 = vmatpush1.msra.mxu0 %v191
    %371 = vmatprep.subr.mxu0 %v200
    %372 = vmatpush1.msra.mxu0 %v199
    %373 = vmatprep.subr.mxu0 %v208
    %374 = vmatpush1.msra.mxu0 %v207
    %375 = vmatprep.subr.mxu0 %v216
    %376 = vmatpush1.msra.mxu0 %v215
    %377 = vmatprep.subr.mxu0 %v224
    %378 = vmatpush1.msra.mxu0 %v223
    %379 = vmatprep.subr.mxu0 %v232
    %380 = vmatpush1.msra.mxu0 %v231
    %381 = vmatprep.subr.mxu0 %v240
    %382 = vmatpush1.msra.mxu0 %v239
    %383 = vmatprep.subr.mxu0 %v248
    %384 = vmatpush1.msra.mxu0 %v247
    %385 = vmatprep.subr.mxu0 %v256
    %386 = vmatpush1.msra.mxu0 %v255
    %387 = vmatprep.subr.mxu0 %v264
    %388 = vmatpush1.msra.mxu0 %v263
    %389 = vmatprep.subr.mxu0 %v272
    %390 = vmatpush1.msra.mxu0 %v271
    %391 = vmatprep.subr.mxu0 %v280
    %392 = vmatpush1.msra.mxu0 %v279
    %393 = vmatprep.subr.mxu0 %v288
    %394 = vmatpush1.msra.mxu0 %v287
    %395 = vmatprep.subr.mxu0 %v296
    %396 = vmatpush1.msra.mxu0 %v295
    %397 = vmatprep.subr.mxu0 %v304
    %398 = vmatpush1.msra.mxu0 %v303
    %399 = vmatprep.subr.mxu0 %v312
    %400 = vmatpush1.msra.mxu0 %v311
    %401 = vmatprep.subr.mxu0 %v320
    %402 = vmatpush1.msra.mxu0 %v319
    %403 = vmatprep.subr.mxu0 %v328
    %404 = vmatpush1.msra.mxu0 %v327
    %405 = vmatprep.subr.mxu0 %v336
    %406 = vmatpush1.msra.mxu0 %v335
    %407 = vmatprep.subr.mxu0 0.0
    %408 = vmatpush1.msra.mxu0 0.0
    %409 = vmatprep.subr.mxu0 0.0
    %410 = vmatpush1.msra.mxu0 0.0
    %411 = vmatprep.subr.mxu0 0.0
    %412 = vmatpush1.msra.mxu0 0.0
    %413 = vmatprep.subr.mxu0 0.0
    %414 = vmatpush1.msra.mxu0 0.0
    %415 = vmatprep.mubr.f32.mxu0 %v349
    %416 = vmatmul.mubr.f32.gmra.mrb[0].mxu0 %v345
    %v417 = vpop.f32.mrb[0].mxu0
    %v418 = vadd.f32 0.0, %v417
    %v419 = vpop.f32.mrb[0].mxu0
    %v420 = vadd.f32 0.0, %v419
    %421 = vdwg.mxu0
    %422 = vmatprep.subr.mxu0 %v122
    %423 = vmatpush1.msra.mxu0 %v121
    %424 = vmatprep.subr.mxu0 %v130
    %425 = vmatpush1.msra.mxu0 %v129
    %426 = vmatprep.subr.mxu0 %v138
    %427 = vmatpush1.msra.mxu0 %v137
    %428 = vmatprep.subr.mxu0 %v146
    %429 = vmatpush1.msra.mxu0 %v145
    %430 = vmatprep.subr.mxu0 %v154
    %431 = vmatpush1.msra.mxu0 %v153
    %432 = vmatprep.subr.mxu0 %v162
    %433 = vmatpush1.msra.mxu0 %v161
    %434 = vmatprep.subr.mxu0 %v170
    %435 = vmatpush1.msra.mxu0 %v169
    %436 = vmatprep.subr.mxu0 %v178
    %437 = vmatpush1.msra.mxu0 %v177
    %438 = vmatprep.subr.mxu0 %v186
    %439 = vmatpush1.msra.mxu0 %v185
    %440 = vmatprep.subr.mxu0 %v194
    %441 = vmatpush1.msra.mxu0 %v193
    %442 = vmatprep.subr.mxu0 %v202
    %443 = vmatpush1.msra.mxu0 %v201
    %444 = vmatprep.subr.mxu0 %v210
    %445 = vmatpush1.msra.mxu0 %v209
    %446 = vmatprep.subr.mxu0 %v218
    %447 = vmatpush1.msra.mxu0 %v217
    %448 = vmatprep.subr.mxu0 %v226
    %449 = vmatpush1.msra.mxu0 %v225
    %450 = vmatprep.subr.mxu0 %v234
    %451 = vmatpush1.msra.mxu0 %v233
    %452 = vmatprep.subr.mxu0 %v242
    %453 = vmatpush1.msra.mxu0 %v241
    %454 = vmatprep.subr.mxu0 %v250
    %455 = vmatpush1.msra.mxu0 %v249
    %456 = vmatprep.subr.mxu0 %v258
    %457 = vmatpush1.msra.mxu0 %v257
    %458 = vmatprep.subr.mxu0 %v266
    %459 = vmatpush1.msra.mxu0 %v265
    %460 = vmatprep.subr.mxu0 %v274
    %461 = vmatpush1.msra.mxu0 %v273
    %462 = vmatprep.subr.mxu0 %v282
    %463 = vmatpush1.msra.mxu0 %v281
    %464 = vmatprep.subr.mxu0 %v290
    %465 = vmatpush1.msra.mxu0 %v289
    %466 = vmatprep.subr.mxu0 %v298
    %467 = vmatpush1.msra.mxu0 %v297
    %468 = vmatprep.subr.mxu0 %v306
    %469 = vmatpush1.msra.mxu0 %v305
    %470 = vmatprep.subr.mxu0 %v314
    %471 = vmatpush1.msra.mxu0 %v313
    %472 = vmatprep.subr.mxu0 %v322
    %473 = vmatpush1.msra.mxu0 %v321
    %474 = vmatprep.subr.mxu0 %v330
    %475 = vmatpush1.msra.mxu0 %v329
    %476 = vmatprep.subr.mxu0 %v338
    %477 = vmatpush1.msra.mxu0 %v337
    %478 = vmatprep.subr.mxu0 0.0
    %479 = vmatpush1.msra.mxu0 0.0
    %480 = vmatprep.subr.mxu0 0.0
    %481 = vmatpush1.msra.mxu0 0.0
    %482 = vmatprep.subr.mxu0 0.0
    %483 = vmatpush1.msra.mxu0 0.0
    %484 = vmatprep.subr.mxu0 0.0
    %485 = vmatpush1.msra.mxu0 0.0
    %486 = vmatprep.mubr.f32.mxu0 %v349
    %487 = vmatmul.mubr.f32.gmra.mrb[0].mxu0 %v345
    %v488 = vpop.f32.mrb[0].mxu0
    %v489 = vadd.f32 0.0, %v488
    %v490 = vpop.f32.mrb[0].mxu0
    %v491 = vadd.f32 0.0, %v490
    %492 = vdwg.mxu0
    %493 = vmatprep.subr.mxu0 %v124
    %494 = vmatpush1.msra.mxu0 %v123
    %495 = vmatprep.subr.mxu0 %v132
    %496 = vmatpush1.msra.mxu0 %v131
    %497 = vmatprep.subr.mxu0 %v140
    %498 = vmatpush1.msra.mxu0 %v139
    %499 = vmatprep.subr.mxu0 %v148
    %500 = vmatpush1.msra.mxu0 %v147
    %501 = vmatprep.subr.mxu0 %v156
    %502 = vmatpush1.msra.mxu0 %v155
    %503 = vmatprep.subr.mxu0 %v164
    %504 = vmatpush1.msra.mxu0 %v163
    %505 = vmatprep.subr.mxu0 %v172
    %506 = vmatpush1.msra.mxu0 %v171
    %507 = vmatprep.subr.mxu0 %v180
    %508 = vmatpush1.msra.mxu0 %v179
    %509 = vmatprep.subr.mxu0 %v188
    %510 = vmatpush1.msra.mxu0 %v187
    %511 = vmatprep.subr.mxu0 %v196
    %512 = vmatpush1.msra.mxu0 %v195
    %513 = vmatprep.subr.mxu0 %v204
    %514 = vmatpush1.msra.mxu0 %v203
    %515 = vmatprep.subr.mxu0 %v212
    %516 = vmatpush1.msra.mxu0 %v211
    %517 = vmatprep.subr.mxu0 %v220
    %518 = vmatpush1.msra.mxu0 %v219
    %519 = vmatprep.subr.mxu0 %v228
    %520 = vmatpush1.msra.mxu0 %v227
    %521 = vmatprep.subr.mxu0 %v236
    %522 = vmatpush1.msra.mxu0 %v235
    %523 = vmatprep.subr.mxu0 %v244
    %524 = vmatpush1.msra.mxu0 %v243
    %525 = vmatprep.subr.mxu0 %v252
    %526 = vmatpush1.msra.mxu0 %v251
    %527 = vmatprep.subr.mxu0 %v260
    %528 = vmatpush1.msra.mxu0 %v259
    %529 = vmatprep.subr.mxu0 %v268
    %530 = vmatpush1.msra.mxu0 %v267
    %531 = vmatprep.subr.mxu0 %v276
    %532 = vmatpush1.msra.mxu0 %v275
    %533 = vmatprep.subr.mxu0 %v284
    %534 = vmatpush1.msra.mxu0 %v283
    %535 = vmatprep.subr.mxu0 %v292
    %536 = vmatpush1.msra.mxu0 %v291
    %537 = vmatprep.subr.mxu0 %v300
    %538 = vmatpush1.msra.mxu0 %v299
    %539 = vmatprep.subr.mxu0 %v308
    %540 = vmatpush1.msra.mxu0 %v307
    %541 = vmatprep.subr.mxu0 %v316
    %542 = vmatpush1.msra.mxu0 %v315
    %543 = vmatprep.subr.mxu0 %v324
    %544 = vmatpush1.msra.mxu0 %v323
    %545 = vmatprep.subr.mxu0 %v332
    %546 = vmatpush1.msra.mxu0 %v331
    %547 = vmatprep.subr.mxu0 %v340
    %548 = vmatpush1.msra.mxu0 %v339
    %549 = vmatprep.subr.mxu0 0.0
    %550 = vmatpush1.msra.mxu0 0.0
    %551 = vmatprep.subr.mxu0 0.0
    %552 = vmatpush1.msra.mxu0 0.0
    %553 = vmatprep.subr.mxu0 0.0
    %554 = vmatpush1.msra.mxu0 0.0
    %555 = vmatprep.subr.mxu0 0.0
    %556 = vmatpush1.msra.mxu0 0.0
    %557 = vmatprep.mubr.f32.mxu0 %v349
    %558 = vmatmul.mubr.f32.gmra.mrb[0].mxu0 %v345
    %v559 = vpop.f32.mrb[0].mxu0
    %v560 = vadd.f32 0.0, %v559
    %v561 = vpop.f32.mrb[0].mxu0
    %v562 = vadd.f32 0.0, %v561
    %563 = vdwg.mxu0
    %564 = vmatprep.subr.mxu0 %v126
    %565 = vmatpush1.msra.mxu0 %v125
    %566 = vmatprep.subr.mxu0 %v134
    %567 = vmatpush1.msra.mxu0 %v133
    %568 = vmatprep.subr.mxu0 %v142
    %569 = vmatpush1.msra.mxu0 %v141
    %570 = vmatprep.subr.mxu0 %v150
    %571 = vmatpush1.msra.mxu0 %v149
    %572 = vmatprep.subr.mxu0 %v158
    %573 = vmatpush1.msra.mxu0 %v157
    %574 = vmatprep.subr.mxu0 %v166
    %575 = vmatpush1.msra.mxu0 %v165
    %576 = vmatprep.subr.mxu0 %v174
    %577 = vmatpush1.msra.mxu0 %v173
    %578 = vmatprep.subr.mxu0 %v182
    %579 = vmatpush1.msra.mxu0 %v181
    %580 = vmatprep.subr.mxu0 %v190
    %581 = vmatpush1.msra.mxu0 %v189
    %582 = vmatprep.subr.mxu0 %v198
    %583 = vmatpush1.msra.mxu0 %v197
    %584 = vmatprep.subr.mxu0 %v206
    %585 = vmatpush1.msra.mxu0 %v205
    %586 = vmatprep.subr.mxu0 %v214
    %587 = vmatpush1.msra.mxu0 %v213
    %588 = vmatprep.subr.mxu0 %v222
    %589 = vmatpush1.msra.mxu0 %v221
    %590 = vmatprep.subr.mxu0 %v230
    %591 = vmatpush1.msra.mxu0 %v229
    %592 = vmatprep.subr.mxu0 %v238
    %593 = vmatpush1.msra.mxu0 %v237
    %594 = vmatprep.subr.mxu0 %v246
    %595 = vmatpush1.msra.mxu0 %v245
    %596 = vmatprep.subr.mxu0 %v254
    %597 = vmatpush1.msra.mxu0 %v253
    %598 = vmatprep.subr.mxu0 %v262
    %599 = vmatpush1.msra.mxu0 %v261
    %600 = vmatprep.subr.mxu0 %v270
    %601 = vmatpush1.msra.mxu0 %v269
    %602 = vmatprep.subr.mxu0 %v278
    %603 = vmatpush1.msra.mxu0 %v277
    %604 = vmatprep.subr.mxu0 %v286
    %605 = vmatpush1.msra.mxu0 %v285
    %606 = vmatprep.subr.mxu0 %v294
    %607 = vmatpush1.msra.mxu0 %v293
    %608 = vmatprep.subr.mxu0 %v302
    %609 = vmatpush1.msra.mxu0 %v301
    %610 = vmatprep.subr.mxu0 %v310
    %611 = vmatpush1.msra.mxu0 %v309
    %612 = vmatprep.subr.mxu0 %v318
    %613 = vmatpush1.msra.mxu0 %v317
    %614 = vmatprep.subr.mxu0 %v326
    %615 = vmatpush1.msra.mxu0 %v325
    %616 = vmatprep.subr.mxu0 %v334
    %617 = vmatpush1.msra.mxu0 %v333
    %618 = vmatprep.subr.mxu0 %v342
    %619 = vmatpush1.msra.mxu0 %v341
    %620 = vmatprep.subr.mxu0 0.0
    %621 = vmatpush1.msra.mxu0 0.0
    %622 = vmatprep.subr.mxu0 0.0
    %623 = vmatpush1.msra.mxu0 0.0
    %624 = vmatprep.subr.mxu0 0.0
    %625 = vmatpush1.msra.mxu0 0.0
    %626 = vmatprep.subr.mxu0 0.0
    %627 = vmatpush1.msra.mxu0 0.0
    %628 = vmatprep.mubr.f32.mxu0 %v349
    %629 = vmatmul.mubr.f32.gmra.mrb[0].mxu0 %v345
    %v630 = vpop.f32.mrb[0].mxu0
    %v631 = vadd.f32 0.0, %v630
    %v632 = vpop.f32.mrb[0].mxu0
    %v633 = vadd.f32 0.0, %v632
    %634 = vdwg.mxu0
    %v635 = vmax.f32 %v418, %v420
    %v636 = vmax.f32 %v635, %v489
    %v637 = vmax.f32 %v636, %v491
    %v639 = vlaneseq
    %v640 = vshrl.u32 %v639, 7
    %v641 = vsub.s32 0, %v640
    %v642 = vrot.slane %v343, %v641
    %v644 = vadd.f32 %v637, %v642
    %v645 = vmax.f32 %v644, 0.0
    %v646 = vmax.f32 %v560, %v562
    %v647 = vmax.f32 %v646, %v631
    %v648 = vmax.f32 %v647, %v633
    %v649 = vadd.f32 %v648, %v642
    %v650 = vmax.f32 %v649, 0.0
    %s651 = scalar_lea.vmem %s0, 16
    %v652 = vld [vmem:[%s651] sm:$0xff]
    %v653 = vld [vmem:[%s651 + $0x8] sm:$0xff]
    %v655 = vsel %vm347, %v653, 0
    %657 = vmatprep.subr.mxu0 %v120
    %658 = vmatpush1.msra.mxu0 %v119
    %659 = vmatprep.subr.mxu0 %v128
    %660 = vmatpush1.msra.mxu0 %v127
    %661 = vmatprep.subr.mxu0 %v136
    %662 = vmatpush1.msra.mxu0 %v135
    %663 = vmatprep.subr.mxu0 %v144
    %664 = vmatpush1.msra.mxu0 %v143
    %665 = vmatprep.subr.mxu0 %v152
    %666 = vmatpush1.msra.mxu0 %v151
    %667 = vmatprep.subr.mxu0 %v160
    %668 = vmatpush1.msra.mxu0 %v159
    %669 = vmatprep.subr.mxu0 %v168
    %670 = vmatpush1.msra.mxu0 %v167
    %671 = vmatprep.subr.mxu0 %v176
    %672 = vmatpush1.msra.mxu0 %v175
    %673 = vmatprep.subr.mxu0 %v184
    %674 = vmatpush1.msra.mxu0 %v183
    %675 = vmatprep.subr.mxu0 %v192
    %676 = vmatpush1.msra.mxu0 %v191
    %677 = vmatprep.subr.mxu0 %v200
    %678 = vmatpush1.msra.mxu0 %v199
    %679 = vmatprep.subr.mxu0 %v208
    %680 = vmatpush1.msra.mxu0 %v207
    %681 = vmatprep.subr.mxu0 %v216
    %682 = vmatpush1.msra.mxu0 %v215
    %683 = vmatprep.subr.mxu0 %v224
    %684 = vmatpush1.msra.mxu0 %v223
    %685 = vmatprep.subr.mxu0 %v232
    %686 = vmatpush1.msra.mxu0 %v231
    %687 = vmatprep.subr.mxu0 %v240
    %688 = vmatpush1.msra.mxu0 %v239
    %689 = vmatprep.subr.mxu0 %v248
    %690 = vmatpush1.msra.mxu0 %v247
    %691 = vmatprep.subr.mxu0 %v256
    %692 = vmatpush1.msra.mxu0 %v255
    %693 = vmatprep.subr.mxu0 %v264
    %694 = vmatpush1.msra.mxu0 %v263
    %695 = vmatprep.subr.mxu0 %v272
    %696 = vmatpush1.msra.mxu0 %v271
    %697 = vmatprep.subr.mxu0 %v280
    %698 = vmatpush1.msra.mxu0 %v279
    %699 = vmatprep.subr.mxu0 %v288
    %700 = vmatpush1.msra.mxu0 %v287
    %701 = vmatprep.subr.mxu0 %v296
    %702 = vmatpush1.msra.mxu0 %v295
    %703 = vmatprep.subr.mxu0 %v304
    %704 = vmatpush1.msra.mxu0 %v303
    %705 = vmatprep.subr.mxu0 %v312
    %706 = vmatpush1.msra.mxu0 %v311
    %707 = vmatprep.subr.mxu0 %v320
    %708 = vmatpush1.msra.mxu0 %v319
    %709 = vmatprep.subr.mxu0 %v328
    %710 = vmatpush1.msra.mxu0 %v327
    %711 = vmatprep.subr.mxu0 %v336
    %712 = vmatpush1.msra.mxu0 %v335
    %713 = vmatprep.subr.mxu0 0.0
    %714 = vmatpush1.msra.mxu0 0.0
    %715 = vmatprep.subr.mxu0 0.0
    %716 = vmatpush1.msra.mxu0 0.0
    %717 = vmatprep.subr.mxu0 0.0
    %718 = vmatpush1.msra.mxu0 0.0
    %719 = vmatprep.subr.mxu0 0.0
    %720 = vmatpush1.msra.mxu0 0.0
    %721 = vmatprep.mubr.f32.mxu0 %v655
    %722 = vmatmul.mubr.f32.gmra.mrb[0].mxu0 %v652
    %v723 = vpop.f32.mrb[0].mxu0
    %v724 = vadd.f32 0.0, %v723
    %v725 = vpop.f32.mrb[0].mxu0
    %v726 = vadd.f32 0.0, %v725
    %727 = vdwg.mxu0
    %728 = vmatprep.subr.mxu0 %v122
    %729 = vmatpush1.msra.mxu0 %v121
    %730 = vmatprep.subr.mxu0 %v130
    %731 = vmatpush1.msra.mxu0 %v129
    %732 = vmatprep.subr.mxu0 %v138
    %733 = vmatpush1.msra.mxu0 %v137
    %734 = vmatprep.subr.mxu0 %v146
    %735 = vmatpush1.msra.mxu0 %v145
    %736 = vmatprep.subr.mxu0 %v154
    %737 = vmatpush1.msra.mxu0 %v153
    %738 = vmatprep.subr.mxu0 %v162
    %739 = vmatpush1.msra.mxu0 %v161
    %740 = vmatprep.subr.mxu0 %v170
    %741 = vmatpush1.msra.mxu0 %v169
    %742 = vmatprep.subr.mxu0 %v178
    %743 = vmatpush1.msra.mxu0 %v177
    %744 = vmatprep.subr.mxu0 %v186
    %745 = vmatpush1.msra.mxu0 %v185
    %746 = vmatprep.subr.mxu0 %v194
    %747 = vmatpush1.msra.mxu0 %v193
    %748 = vmatprep.subr.mxu0 %v202
    %749 = vmatpush1.msra.mxu0 %v201
    %750 = vmatprep.subr.mxu0 %v210
    %751 = vmatpush1.msra.mxu0 %v209
    %752 = vmatprep.subr.mxu0 %v218
    %753 = vmatpush1.msra.mxu0 %v217
    %754 = vmatprep.subr.mxu0 %v226
    %755 = vmatpush1.msra.mxu0 %v225
    %756 = vmatprep.subr.mxu0 %v234
    %757 = vmatpush1.msra.mxu0 %v233
    %758 = vmatprep.subr.mxu0 %v242
    %759 = vmatpush1.msra.mxu0 %v241
    %760 = vmatprep.subr.mxu0 %v250
    %761 = vmatpush1.msra.mxu0 %v249
    %762 = vmatprep.subr.mxu0 %v258
    %763 = vmatpush1.msra.mxu0 %v257
    %764 = vmatprep.subr.mxu0 %v266
    %765 = vmatpush1.msra.mxu0 %v265
    %766 = vmatprep.subr.mxu0 %v274
    %767 = vmatpush1.msra.mxu0 %v273
    %768 = vmatprep.subr.mxu0 %v282
    %769 = vmatpush1.msra.mxu0 %v281
    %770 = vmatprep.subr.mxu0 %v290
    %771 = vmatpush1.msra.mxu0 %v289
    %772 = vmatprep.subr.mxu0 %v298
    %773 = vmatpush1.msra.mxu0 %v297
    %774 = vmatprep.subr.mxu0 %v306
    %775 = vmatpush1.msra.mxu0 %v305
    %776 = vmatprep.subr.mxu0 %v314
    %777 = vmatpush1.msra.mxu0 %v313
    %778 = vmatprep.subr.mxu0 %v322
    %779 = vmatpush1.msra.mxu0 %v321
    %780 = vmatprep.subr.mxu0 %v330
    %781 = vmatpush1.msra.mxu0 %v329
    %782 = vmatprep.subr.mxu0 %v338
    %783 = vmatpush1.msra.mxu0 %v337
    %784 = vmatprep.subr.mxu0 0.0
    %785 = vmatpush1.msra.mxu0 0.0
    %786 = vmatprep.subr.mxu0 0.0
    %787 = vmatpush1.msra.mxu0 0.0
    %788 = vmatprep.subr.mxu0 0.0
    %789 = vmatpush1.msra.mxu0 0.0
    %790 = vmatprep.subr.mxu0 0.0
    %791 = vmatpush1.msra.mxu0 0.0
    %792 = vmatprep.mubr.f32.mxu0 %v655
    %793 = vmatmul.mubr.f32.gmra.mrb[0].mxu0 %v652
    %v794 = vpop.f32.mrb[0].mxu0
    %v795 = vadd.f32 0.0, %v794
    %v796 = vpop.f32.mrb[0].mxu0
    %v797 = vadd.f32 0.0, %v796
    %798 = vdwg.mxu0
    %799 = vmatprep.subr.mxu0 %v124
    %800 = vmatpush1.msra.mxu0 %v123
    %801 = vmatprep.subr.mxu0 %v132
    %802 = vmatpush1.msra.mxu0 %v131
    %803 = vmatprep.subr.mxu0 %v140
    %804 = vmatpush1.msra.mxu0 %v139
    %805 = vmatprep.subr.mxu0 %v148
    %806 = vmatpush1.msra.mxu0 %v147
    %807 = vmatprep.subr.mxu0 %v156
    %808 = vmatpush1.msra.mxu0 %v155
    %809 = vmatprep.subr.mxu0 %v164
    %810 = vmatpush1.msra.mxu0 %v163
    %811 = vmatprep.subr.mxu0 %v172
    %812 = vmatpush1.msra.mxu0 %v171
    %813 = vmatprep.subr.mxu0 %v180
    %814 = vmatpush1.msra.mxu0 %v179
    %815 = vmatprep.subr.mxu0 %v188
    %816 = vmatpush1.msra.mxu0 %v187
    %817 = vmatprep.subr.mxu0 %v196
    %818 = vmatpush1.msra.mxu0 %v195
    %819 = vmatprep.subr.mxu0 %v204
    %820 = vmatpush1.msra.mxu0 %v203
    %821 = vmatprep.subr.mxu0 %v212
    %822 = vmatpush1.msra.mxu0 %v211
    %823 = vmatprep.subr.mxu0 %v220
    %824 = vmatpush1.msra.mxu0 %v219
    %825 = vmatprep.subr.mxu0 %v228
    %826 = vmatpush1.msra.mxu0 %v227
    %827 = vmatprep.subr.mxu0 %v236
    %828 = vmatpush1.msra.mxu0 %v235
    %829 = vmatprep.subr.mxu0 %v244
    %830 = vmatpush1.msra.mxu0 %v243
    %831 = vmatprep.subr.mxu0 %v252
    %832 = vmatpush1.msra.mxu0 %v251
    %833 = vmatprep.subr.mxu0 %v260
    %834 = vmatpush1.msra.mxu0 %v259
    %835 = vmatprep.subr.mxu0 %v268
    %836 = vmatpush1.msra.mxu0 %v267
    %837 = vmatprep.subr.mxu0 %v276
    %838 = vmatpush1.msra.mxu0 %v275
    %839 = vmatprep.subr.mxu0 %v284
    %840 = vmatpush1.msra.mxu0 %v283
    %841 = vmatprep.subr.mxu0 %v292
    %842 = vmatpush1.msra.mxu0 %v291
    %843 = vmatprep.subr.mxu0 %v300
    %844 = vmatpush1.msra.mxu0 %v299
    %845 = vmatprep.subr.mxu0 %v308
    %846 = vmatpush1.msra.mxu0 %v307
    %847 = vmatprep.subr.mxu0 %v316
    %848 = vmatpush1.msra.mxu0 %v315
    %849 = vmatprep.subr.mxu0 %v324
    %850 = vmatpush1.msra.mxu0 %v323
    %851 = vmatprep.subr.mxu0 %v332
    %852 = vmatpush1.msra.mxu0 %v331
    %853 = vmatprep.subr.mxu0 %v340
    %854 = vmatpush1.msra.mxu0 %v339
    %855 = vmatprep.subr.mxu0 0.0
    %856 = vmatpush1.msra.mxu0 0.0
    %857 = vmatprep.subr.mxu0 0.0
    %858 = vmatpush1.msra.mxu0 0.0
    %859 = vmatprep.subr.mxu0 0.0
    %860 = vmatpush1.msra.mxu0 0.0
    %861 = vmatprep.subr.mxu0 0.0
    %862 = vmatpush1.msra.mxu0 0.0
    %863 = vmatprep.mubr.f32.mxu0 %v655
    %864 = vmatmul.mubr.f32.gmra.mrb[0].mxu0 %v652
    %v865 = vpop.f32.mrb[0].mxu0
    %v866 = vadd.f32 0.0, %v865
    %v867 = vpop.f32.mrb[0].mxu0
    %v868 = vadd.f32 0.0, %v867
    %869 = vdwg.mxu0
    %870 = vmatprep.subr.mxu0 %v126
    %871 = vmatpush1.msra.mxu0 %v125
    %872 = vmatprep.subr.mxu0 %v134
    %873 = vmatpush1.msra.mxu0 %v133
    %874 = vmatprep.subr.mxu0 %v142
    %875 = vmatpush1.msra.mxu0 %v141
    %876 = vmatprep.subr.mxu0 %v150
    %877 = vmatpush1.msra.mxu0 %v149
    %878 = vmatprep.subr.mxu0 %v158
    %879 = vmatpush1.msra.mxu0 %v157
    %880 = vmatprep.subr.mxu0 %v166
    %881 = vmatpush1.msra.mxu0 %v165
    %882 = vmatprep.subr.mxu0 %v174
    %883 = vmatpush1.msra.mxu0 %v173
    %884 = vmatprep.subr.mxu0 %v182
    %885 = vmatpush1.msra.mxu0 %v181
    %886 = vmatprep.subr.mxu0 %v190
    %887 = vmatpush1.msra.mxu0 %v189
    %888 = vmatprep.subr.mxu0 %v198
    %889 = vmatpush1.msra.mxu0 %v197
    %890 = vmatprep.subr.mxu0 %v206
    %891 = vmatpush1.msra.mxu0 %v205
    %892 = vmatprep.subr.mxu0 %v214
    %893 = vmatpush1.msra.mxu0 %v213
    %894 = vmatprep.subr.mxu0 %v222
    %895 = vmatpush1.msra.mxu0 %v221
    %896 = vmatprep.subr.mxu0 %v230
    %897 = vmatpush1.msra.mxu0 %v229
    %898 = vmatprep.subr.mxu0 %v238
    %899 = vmatpush1.msra.mxu0 %v237
    %900 = vmatprep.subr.mxu0 %v246
    %901 = vmatpush1.msra.mxu0 %v245
    %902 = vmatprep.subr.mxu0 %v254
    %903 = vmatpush1.msra.mxu0 %v253
    %904 = vmatprep.subr.mxu0 %v262
    %905 = vmatpush1.msra.mxu0 %v261
    %906 = vmatprep.subr.mxu0 %v270
    %907 = vmatpush1.msra.mxu0 %v269
    %908 = vmatprep.subr.mxu0 %v278
    %909 = vmatpush1.msra.mxu0 %v277
    %910 = vmatprep.subr.mxu0 %v286
    %911 = vmatpush1.msra.mxu0 %v285
    %912 = vmatprep.subr.mxu0 %v294
    %913 = vmatpush1.msra.mxu0 %v293
    %914 = vmatprep.subr.mxu0 %v302
    %915 = vmatpush1.msra.mxu0 %v301
    %916 = vmatprep.subr.mxu0 %v310
    %917 = vmatpush1.msra.mxu0 %v309
    %918 = vmatprep.subr.mxu0 %v318
    %919 = vmatpush1.msra.mxu0 %v317
    %920 = vmatprep.subr.mxu0 %v326
    %921 = vmatpush1.msra.mxu0 %v325
    %922 = vmatprep.subr.mxu0 %v334
    %923 = vmatpush1.msra.mxu0 %v333
    %924 = vmatprep.subr.mxu0 %v342
    %925 = vmatpush1.msra.mxu0 %v341
    %926 = vmatprep.subr.mxu0 0.0
    %927 = vmatpush1.msra.mxu0 0.0
    %928 = vmatprep.subr.mxu0 0.0
    %929 = vmatpush1.msra.mxu0 0.0
    %930 = vmatprep.subr.mxu0 0.0
    %931 = vmatpush1.msra.mxu0 0.0
    %932 = vmatprep.subr.mxu0 0.0
    %933 = vmatpush1.msra.mxu0 0.0
    %934 = vmatprep.mubr.f32.mxu0 %v655
    %935 = vmatmul.mubr.f32.gmra.mrb[0].mxu0 %v652
    %v936 = vpop.f32.mrb[0].mxu0
    %v937 = vadd.f32 0.0, %v936
    %v938 = vpop.f32.mrb[0].mxu0
    %v939 = vadd.f32 0.0, %v938
    %940 = vdwg.mxu0
    %v941 = vmax.f32 %v724, %v726
    %v942 = vmax.f32 %v941, %v795
    %v943 = vmax.f32 %v942, %v797
    %v944 = vadd.f32 %v943, %v642
    %v945 = vmax.f32 %v944, 0.0
    %v946 = vmax.f32 %v866, %v868
    %v947 = vmax.f32 %v946, %v937
    %v948 = vmax.f32 %v947, %v939
    %v949 = vadd.f32 %v948, %v642
    %v950 = vmax.f32 %v949, 0.0
    %s951 = scalar_lea.vmem %s0, 32
    %v952 = vld [vmem:[%s951] sm:$0xff]
    %v953 = vld [vmem:[%s951 + $0x8] sm:$0xff]
    %v955 = vsel %vm347, %v953, 0
    %957 = vmatprep.subr.mxu0 %v120
    %958 = vmatpush1.msra.mxu0 %v119
    %959 = vmatprep.subr.mxu0 %v128
    %960 = vmatpush1.msra.mxu0 %v127
    %961 = vmatprep.subr.mxu0 %v136
    %962 = vmatpush1.msra.mxu0 %v135
    %963 = vmatprep.subr.mxu0 %v144
    %964 = vmatpush1.msra.mxu0 %v143
    %965 = vmatprep.subr.mxu0 %v152
    %966 = vmatpush1.msra.mxu0 %v151
    %967 = vmatprep.subr.mxu0 %v160
    %968 = vmatpush1.msra.mxu0 %v159
    %969 = vmatprep.subr.mxu0 %v168
    %970 = vmatpush1.msra.mxu0 %v167
    %971 = vmatprep.subr.mxu0 %v176
    %972 = vmatpush1.msra.mxu0 %v175
    %973 = vmatprep.subr.mxu0 %v184
    %974 = vmatpush1.msra.mxu0 %v183
    %975 = vmatprep.subr.mxu0 %v192
    %976 = vmatpush1.msra.mxu0 %v191
    %977 = vmatprep.subr.mxu0 %v200
    %978 = vmatpush1.msra.mxu0 %v199
    %979 = vmatprep.subr.mxu0 %v208
    %980 = vmatpush1.msra.mxu0 %v207
    %981 = vmatprep.subr.mxu0 %v216
    %982 = vmatpush1.msra.mxu0 %v215
    %983 = vmatprep.subr.mxu0 %v224
    %984 = vmatpush1.msra.mxu0 %v223
    %985 = vmatprep.subr.mxu0 %v232
    %986 = vmatpush1.msra.mxu0 %v231
    %987 = vmatprep.subr.mxu0 %v240
    %988 = vmatpush1.msra.mxu0 %v239
    %989 = vmatprep.subr.mxu0 %v248
    %990 = vmatpush1.msra.mxu0 %v247
    %991 = vmatprep.subr.mxu0 %v256
    %992 = vmatpush1.msra.mxu0 %v255
    %993 = vmatprep.subr.mxu0 %v264
    %994 = vmatpush1.msra.mxu0 %v263
    %995 = vmatprep.subr.mxu0 %v272
    %996 = vmatpush1.msra.mxu0 %v271
    %997 = vmatprep.subr.mxu0 %v280
    %998 = vmatpush1.msra.mxu0 %v279
    %999 = vmatprep.subr.mxu0 %v288
    %1000 = vmatpush1.msra.mxu0 %v287
    %1001 = vmatprep.subr.mxu0 %v296
    %1002 = vmatpush1.msra.mxu0 %v295
    %1003 = vmatprep.subr.mxu0 %v304
    %1004 = vmatpush1.msra.mxu0 %v303
    %1005 = vmatprep.subr.mxu0 %v312
    %1006 = vmatpush1.msra.mxu0 %v311
    %1007 = vmatprep.subr.mxu0 %v320
    %1008 = vmatpush1.msra.mxu0 %v319
    %1009 = vmatprep.subr.mxu0 %v328
    %1010 = vmatpush1.msra.mxu0 %v327
    %1011 = vmatprep.subr.mxu0 %v336
    %1012 = vmatpush1.msra.mxu0 %v335
    %1013 = vmatprep.subr.mxu0 0.0
    %1014 = vmatpush1.msra.mxu0 0.0
    %1015 = vmatprep.subr.mxu0 0.0
    %1016 = vmatpush1.msra.mxu0 0.0
    %1017 = vmatprep.subr.mxu0 0.0
    %1018 = vmatpush1.msra.mxu0 0.0
    %1019 = vmatprep.subr.mxu0 0.0
    %1020 = vmatpush1.msra.mxu0 0.0
    %1021 = vmatprep.mubr.f32.mxu0 %v955
    %1022 = vmatmul.mubr.f32.gmra.mrb[0].mxu0 %v952
    %v1023 = vpop.f32.mrb[0].mxu0
    %v1024 = vadd.f32 0.0, %v1023
    %v1025 = vpop.f32.mrb[0].mxu0
    %v1026 = vadd.f32 0.0, %v1025
    %1027 = vdwg.mxu0
    %1028 = vmatprep.subr.mxu0 %v122
    %1029 = vmatpush1.msra.mxu0 %v121
    %1030 = vmatprep.subr.mxu0 %v130
    %1031 = vmatpush1.msra.mxu0 %v129
    %1032 = vmatprep.subr.mxu0 %v138
    %1033 = vmatpush1.msra.mxu0 %v137
    %1034 = vmatprep.subr.mxu0 %v146
    %1035 = vmatpush1.msra.mxu0 %v145
    %1036 = vmatprep.subr.mxu0 %v154
    %1037 = vmatpush1.msra.mxu0 %v153
    %1038 = vmatprep.subr.mxu0 %v162
    %1039 = vmatpush1.msra.mxu0 %v161
    %1040 = vmatprep.subr.mxu0 %v170
    %1041 = vmatpush1.msra.mxu0 %v169
    %1042 = vmatprep.subr.mxu0 %v178
    %1043 = vmatpush1.msra.mxu0 %v177
    %1044 = vmatprep.subr.mxu0 %v186
    %1045 = vmatpush1.msra.mxu0 %v185
    %1046 = vmatprep.subr.mxu0 %v194
    %1047 = vmatpush1.msra.mxu0 %v193
    %1048 = vmatprep.subr.mxu0 %v202
    %1049 = vmatpush1.msra.mxu0 %v201
    %1050 = vmatprep.subr.mxu0 %v210
    %1051 = vmatpush1.msra.mxu0 %v209
    %1052 = vmatprep.subr.mxu0 %v218
    %1053 = vmatpush1.msra.mxu0 %v217
    %1054 = vmatprep.subr.mxu0 %v226
    %1055 = vmatpush1.msra.mxu0 %v225
    %1056 = vmatprep.subr.mxu0 %v234
    %1057 = vmatpush1.msra.mxu0 %v233
    %1058 = vmatprep.subr.mxu0 %v242
    %1059 = vmatpush1.msra.mxu0 %v241
    %1060 = vmatprep.subr.mxu0 %v250
    %1061 = vmatpush1.msra.mxu0 %v249
    %1062 = vmatprep.subr.mxu0 %v258
    %1063 = vmatpush1.msra.mxu0 %v257
    %1064 = vmatprep.subr.mxu0 %v266
    %1065 = vmatpush1.msra.mxu0 %v265
    %1066 = vmatprep.subr.mxu0 %v274
    %1067 = vmatpush1.msra.mxu0 %v273
    %1068 = vmatprep.subr.mxu0 %v282
    %1069 = vmatpush1.msra.mxu0 %v281
    %1070 = vmatprep.subr.mxu0 %v290
    %1071 = vmatpush1.msra.mxu0 %v289
    %1072 = vmatprep.subr.mxu0 %v298
    %1073 = vmatpush1.msra.mxu0 %v297
    %1074 = vmatprep.subr.mxu0 %v306
    %1075 = vmatpush1.msra.mxu0 %v305
    %1076 = vmatprep.subr.mxu0 %v314
    %1077 = vmatpush1.msra.mxu0 %v313
    %1078 = vmatprep.subr.mxu0 %v322
    %1079 = vmatpush1.msra.mxu0 %v321
    %1080 = vmatprep.subr.mxu0 %v330
    %1081 = vmatpush1.msra.mxu0 %v329
    %1082 = vmatprep.subr.mxu0 %v338
    %1083 = vmatpush1.msra.mxu0 %v337
    %1084 = vmatprep.subr.mxu0 0.0
    %1085 = vmatpush1.msra.mxu0 0.0
    %1086 = vmatprep.subr.mxu0 0.0
    %1087 = vmatpush1.msra.mxu0 0.0
    %1088 = vmatprep.subr.mxu0 0.0
    %1089 = vmatpush1.msra.mxu0 0.0
    %1090 = vmatprep.subr.mxu0 0.0
    %1091 = vmatpush1.msra.mxu0 0.0
    %1092 = vmatprep.mubr.f32.mxu0 %v955
    %1093 = vmatmul.mubr.f32.gmra.mrb[0].mxu0 %v952
    %v1094 = vpop.f32.mrb[0].mxu0
    %v1095 = vadd.f32 0.0, %v1094
    %v1096 = vpop.f32.mrb[0].mxu0
    %v1097 = vadd.f32 0.0, %v1096
    %1098 = vdwg.mxu0
    %1099 = vmatprep.subr.mxu0 %v124
    %1100 = vmatpush1.msra.mxu0 %v123
    %1101 = vmatprep.subr.mxu0 %v132
    %1102 = vmatpush1.msra.mxu0 %v131
    %1103 = vmatprep.subr.mxu0 %v140
    %1104 = vmatpush1.msra.mxu0 %v139
    %1105 = vmatprep.subr.mxu0 %v148
    %1106 = vmatpush1.msra.mxu0 %v147
    %1107 = vmatprep.subr.mxu0 %v156
    %1108 = vmatpush1.msra.mxu0 %v155
    %1109 = vmatprep.subr.mxu0 %v164
    %1110 = vmatpush1.msra.mxu0 %v163
    %1111 = vmatprep.subr.mxu0 %v172
    %1112 = vmatpush1.msra.mxu0 %v171
    %1113 = vmatprep.subr.mxu0 %v180
    %1114 = vmatpush1.msra.mxu0 %v179
    %1115 = vmatprep.subr.mxu0 %v188
    %1116 = vmatpush1.msra.mxu0 %v187
    %1117 = vmatprep.subr.mxu0 %v196
    %1118 = vmatpush1.msra.mxu0 %v195
    %1119 = vmatprep.subr.mxu0 %v204
    %1120 = vmatpush1.msra.mxu0 %v203
    %1121 = vmatprep.subr.mxu0 %v212
    %1122 = vmatpush1.msra.mxu0 %v211
    %1123 = vmatprep.subr.mxu0 %v220
    %1124 = vmatpush1.msra.mxu0 %v219
    %1125 = vmatprep.subr.mxu0 %v228
    %1126 = vmatpush1.msra.mxu0 %v227
    %1127 = vmatprep.subr.mxu0 %v236
    %1128 = vmatpush1.msra.mxu0 %v235
    %1129 = vmatprep.subr.mxu0 %v244
    %1130 = vmatpush1.msra.mxu0 %v243
    %1131 = vmatprep.subr.mxu0 %v252
    %1132 = vmatpush1.msra.mxu0 %v251
    %1133 = vmatprep.subr.mxu0 %v260
    %1134 = vmatpush1.msra.mxu0 %v259
    %1135 = vmatprep.subr.mxu0 %v268
    %1136 = vmatpush1.msra.mxu0 %v267
    %1137 = vmatprep.subr.mxu0 %v276
    %1138 = vmatpush1.msra.mxu0 %v275
    %1139 = vmatprep.subr.mxu0 %v284
    %1140 = vmatpush1.msra.mxu0 %v283
    %1141 = vmatprep.subr.mxu0 %v292
    %1142 = vmatpush1.msra.mxu0 %v291
    %1143 = vmatprep.subr.mxu0 %v300
    %1144 = vmatpush1.msra.mxu0 %v299
    %1145 = vmatprep.subr.mxu0 %v308
    %1146 = vmatpush1.msra.mxu0 %v307
    %1147 = vmatprep.subr.mxu0 %v316
    %1148 = vmatpush1.msra.mxu0 %v315
    %1149 = vmatprep.subr.mxu0 %v324
    %1150 = vmatpush1.msra.mxu0 %v323
    %1151 = vmatprep.subr.mxu0 %v332
    %1152 = vmatpush1.msra.mxu0 %v331
    %1153 = vmatprep.subr.mxu0 %v340
    %1154 = vmatpush1.msra.mxu0 %v339
    %1155 = vmatprep.subr.mxu0 0.0
    %1156 = vmatpush1.msra.mxu0 0.0
    %1157 = vmatprep.subr.mxu0 0.0
    %1158 = vmatpush1.msra.mxu0 0.0
    %1159 = vmatprep.subr.mxu0 0.0
    %1160 = vmatpush1.msra.mxu0 0.0
    %1161 = vmatprep.subr.mxu0 0.0
    %1162 = vmatpush1.msra.mxu0 0.0
    %1163 = vmatprep.mubr.f32.mxu0 %v955
    %1164 = vmatmul.mubr.f32.gmra.mrb[0].mxu0 %v952
    %v1165 = vpop.f32.mrb[0].mxu0
    %v1166 = vadd.f32 0.0, %v1165
    %v1167 = vpop.f32.mrb[0].mxu0
    %v1168 = vadd.f32 0.0, %v1167
    %1169 = vdwg.mxu0
    %1170 = vmatprep.subr.mxu0 %v126
    %1171 = vmatpush1.msra.mxu0 %v125
    %1172 = vmatprep.subr.mxu0 %v134
    %1173 = vmatpush1.msra.mxu0 %v133
    %1174 = vmatprep.subr.mxu0 %v142
    %1175 = vmatpush1.msra.mxu0 %v141
    %1176 = vmatprep.subr.mxu0 %v150
    %1177 = vmatpush1.msra.mxu0 %v149
    %1178 = vmatprep.subr.mxu0 %v158
    %1179 = vmatpush1.msra.mxu0 %v157
    %1180 = vmatprep.subr.mxu0 %v166
    %1181 = vmatpush1.msra.mxu0 %v165
    %1182 = vmatprep.subr.mxu0 %v174
    %1183 = vmatpush1.msra.mxu0 %v173
    %1184 = vmatprep.subr.mxu0 %v182
    %1185 = vmatpush1.msra.mxu0 %v181
    %1186 = vmatprep.subr.mxu0 %v190
    %1187 = vmatpush1.msra.mxu0 %v189
    %1188 = vmatprep.subr.mxu0 %v198
    %1189 = vmatpush1.msra.mxu0 %v197
    %1190 = vmatprep.subr.mxu0 %v206
    %1191 = vmatpush1.msra.mxu0 %v205
    %1192 = vmatprep.subr.mxu0 %v214
    %1193 = vmatpush1.msra.mxu0 %v213
    %1194 = vmatprep.subr.mxu0 %v222
    %1195 = vmatpush1.msra.mxu0 %v221
    %1196 = vmatprep.subr.mxu0 %v230
    %1197 = vmatpush1.msra.mxu0 %v229
    %1198 = vmatprep.subr.mxu0 %v238
    %1199 = vmatpush1.msra.mxu0 %v237
    %1200 = vmatprep.subr.mxu0 %v246
    %1201 = vmatpush1.msra.mxu0 %v245
    %1202 = vmatprep.subr.mxu0 %v254
    %1203 = vmatpush1.msra.mxu0 %v253
    %1204 = vmatprep.subr.mxu0 %v262
    %1205 = vmatpush1.msra.mxu0 %v261
    %1206 = vmatprep.subr.mxu0 %v270
    %1207 = vmatpush1.msra.mxu0 %v269
    %1208 = vmatprep.subr.mxu0 %v278
    %1209 = vmatpush1.msra.mxu0 %v277
    %1210 = vmatprep.subr.mxu0 %v286
    %1211 = vmatpush1.msra.mxu0 %v285
    %1212 = vmatprep.subr.mxu0 %v294
    %1213 = vmatpush1.msra.mxu0 %v293
    %1214 = vmatprep.subr.mxu0 %v302
    %1215 = vmatpush1.msra.mxu0 %v301
    %1216 = vmatprep.subr.mxu0 %v310
    %1217 = vmatpush1.msra.mxu0 %v309
    %1218 = vmatprep.subr.mxu0 %v318
    %1219 = vmatpush1.msra.mxu0 %v317
    %1220 = vmatprep.subr.mxu0 %v326
    %1221 = vmatpush1.msra.mxu0 %v325
    %1222 = vmatprep.subr.mxu0 %v334
    %1223 = vmatpush1.msra.mxu0 %v333
    %1224 = vmatprep.subr.mxu0 %v342
    %1225 = vmatpush1.msra.mxu0 %v341
    %1226 = vmatprep.subr.mxu0 0.0
    %1227 = vmatpush1.msra.mxu0 0.0
    %1228 = vmatprep.subr.mxu0 0.0
    %1229 = vmatpush1.msra.mxu0 0.0
    %1230 = vmatprep.subr.mxu0 0.0
    %1231 = vmatpush1.msra.mxu0 0.0
    %1232 = vmatprep.subr.mxu0 0.0
    %1233 = vmatpush1.msra.mxu0 0.0
    %1234 = vmatprep.mubr.f32.mxu0 %v955
    %1235 = vmatmul.mubr.f32.gmra.mrb[0].mxu0 %v952
    %v1236 = vpop.f32.mrb[0].mxu0
    %v1237 = vadd.f32 0.0, %v1236
    %v1238 = vpop.f32.mrb[0].mxu0
    %v1239 = vadd.f32 0.0, %v1238
    %1240 = vdwg.mxu0
    %v1241 = vmax.f32 %v1024, %v1026
    %v1242 = vmax.f32 %v1241, %v1095
    %v1243 = vmax.f32 %v1242, %v1097
    %v1244 = vadd.f32 %v1243, %v642
    %v1245 = vmax.f32 %v1244, 0.0
    %v1246 = vmax.f32 %v1166, %v1168
    %v1247 = vmax.f32 %v1246, %v1237
    %v1248 = vmax.f32 %v1247, %v1239
    %v1249 = vadd.f32 %v1248, %v642
    %v1250 = vmax.f32 %v1249, 0.0
    %s1251 = scalar_lea.vmem %s0, 48
    %v1252 = vld [vmem:[%s1251] sm:$0xff]
    %v1253 = vld [vmem:[%s1251 + $0x8] sm:$0xff]
    %v1255 = vsel %vm347, %v1253, 0
    %1257 = vmatprep.subr.mxu0 %v120
    %1258 = vmatpush1.msra.mxu0 %v119
    %1259 = vmatprep.subr.mxu0 %v128
    %1260 = vmatpush1.msra.mxu0 %v127
    %1261 = vmatprep.subr.mxu0 %v136
    %1262 = vmatpush1.msra.mxu0 %v135
    %1263 = vmatprep.subr.mxu0 %v144
    %1264 = vmatpush1.msra.mxu0 %v143
    %1265 = vmatprep.subr.mxu0 %v152
    %1266 = vmatpush1.msra.mxu0 %v151
    %1267 = vmatprep.subr.mxu0 %v160
    %1268 = vmatpush1.msra.mxu0 %v159
    %1269 = vmatprep.subr.mxu0 %v168
    %1270 = vmatpush1.msra.mxu0 %v167
    %1271 = vmatprep.subr.mxu0 %v176
    %1272 = vmatpush1.msra.mxu0 %v175
    %1273 = vmatprep.subr.mxu0 %v184
    %1274 = vmatpush1.msra.mxu0 %v183
    %1275 = vmatprep.subr.mxu0 %v192
    %1276 = vmatpush1.msra.mxu0 %v191
    %1277 = vmatprep.subr.mxu0 %v200
    %1278 = vmatpush1.msra.mxu0 %v199
    %1279 = vmatprep.subr.mxu0 %v208
    %1280 = vmatpush1.msra.mxu0 %v207
    %1281 = vmatprep.subr.mxu0 %v216
    %1282 = vmatpush1.msra.mxu0 %v215
    %1283 = vmatprep.subr.mxu0 %v224
    %1284 = vmatpush1.msra.mxu0 %v223
    %1285 = vmatprep.subr.mxu0 %v232
    %1286 = vmatpush1.msra.mxu0 %v231
    %1287 = vmatprep.subr.mxu0 %v240
    %1288 = vmatpush1.msra.mxu0 %v239
    %1289 = vmatprep.subr.mxu0 %v248
    %1290 = vmatpush1.msra.mxu0 %v247
    %1291 = vmatprep.subr.mxu0 %v256
    %1292 = vmatpush1.msra.mxu0 %v255
    %1293 = vmatprep.subr.mxu0 %v264
    %1294 = vmatpush1.msra.mxu0 %v263
    %1295 = vmatprep.subr.mxu0 %v272
    %1296 = vmatpush1.msra.mxu0 %v271
    %1297 = vmatprep.subr.mxu0 %v280
    %1298 = vmatpush1.msra.mxu0 %v279
    %1299 = vmatprep.subr.mxu0 %v288
    %1300 = vmatpush1.msra.mxu0 %v287
    %1301 = vmatprep.subr.mxu0 %v296
    %1302 = vmatpush1.msra.mxu0 %v295
    %1303 = vmatprep.subr.mxu0 %v304
    %1304 = vmatpush1.msra.mxu0 %v303
    %1305 = vmatprep.subr.mxu0 %v312
    %1306 = vmatpush1.msra.mxu0 %v311
    %1307 = vmatprep.subr.mxu0 %v320
    %1308 = vmatpush1.msra.mxu0 %v319
    %1309 = vmatprep.subr.mxu0 %v328
    %1310 = vmatpush1.msra.mxu0 %v327
    %1311 = vmatprep.subr.mxu0 %v336
    %1312 = vmatpush1.msra.mxu0 %v335
    %1313 = vmatprep.subr.mxu0 0.0
    %1314 = vmatpush1.msra.mxu0 0.0
    %1315 = vmatprep.subr.mxu0 0.0
    %1316 = vmatpush1.msra.mxu0 0.0
    %1317 = vmatprep.subr.mxu0 0.0
    %1318 = vmatpush1.msra.mxu0 0.0
    %1319 = vmatprep.subr.mxu0 0.0
    %1320 = vmatpush1.msra.mxu0 0.0
    %1321 = vmatprep.mubr.f32.mxu0 %v1255
    %1322 = vmatmul.mubr.f32.gmra.mrb[0].mxu0 %v1252
    %v1323 = vpop.f32.mrb[0].mxu0
    %v1324 = vadd.f32 0.0, %v1323
    %v1325 = vpop.f32.mrb[0].mxu0
    %v1326 = vadd.f32 0.0, %v1325
    %1327 = vdwg.mxu0
    %1328 = vmatprep.subr.mxu0 %v122
    %1329 = vmatpush1.msra.mxu0 %v121
    %1330 = vmatprep.subr.mxu0 %v130
    %1331 = vmatpush1.msra.mxu0 %v129
    %1332 = vmatprep.subr.mxu0 %v138
    %1333 = vmatpush1.msra.mxu0 %v137
    %1334 = vmatprep.subr.mxu0 %v146
    %1335 = vmatpush1.msra.mxu0 %v145
    %1336 = vmatprep.subr.mxu0 %v154
    %1337 = vmatpush1.msra.mxu0 %v153
    %1338 = vmatprep.subr.mxu0 %v162
    %1339 = vmatpush1.msra.mxu0 %v161
    %1340 = vmatprep.subr.mxu0 %v170
    %1341 = vmatpush1.msra.mxu0 %v169
    %1342 = vmatprep.subr.mxu0 %v178
    %1343 = vmatpush1.msra.mxu0 %v177
    %1344 = vmatprep.subr.mxu0 %v186
    %1345 = vmatpush1.msra.mxu0 %v185
    %1346 = vmatprep.subr.mxu0 %v194
    %1347 = vmatpush1.msra.mxu0 %v193
    %1348 = vmatprep.subr.mxu0 %v202
    %1349 = vmatpush1.msra.mxu0 %v201
    %1350 = vmatprep.subr.mxu0 %v210
    %1351 = vmatpush1.msra.mxu0 %v209
    %1352 = vmatprep.subr.mxu0 %v218
    %1353 = vmatpush1.msra.mxu0 %v217
    %1354 = vmatprep.subr.mxu0 %v226
    %1355 = vmatpush1.msra.mxu0 %v225
    %1356 = vmatprep.subr.mxu0 %v234
    %1357 = vmatpush1.msra.mxu0 %v233
    %1358 = vmatprep.subr.mxu0 %v242
    %1359 = vmatpush1.msra.mxu0 %v241
    %1360 = vmatprep.subr.mxu0 %v250
    %1361 = vmatpush1.msra.mxu0 %v249
    %1362 = vmatprep.subr.mxu0 %v258
    %1363 = vmatpush1.msra.mxu0 %v257
    %1364 = vmatprep.subr.mxu0 %v266
    %1365 = vmatpush1.msra.mxu0 %v265
    %1366 = vmatprep.subr.mxu0 %v274
    %1367 = vmatpush1.msra.mxu0 %v273
    %1368 = vmatprep.subr.mxu0 %v282
    %1369 = vmatpush1.msra.mxu0 %v281
    %1370 = vmatprep.subr.mxu0 %v290
    %1371 = vmatpush1.msra.mxu0 %v289
    %1372 = vmatprep.subr.mxu0 %v298
    %1373 = vmatpush1.msra.mxu0 %v297
    %1374 = vmatprep.subr.mxu0 %v306
    %1375 = vmatpush1.msra.mxu0 %v305
    %1376 = vmatprep.subr.mxu0 %v314
    %1377 = vmatpush1.msra.mxu0 %v313
    %1378 = vmatprep.subr.mxu0 %v322
    %1379 = vmatpush1.msra.mxu0 %v321
    %1380 = vmatprep.subr.mxu0 %v330
    %1381 = vmatpush1.msra.mxu0 %v329
    %1382 = vmatprep.subr.mxu0 %v338
    %1383 = vmatpush1.msra.mxu0 %v337
    %1384 = vmatprep.subr.mxu0 0.0
    %1385 = vmatpush1.msra.mxu0 0.0
    %1386 = vmatprep.subr.mxu0 0.0
    %1387 = vmatpush1.msra.mxu0 0.0
    %1388 = vmatprep.subr.mxu0 0.0
    %1389 = vmatpush1.msra.mxu0 0.0
    %1390 = vmatprep.subr.mxu0 0.0
    %1391 = vmatpush1.msra.mxu0 0.0
    %1392 = vmatprep.mubr.f32.mxu0 %v1255
    %1393 = vmatmul.mubr.f32.gmra.mrb[0].mxu0 %v1252
    %v1394 = vpop.f32.mrb[0].mxu0
    %v1395 = vadd.f32 0.0, %v1394
    %v1396 = vpop.f32.mrb[0].mxu0
    %v1397 = vadd.f32 0.0, %v1396
    %1398 = vdwg.mxu0
    %1399 = vmatprep.subr.mxu0 %v124
    %1400 = vmatpush1.msra.mxu0 %v123
    %1401 = vmatprep.subr.mxu0 %v132
    %1402 = vmatpush1.msra.mxu0 %v131
    %1403 = vmatprep.subr.mxu0 %v140
    %1404 = vmatpush1.msra.mxu0 %v139
    %1405 = vmatprep.subr.mxu0 %v148
    %1406 = vmatpush1.msra.mxu0 %v147
    %1407 = vmatprep.subr.mxu0 %v156
    %1408 = vmatpush1.msra.mxu0 %v155
    %1409 = vmatprep.subr.mxu0 %v164
    %1410 = vmatpush1.msra.mxu0 %v163
    %1411 = vmatprep.subr.mxu0 %v172
    %1412 = vmatpush1.msra.mxu0 %v171
    %1413 = vmatprep.subr.mxu0 %v180
    %1414 = vmatpush1.msra.mxu0 %v179
    %1415 = vmatprep.subr.mxu0 %v188
    %1416 = vmatpush1.msra.mxu0 %v187
    %1417 = vmatprep.subr.mxu0 %v196
    %1418 = vmatpush1.msra.mxu0 %v195
    %1419 = vmatprep.subr.mxu0 %v204
    %1420 = vmatpush1.msra.mxu0 %v203
    %1421 = vmatprep.subr.mxu0 %v212
    %1422 = vmatpush1.msra.mxu0 %v211
    %1423 = vmatprep.subr.mxu0 %v220
    %1424 = vmatpush1.msra.mxu0 %v219
    %1425 = vmatprep.subr.mxu0 %v228
    %1426 = vmatpush1.msra.mxu0 %v227
    %1427 = vmatprep.subr.mxu0 %v236
    %1428 = vmatpush1.msra.mxu0 %v235
    %1429 = vmatprep.subr.mxu0 %v244
    %1430 = vmatpush1.msra.mxu0 %v243
    %1431 = vmatprep.subr.mxu0 %v252
    %1432 = vmatpush1.msra.mxu0 %v251
    %1433 = vmatprep.subr.mxu0 %v260
    %1434 = vmatpush1.msra.mxu0 %v259
    %1435 = vmatprep.subr.mxu0 %v268
    %1436 = vmatpush1.msra.mxu0 %v267
    %1437 = vmatprep.subr.mxu0 %v276
    %1438 = vmatpush1.msra.mxu0 %v275
    %1439 = vmatprep.subr.mxu0 %v284
    %1440 = vmatpush1.msra.mxu0 %v283
    %1441 = vmatprep.subr.mxu0 %v292
    %1442 = vmatpush1.msra.mxu0 %v291
    %1443 = vmatprep.subr.mxu0 %v300
    %1444 = vmatpush1.msra.mxu0 %v299
    %1445 = vmatprep.subr.mxu0 %v308
    %1446 = vmatpush1.msra.mxu0 %v307
    %1447 = vmatprep.subr.mxu0 %v316
    %1448 = vmatpush1.msra.mxu0 %v315
    %1449 = vmatprep.subr.mxu0 %v324
    %1450 = vmatpush1.msra.mxu0 %v323
    %1451 = vmatprep.subr.mxu0 %v332
    %1452 = vmatpush1.msra.mxu0 %v331
    %1453 = vmatprep.subr.mxu0 %v340
    %1454 = vmatpush1.msra.mxu0 %v339
    %1455 = vmatprep.subr.mxu0 0.0
    %1456 = vmatpush1.msra.mxu0 0.0
    %1457 = vmatprep.subr.mxu0 0.0
    %1458 = vmatpush1.msra.mxu0 0.0
    %1459 = vmatprep.subr.mxu0 0.0
    %1460 = vmatpush1.msra.mxu0 0.0
    %1461 = vmatprep.subr.mxu0 0.0
    %1462 = vmatpush1.msra.mxu0 0.0
    %1463 = vmatprep.mubr.f32.mxu0 %v1255
    %1464 = vmatmul.mubr.f32.gmra.mrb[0].mxu0 %v1252
    %v1465 = vpop.f32.mrb[0].mxu0
    %v1466 = vadd.f32 0.0, %v1465
    %v1467 = vpop.f32.mrb[0].mxu0
    %v1468 = vadd.f32 0.0, %v1467
    %1469 = vdwg.mxu0
    %1470 = vmatprep.subr.mxu0 %v126
    %1471 = vmatpush1.msra.mxu0 %v125
    %1472 = vmatprep.subr.mxu0 %v134
    %1473 = vmatpush1.msra.mxu0 %v133
    %1474 = vmatprep.subr.mxu0 %v142
    %1475 = vmatpush1.msra.mxu0 %v141
    %1476 = vmatprep.subr.mxu0 %v150
    %1477 = vmatpush1.msra.mxu0 %v149
    %1478 = vmatprep.subr.mxu0 %v158
    %1479 = vmatpush1.msra.mxu0 %v157
    %1480 = vmatprep.subr.mxu0 %v166
    %1481 = vmatpush1.msra.mxu0 %v165
    %1482 = vmatprep.subr.mxu0 %v174
    %1483 = vmatpush1.msra.mxu0 %v173
    %1484 = vmatprep.subr.mxu0 %v182
    %1485 = vmatpush1.msra.mxu0 %v181
    %1486 = vmatprep.subr.mxu0 %v190
    %1487 = vmatpush1.msra.mxu0 %v189
    %1488 = vmatprep.subr.mxu0 %v198
    %1489 = vmatpush1.msra.mxu0 %v197
    %1490 = vmatprep.subr.mxu0 %v206
    %1491 = vmatpush1.msra.mxu0 %v205
    %1492 = vmatprep.subr.mxu0 %v214
    %1493 = vmatpush1.msra.mxu0 %v213
    %1494 = vmatprep.subr.mxu0 %v222
    %1495 = vmatpush1.msra.mxu0 %v221
    %1496 = vmatprep.subr.mxu0 %v230
    %1497 = vmatpush1.msra.mxu0 %v229
    %1498 = vmatprep.subr.mxu0 %v238
    %1499 = vmatpush1.msra.mxu0 %v237
    %1500 = vmatprep.subr.mxu0 %v246
    %1501 = vmatpush1.msra.mxu0 %v245
    %1502 = vmatprep.subr.mxu0 %v254
    %1503 = vmatpush1.msra.mxu0 %v253
    %1504 = vmatprep.subr.mxu0 %v262
    %1505 = vmatpush1.msra.mxu0 %v261
    %1506 = vmatprep.subr.mxu0 %v270
    %1507 = vmatpush1.msra.mxu0 %v269
    %1508 = vmatprep.subr.mxu0 %v278
    %1509 = vmatpush1.msra.mxu0 %v277
    %1510 = vmatprep.subr.mxu0 %v286
    %1511 = vmatpush1.msra.mxu0 %v285
    %1512 = vmatprep.subr.mxu0 %v294
    %1513 = vmatpush1.msra.mxu0 %v293
    %1514 = vmatprep.subr.mxu0 %v302
    %1515 = vmatpush1.msra.mxu0 %v301
    %1516 = vmatprep.subr.mxu0 %v310
    %1517 = vmatpush1.msra.mxu0 %v309
    %1518 = vmatprep.subr.mxu0 %v318
    %1519 = vmatpush1.msra.mxu0 %v317
    %1520 = vmatprep.subr.mxu0 %v326
    %1521 = vmatpush1.msra.mxu0 %v325
    %1522 = vmatprep.subr.mxu0 %v334
    %1523 = vmatpush1.msra.mxu0 %v333
    %1524 = vmatprep.subr.mxu0 %v342
    %1525 = vmatpush1.msra.mxu0 %v341
    %1526 = vmatprep.subr.mxu0 0.0
    %1527 = vmatpush1.msra.mxu0 0.0
    %1528 = vmatprep.subr.mxu0 0.0
    %1529 = vmatpush1.msra.mxu0 0.0
    %1530 = vmatprep.subr.mxu0 0.0
    %1531 = vmatpush1.msra.mxu0 0.0
    %1532 = vmatprep.subr.mxu0 0.0
    %1533 = vmatpush1.msra.mxu0 0.0
    %1534 = vmatprep.mubr.f32.mxu0 %v1255
    %1535 = vmatmul.mubr.f32.gmra.mrb[0].mxu0 %v1252
    %v1536 = vpop.f32.mrb[0].mxu0
    %v1537 = vadd.f32 0.0, %v1536
    %v1538 = vpop.f32.mrb[0].mxu0
    %v1539 = vadd.f32 0.0, %v1538
    %1540 = vdwg.mxu0
    %v1541 = vmax.f32 %v1324, %v1326
    %v1542 = vmax.f32 %v1541, %v1395
    %v1543 = vmax.f32 %v1542, %v1397
    %v1544 = vadd.f32 %v1543, %v642
    %v1545 = vmax.f32 %v1544, 0.0
    %v1546 = vmax.f32 %v1466, %v1468
    %v1547 = vmax.f32 %v1546, %v1537
    %v1548 = vmax.f32 %v1547, %v1539
    %v1549 = vadd.f32 %v1548, %v642
    %v1550 = vmax.f32 %v1549, 0.0
    %s1551 = scalar_lea.vmem %s0, 64
    %v1552 = vld [vmem:[%s1551] sm:$0xff]
    %v1553 = vld [vmem:[%s1551 + $0x8] sm:$0xff]
    %v1555 = vsel %vm347, %v1553, 0
    %1557 = vmatprep.subr.mxu0 %v120
    %1558 = vmatpush1.msra.mxu0 %v119
    %1559 = vmatprep.subr.mxu0 %v128
    %1560 = vmatpush1.msra.mxu0 %v127
    %1561 = vmatprep.subr.mxu0 %v136
    %1562 = vmatpush1.msra.mxu0 %v135
    %1563 = vmatprep.subr.mxu0 %v144
    %1564 = vmatpush1.msra.mxu0 %v143
    %1565 = vmatprep.subr.mxu0 %v152
    %1566 = vmatpush1.msra.mxu0 %v151
    %1567 = vmatprep.subr.mxu0 %v160
    %1568 = vmatpush1.msra.mxu0 %v159
    %1569 = vmatprep.subr.mxu0 %v168
    %1570 = vmatpush1.msra.mxu0 %v167
    %1571 = vmatprep.subr.mxu0 %v176
    %1572 = vmatpush1.msra.mxu0 %v175
    %1573 = vmatprep.subr.mxu0 %v184
    %1574 = vmatpush1.msra.mxu0 %v183
    %1575 = vmatprep.subr.mxu0 %v192
    %1576 = vmatpush1.msra.mxu0 %v191
    %1577 = vmatprep.subr.mxu0 %v200
    %1578 = vmatpush1.msra.mxu0 %v199
    %1579 = vmatprep.subr.mxu0 %v208
    %1580 = vmatpush1.msra.mxu0 %v207
    %1581 = vmatprep.subr.mxu0 %v216
    %1582 = vmatpush1.msra.mxu0 %v215
    %1583 = vmatprep.subr.mxu0 %v224
    %1584 = vmatpush1.msra.mxu0 %v223
    %1585 = vmatprep.subr.mxu0 %v232
    %1586 = vmatpush1.msra.mxu0 %v231
    %1587 = vmatprep.subr.mxu0 %v240
    %1588 = vmatpush1.msra.mxu0 %v239
    %1589 = vmatprep.subr.mxu0 %v248
    %1590 = vmatpush1.msra.mxu0 %v247
    %1591 = vmatprep.subr.mxu0 %v256
    %1592 = vmatpush1.msra.mxu0 %v255
    %1593 = vmatprep.subr.mxu0 %v264
    %1594 = vmatpush1.msra.mxu0 %v263
    %1595 = vmatprep.subr.mxu0 %v272
    %1596 = vmatpush1.msra.mxu0 %v271
    %1597 = vmatprep.subr.mxu0 %v280
    %1598 = vmatpush1.msra.mxu0 %v279
    %1599 = vmatprep.subr.mxu0 %v288
    %1600 = vmatpush1.msra.mxu0 %v287
    %1601 = vmatprep.subr.mxu0 %v296
    %1602 = vmatpush1.msra.mxu0 %v295
    %1603 = vmatprep.subr.mxu0 %v304
    %1604 = vmatpush1.msra.mxu0 %v303
    %1605 = vmatprep.subr.mxu0 %v312
    %1606 = vmatpush1.msra.mxu0 %v311
    %1607 = vmatprep.subr.mxu0 %v320
    %1608 = vmatpush1.msra.mxu0 %v319
    %1609 = vmatprep.subr.mxu0 %v328
    %1610 = vmatpush1.msra.mxu0 %v327
    %1611 = vmatprep.subr.mxu0 %v336
    %1612 = vmatpush1.msra.mxu0 %v335
    %1613 = vmatprep.subr.mxu0 0.0
    %1614 = vmatpush1.msra.mxu0 0.0
    %1615 = vmatprep.subr.mxu0 0.0
    %1616 = vmatpush1.msra.mxu0 0.0
    %1617 = vmatprep.subr.mxu0 0.0
    %1618 = vmatpush1.msra.mxu0 0.0
    %1619 = vmatprep.subr.mxu0 0.0
    %1620 = vmatpush1.msra.mxu0 0.0
    %1621 = vmatprep.mubr.f32.mxu0 %v1555
    %1622 = vmatmul.mubr.f32.gmra.mrb[0].mxu0 %v1552
    %v1623 = vpop.f32.mrb[0].mxu0
    %v1624 = vadd.f32 0.0, %v1623
    %v1625 = vpop.f32.mrb[0].mxu0
    %v1626 = vadd.f32 0.0, %v1625
    %1627 = vdwg.mxu0
    %1628 = vmatprep.subr.mxu0 %v122
    %1629 = vmatpush1.msra.mxu0 %v121
    %1630 = vmatprep.subr.mxu0 %v130
    %1631 = vmatpush1.msra.mxu0 %v129
    %1632 = vmatprep.subr.mxu0 %v138
    %1633 = vmatpush1.msra.mxu0 %v137
    %1634 = vmatprep.subr.mxu0 %v146
    %1635 = vmatpush1.msra.mxu0 %v145
    %1636 = vmatprep.subr.mxu0 %v154
    %1637 = vmatpush1.msra.mxu0 %v153
    %1638 = vmatprep.subr.mxu0 %v162
    %1639 = vmatpush1.msra.mxu0 %v161
    %1640 = vmatprep.subr.mxu0 %v170
    %1641 = vmatpush1.msra.mxu0 %v169
    %1642 = vmatprep.subr.mxu0 %v178
    %1643 = vmatpush1.msra.mxu0 %v177
    %1644 = vmatprep.subr.mxu0 %v186
    %1645 = vmatpush1.msra.mxu0 %v185
    %1646 = vmatprep.subr.mxu0 %v194
    %1647 = vmatpush1.msra.mxu0 %v193
    %1648 = vmatprep.subr.mxu0 %v202
    %1649 = vmatpush1.msra.mxu0 %v201
    %1650 = vmatprep.subr.mxu0 %v210
    %1651 = vmatpush1.msra.mxu0 %v209
    %1652 = vmatprep.subr.mxu0 %v218
    %1653 = vmatpush1.msra.mxu0 %v217
    %1654 = vmatprep.subr.mxu0 %v226
    %1655 = vmatpush1.msra.mxu0 %v225
    %1656 = vmatprep.subr.mxu0 %v234
    %1657 = vmatpush1.msra.mxu0 %v233
    %1658 = vmatprep.subr.mxu0 %v242
    %1659 = vmatpush1.msra.mxu0 %v241
    %1660 = vmatprep.subr.mxu0 %v250
    %1661 = vmatpush1.msra.mxu0 %v249
    %1662 = vmatprep.subr.mxu0 %v258
    %1663 = vmatpush1.msra.mxu0 %v257
    %1664 = vmatprep.subr.mxu0 %v266
    %1665 = vmatpush1.msra.mxu0 %v265
    %1666 = vmatprep.subr.mxu0 %v274
    %1667 = vmatpush1.msra.mxu0 %v273
    %1668 = vmatprep.subr.mxu0 %v282
    %1669 = vmatpush1.msra.mxu0 %v281
    %1670 = vmatprep.subr.mxu0 %v290
    %1671 = vmatpush1.msra.mxu0 %v289
    %1672 = vmatprep.subr.mxu0 %v298
    %1673 = vmatpush1.msra.mxu0 %v297
    %1674 = vmatprep.subr.mxu0 %v306
    %1675 = vmatpush1.msra.mxu0 %v305
    %1676 = vmatprep.subr.mxu0 %v314
    %1677 = vmatpush1.msra.mxu0 %v313
    %1678 = vmatprep.subr.mxu0 %v322
    %1679 = vmatpush1.msra.mxu0 %v321
    %1680 = vmatprep.subr.mxu0 %v330
    %1681 = vmatpush1.msra.mxu0 %v329
    %1682 = vmatprep.subr.mxu0 %v338
    %1683 = vmatpush1.msra.mxu0 %v337
    %1684 = vmatprep.subr.mxu0 0.0
    %1685 = vmatpush1.msra.mxu0 0.0
    %1686 = vmatprep.subr.mxu0 0.0
    %1687 = vmatpush1.msra.mxu0 0.0
    %1688 = vmatprep.subr.mxu0 0.0
    %1689 = vmatpush1.msra.mxu0 0.0
    %1690 = vmatprep.subr.mxu0 0.0
    %1691 = vmatpush1.msra.mxu0 0.0
    %1692 = vmatprep.mubr.f32.mxu0 %v1555
    %1693 = vmatmul.mubr.f32.gmra.mrb[0].mxu0 %v1552
    %v1694 = vpop.f32.mrb[0].mxu0
    %v1695 = vadd.f32 0.0, %v1694
    %v1696 = vpop.f32.mrb[0].mxu0
    %v1697 = vadd.f32 0.0, %v1696
    %1698 = vdwg.mxu0
    %1699 = vmatprep.subr.mxu0 %v124
    %1700 = vmatpush1.msra.mxu0 %v123
    %1701 = vmatprep.subr.mxu0 %v132
    %1702 = vmatpush1.msra.mxu0 %v131
    %1703 = vmatprep.subr.mxu0 %v140
    %1704 = vmatpush1.msra.mxu0 %v139
    %1705 = vmatprep.subr.mxu0 %v148
    %1706 = vmatpush1.msra.mxu0 %v147
    %1707 = vmatprep.subr.mxu0 %v156
    %1708 = vmatpush1.msra.mxu0 %v155
    %1709 = vmatprep.subr.mxu0 %v164
    %1710 = vmatpush1.msra.mxu0 %v163
    %1711 = vmatprep.subr.mxu0 %v172
    %1712 = vmatpush1.msra.mxu0 %v171
    %1713 = vmatprep.subr.mxu0 %v180
    %1714 = vmatpush1.msra.mxu0 %v179
    %1715 = vmatprep.subr.mxu0 %v188
    %1716 = vmatpush1.msra.mxu0 %v187
    %1717 = vmatprep.subr.mxu0 %v196
    %1718 = vmatpush1.msra.mxu0 %v195
    %1719 = vmatprep.subr.mxu0 %v204
    %1720 = vmatpush1.msra.mxu0 %v203
    %1721 = vmatprep.subr.mxu0 %v212
    %1722 = vmatpush1.msra.mxu0 %v211
    %1723 = vmatprep.subr.mxu0 %v220
    %1724 = vmatpush1.msra.mxu0 %v219
    %1725 = vmatprep.subr.mxu0 %v228
    %1726 = vmatpush1.msra.mxu0 %v227
    %1727 = vmatprep.subr.mxu0 %v236
    %1728 = vmatpush1.msra.mxu0 %v235
    %1729 = vmatprep.subr.mxu0 %v244
    %1730 = vmatpush1.msra.mxu0 %v243
    %1731 = vmatprep.subr.mxu0 %v252
    %1732 = vmatpush1.msra.mxu0 %v251
    %1733 = vmatprep.subr.mxu0 %v260
    %1734 = vmatpush1.msra.mxu0 %v259
    %1735 = vmatprep.subr.mxu0 %v268
    %1736 = vmatpush1.msra.mxu0 %v267
    %1737 = vmatprep.subr.mxu0 %v276
    %1738 = vmatpush1.msra.mxu0 %v275
    %1739 = vmatprep.subr.mxu0 %v284
    %1740 = vmatpush1.msra.mxu0 %v283
    %1741 = vmatprep.subr.mxu0 %v292
    %1742 = vmatpush1.msra.mxu0 %v291
    %1743 = vmatprep.subr.mxu0 %v300
    %1744 = vmatpush1.msra.mxu0 %v299
    %1745 = vmatprep.subr.mxu0 %v308
    %1746 = vmatpush1.msra.mxu0 %v307
    %1747 = vmatprep.subr.mxu0 %v316
    %1748 = vmatpush1.msra.mxu0 %v315
    %1749 = vmatprep.subr.mxu0 %v324
    %1750 = vmatpush1.msra.mxu0 %v323
    %1751 = vmatprep.subr.mxu0 %v332
    %1752 = vmatpush1.msra.mxu0 %v331
    %1753 = vmatprep.subr.mxu0 %v340
    %1754 = vmatpush1.msra.mxu0 %v339
    %1755 = vmatprep.subr.mxu0 0.0
    %1756 = vmatpush1.msra.mxu0 0.0
    %1757 = vmatprep.subr.mxu0 0.0
    %1758 = vmatpush1.msra.mxu0 0.0
    %1759 = vmatprep.subr.mxu0 0.0
    %1760 = vmatpush1.msra.mxu0 0.0
    %1761 = vmatprep.subr.mxu0 0.0
    %1762 = vmatpush1.msra.mxu0 0.0
    %1763 = vmatprep.mubr.f32.mxu0 %v1555
    %1764 = vmatmul.mubr.f32.gmra.mrb[0].mxu0 %v1552
    %v1765 = vpop.f32.mrb[0].mxu0
    %v1766 = vadd.f32 0.0, %v1765
    %v1767 = vpop.f32.mrb[0].mxu0
    %v1768 = vadd.f32 0.0, %v1767
    %1769 = vdwg.mxu0
    %1770 = vmatprep.subr.mxu0 %v126
    %1771 = vmatpush1.msra.mxu0 %v125
    %1772 = vmatprep.subr.mxu0 %v134
    %1773 = vmatpush1.msra.mxu0 %v133
    %1774 = vmatprep.subr.mxu0 %v142
    %1775 = vmatpush1.msra.mxu0 %v141
    %1776 = vmatprep.subr.mxu0 %v150
    %1777 = vmatpush1.msra.mxu0 %v149
    %1778 = vmatprep.subr.mxu0 %v158
    %1779 = vmatpush1.msra.mxu0 %v157
    %1780 = vmatprep.subr.mxu0 %v166
    %1781 = vmatpush1.msra.mxu0 %v165
    %1782 = vmatprep.subr.mxu0 %v174
    %1783 = vmatpush1.msra.mxu0 %v173
    %1784 = vmatprep.subr.mxu0 %v182
    %1785 = vmatpush1.msra.mxu0 %v181
    %1786 = vmatprep.subr.mxu0 %v190
    %1787 = vmatpush1.msra.mxu0 %v189
    %1788 = vmatprep.subr.mxu0 %v198
    %1789 = vmatpush1.msra.mxu0 %v197
    %1790 = vmatprep.subr.mxu0 %v206
    %1791 = vmatpush1.msra.mxu0 %v205
    %1792 = vmatprep.subr.mxu0 %v214
    %1793 = vmatpush1.msra.mxu0 %v213
    %1794 = vmatprep.subr.mxu0 %v222
    %1795 = vmatpush1.msra.mxu0 %v221
    %1796 = vmatprep.subr.mxu0 %v230
    %1797 = vmatpush1.msra.mxu0 %v229
    %1798 = vmatprep.subr.mxu0 %v238
    %1799 = vmatpush1.msra.mxu0 %v237
    %1800 = vmatprep.subr.mxu0 %v246
    %1801 = vmatpush1.msra.mxu0 %v245
    %1802 = vmatprep.subr.mxu0 %v254
    %1803 = vmatpush1.msra.mxu0 %v253
    %1804 = vmatprep.subr.mxu0 %v262
    %1805 = vmatpush1.msra.mxu0 %v261
    %1806 = vmatprep.subr.mxu0 %v270
    %1807 = vmatpush1.msra.mxu0 %v269
    %1808 = vmatprep.subr.mxu0 %v278
    %1809 = vmatpush1.msra.mxu0 %v277
    %1810 = vmatprep.subr.mxu0 %v286
    %1811 = vmatpush1.msra.mxu0 %v285
    %1812 = vmatprep.subr.mxu0 %v294
    %1813 = vmatpush1.msra.mxu0 %v293
    %1814 = vmatprep.subr.mxu0 %v302
    %1815 = vmatpush1.msra.mxu0 %v301
    %1816 = vmatprep.subr.mxu0 %v310
    %1817 = vmatpush1.msra.mxu0 %v309
    %1818 = vmatprep.subr.mxu0 %v318
    %1819 = vmatpush1.msra.mxu0 %v317
    %1820 = vmatprep.subr.mxu0 %v326
    %1821 = vmatpush1.msra.mxu0 %v325
    %1822 = vmatprep.subr.mxu0 %v334
    %1823 = vmatpush1.msra.mxu0 %v333
    %1824 = vmatprep.subr.mxu0 %v342
    %1825 = vmatpush1.msra.mxu0 %v341
    %1826 = vmatprep.subr.mxu0 0.0
    %1827 = vmatpush1.msra.mxu0 0.0
    %1828 = vmatprep.subr.mxu0 0.0
    %1829 = vmatpush1.msra.mxu0 0.0
    %1830 = vmatprep.subr.mxu0 0.0
    %1831 = vmatpush1.msra.mxu0 0.0
    %1832 = vmatprep.subr.mxu0 0.0
    %1833 = vmatpush1.msra.mxu0 0.0
    %1834 = vmatprep.mubr.f32.mxu0 %v1555
    %1835 = vmatmul.mubr.f32.gmra.mrb[0].mxu0 %v1552
    %v1836 = vpop.f32.mrb[0].mxu0
    %v1837 = vadd.f32 0.0, %v1836
    %v1838 = vpop.f32.mrb[0].mxu0
    %v1839 = vadd.f32 0.0, %v1838
    %1840 = vdwg.mxu0
    %v1841 = vmax.f32 %v1624, %v1626
    %v1842 = vmax.f32 %v1841, %v1695
    %v1843 = vmax.f32 %v1842, %v1697
    %v1844 = vadd.f32 %v1843, %v642
    %v1845 = vmax.f32 %v1844, 0.0
    %v1846 = vmax.f32 %v1766, %v1768
    %v1847 = vmax.f32 %v1846, %v1837
    %v1848 = vmax.f32 %v1847, %v1839
    %v1849 = vadd.f32 %v1848, %v642
    %v1850 = vmax.f32 %v1849, 0.0
    %s1851 = scalar_lea.vmem %s0, 80
    %v1852 = vld [vmem:[%s1851] sm:$0xff]
    %v1853 = vld [vmem:[%s1851 + $0x8] sm:$0xff]
    %v1855 = vsel %vm347, %v1853, 0
    %1857 = vmatprep.subr.mxu0 %v120
    %1858 = vmatpush1.msra.mxu0 %v119
    %1859 = vmatprep.subr.mxu0 %v128
    %1860 = vmatpush1.msra.mxu0 %v127
    %1861 = vmatprep.subr.mxu0 %v136
    %1862 = vmatpush1.msra.mxu0 %v135
    %1863 = vmatprep.subr.mxu0 %v144
    %1864 = vmatpush1.msra.mxu0 %v143
    %1865 = vmatprep.subr.mxu0 %v152
    %1866 = vmatpush1.msra.mxu0 %v151
    %1867 = vmatprep.subr.mxu0 %v160
    %1868 = vmatpush1.msra.mxu0 %v159
    %1869 = vmatprep.subr.mxu0 %v168
    %1870 = vmatpush1.msra.mxu0 %v167
    %1871 = vmatprep.subr.mxu0 %v176
    %1872 = vmatpush1.msra.mxu0 %v175
    %1873 = vmatprep.subr.mxu0 %v184
    %1874 = vmatpush1.msra.mxu0 %v183
    %1875 = vmatprep.subr.mxu0 %v192
    %1876 = vmatpush1.msra.mxu0 %v191
    %1877 = vmatprep.subr.mxu0 %v200
    %1878 = vmatpush1.msra.mxu0 %v199
    %1879 = vmatprep.subr.mxu0 %v208
    %1880 = vmatpush1.msra.mxu0 %v207
    %1881 = vmatprep.subr.mxu0 %v216
    %1882 = vmatpush1.msra.mxu0 %v215
    %1883 = vmatprep.subr.mxu0 %v224
    %1884 = vmatpush1.msra.mxu0 %v223
    %1885 = vmatprep.subr.mxu0 %v232
    %1886 = vmatpush1.msra.mxu0 %v231
    %1887 = vmatprep.subr.mxu0 %v240
    %1888 = vmatpush1.msra.mxu0 %v239
    %1889 = vmatprep.subr.mxu0 %v248
    %1890 = vmatpush1.msra.mxu0 %v247
    %1891 = vmatprep.subr.mxu0 %v256
    %1892 = vmatpush1.msra.mxu0 %v255
    %1893 = vmatprep.subr.mxu0 %v264
    %1894 = vmatpush1.msra.mxu0 %v263
    %1895 = vmatprep.subr.mxu0 %v272
    %1896 = vmatpush1.msra.mxu0 %v271
    %1897 = vmatprep.subr.mxu0 %v280
    %1898 = vmatpush1.msra.mxu0 %v279
    %1899 = vmatprep.subr.mxu0 %v288
    %1900 = vmatpush1.msra.mxu0 %v287
    %1901 = vmatprep.subr.mxu0 %v296
    %1902 = vmatpush1.msra.mxu0 %v295
    %1903 = vmatprep.subr.mxu0 %v304
    %1904 = vmatpush1.msra.mxu0 %v303
    %1905 = vmatprep.subr.mxu0 %v312
    %1906 = vmatpush1.msra.mxu0 %v311
    %1907 = vmatprep.subr.mxu0 %v320
    %1908 = vmatpush1.msra.mxu0 %v319
    %1909 = vmatprep.subr.mxu0 %v328
    %1910 = vmatpush1.msra.mxu0 %v327
    %1911 = vmatprep.subr.mxu0 %v336
    %1912 = vmatpush1.msra.mxu0 %v335
    %1913 = vmatprep.subr.mxu0 0.0
    %1914 = vmatpush1.msra.mxu0 0.0
    %1915 = vmatprep.subr.mxu0 0.0
    %1916 = vmatpush1.msra.mxu0 0.0
    %1917 = vmatprep.subr.mxu0 0.0
    %1918 = vmatpush1.msra.mxu0 0.0
    %1919 = vmatprep.subr.mxu0 0.0
    %1920 = vmatpush1.msra.mxu0 0.0
    %1921 = vmatprep.mubr.f32.mxu0 %v1855
    %1922 = vmatmul.mubr.f32.gmra.mrb[0].mxu0 %v1852
    %v1923 = vpop.f32.mrb[0].mxu0
    %v1924 = vadd.f32 0.0, %v1923
    %v1925 = vpop.f32.mrb[0].mxu0
    %v1926 = vadd.f32 0.0, %v1925
    %1927 = vdwg.mxu0
    %1928 = vmatprep.subr.mxu0 %v122
    %1929 = vmatpush1.msra.mxu0 %v121
    %1930 = vmatprep.subr.mxu0 %v130
    %1931 = vmatpush1.msra.mxu0 %v129
    %1932 = vmatprep.subr.mxu0 %v138
    %1933 = vmatpush1.msra.mxu0 %v137
    %1934 = vmatprep.subr.mxu0 %v146
    %1935 = vmatpush1.msra.mxu0 %v145
    %1936 = vmatprep.subr.mxu0 %v154
    %1937 = vmatpush1.msra.mxu0 %v153
    %1938 = vmatprep.subr.mxu0 %v162
    %1939 = vmatpush1.msra.mxu0 %v161
    %1940 = vmatprep.subr.mxu0 %v170
    %1941 = vmatpush1.msra.mxu0 %v169
    %1942 = vmatprep.subr.mxu0 %v178
    %1943 = vmatpush1.msra.mxu0 %v177
    %1944 = vmatprep.subr.mxu0 %v186
    %1945 = vmatpush1.msra.mxu0 %v185
    %1946 = vmatprep.subr.mxu0 %v194
    %1947 = vmatpush1.msra.mxu0 %v193
    %1948 = vmatprep.subr.mxu0 %v202
    %1949 = vmatpush1.msra.mxu0 %v201
    %1950 = vmatprep.subr.mxu0 %v210
    %1951 = vmatpush1.msra.mxu0 %v209
    %1952 = vmatprep.subr.mxu0 %v218
    %1953 = vmatpush1.msra.mxu0 %v217
    %1954 = vmatprep.subr.mxu0 %v226
    %1955 = vmatpush1.msra.mxu0 %v225
    %1956 = vmatprep.subr.mxu0 %v234
    %1957 = vmatpush1.msra.mxu0 %v233
    %1958 = vmatprep.subr.mxu0 %v242
    %1959 = vmatpush1.msra.mxu0 %v241
    %1960 = vmatprep.subr.mxu0 %v250
    %1961 = vmatpush1.msra.mxu0 %v249
    %1962 = vmatprep.subr.mxu0 %v258
    %1963 = vmatpush1.msra.mxu0 %v257
    %1964 = vmatprep.subr.mxu0 %v266
    %1965 = vmatpush1.msra.mxu0 %v265
    %1966 = vmatprep.subr.mxu0 %v274
    %1967 = vmatpush1.msra.mxu0 %v273
    %1968 = vmatprep.subr.mxu0 %v282
    %1969 = vmatpush1.msra.mxu0 %v281
    %1970 = vmatprep.subr.mxu0 %v290
    %1971 = vmatpush1.msra.mxu0 %v289
    %1972 = vmatprep.subr.mxu0 %v298
    %1973 = vmatpush1.msra.mxu0 %v297
    %1974 = vmatprep.subr.mxu0 %v306
    %1975 = vmatpush1.msra.mxu0 %v305
    %1976 = vmatprep.subr.mxu0 %v314
    %1977 = vmatpush1.msra.mxu0 %v313
    %1978 = vmatprep.subr.mxu0 %v322
    %1979 = vmatpush1.msra.mxu0 %v321
    %1980 = vmatprep.subr.mxu0 %v330
    %1981 = vmatpush1.msra.mxu0 %v329
    %1982 = vmatprep.subr.mxu0 %v338
    %1983 = vmatpush1.msra.mxu0 %v337
    %1984 = vmatprep.subr.mxu0 0.0
    %1985 = vmatpush1.msra.mxu0 0.0
    %1986 = vmatprep.subr.mxu0 0.0
    %1987 = vmatpush1.msra.mxu0 0.0
    %1988 = vmatprep.subr.mxu0 0.0
    %1989 = vmatpush1.msra.mxu0 0.0
    %1990 = vmatprep.subr.mxu0 0.0
    %1991 = vmatpush1.msra.mxu0 0.0
    %1992 = vmatprep.mubr.f32.mxu0 %v1855
    %1993 = vmatmul.mubr.f32.gmra.mrb[0].mxu0 %v1852
    %v1994 = vpop.f32.mrb[0].mxu0
    %v1995 = vadd.f32 0.0, %v1994
    %v1996 = vpop.f32.mrb[0].mxu0
    %v1997 = vadd.f32 0.0, %v1996
    %1998 = vdwg.mxu0
    %1999 = vmatprep.subr.mxu0 %v124
    %2000 = vmatpush1.msra.mxu0 %v123
    %2001 = vmatprep.subr.mxu0 %v132
    %2002 = vmatpush1.msra.mxu0 %v131
    %2003 = vmatprep.subr.mxu0 %v140
    %2004 = vmatpush1.msra.mxu0 %v139
    %2005 = vmatprep.subr.mxu0 %v148
    %2006 = vmatpush1.msra.mxu0 %v147
    %2007 = vmatprep.subr.mxu0 %v156
    %2008 = vmatpush1.msra.mxu0 %v155
    %2009 = vmatprep.subr.mxu0 %v164
    %2010 = vmatpush1.msra.mxu0 %v163
    %2011 = vmatprep.subr.mxu0 %v172
    %2012 = vmatpush1.msra.mxu0 %v171
    %2013 = vmatprep.subr.mxu0 %v180
    %2014 = vmatpush1.msra.mxu0 %v179
    %2015 = vmatprep.subr.mxu0 %v188
    %2016 = vmatpush1.msra.mxu0 %v187
    %2017 = vmatprep.subr.mxu0 %v196
    %2018 = vmatpush1.msra.mxu0 %v195
    %2019 = vmatprep.subr.mxu0 %v204
    %2020 = vmatpush1.msra.mxu0 %v203
    %2021 = vmatprep.subr.mxu0 %v212
    %2022 = vmatpush1.msra.mxu0 %v211
    %2023 = vmatprep.subr.mxu0 %v220
    %2024 = vmatpush1.msra.mxu0 %v219
    %2025 = vmatprep.subr.mxu0 %v228
    %2026 = vmatpush1.msra.mxu0 %v227
    %2027 = vmatprep.subr.mxu0 %v236
    %2028 = vmatpush1.msra.mxu0 %v235
    %2029 = vmatprep.subr.mxu0 %v244
    %2030 = vmatpush1.msra.mxu0 %v243
    %2031 = vmatprep.subr.mxu0 %v252
    %2032 = vmatpush1.msra.mxu0 %v251
    %2033 = vmatprep.subr.mxu0 %v260
    %2034 = vmatpush1.msra.mxu0 %v259
    %2035 = vmatprep.subr.mxu0 %v268
    %2036 = vmatpush1.msra.mxu0 %v267
    %2037 = vmatprep.subr.mxu0 %v276
    %2038 = vmatpush1.msra.mxu0 %v275
    %2039 = vmatprep.subr.mxu0 %v284
    %2040 = vmatpush1.msra.mxu0 %v283
    %2041 = vmatprep.subr.mxu0 %v292
    %2042 = vmatpush1.msra.mxu0 %v291
    %2043 = vmatprep.subr.mxu0 %v300
    %2044 = vmatpush1.msra.mxu0 %v299
    %2045 = vmatprep.subr.mxu0 %v308
    %2046 = vmatpush1.msra.mxu0 %v307
    %2047 = vmatprep.subr.mxu0 %v316
    %2048 = vmatpush1.msra.mxu0 %v315
    %2049 = vmatprep.subr.mxu0 %v324
    %2050 = vmatpush1.msra.mxu0 %v323
    %2051 = vmatprep.subr.mxu0 %v332
    %2052 = vmatpush1.msra.mxu0 %v331
    %2053 = vmatprep.subr.mxu0 %v340
    %2054 = vmatpush1.msra.mxu0 %v339
    %2055 = vmatprep.subr.mxu0 0.0
    %2056 = vmatpush1.msra.mxu0 0.0
    %2057 = vmatprep.subr.mxu0 0.0
    %2058 = vmatpush1.msra.mxu0 0.0
    %2059 = vmatprep.subr.mxu0 0.0
    %2060 = vmatpush1.msra.mxu0 0.0
    %2061 = vmatprep.subr.mxu0 0.0
    %2062 = vmatpush1.msra.mxu0 0.0
    %2063 = vmatprep.mubr.f32.mxu0 %v1855
    %2064 = vmatmul.mubr.f32.gmra.mrb[0].mxu0 %v1852
    %v2065 = vpop.f32.mrb[0].mxu0
    %v2066 = vadd.f32 0.0, %v2065
    %v2067 = vpop.f32.mrb[0].mxu0
    %v2068 = vadd.f32 0.0, %v2067
    %2069 = vdwg.mxu0
    %2070 = vmatprep.subr.mxu0 %v126
    %2071 = vmatpush1.msra.mxu0 %v125
    %2072 = vmatprep.subr.mxu0 %v134
    %2073 = vmatpush1.msra.mxu0 %v133
    %2074 = vmatprep.subr.mxu0 %v142
    %2075 = vmatpush1.msra.mxu0 %v141
    %2076 = vmatprep.subr.mxu0 %v150
    %2077 = vmatpush1.msra.mxu0 %v149
    %2078 = vmatprep.subr.mxu0 %v158
    %2079 = vmatpush1.msra.mxu0 %v157
    %2080 = vmatprep.subr.mxu0 %v166
    %2081 = vmatpush1.msra.mxu0 %v165
    %2082 = vmatprep.subr.mxu0 %v174
    %2083 = vmatpush1.msra.mxu0 %v173
    %2084 = vmatprep.subr.mxu0 %v182
    %2085 = vmatpush1.msra.mxu0 %v181
    %2086 = vmatprep.subr.mxu0 %v190
    %2087 = vmatpush1.msra.mxu0 %v189
    %2088 = vmatprep.subr.mxu0 %v198
    %2089 = vmatpush1.msra.mxu0 %v197
    %2090 = vmatprep.subr.mxu0 %v206
    %2091 = vmatpush1.msra.mxu0 %v205
    %2092 = vmatprep.subr.mxu0 %v214
    %2093 = vmatpush1.msra.mxu0 %v213
    %2094 = vmatprep.subr.mxu0 %v222
    %2095 = vmatpush1.msra.mxu0 %v221
    %2096 = vmatprep.subr.mxu0 %v230
    %2097 = vmatpush1.msra.mxu0 %v229
    %2098 = vmatprep.subr.mxu0 %v238
    %2099 = vmatpush1.msra.mxu0 %v237
    %2100 = vmatprep.subr.mxu0 %v246
    %2101 = vmatpush1.msra.mxu0 %v245
    %2102 = vmatprep.subr.mxu0 %v254
    %2103 = vmatpush1.msra.mxu0 %v253
    %2104 = vmatprep.subr.mxu0 %v262
    %2105 = vmatpush1.msra.mxu0 %v261
    %2106 = vmatprep.subr.mxu0 %v270
    %2107 = vmatpush1.msra.mxu0 %v269
    %2108 = vmatprep.subr.mxu0 %v278
    %2109 = vmatpush1.msra.mxu0 %v277
    %2110 = vmatprep.subr.mxu0 %v286
    %2111 = vmatpush1.msra.mxu0 %v285
    %2112 = vmatprep.subr.mxu0 %v294
    %2113 = vmatpush1.msra.mxu0 %v293
    %2114 = vmatprep.subr.mxu0 %v302
    %2115 = vmatpush1.msra.mxu0 %v301
    %2116 = vmatprep.subr.mxu0 %v310
    %2117 = vmatpush1.msra.mxu0 %v309
    %2118 = vmatprep.subr.mxu0 %v318
    %2119 = vmatpush1.msra.mxu0 %v317
    %2120 = vmatprep.subr.mxu0 %v326
    %2121 = vmatpush1.msra.mxu0 %v325
    %2122 = vmatprep.subr.mxu0 %v334
    %2123 = vmatpush1.msra.mxu0 %v333
    %2124 = vmatprep.subr.mxu0 %v342
    %2125 = vmatpush1.msra.mxu0 %v341
    %2126 = vmatprep.subr.mxu0 0.0
    %2127 = vmatpush1.msra.mxu0 0.0
    %2128 = vmatprep.subr.mxu0 0.0
    %2129 = vmatpush1.msra.mxu0 0.0
    %2130 = vmatprep.subr.mxu0 0.0
    %2131 = vmatpush1.msra.mxu0 0.0
    %2132 = vmatprep.subr.mxu0 0.0
    %2133 = vmatpush1.msra.mxu0 0.0
    %2134 = vmatprep.mubr.f32.mxu0 %v1855
    %2135 = vmatmul.mubr.f32.gmra.mrb[0].mxu0 %v1852
    %v2136 = vpop.f32.mrb[0].mxu0
    %v2137 = vadd.f32 0.0, %v2136
    %v2138 = vpop.f32.mrb[0].mxu0
    %v2139 = vadd.f32 0.0, %v2138
    %2140 = vdwg.mxu0
    %v2141 = vmax.f32 %v1924, %v1926
    %v2142 = vmax.f32 %v2141, %v1995
    %v2143 = vmax.f32 %v2142, %v1997
    %v2144 = vadd.f32 %v2143, %v642
    %v2145 = vmax.f32 %v2144, 0.0
    %v2146 = vmax.f32 %v2066, %v2068
    %v2147 = vmax.f32 %v2146, %v2137
    %v2148 = vmax.f32 %v2147, %v2139
    %v2149 = vadd.f32 %v2148, %v642
    %v2150 = vmax.f32 %v2149, 0.0
    %v2151 = vld [vmem:[#allocation4] sm:$0xff]
    %v2152 = vld [vmem:[#allocation4 + $0x8] sm:$0xff]
    %v2153 = vld [vmem:[#allocation4 + $0x10] sm:$0xff]
    %v2154 = vld [vmem:[#allocation4 + $0x18] sm:$0xff]
    %v2155 = vld [vmem:[#allocation4 + $0x20] sm:$0xff]
    %v2156 = vld [vmem:[#allocation4 + $0x28] sm:$0xff]
    %v2157 = vld [vmem:[#allocation4 + $0x30] sm:$0xff]
    %v2158 = vld [vmem:[#allocation4 + $0x38] sm:$0xff]
    %v2159 = vld [vmem:[#allocation4 + $0x40] sm:$0xff]
    %v2160 = vld [vmem:[#allocation4 + $0x48] sm:$0xff]
    %v2161 = vld [vmem:[#allocation4 + $0x50] sm:$0xff]
    %v2162 = vld [vmem:[#allocation4 + $0x58] sm:$0xff]
    %v2163 = vld [vmem:[#allocation4 + $0x60] sm:$0xff]
    %v2164 = vld [vmem:[#allocation4 + $0x68] sm:$0xff]
    %v2165 = vld [vmem:[#allocation4 + $0x70] sm:$0xff]
    %v2166 = vld [vmem:[#allocation4 + $0x78] sm:$0xff]
    %v2167 = vld [vmem:[#allocation4 + $0x80] sm:$0xff]
    %v2168 = vld [vmem:[#allocation4 + $0x88] sm:$0xff]
    %v2169 = vld [vmem:[#allocation4 + $0x90] sm:$0xff]
    %v2170 = vld [vmem:[#allocation4 + $0x98] sm:$0xff]
    %v2171 = vld [vmem:[#allocation4 + $0xa0] sm:$0xff]
    %v2172 = vld [vmem:[#allocation4 + $0xa8] sm:$0xff]
    %v2173 = vld [vmem:[#allocation4 + $0xb0] sm:$0xff]
    %v2174 = vld [vmem:[#allocation4 + $0xb8] sm:$0xff]
    %v2175 = vld [vmem:[#allocation4 + $0xc0] sm:$0xff]
    %v2176 = vld [vmem:[#allocation4 + $0xc8] sm:$0xff]
    %v2177 = vld [vmem:[#allocation4 + $0xd0] sm:$0xff]
    %v2178 = vld [vmem:[#allocation4 + $0xd8] sm:$0xff]
    %v2179 = vld [vmem:[#allocation4 + $0xe0] sm:$0xff]
    %v2180 = vld [vmem:[#allocation4 + $0xe8] sm:$0xff]
    %v2181 = vld [vmem:[#allocation4 + $0xf0] sm:$0xff]
    %v2182 = vld [vmem:[#allocation4 + $0xf8] sm:$0xff]
    %v2183 = vld [vmem:[#allocation4 + $0x100] sm:$0xff]
    %v2184 = vld [vmem:[#allocation4 + $0x108] sm:$0xff]
    %v2185 = vld [vmem:[#allocation4 + $0x110] sm:$0xff]
    %v2186 = vld [vmem:[#allocation4 + $0x118] sm:$0xff]
    %v2187 = vld [vmem:[#allocation4 + $0x120] sm:$0xff]
    %v2188 = vld [vmem:[#allocation4 + $0x128] sm:$0xff]
    %v2189 = vld [vmem:[#allocation4 + $0x130] sm:$0xff]
    %v2190 = vld [vmem:[#allocation4 + $0x138] sm:$0xff]
    %v2191 = vld [vmem:[#allocation4 + $0x140] sm:$0xff]
    %v2192 = vld [vmem:[#allocation4 + $0x148] sm:$0xff]
    %v2193 = vld [vmem:[#allocation4 + $0x150] sm:$0xff]
    %v2194 = vld [vmem:[#allocation4 + $0x158] sm:$0xff]
    %v2195 = vld [vmem:[#allocation4 + $0x160] sm:$0xff]
    %v2196 = vld [vmem:[#allocation4 + $0x168] sm:$0xff]
    %v2197 = vld [vmem:[#allocation4 + $0x170] sm:$0xff]
    %v2198 = vld [vmem:[#allocation4 + $0x178] sm:$0xff]
    %v2199 = vld [vmem:[#allocation4 + $0x180] sm:$0xff]
    %v2200 = vld [vmem:[#allocation4 + $0x188] sm:$0xff]
    %v2201 = vld [vmem:[#allocation4 + $0x190] sm:$0xff]
    %v2202 = vld [vmem:[#allocation4 + $0x198] sm:$0xff]
    %v2203 = vld [vmem:[#allocation4 + $0x1a0] sm:$0xff]
    %v2204 = vld [vmem:[#allocation4 + $0x1a8] sm:$0xff]
    %v2205 = vld [vmem:[#allocation4 + $0x1b0] sm:$0xff]
    %v2206 = vld [vmem:[#allocation4 + $0x1b8] sm:$0xff]
    %v2207 = vld [vmem:[#allocation4 + $0x1c0] sm:$0xff]
    %v2208 = vld [vmem:[#allocation4 + $0x1c8] sm:$0xff]
    %v2209 = vld [vmem:[#allocation4 + $0x1d0] sm:$0xff]
    %v2210 = vld [vmem:[#allocation4 + $0x1d8] sm:$0xff]
    %v2211 = vld [vmem:[#allocation4 + $0x1e0] sm:$0xff]
    %v2212 = vld [vmem:[#allocation4 + $0x1e8] sm:$0xff]
    %v2213 = vld [vmem:[#allocation4 + $0x1f0] sm:$0xff]
    %v2214 = vld [vmem:[#allocation4 + $0x1f8] sm:$0xff]
    %s2215 = scalar_lea.vmem [#allocation4], 512
    %v2216 = vld [vmem:[%s2215] sm:$0xff]
    %v2217 = vld [vmem:[%s2215 + $0x8] sm:$0xff]
    %v2218 = vld [vmem:[%s2215 + $0x10] sm:$0xff]
    %v2219 = vld [vmem:[%s2215 + $0x18] sm:$0xff]
    %v2220 = vld [vmem:[%s2215 + $0x20] sm:$0xff]
    %v2221 = vld [vmem:[%s2215 + $0x28] sm:$0xff]
    %v2222 = vld [vmem:[%s2215 + $0x30] sm:$0xff]
    %v2223 = vld [vmem:[%s2215 + $0x38] sm:$0xff]
    %v2224 = vld [vmem:[%s2215 + $0x40] sm:$0xff]
    %v2225 = vld [vmem:[%s2215 + $0x48] sm:$0xff]
    %v2226 = vld [vmem:[%s2215 + $0x50] sm:$0xff]
    %v2227 = vld [vmem:[%s2215 + $0x58] sm:$0xff]
    %v2228 = vld [vmem:[%s2215 + $0x60] sm:$0xff]
    %v2229 = vld [vmem:[%s2215 + $0x68] sm:$0xff]
    %v2230 = vld [vmem:[%s2215 + $0x70] sm:$0xff]
    %v2231 = vld [vmem:[%s2215 + $0x78] sm:$0xff]
    %v2232 = vld [vmem:[%s2215 + $0x80] sm:$0xff]
    %v2233 = vld [vmem:[%s2215 + $0x88] sm:$0xff]
    %v2234 = vld [vmem:[%s2215 + $0x90] sm:$0xff]
    %v2235 = vld [vmem:[%s2215 + $0x98] sm:$0xff]
    %v2236 = vld [vmem:[%s2215 + $0xa0] sm:$0xff]
    %v2237 = vld [vmem:[%s2215 + $0xa8] sm:$0xff]
    %v2238 = vld [vmem:[%s2215 + $0xb0] sm:$0xff]
    %v2239 = vld [vmem:[%s2215 + $0xb8] sm:$0xff]
    %v2240 = vld [vmem:[%s2215 + $0xc0] sm:$0xff]
    %v2241 = vld [vmem:[%s2215 + $0xc8] sm:$0xff]
    %v2242 = vld [vmem:[%s2215 + $0xd0] sm:$0xff]
    %v2243 = vld [vmem:[%s2215 + $0xd8] sm:$0xff]
    %v2244 = vld [vmem:[%s2215 + $0xe0] sm:$0xff]
    %v2245 = vld [vmem:[%s2215 + $0xe8] sm:$0xff]
    %v2246 = vld [vmem:[%s2215 + $0xf0] sm:$0xff]
    %v2247 = vld [vmem:[%s2215 + $0xf8] sm:$0xff]
    %v2248 = vld [vmem:[%s2215 + $0x100] sm:$0xff]
    %v2249 = vld [vmem:[%s2215 + $0x108] sm:$0xff]
    %v2250 = vld [vmem:[%s2215 + $0x110] sm:$0xff]
    %v2251 = vld [vmem:[%s2215 + $0x118] sm:$0xff]
    %v2252 = vld [vmem:[%s2215 + $0x120] sm:$0xff]
    %v2253 = vld [vmem:[%s2215 + $0x128] sm:$0xff]
    %v2254 = vld [vmem:[%s2215 + $0x130] sm:$0xff]
    %v2255 = vld [vmem:[%s2215 + $0x138] sm:$0xff]
    %v2256 = vld [vmem:[%s2215 + $0x140] sm:$0xff]
    %v2257 = vld [vmem:[%s2215 + $0x148] sm:$0xff]
    %v2258 = vld [vmem:[%s2215 + $0x150] sm:$0xff]
    %v2259 = vld [vmem:[%s2215 + $0x158] sm:$0xff]
    %v2260 = vld [vmem:[%s2215 + $0x160] sm:$0xff]
    %v2261 = vld [vmem:[%s2215 + $0x168] sm:$0xff]
    %v2262 = vld [vmem:[%s2215 + $0x170] sm:$0xff]
    %v2263 = vld [vmem:[%s2215 + $0x178] sm:$0xff]
    %v2264 = vld [vmem:[%s2215 + $0x180] sm:$0xff]
    %v2265 = vld [vmem:[%s2215 + $0x188] sm:$0xff]
    %v2266 = vld [vmem:[%s2215 + $0x190] sm:$0xff]
    %v2267 = vld [vmem:[%s2215 + $0x198] sm:$0xff]
    %v2268 = vld [vmem:[%s2215 + $0x1a0] sm:$0xff]
    %v2269 = vld [vmem:[%s2215 + $0x1a8] sm:$0xff]
    %v2270 = vld [vmem:[%s2215 + $0x1b0] sm:$0xff]
    %v2271 = vld [vmem:[%s2215 + $0x1b8] sm:$0xff]
    %v2272 = vld [vmem:[%s2215 + $0x1c0] sm:$0xff]
    %v2273 = vld [vmem:[%s2215 + $0x1c8] sm:$0xff]
    %v2274 = vld [vmem:[%s2215 + $0x1d0] sm:$0xff]
    %v2275 = vld [vmem:[%s2215 + $0x1d8] sm:$0xff]
    %v2276 = vld [vmem:[%s2215 + $0x1e0] sm:$0xff]
    %v2277 = vld [vmem:[%s2215 + $0x1e8] sm:$0xff]
    %v2278 = vld [vmem:[%s2215 + $0x1f0] sm:$0xff]
    %v2279 = vld [vmem:[%s2215 + $0x1f8] sm:$0xff]
    %2280 = vmatprep.subr.mxu0 %v2217
    %2281 = vmatpush1.msra.mxu0 %v2216
    %2282 = vmatprep.subr.mxu0 %v2221
    %2283 = vmatpush1.msra.mxu0 %v2220
    %2284 = vmatprep.subr.mxu0 %v2225
    %2285 = vmatpush1.msra.mxu0 %v2224
    %2286 = vmatprep.subr.mxu0 %v2229
    %2287 = vmatpush1.msra.mxu0 %v2228
    %2288 = vmatprep.subr.mxu0 %v2233
    %2289 = vmatpush1.msra.mxu0 %v2232
    %2290 = vmatprep.subr.mxu0 %v2237
    %2291 = vmatpush1.msra.mxu0 %v2236
    %2292 = vmatprep.subr.mxu0 %v2241
    %2293 = vmatpush1.msra.mxu0 %v2240
    %2294 = vmatprep.subr.mxu0 %v2245
    %2295 = vmatpush1.msra.mxu0 %v2244
    %2296 = vmatprep.subr.mxu0 %v2249
    %2297 = vmatpush1.msra.mxu0 %v2248
    %2298 = vmatprep.subr.mxu0 %v2253
    %2299 = vmatpush1.msra.mxu0 %v2252
    %2300 = vmatprep.subr.mxu0 %v2257
    %2301 = vmatpush1.msra.mxu0 %v2256
    %2302 = vmatprep.subr.mxu0 %v2261
    %2303 = vmatpush1.msra.mxu0 %v2260
    %2304 = vmatprep.subr.mxu0 %v2265
    %2305 = vmatpush1.msra.mxu0 %v2264
    %2306 = vmatprep.subr.mxu0 %v2269
    %2307 = vmatpush1.msra.mxu0 %v2268
    %2308 = vmatprep.subr.mxu0 %v2273
    %2309 = vmatpush1.msra.mxu0 %v2272
    %2310 = vmatprep.subr.mxu0 %v2277
    %2311 = vmatpush1.msra.mxu0 %v2276
    %2312 = vmatprep.subr.mxu0 0.0
    %2313 = vmatpush1.msra.mxu0 0.0
    %2314 = vmatprep.subr.mxu0 0.0
    %2315 = vmatpush1.msra.mxu0 0.0
    %2316 = vmatprep.subr.mxu0 0.0
    %2317 = vmatpush1.msra.mxu0 0.0
    %2318 = vmatprep.subr.mxu0 0.0
    %2319 = vmatpush1.msra.mxu0 0.0
    %2320 = vmatprep.subr.mxu0 0.0
    %2321 = vmatpush1.msra.mxu0 0.0
    %2322 = vmatprep.subr.mxu0 0.0
    %2323 = vmatpush1.msra.mxu0 0.0
    %2324 = vmatprep.subr.mxu0 0.0
    %2325 = vmatpush1.msra.mxu0 0.0
    %2326 = vmatprep.subr.mxu0 0.0
    %2327 = vmatpush1.msra.mxu0 0.0
    %2328 = vmatprep.subr.mxu0 0.0
    %2329 = vmatpush1.msra.mxu0 0.0
    %2330 = vmatprep.subr.mxu0 0.0
    %2331 = vmatpush1.msra.mxu0 0.0
    %2332 = vmatprep.subr.mxu0 0.0
    %2333 = vmatpush1.msra.mxu0 0.0
    %2334 = vmatprep.subr.mxu0 0.0
    %2335 = vmatpush1.msra.mxu0 0.0
    %2336 = vmatprep.subr.mxu0 0.0
    %2337 = vmatpush1.msra.mxu0 0.0
    %2338 = vmatprep.subr.mxu0 0.0
    %2339 = vmatpush1.msra.mxu0 0.0
    %2340 = vmatprep.subr.mxu0 0.0
    %2341 = vmatpush1.msra.mxu0 0.0
    %2342 = vmatprep.subr.mxu0 0.0
    %2343 = vmatpush1.msra.mxu0 0.0
    %2344 = vmatprep.mubr.f32.mxu0 0.0
    %2345 = vmatmul.mubr.f32.gmra.mrb[0].mxu0 %v650
    %v2346 = vpop.f32.mrb[0].mxu0
    %v2347 = vadd.f32 0.0, %v2346
    %v2348 = vpop.f32.mrb[0].mxu0
    %v2349 = vadd.f32 0.0, %v2348
    %2350 = vdwg.mxu0
    %2351 = vmatprep.subr.mxu0 %v2219
    %2352 = vmatpush1.msra.mxu0 %v2218
    %2353 = vmatprep.subr.mxu0 %v2223
    %2354 = vmatpush1.msra.mxu0 %v2222
    %2355 = vmatprep.subr.mxu0 %v2227
    %2356 = vmatpush1.msra.mxu0 %v2226
    %2357 = vmatprep.subr.mxu0 %v2231
    %2358 = vmatpush1.msra.mxu0 %v2230
    %2359 = vmatprep.subr.mxu0 %v2235
    %2360 = vmatpush1.msra.mxu0 %v2234
    %2361 = vmatprep.subr.mxu0 %v2239
    %2362 = vmatpush1.msra.mxu0 %v2238
    %2363 = vmatprep.subr.mxu0 %v2243
    %2364 = vmatpush1.msra.mxu0 %v2242
    %2365 = vmatprep.subr.mxu0 %v2247
    %2366 = vmatpush1.msra.mxu0 %v2246
    %2367 = vmatprep.subr.mxu0 %v2251
    %2368 = vmatpush1.msra.mxu0 %v2250
    %2369 = vmatprep.subr.mxu0 %v2255
    %2370 = vmatpush1.msra.mxu0 %v2254
    %2371 = vmatprep.subr.mxu0 %v2259
    %2372 = vmatpush1.msra.mxu0 %v2258
    %2373 = vmatprep.subr.mxu0 %v2263
    %2374 = vmatpush1.msra.mxu0 %v2262
    %2375 = vmatprep.subr.mxu0 %v2267
    %2376 = vmatpush1.msra.mxu0 %v2266
    %2377 = vmatprep.subr.mxu0 %v2271
    %2378 = vmatpush1.msra.mxu0 %v2270
    %2379 = vmatprep.subr.mxu0 %v2275
    %2380 = vmatpush1.msra.mxu0 %v2274
    %2381 = vmatprep.subr.mxu0 %v2279
    %2382 = vmatpush1.msra.mxu0 %v2278
    %2383 = vmatprep.subr.mxu0 0.0
    %2384 = vmatpush1.msra.mxu0 0.0
    %2385 = vmatprep.subr.mxu0 0.0
    %2386 = vmatpush1.msra.mxu0 0.0
    %2387 = vmatprep.subr.mxu0 0.0
    %2388 = vmatpush1.msra.mxu0 0.0
    %2389 = vmatprep.subr.mxu0 0.0
    %2390 = vmatpush1.msra.mxu0 0.0
    %2391 = vmatprep.subr.mxu0 0.0
    %2392 = vmatpush1.msra.mxu0 0.0
    %2393 = vmatprep.subr.mxu0 0.0
    %2394 = vmatpush1.msra.mxu0 0.0
    %2395 = vmatprep.subr.mxu0 0.0
    %2396 = vmatpush1.msra.mxu0 0.0
    %2397 = vmatprep.subr.mxu0 0.0
    %2398 = vmatpush1.msra.mxu0 0.0
    %2399 = vmatprep.subr.mxu0 0.0
    %2400 = vmatpush1.msra.mxu0 0.0
    %2401 = vmatprep.subr.mxu0 0.0
    %2402 = vmatpush1.msra.mxu0 0.0
    %2403 = vmatprep.subr.mxu0 0.0
    %2404 = vmatpush1.msra.mxu0 0.0
    %2405 = vmatprep.subr.mxu0 0.0
    %2406 = vmatpush1.msra.mxu0 0.0
    %2407 = vmatprep.subr.mxu0 0.0
    %2408 = vmatpush1.msra.mxu0 0.0
    %2409 = vmatprep.subr.mxu0 0.0
    %2410 = vmatpush1.msra.mxu0 0.0
    %2411 = vmatprep.subr.mxu0 0.0
    %2412 = vmatpush1.msra.mxu0 0.0
    %2413 = vmatprep.subr.mxu0 0.0
    %2414 = vmatpush1.msra.mxu0 0.0
    %2415 = vmatprep.mubr.f32.mxu0 0.0
    %2416 = vmatmul.mubr.f32.gmra.mrb[0].mxu0 %v650
    %v2417 = vpop.f32.mrb[0].mxu0
    %v2418 = vadd.f32 0.0, %v2417
    %v2419 = vpop.f32.mrb[0].mxu0
    %v2420 = vadd.f32 0.0, %v2419
    %2421 = vdwg.mxu0
    %2422 = vmatprep.subr.mxu0 %v2152
    %2423 = vmatpush1.msra.mxu0 %v2151
    %2424 = vmatprep.subr.mxu0 %v2156
    %2425 = vmatpush1.msra.mxu0 %v2155
    %2426 = vmatprep.subr.mxu0 %v2160
    %2427 = vmatpush1.msra.mxu0 %v2159
    %2428 = vmatprep.subr.mxu0 %v2164
    %2429 = vmatpush1.msra.mxu0 %v2163
    %2430 = vmatprep.subr.mxu0 %v2168
    %2431 = vmatpush1.msra.mxu0 %v2167
    %2432 = vmatprep.subr.mxu0 %v2172
    %2433 = vmatpush1.msra.mxu0 %v2171
    %2434 = vmatprep.subr.mxu0 %v2176
    %2435 = vmatpush1.msra.mxu0 %v2175
    %2436 = vmatprep.subr.mxu0 %v2180
    %2437 = vmatpush1.msra.mxu0 %v2179
    %2438 = vmatprep.subr.mxu0 %v2184
    %2439 = vmatpush1.msra.mxu0 %v2183
    %2440 = vmatprep.subr.mxu0 %v2188
    %2441 = vmatpush1.msra.mxu0 %v2187
    %2442 = vmatprep.subr.mxu0 %v2192
    %2443 = vmatpush1.msra.mxu0 %v2191
    %2444 = vmatprep.subr.mxu0 %v2196
    %2445 = vmatpush1.msra.mxu0 %v2195
    %2446 = vmatprep.subr.mxu0 %v2200
    %2447 = vmatpush1.msra.mxu0 %v2199
    %2448 = vmatprep.subr.mxu0 %v2204
    %2449 = vmatpush1.msra.mxu0 %v2203
    %2450 = vmatprep.subr.mxu0 %v2208
    %2451 = vmatpush1.msra.mxu0 %v2207
    %2452 = vmatprep.subr.mxu0 %v2212
    %2453 = vmatpush1.msra.mxu0 %v2211
    %2454 = vmatprep.subr.mxu0 0.0
    %2455 = vmatpush1.msra.mxu0 0.0
    %2456 = vmatprep.subr.mxu0 0.0
    %2457 = vmatpush1.msra.mxu0 0.0
    %2458 = vmatprep.subr.mxu0 0.0
    %2459 = vmatpush1.msra.mxu0 0.0
    %2460 = vmatprep.subr.mxu0 0.0
    %2461 = vmatpush1.msra.mxu0 0.0
    %2462 = vmatprep.subr.mxu0 0.0
    %2463 = vmatpush1.msra.mxu0 0.0
    %2464 = vmatprep.subr.mxu0 0.0
    %2465 = vmatpush1.msra.mxu0 0.0
    %2466 = vmatprep.subr.mxu0 0.0
    %2467 = vmatpush1.msra.mxu0 0.0
    %2468 = vmatprep.subr.mxu0 0.0
    %2469 = vmatpush1.msra.mxu0 0.0
    %2470 = vmatprep.subr.mxu0 0.0
    %2471 = vmatpush1.msra.mxu0 0.0
    %2472 = vmatprep.subr.mxu0 0.0
    %2473 = vmatpush1.msra.mxu0 0.0
    %2474 = vmatprep.subr.mxu0 0.0
    %2475 = vmatpush1.msra.mxu0 0.0
    %2476 = vmatprep.subr.mxu0 0.0
    %2477 = vmatpush1.msra.mxu0 0.0
    %2478 = vmatprep.subr.mxu0 0.0
    %2479 = vmatpush1.msra.mxu0 0.0
    %2480 = vmatprep.subr.mxu0 0.0
    %2481 = vmatpush1.msra.mxu0 0.0
    %2482 = vmatprep.subr.mxu0 0.0
    %2483 = vmatpush1.msra.mxu0 0.0
    %2484 = vmatprep.subr.mxu0 0.0
    %2485 = vmatpush1.msra.mxu0 0.0
    %2486 = vmatprep.mubr.f32.mxu0 0.0
    %2487 = vmatmul.mubr.f32.gmra.mrb[0].mxu0 %v645
    %v2488 = vpop.f32.mrb[0].mxu0
    %v2489 = vadd.f32 %v2347, %v2488
    %v2490 = vpop.f32.mrb[0].mxu0
    %v2491 = vadd.f32 %v2349, %v2490
    %2492 = vdwg.mxu0
    %2493 = vmatprep.subr.mxu0 %v2154
    %2494 = vmatpush1.msra.mxu0 %v2153
    %2495 = vmatprep.subr.mxu0 %v2158
    %2496 = vmatpush1.msra.mxu0 %v2157
    %2497 = vmatprep.subr.mxu0 %v2162
    %2498 = vmatpush1.msra.mxu0 %v2161
    %2499 = vmatprep.subr.mxu0 %v2166
    %2500 = vmatpush1.msra.mxu0 %v2165
    %2501 = vmatprep.subr.mxu0 %v2170
    %2502 = vmatpush1.msra.mxu0 %v2169
    %2503 = vmatprep.subr.mxu0 %v2174
    %2504 = vmatpush1.msra.mxu0 %v2173
    %2505 = vmatprep.subr.mxu0 %v2178
    %2506 = vmatpush1.msra.mxu0 %v2177
    %2507 = vmatprep.subr.mxu0 %v2182
    %2508 = vmatpush1.msra.mxu0 %v2181
    %2509 = vmatprep.subr.mxu0 %v2186
    %2510 = vmatpush1.msra.mxu0 %v2185
    %2511 = vmatprep.subr.mxu0 %v2190
    %2512 = vmatpush1.msra.mxu0 %v2189
    %2513 = vmatprep.subr.mxu0 %v2194
    %2514 = vmatpush1.msra.mxu0 %v2193
    %2515 = vmatprep.subr.mxu0 %v2198
    %2516 = vmatpush1.msra.mxu0 %v2197
    %2517 = vmatprep.subr.mxu0 %v2202
    %2518 = vmatpush1.msra.mxu0 %v2201
    %2519 = vmatprep.subr.mxu0 %v2206
    %2520 = vmatpush1.msra.mxu0 %v2205
    %2521 = vmatprep.subr.mxu0 %v2210
    %2522 = vmatpush1.msra.mxu0 %v2209
    %2523 = vmatprep.subr.mxu0 %v2214
    %2524 = vmatpush1.msra.mxu0 %v2213
    %2525 = vmatprep.subr.mxu0 0.0
    %2526 = vmatpush1.msra.mxu0 0.0
    %2527 = vmatprep.subr.mxu0 0.0
    %2528 = vmatpush1.msra.mxu0 0.0
    %2529 = vmatprep.subr.mxu0 0.0
    %2530 = vmatpush1.msra.mxu0 0.0
    %2531 = vmatprep.subr.mxu0 0.0
    %2532 = vmatpush1.msra.mxu0 0.0
    %2533 = vmatprep.subr.mxu0 0.0
    %2534 = vmatpush1.msra.mxu0 0.0
    %2535 = vmatprep.subr.mxu0 0.0
    %2536 = vmatpush1.msra.mxu0 0.0
    %2537 = vmatprep.subr.mxu0 0.0
    %2538 = vmatpush1.msra.mxu0 0.0
    %2539 = vmatprep.subr.mxu0 0.0
    %2540 = vmatpush1.msra.mxu0 0.0
    %2541 = vmatprep.subr.mxu0 0.0
    %2542 = vmatpush1.msra.mxu0 0.0
    %2543 = vmatprep.subr.mxu0 0.0
    %2544 = vmatpush1.msra.mxu0 0.0
    %2545 = vmatprep.subr.mxu0 0.0
    %2546 = vmatpush1.msra.mxu0 0.0
    %2547 = vmatprep.subr.mxu0 0.0
    %2548 = vmatpush1.msra.mxu0 0.0
    %2549 = vmatprep.subr.mxu0 0.0
    %2550 = vmatpush1.msra.mxu0 0.0
    %2551 = vmatprep.subr.mxu0 0.0
    %2552 = vmatpush1.msra.mxu0 0.0
    %2553 = vmatprep.subr.mxu0 0.0
    %2554 = vmatpush1.msra.mxu0 0.0
    %2555 = vmatprep.subr.mxu0 0.0
    %2556 = vmatpush1.msra.mxu0 0.0
    %2557 = vmatprep.mubr.f32.mxu0 0.0
    %2558 = vmatmul.mubr.f32.gmra.mrb[0].mxu0 %v645
    %v2559 = vpop.f32.mrb[0].mxu0
    %v2560 = vadd.f32 %v2418, %v2559
    %v2561 = vpop.f32.mrb[0].mxu0
    %v2562 = vadd.f32 %v2420, %v2561
    %2563 = vdwg.mxu0
    %2564 = vmatprep.subr.mxu0 %v2217
    %2565 = vmatpush1.msra.mxu0 %v2216
    %2566 = vmatprep.subr.mxu0 %v2221
    %2567 = vmatpush1.msra.mxu0 %v2220
    %2568 = vmatprep.subr.mxu0 %v2225
    %2569 = vmatpush1.msra.mxu0 %v2224
    %2570 = vmatprep.subr.mxu0 %v2229
    %2571 = vmatpush1.msra.mxu0 %v2228
    %2572 = vmatprep.subr.mxu0 %v2233
    %2573 = vmatpush1.msra.mxu0 %v2232
    %2574 = vmatprep.subr.mxu0 %v2237
    %2575 = vmatpush1.msra.mxu0 %v2236
    %2576 = vmatprep.subr.mxu0 %v2241
    %2577 = vmatpush1.msra.mxu0 %v2240
    %2578 = vmatprep.subr.mxu0 %v2245
    %2579 = vmatpush1.msra.mxu0 %v2244
    %2580 = vmatprep.subr.mxu0 %v2249
    %2581 = vmatpush1.msra.mxu0 %v2248
    %2582 = vmatprep.subr.mxu0 %v2253
    %2583 = vmatpush1.msra.mxu0 %v2252
    %2584 = vmatprep.subr.mxu0 %v2257
    %2585 = vmatpush1.msra.mxu0 %v2256
    %2586 = vmatprep.subr.mxu0 %v2261
    %2587 = vmatpush1.msra.mxu0 %v2260
    %2588 = vmatprep.subr.mxu0 %v2265
    %2589 = vmatpush1.msra.mxu0 %v2264
    %2590 = vmatprep.subr.mxu0 %v2269
    %2591 = vmatpush1.msra.mxu0 %v2268
    %2592 = vmatprep.subr.mxu0 %v2273
    %2593 = vmatpush1.msra.mxu0 %v2272
    %2594 = vmatprep.subr.mxu0 %v2277
    %2595 = vmatpush1.msra.mxu0 %v2276
    %2596 = vmatprep.subr.mxu0 0.0
    %2597 = vmatpush1.msra.mxu0 0.0
    %2598 = vmatprep.subr.mxu0 0.0
    %2599 = vmatpush1.msra.mxu0 0.0
    %2600 = vmatprep.subr.mxu0 0.0
    %2601 = vmatpush1.msra.mxu0 0.0
    %2602 = vmatprep.subr.mxu0 0.0
    %2603 = vmatpush1.msra.mxu0 0.0
    %2604 = vmatprep.subr.mxu0 0.0
    %2605 = vmatpush1.msra.mxu0 0.0
    %2606 = vmatprep.subr.mxu0 0.0
    %2607 = vmatpush1.msra.mxu0 0.0
    %2608 = vmatprep.subr.mxu0 0.0
    %2609 = vmatpush1.msra.mxu0 0.0
    %2610 = vmatprep.subr.mxu0 0.0
    %2611 = vmatpush1.msra.mxu0 0.0
    %2612 = vmatprep.subr.mxu0 0.0
    %2613 = vmatpush1.msra.mxu0 0.0
    %2614 = vmatprep.subr.mxu0 0.0
    %2615 = vmatpush1.msra.mxu0 0.0
    %2616 = vmatprep.subr.mxu0 0.0
    %2617 = vmatpush1.msra.mxu0 0.0
    %2618 = vmatprep.subr.mxu0 0.0
    %2619 = vmatpush1.msra.mxu0 0.0
    %2620 = vmatprep.subr.mxu0 0.0
    %2621 = vmatpush1.msra.mxu0 0.0
    %2622 = vmatprep.subr.mxu0 0.0
    %2623 = vmatpush1.msra.mxu0 0.0
    %2624 = vmatprep.subr.mxu0 0.0
    %2625 = vmatpush1.msra.mxu0 0.0
    %2626 = vmatprep.subr.mxu0 0.0
    %2627 = vmatpush1.msra.mxu0 0.0
    %2628 = vmatprep.mubr.f32.mxu0 0.0
    %2629 = vmatmul.mubr.f32.gmra.mrb[0].mxu0 %v950
    %v2630 = vpop.f32.mrb[0].mxu0
    %v2631 = vadd.f32 0.0, %v2630
    %v2632 = vpop.f32.mrb[0].mxu0
    %v2633 = vadd.f32 0.0, %v2632
    %2634 = vdwg.mxu0
    %2635 = vmatprep.subr.mxu0 %v2219
    %2636 = vmatpush1.msra.mxu0 %v2218
    %2637 = vmatprep.subr.mxu0 %v2223
    %2638 = vmatpush1.msra.mxu0 %v2222
    %2639 = vmatprep.subr.mxu0 %v2227
    %2640 = vmatpush1.msra.mxu0 %v2226
    %2641 = vmatprep.subr.mxu0 %v2231
    %2642 = vmatpush1.msra.mxu0 %v2230
    %2643 = vmatprep.subr.mxu0 %v2235
    %2644 = vmatpush1.msra.mxu0 %v2234
    %2645 = vmatprep.subr.mxu0 %v2239
    %2646 = vmatpush1.msra.mxu0 %v2238
    %2647 = vmatprep.subr.mxu0 %v2243
    %2648 = vmatpush1.msra.mxu0 %v2242
    %2649 = vmatprep.subr.mxu0 %v2247
    %2650 = vmatpush1.msra.mxu0 %v2246
    %2651 = vmatprep.subr.mxu0 %v2251
    %2652 = vmatpush1.msra.mxu0 %v2250
    %2653 = vmatprep.subr.mxu0 %v2255
    %2654 = vmatpush1.msra.mxu0 %v2254
    %2655 = vmatprep.subr.mxu0 %v2259
    %2656 = vmatpush1.msra.mxu0 %v2258
    %2657 = vmatprep.subr.mxu0 %v2263
    %2658 = vmatpush1.msra.mxu0 %v2262
    %2659 = vmatprep.subr.mxu0 %v2267
    %2660 = vmatpush1.msra.mxu0 %v2266
    %2661 = vmatprep.subr.mxu0 %v2271
    %2662 = vmatpush1.msra.mxu0 %v2270
    %2663 = vmatprep.subr.mxu0 %v2275
    %2664 = vmatpush1.msra.mxu0 %v2274
    %2665 = vmatprep.subr.mxu0 %v2279
    %2666 = vmatpush1.msra.mxu0 %v2278
    %2667 = vmatprep.subr.mxu0 0.0
    %2668 = vmatpush1.msra.mxu0 0.0
    %2669 = vmatprep.subr.mxu0 0.0
    %2670 = vmatpush1.msra.mxu0 0.0
    %2671 = vmatprep.subr.mxu0 0.0
    %2672 = vmatpush1.msra.mxu0 0.0
    %2673 = vmatprep.subr.mxu0 0.0
    %2674 = vmatpush1.msra.mxu0 0.0
    %2675 = vmatprep.subr.mxu0 0.0
    %2676 = vmatpush1.msra.mxu0 0.0
    %2677 = vmatprep.subr.mxu0 0.0
    %2678 = vmatpush1.msra.mxu0 0.0
    %2679 = vmatprep.subr.mxu0 0.0
    %2680 = vmatpush1.msra.mxu0 0.0
    %2681 = vmatprep.subr.mxu0 0.0
    %2682 = vmatpush1.msra.mxu0 0.0
    %2683 = vmatprep.subr.mxu0 0.0
    %2684 = vmatpush1.msra.mxu0 0.0
    %2685 = vmatprep.subr.mxu0 0.0
    %2686 = vmatpush1.msra.mxu0 0.0
    %2687 = vmatprep.subr.mxu0 0.0
    %2688 = vmatpush1.msra.mxu0 0.0
    %2689 = vmatprep.subr.mxu0 0.0
    %2690 = vmatpush1.msra.mxu0 0.0
    %2691 = vmatprep.subr.mxu0 0.0
    %2692 = vmatpush1.msra.mxu0 0.0
    %2693 = vmatprep.subr.mxu0 0.0
    %2694 = vmatpush1.msra.mxu0 0.0
    %2695 = vmatprep.subr.mxu0 0.0
    %2696 = vmatpush1.msra.mxu0 0.0
    %2697 = vmatprep.subr.mxu0 0.0
    %2698 = vmatpush1.msra.mxu0 0.0
    %2699 = vmatprep.mubr.f32.mxu0 0.0
    %2700 = vmatmul.mubr.f32.gmra.mrb[0].mxu0 %v950
    %v2701 = vpop.f32.mrb[0].mxu0
    %v2702 = vadd.f32 0.0, %v2701
    %v2703 = vpop.f32.mrb[0].mxu0
    %v2704 = vadd.f32 0.0, %v2703
    %2705 = vdwg.mxu0
    %2706 = vmatprep.subr.mxu0 %v2152
    %2707 = vmatpush1.msra.mxu0 %v2151
    %2708 = vmatprep.subr.mxu0 %v2156
    %2709 = vmatpush1.msra.mxu0 %v2155
    %2710 = vmatprep.subr.mxu0 %v2160
    %2711 = vmatpush1.msra.mxu0 %v2159
    %2712 = vmatprep.subr.mxu0 %v2164
    %2713 = vmatpush1.msra.mxu0 %v2163
    %2714 = vmatprep.subr.mxu0 %v2168
    %2715 = vmatpush1.msra.mxu0 %v2167
    %2716 = vmatprep.subr.mxu0 %v2172
    %2717 = vmatpush1.msra.mxu0 %v2171
    %2718 = vmatprep.subr.mxu0 %v2176
    %2719 = vmatpush1.msra.mxu0 %v2175
    %2720 = vmatprep.subr.mxu0 %v2180
    %2721 = vmatpush1.msra.mxu0 %v2179
    %2722 = vmatprep.subr.mxu0 %v2184
    %2723 = vmatpush1.msra.mxu0 %v2183
    %2724 = vmatprep.subr.mxu0 %v2188
    %2725 = vmatpush1.msra.mxu0 %v2187
    %2726 = vmatprep.subr.mxu0 %v2192
    %2727 = vmatpush1.msra.mxu0 %v2191
    %2728 = vmatprep.subr.mxu0 %v2196
    %2729 = vmatpush1.msra.mxu0 %v2195
    %2730 = vmatprep.subr.mxu0 %v2200
    %2731 = vmatpush1.msra.mxu0 %v2199
    %2732 = vmatprep.subr.mxu0 %v2204
    %2733 = vmatpush1.msra.mxu0 %v2203
    %2734 = vmatprep.subr.mxu0 %v2208
    %2735 = vmatpush1.msra.mxu0 %v2207
    %2736 = vmatprep.subr.mxu0 %v2212
    %2737 = vmatpush1.msra.mxu0 %v2211
    %2738 = vmatprep.subr.mxu0 0.0
    %2739 = vmatpush1.msra.mxu0 0.0
    %2740 = vmatprep.subr.mxu0 0.0
    %2741 = vmatpush1.msra.mxu0 0.0
    %2742 = vmatprep.subr.mxu0 0.0
    %2743 = vmatpush1.msra.mxu0 0.0
    %2744 = vmatprep.subr.mxu0 0.0
    %2745 = vmatpush1.msra.mxu0 0.0
    %2746 = vmatprep.subr.mxu0 0.0
    %2747 = vmatpush1.msra.mxu0 0.0
    %2748 = vmatprep.subr.mxu0 0.0
    %2749 = vmatpush1.msra.mxu0 0.0
    %2750 = vmatprep.subr.mxu0 0.0
    %2751 = vmatpush1.msra.mxu0 0.0
    %2752 = vmatprep.subr.mxu0 0.0
    %2753 = vmatpush1.msra.mxu0 0.0
    %2754 = vmatprep.subr.mxu0 0.0
    %2755 = vmatpush1.msra.mxu0 0.0
    %2756 = vmatprep.subr.mxu0 0.0
    %2757 = vmatpush1.msra.mxu0 0.0
    %2758 = vmatprep.subr.mxu0 0.0
    %2759 = vmatpush1.msra.mxu0 0.0
    %2760 = vmatprep.subr.mxu0 0.0
    %2761 = vmatpush1.msra.mxu0 0.0
    %2762 = vmatprep.subr.mxu0 0.0
    %2763 = vmatpush1.msra.mxu0 0.0
    %2764 = vmatprep.subr.mxu0 0.0
    %2765 = vmatpush1.msra.mxu0 0.0
    %2766 = vmatprep.subr.mxu0 0.0
    %2767 = vmatpush1.msra.mxu0 0.0
    %2768 = vmatprep.subr.mxu0 0.0
    %2769 = vmatpush1.msra.mxu0 0.0
    %2770 = vmatprep.mubr.f32.mxu0 0.0
    %2771 = vmatmul.mubr.f32.gmra.mrb[0].mxu0 %v945
    %v2772 = vpop.f32.mrb[0].mxu0
    %v2773 = vadd.f32 %v2631, %v2772
    %v2774 = vpop.f32.mrb[0].mxu0
    %v2775 = vadd.f32 %v2633, %v2774
    %2776 = vdwg.mxu0
    %2777 = vmatprep.subr.mxu0 %v2154
    %2778 = vmatpush1.msra.mxu0 %v2153
    %2779 = vmatprep.subr.mxu0 %v2158
    %2780 = vmatpush1.msra.mxu0 %v2157
    %2781 = vmatprep.subr.mxu0 %v2162
    %2782 = vmatpush1.msra.mxu0 %v2161
    %2783 = vmatprep.subr.mxu0 %v2166
    %2784 = vmatpush1.msra.mxu0 %v2165
    %2785 = vmatprep.subr.mxu0 %v2170
    %2786 = vmatpush1.msra.mxu0 %v2169
    %2787 = vmatprep.subr.mxu0 %v2174
    %2788 = vmatpush1.msra.mxu0 %v2173
    %2789 = vmatprep.subr.mxu0 %v2178
    %2790 = vmatpush1.msra.mxu0 %v2177
    %2791 = vmatprep.subr.mxu0 %v2182
    %2792 = vmatpush1.msra.mxu0 %v2181
    %2793 = vmatprep.subr.mxu0 %v2186
    %2794 = vmatpush1.msra.mxu0 %v2185
    %2795 = vmatprep.subr.mxu0 %v2190
    %2796 = vmatpush1.msra.mxu0 %v2189
    %2797 = vmatprep.subr.mxu0 %v2194
    %2798 = vmatpush1.msra.mxu0 %v2193
    %2799 = vmatprep.subr.mxu0 %v2198
    %2800 = vmatpush1.msra.mxu0 %v2197
    %2801 = vmatprep.subr.mxu0 %v2202
    %2802 = vmatpush1.msra.mxu0 %v2201
    %2803 = vmatprep.subr.mxu0 %v2206
    %2804 = vmatpush1.msra.mxu0 %v2205
    %2805 = vmatprep.subr.mxu0 %v2210
    %2806 = vmatpush1.msra.mxu0 %v2209
    %2807 = vmatprep.subr.mxu0 %v2214
    %2808 = vmatpush1.msra.mxu0 %v2213
    %2809 = vmatprep.subr.mxu0 0.0
    %2810 = vmatpush1.msra.mxu0 0.0
    %2811 = vmatprep.subr.mxu0 0.0
    %2812 = vmatpush1.msra.mxu0 0.0
    %2813 = vmatprep.subr.mxu0 0.0
    %2814 = vmatpush1.msra.mxu0 0.0
    %2815 = vmatprep.subr.mxu0 0.0
    %2816 = vmatpush1.msra.mxu0 0.0
    %2817 = vmatprep.subr.mxu0 0.0
    %2818 = vmatpush1.msra.mxu0 0.0
    %2819 = vmatprep.subr.mxu0 0.0
    %2820 = vmatpush1.msra.mxu0 0.0
    %2821 = vmatprep.subr.mxu0 0.0
    %2822 = vmatpush1.msra.mxu0 0.0
    %2823 = vmatprep.subr.mxu0 0.0
    %2824 = vmatpush1.msra.mxu0 0.0
    %2825 = vmatprep.subr.mxu0 0.0
    %2826 = vmatpush1.msra.mxu0 0.0
    %2827 = vmatprep.subr.mxu0 0.0
    %2828 = vmatpush1.msra.mxu0 0.0
    %2829 = vmatprep.subr.mxu0 0.0
    %2830 = vmatpush1.msra.mxu0 0.0
    %2831 = vmatprep.subr.mxu0 0.0
    %2832 = vmatpush1.msra.mxu0 0.0
    %2833 = vmatprep.subr.mxu0 0.0
    %2834 = vmatpush1.msra.mxu0 0.0
    %2835 = vmatprep.subr.mxu0 0.0
    %2836 = vmatpush1.msra.mxu0 0.0
    %2837 = vmatprep.subr.mxu0 0.0
    %2838 = vmatpush1.msra.mxu0 0.0
    %2839 = vmatprep.subr.mxu0 0.0
    %2840 = vmatpush1.msra.mxu0 0.0
    %2841 = vmatprep.mubr.f32.mxu0 0.0
    %2842 = vmatmul.mubr.f32.gmra.mrb[0].mxu0 %v945
    %v2843 = vpop.f32.mrb[0].mxu0
    %v2844 = vadd.f32 %v2702, %v2843
    %v2845 = vpop.f32.mrb[0].mxu0
    %v2846 = vadd.f32 %v2704, %v2845
    %2847 = vdwg.mxu0
    %2848 = vmatprep.subr.mxu0 %v2217
    %2849 = vmatpush1.msra.mxu0 %v2216
    %2850 = vmatprep.subr.mxu0 %v2221
    %2851 = vmatpush1.msra.mxu0 %v2220
    %2852 = vmatprep.subr.mxu0 %v2225
    %2853 = vmatpush1.msra.mxu0 %v2224
    %2854 = vmatprep.subr.mxu0 %v2229
    %2855 = vmatpush1.msra.mxu0 %v2228
    %2856 = vmatprep.subr.mxu0 %v2233
    %2857 = vmatpush1.msra.mxu0 %v2232
    %2858 = vmatprep.subr.mxu0 %v2237
    %2859 = vmatpush1.msra.mxu0 %v2236
    %2860 = vmatprep.subr.mxu0 %v2241
    %2861 = vmatpush1.msra.mxu0 %v2240
    %2862 = vmatprep.subr.mxu0 %v2245
    %2863 = vmatpush1.msra.mxu0 %v2244
    %2864 = vmatprep.subr.mxu0 %v2249
    %2865 = vmatpush1.msra.mxu0 %v2248
    %2866 = vmatprep.subr.mxu0 %v2253
    %2867 = vmatpush1.msra.mxu0 %v2252
    %2868 = vmatprep.subr.mxu0 %v2257
    %2869 = vmatpush1.msra.mxu0 %v2256
    %2870 = vmatprep.subr.mxu0 %v2261
    %2871 = vmatpush1.msra.mxu0 %v2260
    %2872 = vmatprep.subr.mxu0 %v2265
    %2873 = vmatpush1.msra.mxu0 %v2264
    %2874 = vmatprep.subr.mxu0 %v2269
    %2875 = vmatpush1.msra.mxu0 %v2268
    %2876 = vmatprep.subr.mxu0 %v2273
    %2877 = vmatpush1.msra.mxu0 %v2272
    %2878 = vmatprep.subr.mxu0 %v2277
    %2879 = vmatpush1.msra.mxu0 %v2276
    %2880 = vmatprep.subr.mxu0 0.0
    %2881 = vmatpush1.msra.mxu0 0.0
    %2882 = vmatprep.subr.mxu0 0.0
    %2883 = vmatpush1.msra.mxu0 0.0
    %2884 = vmatprep.subr.mxu0 0.0
    %2885 = vmatpush1.msra.mxu0 0.0
    %2886 = vmatprep.subr.mxu0 0.0
    %2887 = vmatpush1.msra.mxu0 0.0
    %2888 = vmatprep.subr.mxu0 0.0
    %2889 = vmatpush1.msra.mxu0 0.0
    %2890 = vmatprep.subr.mxu0 0.0
    %2891 = vmatpush1.msra.mxu0 0.0
    %2892 = vmatprep.subr.mxu0 0.0
    %2893 = vmatpush1.msra.mxu0 0.0
    %2894 = vmatprep.subr.mxu0 0.0
    %2895 = vmatpush1.msra.mxu0 0.0
    %2896 = vmatprep.subr.mxu0 0.0
    %2897 = vmatpush1.msra.mxu0 0.0
    %2898 = vmatprep.subr.mxu0 0.0
    %2899 = vmatpush1.msra.mxu0 0.0
    %2900 = vmatprep.subr.mxu0 0.0
    %2901 = vmatpush1.msra.mxu0 0.0
    %2902 = vmatprep.subr.mxu0 0.0
    %2903 = vmatpush1.msra.mxu0 0.0
    %2904 = vmatprep.subr.mxu0 0.0
    %2905 = vmatpush1.msra.mxu0 0.0
    %2906 = vmatprep.subr.mxu0 0.0
    %2907 = vmatpush1.msra.mxu0 0.0
    %2908 = vmatprep.subr.mxu0 0.0
    %2909 = vmatpush1.msra.mxu0 0.0
    %2910 = vmatprep.subr.mxu0 0.0
    %2911 = vmatpush1.msra.mxu0 0.0
    %2912 = vmatprep.mubr.f32.mxu0 0.0
    %2913 = vmatmul.mubr.f32.gmra.mrb[0].mxu0 %v1250
    %v2914 = vpop.f32.mrb[0].mxu0
    %v2915 = vadd.f32 0.0, %v2914
    %v2916 = vpop.f32.mrb[0].mxu0
    %v2917 = vadd.f32 0.0, %v2916
    %2918 = vdwg.mxu0
    %2919 = vmatprep.subr.mxu0 %v2219
    %2920 = vmatpush1.msra.mxu0 %v2218
    %2921 = vmatprep.subr.mxu0 %v2223
    %2922 = vmatpush1.msra.mxu0 %v2222
    %2923 = vmatprep.subr.mxu0 %v2227
    %2924 = vmatpush1.msra.mxu0 %v2226
    %2925 = vmatprep.subr.mxu0 %v2231
    %2926 = vmatpush1.msra.mxu0 %v2230
    %2927 = vmatprep.subr.mxu0 %v2235
    %2928 = vmatpush1.msra.mxu0 %v2234
    %2929 = vmatprep.subr.mxu0 %v2239
    %2930 = vmatpush1.msra.mxu0 %v2238
    %2931 = vmatprep.subr.mxu0 %v2243
    %2932 = vmatpush1.msra.mxu0 %v2242
    %2933 = vmatprep.subr.mxu0 %v2247
    %2934 = vmatpush1.msra.mxu0 %v2246
    %2935 = vmatprep.subr.mxu0 %v2251
    %2936 = vmatpush1.msra.mxu0 %v2250
    %2937 = vmatprep.subr.mxu0 %v2255
    %2938 = vmatpush1.msra.mxu0 %v2254
    %2939 = vmatprep.subr.mxu0 %v2259
    %2940 = vmatpush1.msra.mxu0 %v2258
    %2941 = vmatprep.subr.mxu0 %v2263
    %2942 = vmatpush1.msra.mxu0 %v2262
    %2943 = vmatprep.subr.mxu0 %v2267
    %2944 = vmatpush1.msra.mxu0 %v2266
    %2945 = vmatprep.subr.mxu0 %v2271
    %2946 = vmatpush1.msra.mxu0 %v2270
    %2947 = vmatprep.subr.mxu0 %v2275
    %2948 = vmatpush1.msra.mxu0 %v2274
    %2949 = vmatprep.subr.mxu0 %v2279
    %2950 = vmatpush1.msra.mxu0 %v2278
    %2951 = vmatprep.subr.mxu0 0.0
    %2952 = vmatpush1.msra.mxu0 0.0
    %2953 = vmatprep.subr.mxu0 0.0
    %2954 = vmatpush1.msra.mxu0 0.0
    %2955 = vmatprep.subr.mxu0 0.0
    %2956 = vmatpush1.msra.mxu0 0.0
    %2957 = vmatprep.subr.mxu0 0.0
    %2958 = vmatpush1.msra.mxu0 0.0
    %2959 = vmatprep.subr.mxu0 0.0
    %2960 = vmatpush1.msra.mxu0 0.0
    %2961 = vmatprep.subr.mxu0 0.0
    %2962 = vmatpush1.msra.mxu0 0.0
    %2963 = vmatprep.subr.mxu0 0.0
    %2964 = vmatpush1.msra.mxu0 0.0
    %2965 = vmatprep.subr.mxu0 0.0
    %2966 = vmatpush1.msra.mxu0 0.0
    %2967 = vmatprep.subr.mxu0 0.0
    %2968 = vmatpush1.msra.mxu0 0.0
    %2969 = vmatprep.subr.mxu0 0.0
    %2970 = vmatpush1.msra.mxu0 0.0
    %2971 = vmatprep.subr.mxu0 0.0
    %2972 = vmatpush1.msra.mxu0 0.0
    %2973 = vmatprep.subr.mxu0 0.0
    %2974 = vmatpush1.msra.mxu0 0.0
    %2975 = vmatprep.subr.mxu0 0.0
    %2976 = vmatpush1.msra.mxu0 0.0
    %2977 = vmatprep.subr.mxu0 0.0
    %2978 = vmatpush1.msra.mxu0 0.0
    %2979 = vmatprep.subr.mxu0 0.0
    %2980 = vmatpush1.msra.mxu0 0.0
    %2981 = vmatprep.subr.mxu0 0.0
    %2982 = vmatpush1.msra.mxu0 0.0
    %2983 = vmatprep.mubr.f32.mxu0 0.0
    %2984 = vmatmul.mubr.f32.gmra.mrb[0].mxu0 %v1250
    %v2985 = vpop.f32.mrb[0].mxu0
    %v2986 = vadd.f32 0.0, %v2985
    %v2987 = vpop.f32.mrb[0].mxu0
    %v2988 = vadd.f32 0.0, %v2987
    %2989 = vdwg.mxu0
    %2990 = vmatprep.subr.mxu0 %v2152
    %2991 = vmatpush1.msra.mxu0 %v2151
    %2992 = vmatprep.subr.mxu0 %v2156
    %2993 = vmatpush1.msra.mxu0 %v2155
    %2994 = vmatprep.subr.mxu0 %v2160
    %2995 = vmatpush1.msra.mxu0 %v2159
    %2996 = vmatprep.subr.mxu0 %v2164
    %2997 = vmatpush1.msra.mxu0 %v2163
    %2998 = vmatprep.subr.mxu0 %v2168
    %2999 = vmatpush1.msra.mxu0 %v2167
    %3000 = vmatprep.subr.mxu0 %v2172
    %3001 = vmatpush1.msra.mxu0 %v2171
    %3002 = vmatprep.subr.mxu0 %v2176
    %3003 = vmatpush1.msra.mxu0 %v2175
    %3004 = vmatprep.subr.mxu0 %v2180
    %3005 = vmatpush1.msra.mxu0 %v2179
    %3006 = vmatprep.subr.mxu0 %v2184
    %3007 = vmatpush1.msra.mxu0 %v2183
    %3008 = vmatprep.subr.mxu0 %v2188
    %3009 = vmatpush1.msra.mxu0 %v2187
    %3010 = vmatprep.subr.mxu0 %v2192
    %3011 = vmatpush1.msra.mxu0 %v2191
    %3012 = vmatprep.subr.mxu0 %v2196
    %3013 = vmatpush1.msra.mxu0 %v2195
    %3014 = vmatprep.subr.mxu0 %v2200
    %3015 = vmatpush1.msra.mxu0 %v2199
    %3016 = vmatprep.subr.mxu0 %v2204
    %3017 = vmatpush1.msra.mxu0 %v2203
    %3018 = vmatprep.subr.mxu0 %v2208
    %3019 = vmatpush1.msra.mxu0 %v2207
    %3020 = vmatprep.subr.mxu0 %v2212
    %3021 = vmatpush1.msra.mxu0 %v2211
    %3022 = vmatprep.subr.mxu0 0.0
    %3023 = vmatpush1.msra.mxu0 0.0
    %3024 = vmatprep.subr.mxu0 0.0
    %3025 = vmatpush1.msra.mxu0 0.0
    %3026 = vmatprep.subr.mxu0 0.0
    %3027 = vmatpush1.msra.mxu0 0.0
    %3028 = vmatprep.subr.mxu0 0.0
    %3029 = vmatpush1.msra.mxu0 0.0
    %3030 = vmatprep.subr.mxu0 0.0
    %3031 = vmatpush1.msra.mxu0 0.0
    %3032 = vmatprep.subr.mxu0 0.0
    %3033 = vmatpush1.msra.mxu0 0.0
    %3034 = vmatprep.subr.mxu0 0.0
    %3035 = vmatpush1.msra.mxu0 0.0
    %3036 = vmatprep.subr.mxu0 0.0
    %3037 = vmatpush1.msra.mxu0 0.0
    %3038 = vmatprep.subr.mxu0 0.0
    %3039 = vmatpush1.msra.mxu0 0.0
    %3040 = vmatprep.subr.mxu0 0.0
    %3041 = vmatpush1.msra.mxu0 0.0
    %3042 = vmatprep.subr.mxu0 0.0
    %3043 = vmatpush1.msra.mxu0 0.0
    %3044 = vmatprep.subr.mxu0 0.0
    %3045 = vmatpush1.msra.mxu0 0.0
    %3046 = vmatprep.subr.mxu0 0.0
    %3047 = vmatpush1.msra.mxu0 0.0
    %3048 = vmatprep.subr.mxu0 0.0
    %3049 = vmatpush1.msra.mxu0 0.0
    %3050 = vmatprep.subr.mxu0 0.0
    %3051 = vmatpush1.msra.mxu0 0.0
    %3052 = vmatprep.subr.mxu0 0.0
    %3053 = vmatpush1.msra.mxu0 0.0
    %3054 = vmatprep.mubr.f32.mxu0 0.0
    %3055 = vmatmul.mubr.f32.gmra.mrb[0].mxu0 %v1245
    %v3056 = vpop.f32.mrb[0].mxu0
    %v3057 = vadd.f32 %v2915, %v3056
    %v3058 = vpop.f32.mrb[0].mxu0
    %v3059 = vadd.f32 %v2917, %v3058
    %3060 = vdwg.mxu0
    %3061 = vmatprep.subr.mxu0 %v2154
    %3062 = vmatpush1.msra.mxu0 %v2153
    %3063 = vmatprep.subr.mxu0 %v2158
    %3064 = vmatpush1.msra.mxu0 %v2157
    %3065 = vmatprep.subr.mxu0 %v2162
    %3066 = vmatpush1.msra.mxu0 %v2161
    %3067 = vmatprep.subr.mxu0 %v2166
    %3068 = vmatpush1.msra.mxu0 %v2165
    %3069 = vmatprep.subr.mxu0 %v2170
    %3070 = vmatpush1.msra.mxu0 %v2169
    %3071 = vmatprep.subr.mxu0 %v2174
    %3072 = vmatpush1.msra.mxu0 %v2173
    %3073 = vmatprep.subr.mxu0 %v2178
    %3074 = vmatpush1.msra.mxu0 %v2177
    %3075 = vmatprep.subr.mxu0 %v2182
    %3076 = vmatpush1.msra.mxu0 %v2181
    %3077 = vmatprep.subr.mxu0 %v2186
    %3078 = vmatpush1.msra.mxu0 %v2185
    %3079 = vmatprep.subr.mxu0 %v2190
    %3080 = vmatpush1.msra.mxu0 %v2189
    %3081 = vmatprep.subr.mxu0 %v2194
    %3082 = vmatpush1.msra.mxu0 %v2193
    %3083 = vmatprep.subr.mxu0 %v2198
    %3084 = vmatpush1.msra.mxu0 %v2197
    %3085 = vmatprep.subr.mxu0 %v2202
    %3086 = vmatpush1.msra.mxu0 %v2201
    %3087 = vmatprep.subr.mxu0 %v2206
    %3088 = vmatpush1.msra.mxu0 %v2205
    %3089 = vmatprep.subr.mxu0 %v2210
    %3090 = vmatpush1.msra.mxu0 %v2209
    %3091 = vmatprep.subr.mxu0 %v2214
    %3092 = vmatpush1.msra.mxu0 %v2213
    %3093 = vmatprep.subr.mxu0 0.0
    %3094 = vmatpush1.msra.mxu0 0.0
    %3095 = vmatprep.subr.mxu0 0.0
    %3096 = vmatpush1.msra.mxu0 0.0
    %3097 = vmatprep.subr.mxu0 0.0
    %3098 = vmatpush1.msra.mxu0 0.0
    %3099 = vmatprep.subr.mxu0 0.0
    %3100 = vmatpush1.msra.mxu0 0.0
    %3101 = vmatprep.subr.mxu0 0.0
    %3102 = vmatpush1.msra.mxu0 0.0
    %3103 = vmatprep.subr.mxu0 0.0
    %3104 = vmatpush1.msra.mxu0 0.0
    %3105 = vmatprep.subr.mxu0 0.0
    %3106 = vmatpush1.msra.mxu0 0.0
    %3107 = vmatprep.subr.mxu0 0.0
    %3108 = vmatpush1.msra.mxu0 0.0
    %3109 = vmatprep.subr.mxu0 0.0
    %3110 = vmatpush1.msra.mxu0 0.0
    %3111 = vmatprep.subr.mxu0 0.0
    %3112 = vmatpush1.msra.mxu0 0.0
    %3113 = vmatprep.subr.mxu0 0.0
    %3114 = vmatpush1.msra.mxu0 0.0
    %3115 = vmatprep.subr.mxu0 0.0
    %3116 = vmatpush1.msra.mxu0 0.0
    %3117 = vmatprep.subr.mxu0 0.0
    %3118 = vmatpush1.msra.mxu0 0.0
    %3119 = vmatprep.subr.mxu0 0.0
    %3120 = vmatpush1.msra.mxu0 0.0
    %3121 = vmatprep.subr.mxu0 0.0
    %3122 = vmatpush1.msra.mxu0 0.0
    %3123 = vmatprep.subr.mxu0 0.0
    %3124 = vmatpush1.msra.mxu0 0.0
    %3125 = vmatprep.mubr.f32.mxu0 0.0
    %3126 = vmatmul.mubr.f32.gmra.mrb[0].mxu0 %v1245
    %v3127 = vpop.f32.mrb[0].mxu0
    %v3128 = vadd.f32 %v2986, %v3127
    %v3129 = vpop.f32.mrb[0].mxu0
    %v3130 = vadd.f32 %v2988, %v3129
    %3131 = vdwg.mxu0
    %3132 = vmatprep.subr.mxu0 %v2217
    %3133 = vmatpush1.msra.mxu0 %v2216
    %3134 = vmatprep.subr.mxu0 %v2221
    %3135 = vmatpush1.msra.mxu0 %v2220
    %3136 = vmatprep.subr.mxu0 %v2225
    %3137 = vmatpush1.msra.mxu0 %v2224
    %3138 = vmatprep.subr.mxu0 %v2229
    %3139 = vmatpush1.msra.mxu0 %v2228
    %3140 = vmatprep.subr.mxu0 %v2233
    %3141 = vmatpush1.msra.mxu0 %v2232
    %3142 = vmatprep.subr.mxu0 %v2237
    %3143 = vmatpush1.msra.mxu0 %v2236
    %3144 = vmatprep.subr.mxu0 %v2241
    %3145 = vmatpush1.msra.mxu0 %v2240
    %3146 = vmatprep.subr.mxu0 %v2245
    %3147 = vmatpush1.msra.mxu0 %v2244
    %3148 = vmatprep.subr.mxu0 %v2249
    %3149 = vmatpush1.msra.mxu0 %v2248
    %3150 = vmatprep.subr.mxu0 %v2253
    %3151 = vmatpush1.msra.mxu0 %v2252
    %3152 = vmatprep.subr.mxu0 %v2257
    %3153 = vmatpush1.msra.mxu0 %v2256
    %3154 = vmatprep.subr.mxu0 %v2261
    %3155 = vmatpush1.msra.mxu0 %v2260
    %3156 = vmatprep.subr.mxu0 %v2265
    %3157 = vmatpush1.msra.mxu0 %v2264
    %3158 = vmatprep.subr.mxu0 %v2269
    %3159 = vmatpush1.msra.mxu0 %v2268
    %3160 = vmatprep.subr.mxu0 %v2273
    %3161 = vmatpush1.msra.mxu0 %v2272
    %3162 = vmatprep.subr.mxu0 %v2277
    %3163 = vmatpush1.msra.mxu0 %v2276
    %3164 = vmatprep.subr.mxu0 0.0
    %3165 = vmatpush1.msra.mxu0 0.0
    %3166 = vmatprep.subr.mxu0 0.0
    %3167 = vmatpush1.msra.mxu0 0.0
    %3168 = vmatprep.subr.mxu0 0.0
    %3169 = vmatpush1.msra.mxu0 0.0
    %3170 = vmatprep.subr.mxu0 0.0
    %3171 = vmatpush1.msra.mxu0 0.0
    %3172 = vmatprep.subr.mxu0 0.0
    %3173 = vmatpush1.msra.mxu0 0.0
    %3174 = vmatprep.subr.mxu0 0.0
    %3175 = vmatpush1.msra.mxu0 0.0
    %3176 = vmatprep.subr.mxu0 0.0
    %3177 = vmatpush1.msra.mxu0 0.0
    %3178 = vmatprep.subr.mxu0 0.0
    %3179 = vmatpush1.msra.mxu0 0.0
    %3180 = vmatprep.subr.mxu0 0.0
    %3181 = vmatpush1.msra.mxu0 0.0
    %3182 = vmatprep.subr.mxu0 0.0
    %3183 = vmatpush1.msra.mxu0 0.0
    %3184 = vmatprep.subr.mxu0 0.0
    %3185 = vmatpush1.msra.mxu0 0.0
    %3186 = vmatprep.subr.mxu0 0.0
    %3187 = vmatpush1.msra.mxu0 0.0
    %3188 = vmatprep.subr.mxu0 0.0
    %3189 = vmatpush1.msra.mxu0 0.0
    %3190 = vmatprep.subr.mxu0 0.0
    %3191 = vmatpush1.msra.mxu0 0.0
    %3192 = vmatprep.subr.mxu0 0.0
    %3193 = vmatpush1.msra.mxu0 0.0
    %3194 = vmatprep.subr.mxu0 0.0
    %3195 = vmatpush1.msra.mxu0 0.0
    %3196 = vmatprep.mubr.f32.mxu0 0.0
    %3197 = vmatmul.mubr.f32.gmra.mrb[0].mxu0 %v1550
    %v3198 = vpop.f32.mrb[0].mxu0
    %v3199 = vadd.f32 0.0, %v3198
    %v3200 = vpop.f32.mrb[0].mxu0
    %v3201 = vadd.f32 0.0, %v3200
    %3202 = vdwg.mxu0
    %3203 = vmatprep.subr.mxu0 %v2219
    %3204 = vmatpush1.msra.mxu0 %v2218
    %3205 = vmatprep.subr.mxu0 %v2223
    %3206 = vmatpush1.msra.mxu0 %v2222
    %3207 = vmatprep.subr.mxu0 %v2227
    %3208 = vmatpush1.msra.mxu0 %v2226
    %3209 = vmatprep.subr.mxu0 %v2231
    %3210 = vmatpush1.msra.mxu0 %v2230
    %3211 = vmatprep.subr.mxu0 %v2235
    %3212 = vmatpush1.msra.mxu0 %v2234
    %3213 = vmatprep.subr.mxu0 %v2239
    %3214 = vmatpush1.msra.mxu0 %v2238
    %3215 = vmatprep.subr.mxu0 %v2243
    %3216 = vmatpush1.msra.mxu0 %v2242
    %3217 = vmatprep.subr.mxu0 %v2247
    %3218 = vmatpush1.msra.mxu0 %v2246
    %3219 = vmatprep.subr.mxu0 %v2251
    %3220 = vmatpush1.msra.mxu0 %v2250
    %3221 = vmatprep.subr.mxu0 %v2255
    %3222 = vmatpush1.msra.mxu0 %v2254
    %3223 = vmatprep.subr.mxu0 %v2259
    %3224 = vmatpush1.msra.mxu0 %v2258
    %3225 = vmatprep.subr.mxu0 %v2263
    %3226 = vmatpush1.msra.mxu0 %v2262
    %3227 = vmatprep.subr.mxu0 %v2267
    %3228 = vmatpush1.msra.mxu0 %v2266
    %3229 = vmatprep.subr.mxu0 %v2271
    %3230 = vmatpush1.msra.mxu0 %v2270
    %3231 = vmatprep.subr.mxu0 %v2275
    %3232 = vmatpush1.msra.mxu0 %v2274
    %3233 = vmatprep.subr.mxu0 %v2279
    %3234 = vmatpush1.msra.mxu0 %v2278
    %3235 = vmatprep.subr.mxu0 0.0
    %3236 = vmatpush1.msra.mxu0 0.0
    %3237 = vmatprep.subr.mxu0 0.0
    %3238 = vmatpush1.msra.mxu0 0.0
    %3239 = vmatprep.subr.mxu0 0.0
    %3240 = vmatpush1.msra.mxu0 0.0
    %3241 = vmatprep.subr.mxu0 0.0
    %3242 = vmatpush1.msra.mxu0 0.0
    %3243 = vmatprep.subr.mxu0 0.0
    %3244 = vmatpush1.msra.mxu0 0.0
    %3245 = vmatprep.subr.mxu0 0.0
    %3246 = vmatpush1.msra.mxu0 0.0
    %3247 = vmatprep.subr.mxu0 0.0
    %3248 = vmatpush1.msra.mxu0 0.0
    %3249 = vmatprep.subr.mxu0 0.0
    %3250 = vmatpush1.msra.mxu0 0.0
    %3251 = vmatprep.subr.mxu0 0.0
    %3252 = vmatpush1.msra.mxu0 0.0
    %3253 = vmatprep.subr.mxu0 0.0
    %3254 = vmatpush1.msra.mxu0 0.0
    %3255 = vmatprep.subr.mxu0 0.0
    %3256 = vmatpush1.msra.mxu0 0.0
    %3257 = vmatprep.subr.mxu0 0.0
    %3258 = vmatpush1.msra.mxu0 0.0
    %3259 = vmatprep.subr.mxu0 0.0
    %3260 = vmatpush1.msra.mxu0 0.0
    %3261 = vmatprep.subr.mxu0 0.0
    %3262 = vmatpush1.msra.mxu0 0.0
    %3263 = vmatprep.subr.mxu0 0.0
    %3264 = vmatpush1.msra.mxu0 0.0
    %3265 = vmatprep.subr.mxu0 0.0
    %3266 = vmatpush1.msra.mxu0 0.0
    %3267 = vmatprep.mubr.f32.mxu0 0.0
    %3268 = vmatmul.mubr.f32.gmra.mrb[0].mxu0 %v1550
    %v3269 = vpop.f32.mrb[0].mxu0
    %v3270 = vadd.f32 0.0, %v3269
    %v3271 = vpop.f32.mrb[0].mxu0
    %v3272 = vadd.f32 0.0, %v3271
    %3273 = vdwg.mxu0
    %3274 = vmatprep.subr.mxu0 %v2152
    %3275 = vmatpush1.msra.mxu0 %v2151
    %3276 = vmatprep.subr.mxu0 %v2156
    %3277 = vmatpush1.msra.mxu0 %v2155
    %3278 = vmatprep.subr.mxu0 %v2160
    %3279 = vmatpush1.msra.mxu0 %v2159
    %3280 = vmatprep.subr.mxu0 %v2164
    %3281 = vmatpush1.msra.mxu0 %v2163
    %3282 = vmatprep.subr.mxu0 %v2168
    %3283 = vmatpush1.msra.mxu0 %v2167
    %3284 = vmatprep.subr.mxu0 %v2172
    %3285 = vmatpush1.msra.mxu0 %v2171
    %3286 = vmatprep.subr.mxu0 %v2176
    %3287 = vmatpush1.msra.mxu0 %v2175
    %3288 = vmatprep.subr.mxu0 %v2180
    %3289 = vmatpush1.msra.mxu0 %v2179
    %3290 = vmatprep.subr.mxu0 %v2184
    %3291 = vmatpush1.msra.mxu0 %v2183
    %3292 = vmatprep.subr.mxu0 %v2188
    %3293 = vmatpush1.msra.mxu0 %v2187
    %3294 = vmatprep.subr.mxu0 %v2192
    %3295 = vmatpush1.msra.mxu0 %v2191
    %3296 = vmatprep.subr.mxu0 %v2196
    %3297 = vmatpush1.msra.mxu0 %v2195
    %3298 = vmatprep.subr.mxu0 %v2200
    %3299 = vmatpush1.msra.mxu0 %v2199
    %3300 = vmatprep.subr.mxu0 %v2204
    %3301 = vmatpush1.msra.mxu0 %v2203
    %3302 = vmatprep.subr.mxu0 %v2208
    %3303 = vmatpush1.msra.mxu0 %v2207
    %3304 = vmatprep.subr.mxu0 %v2212
    %3305 = vmatpush1.msra.mxu0 %v2211
    %3306 = vmatprep.subr.mxu0 0.0
    %3307 = vmatpush1.msra.mxu0 0.0
    %3308 = vmatprep.subr.mxu0 0.0
    %3309 = vmatpush1.msra.mxu0 0.0
    %3310 = vmatprep.subr.mxu0 0.0
    %3311 = vmatpush1.msra.mxu0 0.0
    %3312 = vmatprep.subr.mxu0 0.0
    %3313 = vmatpush1.msra.mxu0 0.0
    %3314 = vmatprep.subr.mxu0 0.0
    %3315 = vmatpush1.msra.mxu0 0.0
    %3316 = vmatprep.subr.mxu0 0.0
    %3317 = vmatpush1.msra.mxu0 0.0
    %3318 = vmatprep.subr.mxu0 0.0
    %3319 = vmatpush1.msra.mxu0 0.0
    %3320 = vmatprep.subr.mxu0 0.0
    %3321 = vmatpush1.msra.mxu0 0.0
    %3322 = vmatprep.subr.mxu0 0.0
    %3323 = vmatpush1.msra.mxu0 0.0
    %3324 = vmatprep.subr.mxu0 0.0
    %3325 = vmatpush1.msra.mxu0 0.0
    %3326 = vmatprep.subr.mxu0 0.0
    %3327 = vmatpush1.msra.mxu0 0.0
    %3328 = vmatprep.subr.mxu0 0.0
    %3329 = vmatpush1.msra.mxu0 0.0
    %3330 = vmatprep.subr.mxu0 0.0
    %3331 = vmatpush1.msra.mxu0 0.0
    %3332 = vmatprep.subr.mxu0 0.0
    %3333 = vmatpush1.msra.mxu0 0.0
    %3334 = vmatprep.subr.mxu0 0.0
    %3335 = vmatpush1.msra.mxu0 0.0
    %3336 = vmatprep.subr.mxu0 0.0
    %3337 = vmatpush1.msra.mxu0 0.0
    %3338 = vmatprep.mubr.f32.mxu0 0.0
    %3339 = vmatmul.mubr.f32.gmra.mrb[0].mxu0 %v1545
    %v3340 = vpop.f32.mrb[0].mxu0
    %v3341 = vadd.f32 %v3199, %v3340
    %v3342 = vpop.f32.mrb[0].mxu0
    %v3343 = vadd.f32 %v3201, %v3342
    %3344 = vdwg.mxu0
    %3345 = vmatprep.subr.mxu0 %v2154
    %3346 = vmatpush1.msra.mxu0 %v2153
    %3347 = vmatprep.subr.mxu0 %v2158
    %3348 = vmatpush1.msra.mxu0 %v2157
    %3349 = vmatprep.subr.mxu0 %v2162
    %3350 = vmatpush1.msra.mxu0 %v2161
    %3351 = vmatprep.subr.mxu0 %v2166
    %3352 = vmatpush1.msra.mxu0 %v2165
    %3353 = vmatprep.subr.mxu0 %v2170
    %3354 = vmatpush1.msra.mxu0 %v2169
    %3355 = vmatprep.subr.mxu0 %v2174
    %3356 = vmatpush1.msra.mxu0 %v2173
    %3357 = vmatprep.subr.mxu0 %v2178
    %3358 = vmatpush1.msra.mxu0 %v2177
    %3359 = vmatprep.subr.mxu0 %v2182
    %3360 = vmatpush1.msra.mxu0 %v2181
    %3361 = vmatprep.subr.mxu0 %v2186
    %3362 = vmatpush1.msra.mxu0 %v2185
    %3363 = vmatprep.subr.mxu0 %v2190
    %3364 = vmatpush1.msra.mxu0 %v2189
    %3365 = vmatprep.subr.mxu0 %v2194
    %3366 = vmatpush1.msra.mxu0 %v2193
    %3367 = vmatprep.subr.mxu0 %v2198
    %3368 = vmatpush1.msra.mxu0 %v2197
    %3369 = vmatprep.subr.mxu0 %v2202
    %3370 = vmatpush1.msra.mxu0 %v2201
    %3371 = vmatprep.subr.mxu0 %v2206
    %3372 = vmatpush1.msra.mxu0 %v2205
    %3373 = vmatprep.subr.mxu0 %v2210
    %3374 = vmatpush1.msra.mxu0 %v2209
    %3375 = vmatprep.subr.mxu0 %v2214
    %3376 = vmatpush1.msra.mxu0 %v2213
    %3377 = vmatprep.subr.mxu0 0.0
    %3378 = vmatpush1.msra.mxu0 0.0
    %3379 = vmatprep.subr.mxu0 0.0
    %3380 = vmatpush1.msra.mxu0 0.0
    %3381 = vmatprep.subr.mxu0 0.0
    %3382 = vmatpush1.msra.mxu0 0.0
    %3383 = vmatprep.subr.mxu0 0.0
    %3384 = vmatpush1.msra.mxu0 0.0
    %3385 = vmatprep.subr.mxu0 0.0
    %3386 = vmatpush1.msra.mxu0 0.0
    %3387 = vmatprep.subr.mxu0 0.0
    %3388 = vmatpush1.msra.mxu0 0.0
    %3389 = vmatprep.subr.mxu0 0.0
    %3390 = vmatpush1.msra.mxu0 0.0
    %3391 = vmatprep.subr.mxu0 0.0
    %3392 = vmatpush1.msra.mxu0 0.0
    %3393 = vmatprep.subr.mxu0 0.0
    %3394 = vmatpush1.msra.mxu0 0.0
    %3395 = vmatprep.subr.mxu0 0.0
    %3396 = vmatpush1.msra.mxu0 0.0
    %3397 = vmatprep.subr.mxu0 0.0
    %3398 = vmatpush1.msra.mxu0 0.0
    %3399 = vmatprep.subr.mxu0 0.0
    %3400 = vmatpush1.msra.mxu0 0.0
    %3401 = vmatprep.subr.mxu0 0.0
    %3402 = vmatpush1.msra.mxu0 0.0
    %3403 = vmatprep.subr.mxu0 0.0
    %3404 = vmatpush1.msra.mxu0 0.0
    %3405 = vmatprep.subr.mxu0 0.0
    %3406 = vmatpush1.msra.mxu0 0.0
    %3407 = vmatprep.subr.mxu0 0.0
    %3408 = vmatpush1.msra.mxu0 0.0
    %3409 = vmatprep.mubr.f32.mxu0 0.0
    %3410 = vmatmul.mubr.f32.gmra.mrb[0].mxu0 %v1545
    %v3411 = vpop.f32.mrb[0].mxu0
    %v3412 = vadd.f32 %v3270, %v3411
    %v3413 = vpop.f32.mrb[0].mxu0
    %v3414 = vadd.f32 %v3272, %v3413
    %3415 = vdwg.mxu0
    %s3416 = scalar_lea.vmem [#allocation4], 1024
    %v3417 = vld [vmem:[%s3416] sm:$0xff]
    %v3418 = vld [vmem:[%s3416 + $0x8] sm:$0xff]
    %v3419 = vld [vmem:[%s3416 + $0x10] sm:$0xff]
    %v3420 = vld [vmem:[%s3416 + $0x18] sm:$0xff]
    %v3421 = vld [vmem:[%s3416 + $0x20] sm:$0xff]
    %v3422 = vld [vmem:[%s3416 + $0x28] sm:$0xff]
    %v3423 = vld [vmem:[%s3416 + $0x30] sm:$0xff]
    %v3424 = vld [vmem:[%s3416 + $0x38] sm:$0xff]
    %v3425 = vld [vmem:[%s3416 + $0x40] sm:$0xff]
    %v3426 = vld [vmem:[%s3416 + $0x48] sm:$0xff]
    %v3427 = vld [vmem:[%s3416 + $0x50] sm:$0xff]
    %v3428 = vld [vmem:[%s3416 + $0x58] sm:$0xff]
    %v3429 = vld [vmem:[%s3416 + $0x60] sm:$0xff]
    %v3430 = vld [vmem:[%s3416 + $0x68] sm:$0xff]
    %v3431 = vld [vmem:[%s3416 + $0x70] sm:$0xff]
    %v3432 = vld [vmem:[%s3416 + $0x78] sm:$0xff]
    %v3433 = vld [vmem:[%s3416 + $0x80] sm:$0xff]
    %v3434 = vld [vmem:[%s3416 + $0x88] sm:$0xff]
    %v3435 = vld [vmem:[%s3416 + $0x90] sm:$0xff]
    %v3436 = vld [vmem:[%s3416 + $0x98] sm:$0xff]
    %v3437 = vld [vmem:[%s3416 + $0xa0] sm:$0xff]
    %v3438 = vld [vmem:[%s3416 + $0xa8] sm:$0xff]
    %v3439 = vld [vmem:[%s3416 + $0xb0] sm:$0xff]
    %v3440 = vld [vmem:[%s3416 + $0xb8] sm:$0xff]
    %v3441 = vld [vmem:[%s3416 + $0xc0] sm:$0xff]
    %v3442 = vld [vmem:[%s3416 + $0xc8] sm:$0xff]
    %v3443 = vld [vmem:[%s3416 + $0xd0] sm:$0xff]
    %v3444 = vld [vmem:[%s3416 + $0xd8] sm:$0xff]
    %v3445 = vld [vmem:[%s3416 + $0xe0] sm:$0xff]
    %v3446 = vld [vmem:[%s3416 + $0xe8] sm:$0xff]
    %v3447 = vld [vmem:[%s3416 + $0xf0] sm:$0xff]
    %v3448 = vld [vmem:[%s3416 + $0xf8] sm:$0xff]
    %v3449 = vld [vmem:[%s3416 + $0x100] sm:$0xff]
    %v3450 = vld [vmem:[%s3416 + $0x108] sm:$0xff]
    %v3451 = vld [vmem:[%s3416 + $0x110] sm:$0xff]
    %v3452 = vld [vmem:[%s3416 + $0x118] sm:$0xff]
    %v3453 = vld [vmem:[%s3416 + $0x120] sm:$0xff]
    %v3454 = vld [vmem:[%s3416 + $0x128] sm:$0xff]
    %v3455 = vld [vmem:[%s3416 + $0x130] sm:$0xff]
    %v3456 = vld [vmem:[%s3416 + $0x138] sm:$0xff]
    %v3457 = vld [vmem:[%s3416 + $0x140] sm:$0xff]
    %v3458 = vld [vmem:[%s3416 + $0x148] sm:$0xff]
    %v3459 = vld [vmem:[%s3416 + $0x150] sm:$0xff]
    %v3460 = vld [vmem:[%s3416 + $0x158] sm:$0xff]
    %v3461 = vld [vmem:[%s3416 + $0x160] sm:$0xff]
    %v3462 = vld [vmem:[%s3416 + $0x168] sm:$0xff]
    %v3463 = vld [vmem:[%s3416 + $0x170] sm:$0xff]
    %v3464 = vld [vmem:[%s3416 + $0x178] sm:$0xff]
    %v3465 = vld [vmem:[%s3416 + $0x180] sm:$0xff]
    %v3466 = vld [vmem:[%s3416 + $0x188] sm:$0xff]
    %v3467 = vld [vmem:[%s3416 + $0x190] sm:$0xff]
    %v3468 = vld [vmem:[%s3416 + $0x198] sm:$0xff]
    %v3469 = vld [vmem:[%s3416 + $0x1a0] sm:$0xff]
    %v3470 = vld [vmem:[%s3416 + $0x1a8] sm:$0xff]
    %v3471 = vld [vmem:[%s3416 + $0x1b0] sm:$0xff]
    %v3472 = vld [vmem:[%s3416 + $0x1b8] sm:$0xff]
    %v3473 = vld [vmem:[%s3416 + $0x1c0] sm:$0xff]
    %v3474 = vld [vmem:[%s3416 + $0x1c8] sm:$0xff]
    %v3475 = vld [vmem:[%s3416 + $0x1d0] sm:$0xff]
    %v3476 = vld [vmem:[%s3416 + $0x1d8] sm:$0xff]
    %v3477 = vld [vmem:[%s3416 + $0x1e0] sm:$0xff]
    %v3478 = vld [vmem:[%s3416 + $0x1e8] sm:$0xff]
    %v3479 = vld [vmem:[%s3416 + $0x1f0] sm:$0xff]
    %v3480 = vld [vmem:[%s3416 + $0x1f8] sm:$0xff]
    %3481 = vmatprep.subr.mxu0 %v3418
    %3482 = vmatpush1.msra.mxu0 %v3417
    %3483 = vmatprep.subr.mxu0 %v3422
    %3484 = vmatpush1.msra.mxu0 %v3421
    %3485 = vmatprep.subr.mxu0 %v3426
    %3486 = vmatpush1.msra.mxu0 %v3425
    %3487 = vmatprep.subr.mxu0 %v3430
    %3488 = vmatpush1.msra.mxu0 %v3429
    %3489 = vmatprep.subr.mxu0 %v3434
    %3490 = vmatpush1.msra.mxu0 %v3433
    %3491 = vmatprep.subr.mxu0 %v3438
    %3492 = vmatpush1.msra.mxu0 %v3437
    %3493 = vmatprep.subr.mxu0 %v3442
    %3494 = vmatpush1.msra.mxu0 %v3441
    %3495 = vmatprep.subr.mxu0 %v3446
    %3496 = vmatpush1.msra.mxu0 %v3445
    %3497 = vmatprep.subr.mxu0 %v3450
    %3498 = vmatpush1.msra.mxu0 %v3449
    %3499 = vmatprep.subr.mxu0 %v3454
    %3500 = vmatpush1.msra.mxu0 %v3453
    %3501 = vmatprep.subr.mxu0 %v3458
    %3502 = vmatpush1.msra.mxu0 %v3457
    %3503 = vmatprep.subr.mxu0 %v3462
    %3504 = vmatpush1.msra.mxu0 %v3461
    %3505 = vmatprep.subr.mxu0 %v3466
    %3506 = vmatpush1.msra.mxu0 %v3465
    %3507 = vmatprep.subr.mxu0 %v3470
    %3508 = vmatpush1.msra.mxu0 %v3469
    %3509 = vmatprep.subr.mxu0 %v3474
    %3510 = vmatpush1.msra.mxu0 %v3473
    %3511 = vmatprep.subr.mxu0 %v3478
    %3512 = vmatpush1.msra.mxu0 %v3477
    %3513 = vmatprep.subr.mxu0 0.0
    %3514 = vmatpush1.msra.mxu0 0.0
    %3515 = vmatprep.subr.mxu0 0.0
    %3516 = vmatpush1.msra.mxu0 0.0
    %3517 = vmatprep.subr.mxu0 0.0
    %3518 = vmatpush1.msra.mxu0 0.0
    %3519 = vmatprep.subr.mxu0 0.0
    %3520 = vmatpush1.msra.mxu0 0.0
    %3521 = vmatprep.subr.mxu0 0.0
    %3522 = vmatpush1.msra.mxu0 0.0
    %3523 = vmatprep.subr.mxu0 0.0
    %3524 = vmatpush1.msra.mxu0 0.0
    %3525 = vmatprep.subr.mxu0 0.0
    %3526 = vmatpush1.msra.mxu0 0.0
    %3527 = vmatprep.subr.mxu0 0.0
    %3528 = vmatpush1.msra.mxu0 0.0
    %3529 = vmatprep.subr.mxu0 0.0
    %3530 = vmatpush1.msra.mxu0 0.0
    %3531 = vmatprep.subr.mxu0 0.0
    %3532 = vmatpush1.msra.mxu0 0.0
    %3533 = vmatprep.subr.mxu0 0.0
    %3534 = vmatpush1.msra.mxu0 0.0
    %3535 = vmatprep.subr.mxu0 0.0
    %3536 = vmatpush1.msra.mxu0 0.0
    %3537 = vmatprep.subr.mxu0 0.0
    %3538 = vmatpush1.msra.mxu0 0.0
    %3539 = vmatprep.subr.mxu0 0.0
    %3540 = vmatpush1.msra.mxu0 0.0
    %3541 = vmatprep.subr.mxu0 0.0
    %3542 = vmatpush1.msra.mxu0 0.0
    %3543 = vmatprep.subr.mxu0 0.0
    %3544 = vmatpush1.msra.mxu0 0.0
    %3545 = vmatprep.mubr.f32.mxu0 0.0
    %3546 = vmatmul.mubr.f32.gmra.mrb[0].mxu0 %v945
    %v3547 = vpop.f32.mrb[0].mxu0
    %v3548 = vadd.f32 0.0, %v3547
    %v3549 = vpop.f32.mrb[0].mxu0
    %v3550 = vadd.f32 0.0, %v3549
    %3551 = vdwg.mxu0
    %3552 = vmatprep.subr.mxu0 %v3420
    %3553 = vmatpush1.msra.mxu0 %v3419
    %3554 = vmatprep.subr.mxu0 %v3424
    %3555 = vmatpush1.msra.mxu0 %v3423
    %3556 = vmatprep.subr.mxu0 %v3428
    %3557 = vmatpush1.msra.mxu0 %v3427
    %3558 = vmatprep.subr.mxu0 %v3432
    %3559 = vmatpush1.msra.mxu0 %v3431
    %3560 = vmatprep.subr.mxu0 %v3436
    %3561 = vmatpush1.msra.mxu0 %v3435
    %3562 = vmatprep.subr.mxu0 %v3440
    %3563 = vmatpush1.msra.mxu0 %v3439
    %3564 = vmatprep.subr.mxu0 %v3444
    %3565 = vmatpush1.msra.mxu0 %v3443
    %3566 = vmatprep.subr.mxu0 %v3448
    %3567 = vmatpush1.msra.mxu0 %v3447
    %3568 = vmatprep.subr.mxu0 %v3452
    %3569 = vmatpush1.msra.mxu0 %v3451
    %3570 = vmatprep.subr.mxu0 %v3456
    %3571 = vmatpush1.msra.mxu0 %v3455
    %3572 = vmatprep.subr.mxu0 %v3460
    %3573 = vmatpush1.msra.mxu0 %v3459
    %3574 = vmatprep.subr.mxu0 %v3464
    %3575 = vmatpush1.msra.mxu0 %v3463
    %3576 = vmatprep.subr.mxu0 %v3468
    %3577 = vmatpush1.msra.mxu0 %v3467
    %3578 = vmatprep.subr.mxu0 %v3472
    %3579 = vmatpush1.msra.mxu0 %v3471
    %3580 = vmatprep.subr.mxu0 %v3476
    %3581 = vmatpush1.msra.mxu0 %v3475
    %3582 = vmatprep.subr.mxu0 %v3480
    %3583 = vmatpush1.msra.mxu0 %v3479
    %3584 = vmatprep.subr.mxu0 0.0
    %3585 = vmatpush1.msra.mxu0 0.0
    %3586 = vmatprep.subr.mxu0 0.0
    %3587 = vmatpush1.msra.mxu0 0.0
    %3588 = vmatprep.subr.mxu0 0.0
    %3589 = vmatpush1.msra.mxu0 0.0
    %3590 = vmatprep.subr.mxu0 0.0
    %3591 = vmatpush1.msra.mxu0 0.0
    %3592 = vmatprep.subr.mxu0 0.0
    %3593 = vmatpush1.msra.mxu0 0.0
    %3594 = vmatprep.subr.mxu0 0.0
    %3595 = vmatpush1.msra.mxu0 0.0
    %3596 = vmatprep.subr.mxu0 0.0
    %3597 = vmatpush1.msra.mxu0 0.0
    %3598 = vmatprep.subr.mxu0 0.0
    %3599 = vmatpush1.msra.mxu0 0.0
    %3600 = vmatprep.subr.mxu0 0.0
    %3601 = vmatpush1.msra.mxu0 0.0
    %3602 = vmatprep.subr.mxu0 0.0
    %3603 = vmatpush1.msra.mxu0 0.0
    %3604 = vmatprep.subr.mxu0 0.0
    %3605 = vmatpush1.msra.mxu0 0.0
    %3606 = vmatprep.subr.mxu0 0.0
    %3607 = vmatpush1.msra.mxu0 0.0
    %3608 = vmatprep.subr.mxu0 0.0
    %3609 = vmatpush1.msra.mxu0 0.0
    %3610 = vmatprep.subr.mxu0 0.0
    %3611 = vmatpush1.msra.mxu0 0.0
    %3612 = vmatprep.subr.mxu0 0.0
    %3613 = vmatpush1.msra.mxu0 0.0
    %3614 = vmatprep.subr.mxu0 0.0
    %3615 = vmatpush1.msra.mxu0 0.0
    %3616 = vmatprep.mubr.f32.mxu0 0.0
    %3617 = vmatmul.mubr.f32.gmra.mrb[0].mxu0 %v945
    %v3618 = vpop.f32.mrb[0].mxu0
    %v3619 = vadd.f32 0.0, %v3618
    %v3620 = vpop.f32.mrb[0].mxu0
    %v3621 = vadd.f32 0.0, %v3620
    %3622 = vdwg.mxu0
    %v3623 = vadd.f32 %v2489, %v3548
    %v3624 = vadd.f32 %v2491, %v3550
    %v3625 = vadd.f32 %v2560, %v3619
    %v3626 = vadd.f32 %v2562, %v3621
    %3627 = vmatprep.subr.mxu0 %v3418
    %3628 = vmatpush1.msra.mxu0 %v3417
    %3629 = vmatprep.subr.mxu0 %v3422
    %3630 = vmatpush1.msra.mxu0 %v3421
    %3631 = vmatprep.subr.mxu0 %v3426
    %3632 = vmatpush1.msra.mxu0 %v3425
    %3633 = vmatprep.subr.mxu0 %v3430
    %3634 = vmatpush1.msra.mxu0 %v3429
    %3635 = vmatprep.subr.mxu0 %v3434
    %3636 = vmatpush1.msra.mxu0 %v3433
    %3637 = vmatprep.subr.mxu0 %v3438
    %3638 = vmatpush1.msra.mxu0 %v3437
    %3639 = vmatprep.subr.mxu0 %v3442
    %3640 = vmatpush1.msra.mxu0 %v3441
    %3641 = vmatprep.subr.mxu0 %v3446
    %3642 = vmatpush1.msra.mxu0 %v3445
    %3643 = vmatprep.subr.mxu0 %v3450
    %3644 = vmatpush1.msra.mxu0 %v3449
    %3645 = vmatprep.subr.mxu0 %v3454
    %3646 = vmatpush1.msra.mxu0 %v3453
    %3647 = vmatprep.subr.mxu0 %v3458
    %3648 = vmatpush1.msra.mxu0 %v3457
    %3649 = vmatprep.subr.mxu0 %v3462
    %3650 = vmatpush1.msra.mxu0 %v3461
    %3651 = vmatprep.subr.mxu0 %v3466
    %3652 = vmatpush1.msra.mxu0 %v3465
    %3653 = vmatprep.subr.mxu0 %v3470
    %3654 = vmatpush1.msra.mxu0 %v3469
    %3655 = vmatprep.subr.mxu0 %v3474
    %3656 = vmatpush1.msra.mxu0 %v3473
    %3657 = vmatprep.subr.mxu0 %v3478
    %3658 = vmatpush1.msra.mxu0 %v3477
    %3659 = vmatprep.subr.mxu0 0.0
    %3660 = vmatpush1.msra.mxu0 0.0
    %3661 = vmatprep.subr.mxu0 0.0
    %3662 = vmatpush1.msra.mxu0 0.0
    %3663 = vmatprep.subr.mxu0 0.0
    %3664 = vmatpush1.msra.mxu0 0.0
    %3665 = vmatprep.subr.mxu0 0.0
    %3666 = vmatpush1.msra.mxu0 0.0
    %3667 = vmatprep.subr.mxu0 0.0
    %3668 = vmatpush1.msra.mxu0 0.0
    %3669 = vmatprep.subr.mxu0 0.0
    %3670 = vmatpush1.msra.mxu0 0.0
    %3671 = vmatprep.subr.mxu0 0.0
    %3672 = vmatpush1.msra.mxu0 0.0
    %3673 = vmatprep.subr.mxu0 0.0
    %3674 = vmatpush1.msra.mxu0 0.0
    %3675 = vmatprep.subr.mxu0 0.0
    %3676 = vmatpush1.msra.mxu0 0.0
    %3677 = vmatprep.subr.mxu0 0.0
    %3678 = vmatpush1.msra.mxu0 0.0
    %3679 = vmatprep.subr.mxu0 0.0
    %3680 = vmatpush1.msra.mxu0 0.0
    %3681 = vmatprep.subr.mxu0 0.0
    %3682 = vmatpush1.msra.mxu0 0.0
    %3683 = vmatprep.subr.mxu0 0.0
    %3684 = vmatpush1.msra.mxu0 0.0
    %3685 = vmatprep.subr.mxu0 0.0
    %3686 = vmatpush1.msra.mxu0 0.0
    %3687 = vmatprep.subr.mxu0 0.0
    %3688 = vmatpush1.msra.mxu0 0.0
    %3689 = vmatprep.subr.mxu0 0.0
    %3690 = vmatpush1.msra.mxu0 0.0
    %3691 = vmatprep.mubr.f32.mxu0 0.0
    %3692 = vmatmul.mubr.f32.gmra.mrb[0].mxu0 %v1245
    %v3693 = vpop.f32.mrb[0].mxu0
    %v3694 = vadd.f32 0.0, %v3693
    %v3695 = vpop.f32.mrb[0].mxu0
    %v3696 = vadd.f32 0.0, %v3695
    %3697 = vdwg.mxu0
    %3698 = vmatprep.subr.mxu0 %v3420
    %3699 = vmatpush1.msra.mxu0 %v3419
    %3700 = vmatprep.subr.mxu0 %v3424
    %3701 = vmatpush1.msra.mxu0 %v3423
    %3702 = vmatprep.subr.mxu0 %v3428
    %3703 = vmatpush1.msra.mxu0 %v3427
    %3704 = vmatprep.subr.mxu0 %v3432
    %3705 = vmatpush1.msra.mxu0 %v3431
    %3706 = vmatprep.subr.mxu0 %v3436
    %3707 = vmatpush1.msra.mxu0 %v3435
    %3708 = vmatprep.subr.mxu0 %v3440
    %3709 = vmatpush1.msra.mxu0 %v3439
    %3710 = vmatprep.subr.mxu0 %v3444
    %3711 = vmatpush1.msra.mxu0 %v3443
    %3712 = vmatprep.subr.mxu0 %v3448
    %3713 = vmatpush1.msra.mxu0 %v3447
    %3714 = vmatprep.subr.mxu0 %v3452
    %3715 = vmatpush1.msra.mxu0 %v3451
    %3716 = vmatprep.subr.mxu0 %v3456
    %3717 = vmatpush1.msra.mxu0 %v3455
    %3718 = vmatprep.subr.mxu0 %v3460
    %3719 = vmatpush1.msra.mxu0 %v3459
    %3720 = vmatprep.subr.mxu0 %v3464
    %3721 = vmatpush1.msra.mxu0 %v3463
    %3722 = vmatprep.subr.mxu0 %v3468
    %3723 = vmatpush1.msra.mxu0 %v3467
    %3724 = vmatprep.subr.mxu0 %v3472
    %3725 = vmatpush1.msra.mxu0 %v3471
    %3726 = vmatprep.subr.mxu0 %v3476
    %3727 = vmatpush1.msra.mxu0 %v3475
    %3728 = vmatprep.subr.mxu0 %v3480
    %3729 = vmatpush1.msra.mxu0 %v3479
    %3730 = vmatprep.subr.mxu0 0.0
    %3731 = vmatpush1.msra.mxu0 0.0
    %3732 = vmatprep.subr.mxu0 0.0
    %3733 = vmatpush1.msra.mxu0 0.0
    %3734 = vmatprep.subr.mxu0 0.0
    %3735 = vmatpush1.msra.mxu0 0.0
    %3736 = vmatprep.subr.mxu0 0.0
    %3737 = vmatpush1.msra.mxu0 0.0
    %3738 = vmatprep.subr.mxu0 0.0
    %3739 = vmatpush1.msra.mxu0 0.0
    %3740 = vmatprep.subr.mxu0 0.0
    %3741 = vmatpush1.msra.mxu0 0.0
    %3742 = vmatprep.subr.mxu0 0.0
    %3743 = vmatpush1.msra.mxu0 0.0
    %3744 = vmatprep.subr.mxu0 0.0
    %3745 = vmatpush1.msra.mxu0 0.0
    %3746 = vmatprep.subr.mxu0 0.0
    %3747 = vmatpush1.msra.mxu0 0.0
    %3748 = vmatprep.subr.mxu0 0.0
    %3749 = vmatpush1.msra.mxu0 0.0
    %3750 = vmatprep.subr.mxu0 0.0
    %3751 = vmatpush1.msra.mxu0 0.0
    %3752 = vmatprep.subr.mxu0 0.0
    %3753 = vmatpush1.msra.mxu0 0.0
    %3754 = vmatprep.subr.mxu0 0.0
    %3755 = vmatpush1.msra.mxu0 0.0
    %3756 = vmatprep.subr.mxu0 0.0
    %3757 = vmatpush1.msra.mxu0 0.0
    %3758 = vmatprep.subr.mxu0 0.0
    %3759 = vmatpush1.msra.mxu0 0.0
    %3760 = vmatprep.subr.mxu0 0.0
    %3761 = vmatpush1.msra.mxu0 0.0
    %3762 = vmatprep.mubr.f32.mxu0 0.0
    %3763 = vmatmul.mubr.f32.gmra.mrb[0].mxu0 %v1245
    %v3764 = vpop.f32.mrb[0].mxu0
    %v3765 = vadd.f32 0.0, %v3764
    %v3766 = vpop.f32.mrb[0].mxu0
    %v3767 = vadd.f32 0.0, %v3766
    %3768 = vdwg.mxu0
    %v3769 = vadd.f32 %v2773, %v3694
    %v3770 = vadd.f32 %v2775, %v3696
    %v3771 = vadd.f32 %v2844, %v3765
    %v3772 = vadd.f32 %v2846, %v3767
    %3773 = vmatprep.subr.mxu0 %v3418
    %3774 = vmatpush1.msra.mxu0 %v3417
    %3775 = vmatprep.subr.mxu0 %v3422
    %3776 = vmatpush1.msra.mxu0 %v3421
    %3777 = vmatprep.subr.mxu0 %v3426
    %3778 = vmatpush1.msra.mxu0 %v3425
    %3779 = vmatprep.subr.mxu0 %v3430
    %3780 = vmatpush1.msra.mxu0 %v3429
    %3781 = vmatprep.subr.mxu0 %v3434
    %3782 = vmatpush1.msra.mxu0 %v3433
    %3783 = vmatprep.subr.mxu0 %v3438
    %3784 = vmatpush1.msra.mxu0 %v3437
    %3785 = vmatprep.subr.mxu0 %v3442
    %3786 = vmatpush1.msra.mxu0 %v3441
    %3787 = vmatprep.subr.mxu0 %v3446
    %3788 = vmatpush1.msra.mxu0 %v3445
    %3789 = vmatprep.subr.mxu0 %v3450
    %3790 = vmatpush1.msra.mxu0 %v3449
    %3791 = vmatprep.subr.mxu0 %v3454
    %3792 = vmatpush1.msra.mxu0 %v3453
    %3793 = vmatprep.subr.mxu0 %v3458
    %3794 = vmatpush1.msra.mxu0 %v3457
    %3795 = vmatprep.subr.mxu0 %v3462
    %3796 = vmatpush1.msra.mxu0 %v3461
    %3797 = vmatprep.subr.mxu0 %v3466
    %3798 = vmatpush1.msra.mxu0 %v3465
    %3799 = vmatprep.subr.mxu0 %v3470
    %3800 = vmatpush1.msra.mxu0 %v3469
    %3801 = vmatprep.subr.mxu0 %v3474
    %3802 = vmatpush1.msra.mxu0 %v3473
    %3803 = vmatprep.subr.mxu0 %v3478
    %3804 = vmatpush1.msra.mxu0 %v3477
    %3805 = vmatprep.subr.mxu0 0.0
    %3806 = vmatpush1.msra.mxu0 0.0
    %3807 = vmatprep.subr.mxu0 0.0
    %3808 = vmatpush1.msra.mxu0 0.0
    %3809 = vmatprep.subr.mxu0 0.0
    %3810 = vmatpush1.msra.mxu0 0.0
    %3811 = vmatprep.subr.mxu0 0.0
    %3812 = vmatpush1.msra.mxu0 0.0
    %3813 = vmatprep.subr.mxu0 0.0
    %3814 = vmatpush1.msra.mxu0 0.0
    %3815 = vmatprep.subr.mxu0 0.0
    %3816 = vmatpush1.msra.mxu0 0.0
    %3817 = vmatprep.subr.mxu0 0.0
    %3818 = vmatpush1.msra.mxu0 0.0
    %3819 = vmatprep.subr.mxu0 0.0
    %3820 = vmatpush1.msra.mxu0 0.0
    %3821 = vmatprep.subr.mxu0 0.0
    %3822 = vmatpush1.msra.mxu0 0.0
    %3823 = vmatprep.subr.mxu0 0.0
    %3824 = vmatpush1.msra.mxu0 0.0
    %3825 = vmatprep.subr.mxu0 0.0
    %3826 = vmatpush1.msra.mxu0 0.0
    %3827 = vmatprep.subr.mxu0 0.0
    %3828 = vmatpush1.msra.mxu0 0.0
    %3829 = vmatprep.subr.mxu0 0.0
    %3830 = vmatpush1.msra.mxu0 0.0
    %3831 = vmatprep.subr.mxu0 0.0
    %3832 = vmatpush1.msra.mxu0 0.0
    %3833 = vmatprep.subr.mxu0 0.0
    %3834 = vmatpush1.msra.mxu0 0.0
    %3835 = vmatprep.subr.mxu0 0.0
    %3836 = vmatpush1.msra.mxu0 0.0
    %3837 = vmatprep.mubr.f32.mxu0 0.0
    %3838 = vmatmul.mubr.f32.gmra.mrb[0].mxu0 %v1545
    %v3839 = vpop.f32.mrb[0].mxu0
    %v3840 = vadd.f32 0.0, %v3839
    %v3841 = vpop.f32.mrb[0].mxu0
    %v3842 = vadd.f32 0.0, %v3841
    %3843 = vdwg.mxu0
    %3844 = vmatprep.subr.mxu0 %v3420
    %3845 = vmatpush1.msra.mxu0 %v3419
    %3846 = vmatprep.subr.mxu0 %v3424
    %3847 = vmatpush1.msra.mxu0 %v3423
    %3848 = vmatprep.subr.mxu0 %v3428
    %3849 = vmatpush1.msra.mxu0 %v3427
    %3850 = vmatprep.subr.mxu0 %v3432
    %3851 = vmatpush1.msra.mxu0 %v3431
    %3852 = vmatprep.subr.mxu0 %v3436
    %3853 = vmatpush1.msra.mxu0 %v3435
    %3854 = vmatprep.subr.mxu0 %v3440
    %3855 = vmatpush1.msra.mxu0 %v3439
    %3856 = vmatprep.subr.mxu0 %v3444
    %3857 = vmatpush1.msra.mxu0 %v3443
    %3858 = vmatprep.subr.mxu0 %v3448
    %3859 = vmatpush1.msra.mxu0 %v3447
    %3860 = vmatprep.subr.mxu0 %v3452
    %3861 = vmatpush1.msra.mxu0 %v3451
    %3862 = vmatprep.subr.mxu0 %v3456
    %3863 = vmatpush1.msra.mxu0 %v3455
    %3864 = vmatprep.subr.mxu0 %v3460
    %3865 = vmatpush1.msra.mxu0 %v3459
    %3866 = vmatprep.subr.mxu0 %v3464
    %3867 = vmatpush1.msra.mxu0 %v3463
    %3868 = vmatprep.subr.mxu0 %v3468
    %3869 = vmatpush1.msra.mxu0 %v3467
    %3870 = vmatprep.subr.mxu0 %v3472
    %3871 = vmatpush1.msra.mxu0 %v3471
    %3872 = vmatprep.subr.mxu0 %v3476
    %3873 = vmatpush1.msra.mxu0 %v3475
    %3874 = vmatprep.subr.mxu0 %v3480
    %3875 = vmatpush1.msra.mxu0 %v3479
    %3876 = vmatprep.subr.mxu0 0.0
    %3877 = vmatpush1.msra.mxu0 0.0
    %3878 = vmatprep.subr.mxu0 0.0
    %3879 = vmatpush1.msra.mxu0 0.0
    %3880 = vmatprep.subr.mxu0 0.0
    %3881 = vmatpush1.msra.mxu0 0.0
    %3882 = vmatprep.subr.mxu0 0.0
    %3883 = vmatpush1.msra.mxu0 0.0
    %3884 = vmatprep.subr.mxu0 0.0
    %3885 = vmatpush1.msra.mxu0 0.0
    %3886 = vmatprep.subr.mxu0 0.0
    %3887 = vmatpush1.msra.mxu0 0.0
    %3888 = vmatprep.subr.mxu0 0.0
    %3889 = vmatpush1.msra.mxu0 0.0
    %3890 = vmatprep.subr.mxu0 0.0
    %3891 = vmatpush1.msra.mxu0 0.0
    %3892 = vmatprep.subr.mxu0 0.0
    %3893 = vmatpush1.msra.mxu0 0.0
    %3894 = vmatprep.subr.mxu0 0.0
    %3895 = vmatpush1.msra.mxu0 0.0
    %3896 = vmatprep.subr.mxu0 0.0
    %3897 = vmatpush1.msra.mxu0 0.0
    %3898 = vmatprep.subr.mxu0 0.0
    %3899 = vmatpush1.msra.mxu0 0.0
    %3900 = vmatprep.subr.mxu0 0.0
    %3901 = vmatpush1.msra.mxu0 0.0
    %3902 = vmatprep.subr.mxu0 0.0
    %3903 = vmatpush1.msra.mxu0 0.0
    %3904 = vmatprep.subr.mxu0 0.0
    %3905 = vmatpush1.msra.mxu0 0.0
    %3906 = vmatprep.subr.mxu0 0.0
    %3907 = vmatpush1.msra.mxu0 0.0
    %3908 = vmatprep.mubr.f32.mxu0 0.0
    %3909 = vmatmul.mubr.f32.gmra.mrb[0].mxu0 %v1545
    %v3910 = vpop.f32.mrb[0].mxu0
    %v3911 = vadd.f32 0.0, %v3910
    %v3912 = vpop.f32.mrb[0].mxu0
    %v3913 = vadd.f32 0.0, %v3912
    %3914 = vdwg.mxu0
    %v3915 = vadd.f32 %v3057, %v3840
    %v3916 = vadd.f32 %v3059, %v3842
    %v3917 = vadd.f32 %v3128, %v3911
    %v3918 = vadd.f32 %v3130, %v3913
    %3919 = vmatprep.subr.mxu0 %v3418
    %3920 = vmatpush1.msra.mxu0 %v3417
    %3921 = vmatprep.subr.mxu0 %v3422
    %3922 = vmatpush1.msra.mxu0 %v3421
    %3923 = vmatprep.subr.mxu0 %v3426
    %3924 = vmatpush1.msra.mxu0 %v3425
    %3925 = vmatprep.subr.mxu0 %v3430
    %3926 = vmatpush1.msra.mxu0 %v3429
    %3927 = vmatprep.subr.mxu0 %v3434
    %3928 = vmatpush1.msra.mxu0 %v3433
    %3929 = vmatprep.subr.mxu0 %v3438
    %3930 = vmatpush1.msra.mxu0 %v3437
    %3931 = vmatprep.subr.mxu0 %v3442
    %3932 = vmatpush1.msra.mxu0 %v3441
    %3933 = vmatprep.subr.mxu0 %v3446
    %3934 = vmatpush1.msra.mxu0 %v3445
    %3935 = vmatprep.subr.mxu0 %v3450
    %3936 = vmatpush1.msra.mxu0 %v3449
    %3937 = vmatprep.subr.mxu0 %v3454
    %3938 = vmatpush1.msra.mxu0 %v3453
    %3939 = vmatprep.subr.mxu0 %v3458
    %3940 = vmatpush1.msra.mxu0 %v3457
    %3941 = vmatprep.subr.mxu0 %v3462
    %3942 = vmatpush1.msra.mxu0 %v3461
    %3943 = vmatprep.subr.mxu0 %v3466
    %3944 = vmatpush1.msra.mxu0 %v3465
    %3945 = vmatprep.subr.mxu0 %v3470
    %3946 = vmatpush1.msra.mxu0 %v3469
    %3947 = vmatprep.subr.mxu0 %v3474
    %3948 = vmatpush1.msra.mxu0 %v3473
    %3949 = vmatprep.subr.mxu0 %v3478
    %3950 = vmatpush1.msra.mxu0 %v3477
    %3951 = vmatprep.subr.mxu0 0.0
    %3952 = vmatpush1.msra.mxu0 0.0
    %3953 = vmatprep.subr.mxu0 0.0
    %3954 = vmatpush1.msra.mxu0 0.0
    %3955 = vmatprep.subr.mxu0 0.0
    %3956 = vmatpush1.msra.mxu0 0.0
    %3957 = vmatprep.subr.mxu0 0.0
    %3958 = vmatpush1.msra.mxu0 0.0
    %3959 = vmatprep.subr.mxu0 0.0
    %3960 = vmatpush1.msra.mxu0 0.0
    %3961 = vmatprep.subr.mxu0 0.0
    %3962 = vmatpush1.msra.mxu0 0.0
    %3963 = vmatprep.subr.mxu0 0.0
    %3964 = vmatpush1.msra.mxu0 0.0
    %3965 = vmatprep.subr.mxu0 0.0
    %3966 = vmatpush1.msra.mxu0 0.0
    %3967 = vmatprep.subr.mxu0 0.0
    %3968 = vmatpush1.msra.mxu0 0.0
    %3969 = vmatprep.subr.mxu0 0.0
    %3970 = vmatpush1.msra.mxu0 0.0
    %3971 = vmatprep.subr.mxu0 0.0
    %3972 = vmatpush1.msra.mxu0 0.0
    %3973 = vmatprep.subr.mxu0 0.0
    %3974 = vmatpush1.msra.mxu0 0.0
    %3975 = vmatprep.subr.mxu0 0.0
    %3976 = vmatpush1.msra.mxu0 0.0
    %3977 = vmatprep.subr.mxu0 0.0
    %3978 = vmatpush1.msra.mxu0 0.0
    %3979 = vmatprep.subr.mxu0 0.0
    %3980 = vmatpush1.msra.mxu0 0.0
    %3981 = vmatprep.subr.mxu0 0.0
    %3982 = vmatpush1.msra.mxu0 0.0
    %3983 = vmatprep.mubr.f32.mxu0 0.0
    %3984 = vmatmul.mubr.f32.gmra.mrb[0].mxu0 %v1845
    %v3985 = vpop.f32.mrb[0].mxu0
    %v3986 = vadd.f32 0.0, %v3985
    %v3987 = vpop.f32.mrb[0].mxu0
    %v3988 = vadd.f32 0.0, %v3987
    %3989 = vdwg.mxu0
    %3990 = vmatprep.subr.mxu0 %v3420
    %3991 = vmatpush1.msra.mxu0 %v3419
    %3992 = vmatprep.subr.mxu0 %v3424
    %3993 = vmatpush1.msra.mxu0 %v3423
    %3994 = vmatprep.subr.mxu0 %v3428
    %3995 = vmatpush1.msra.mxu0 %v3427
    %3996 = vmatprep.subr.mxu0 %v3432
    %3997 = vmatpush1.msra.mxu0 %v3431
    %3998 = vmatprep.subr.mxu0 %v3436
    %3999 = vmatpush1.msra.mxu0 %v3435
    %4000 = vmatprep.subr.mxu0 %v3440
    %4001 = vmatpush1.msra.mxu0 %v3439
    %4002 = vmatprep.subr.mxu0 %v3444
    %4003 = vmatpush1.msra.mxu0 %v3443
    %4004 = vmatprep.subr.mxu0 %v3448
    %4005 = vmatpush1.msra.mxu0 %v3447
    %4006 = vmatprep.subr.mxu0 %v3452
    %4007 = vmatpush1.msra.mxu0 %v3451
    %4008 = vmatprep.subr.mxu0 %v3456
    %4009 = vmatpush1.msra.mxu0 %v3455
    %4010 = vmatprep.subr.mxu0 %v3460
    %4011 = vmatpush1.msra.mxu0 %v3459
    %4012 = vmatprep.subr.mxu0 %v3464
    %4013 = vmatpush1.msra.mxu0 %v3463
    %4014 = vmatprep.subr.mxu0 %v3468
    %4015 = vmatpush1.msra.mxu0 %v3467
    %4016 = vmatprep.subr.mxu0 %v3472
    %4017 = vmatpush1.msra.mxu0 %v3471
    %4018 = vmatprep.subr.mxu0 %v3476
    %4019 = vmatpush1.msra.mxu0 %v3475
    %4020 = vmatprep.subr.mxu0 %v3480
    %4021 = vmatpush1.msra.mxu0 %v3479
    %4022 = vmatprep.subr.mxu0 0.0
    %4023 = vmatpush1.msra.mxu0 0.0
    %4024 = vmatprep.subr.mxu0 0.0
    %4025 = vmatpush1.msra.mxu0 0.0
    %4026 = vmatprep.subr.mxu0 0.0
    %4027 = vmatpush1.msra.mxu0 0.0
    %4028 = vmatprep.subr.mxu0 0.0
    %4029 = vmatpush1.msra.mxu0 0.0
    %4030 = vmatprep.subr.mxu0 0.0
    %4031 = vmatpush1.msra.mxu0 0.0
    %4032 = vmatprep.subr.mxu0 0.0
    %4033 = vmatpush1.msra.mxu0 0.0
    %4034 = vmatprep.subr.mxu0 0.0
    %4035 = vmatpush1.msra.mxu0 0.0
    %4036 = vmatprep.subr.mxu0 0.0
    %4037 = vmatpush1.msra.mxu0 0.0
    %4038 = vmatprep.subr.mxu0 0.0
    %4039 = vmatpush1.msra.mxu0 0.0
    %4040 = vmatprep.subr.mxu0 0.0
    %4041 = vmatpush1.msra.mxu0 0.0
    %4042 = vmatprep.subr.mxu0 0.0
    %4043 = vmatpush1.msra.mxu0 0.0
    %4044 = vmatprep.subr.mxu0 0.0
    %4045 = vmatpush1.msra.mxu0 0.0
    %4046 = vmatprep.subr.mxu0 0.0
    %4047 = vmatpush1.msra.mxu0 0.0
    %4048 = vmatprep.subr.mxu0 0.0
    %4049 = vmatpush1.msra.mxu0 0.0
    %4050 = vmatprep.subr.mxu0 0.0
    %4051 = vmatpush1.msra.mxu0 0.0
    %4052 = vmatprep.subr.mxu0 0.0
    %4053 = vmatpush1.msra.mxu0 0.0
    %4054 = vmatprep.mubr.f32.mxu0 0.0
    %4055 = vmatmul.mubr.f32.gmra.mrb[0].mxu0 %v1845
    %v4056 = vpop.f32.mrb[0].mxu0
    %v4057 = vadd.f32 0.0, %v4056
    %v4058 = vpop.f32.mrb[0].mxu0
    %v4059 = vadd.f32 0.0, %v4058
    %4060 = vdwg.mxu0
    %v4061 = vadd.f32 %v3341, %v3986
    %v4062 = vadd.f32 %v3343, %v3988
    %v4063 = vadd.f32 %v3412, %v4057
    %v4064 = vadd.f32 %v3414, %v4059
    %s4065 = scalar_lea.vmem [#allocation4], 1536
    %v4066 = vld [vmem:[%s4065] sm:$0xff]
    %v4067 = vld [vmem:[%s4065 + $0x8] sm:$0xff]
    %v4068 = vld [vmem:[%s4065 + $0x10] sm:$0xff]
    %v4069 = vld [vmem:[%s4065 + $0x18] sm:$0xff]
    %v4070 = vld [vmem:[%s4065 + $0x20] sm:$0xff]
    %v4071 = vld [vmem:[%s4065 + $0x28] sm:$0xff]
    %v4072 = vld [vmem:[%s4065 + $0x30] sm:$0xff]
    %v4073 = vld [vmem:[%s4065 + $0x38] sm:$0xff]
    %v4074 = vld [vmem:[%s4065 + $0x40] sm:$0xff]
    %v4075 = vld [vmem:[%s4065 + $0x48] sm:$0xff]
    %v4076 = vld [vmem:[%s4065 + $0x50] sm:$0xff]
    %v4077 = vld [vmem:[%s4065 + $0x58] sm:$0xff]
    %v4078 = vld [vmem:[%s4065 + $0x60] sm:$0xff]
    %v4079 = vld [vmem:[%s4065 + $0x68] sm:$0xff]
    %v4080 = vld [vmem:[%s4065 + $0x70] sm:$0xff]
    %v4081 = vld [vmem:[%s4065 + $0x78] sm:$0xff]
    %v4082 = vld [vmem:[%s4065 + $0x80] sm:$0xff]
    %v4083 = vld [vmem:[%s4065 + $0x88] sm:$0xff]
    %v4084 = vld [vmem:[%s4065 + $0x90] sm:$0xff]
    %v4085 = vld [vmem:[%s4065 + $0x98] sm:$0xff]
    %v4086 = vld [vmem:[%s4065 + $0xa0] sm:$0xff]
    %v4087 = vld [vmem:[%s4065 + $0xa8] sm:$0xff]
    %v4088 = vld [vmem:[%s4065 + $0xb0] sm:$0xff]
    %v4089 = vld [vmem:[%s4065 + $0xb8] sm:$0xff]
    %v4090 = vld [vmem:[%s4065 + $0xc0] sm:$0xff]
    %v4091 = vld [vmem:[%s4065 + $0xc8] sm:$0xff]
    %v4092 = vld [vmem:[%s4065 + $0xd0] sm:$0xff]
    %v4093 = vld [vmem:[%s4065 + $0xd8] sm:$0xff]
    %v4094 = vld [vmem:[%s4065 + $0xe0] sm:$0xff]
    %v4095 = vld [vmem:[%s4065 + $0xe8] sm:$0xff]
    %v4096 = vld [vmem:[%s4065 + $0xf0] sm:$0xff]
    %v4097 = vld [vmem:[%s4065 + $0xf8] sm:$0xff]
    %v4098 = vld [vmem:[%s4065 + $0x100] sm:$0xff]
    %v4099 = vld [vmem:[%s4065 + $0x108] sm:$0xff]
    %v4100 = vld [vmem:[%s4065 + $0x110] sm:$0xff]
    %v4101 = vld [vmem:[%s4065 + $0x118] sm:$0xff]
    %v4102 = vld [vmem:[%s4065 + $0x120] sm:$0xff]
    %v4103 = vld [vmem:[%s4065 + $0x128] sm:$0xff]
    %v4104 = vld [vmem:[%s4065 + $0x130] sm:$0xff]
    %v4105 = vld [vmem:[%s4065 + $0x138] sm:$0xff]
    %v4106 = vld [vmem:[%s4065 + $0x140] sm:$0xff]
    %v4107 = vld [vmem:[%s4065 + $0x148] sm:$0xff]
    %v4108 = vld [vmem:[%s4065 + $0x150] sm:$0xff]
    %v4109 = vld [vmem:[%s4065 + $0x158] sm:$0xff]
    %v4110 = vld [vmem:[%s4065 + $0x160] sm:$0xff]
    %v4111 = vld [vmem:[%s4065 + $0x168] sm:$0xff]
    %v4112 = vld [vmem:[%s4065 + $0x170] sm:$0xff]
    %v4113 = vld [vmem:[%s4065 + $0x178] sm:$0xff]
    %v4114 = vld [vmem:[%s4065 + $0x180] sm:$0xff]
    %v4115 = vld [vmem:[%s4065 + $0x188] sm:$0xff]
    %v4116 = vld [vmem:[%s4065 + $0x190] sm:$0xff]
    %v4117 = vld [vmem:[%s4065 + $0x198] sm:$0xff]
    %v4118 = vld [vmem:[%s4065 + $0x1a0] sm:$0xff]
    %v4119 = vld [vmem:[%s4065 + $0x1a8] sm:$0xff]
    %v4120 = vld [vmem:[%s4065 + $0x1b0] sm:$0xff]
    %v4121 = vld [vmem:[%s4065 + $0x1b8] sm:$0xff]
    %v4122 = vld [vmem:[%s4065 + $0x1c0] sm:$0xff]
    %v4123 = vld [vmem:[%s4065 + $0x1c8] sm:$0xff]
    %v4124 = vld [vmem:[%s4065 + $0x1d0] sm:$0xff]
    %v4125 = vld [vmem:[%s4065 + $0x1d8] sm:$0xff]
    %v4126 = vld [vmem:[%s4065 + $0x1e0] sm:$0xff]
    %v4127 = vld [vmem:[%s4065 + $0x1e8] sm:$0xff]
    %v4128 = vld [vmem:[%s4065 + $0x1f0] sm:$0xff]
    %v4129 = vld [vmem:[%s4065 + $0x1f8] sm:$0xff]
    %4130 = vmatprep.subr.mxu0 %v4067
    %4131 = vmatpush1.msra.mxu0 %v4066
    %4132 = vmatprep.subr.mxu0 %v4071
    %4133 = vmatpush1.msra.mxu0 %v4070
    %4134 = vmatprep.subr.mxu0 %v4075
    %4135 = vmatpush1.msra.mxu0 %v4074
    %4136 = vmatprep.subr.mxu0 %v4079
    %4137 = vmatpush1.msra.mxu0 %v4078
    %4138 = vmatprep.subr.mxu0 %v4083
    %4139 = vmatpush1.msra.mxu0 %v4082
    %4140 = vmatprep.subr.mxu0 %v4087
    %4141 = vmatpush1.msra.mxu0 %v4086
    %4142 = vmatprep.subr.mxu0 %v4091
    %4143 = vmatpush1.msra.mxu0 %v4090
    %4144 = vmatprep.subr.mxu0 %v4095
    %4145 = vmatpush1.msra.mxu0 %v4094
    %4146 = vmatprep.subr.mxu0 %v4099
    %4147 = vmatpush1.msra.mxu0 %v4098
    %4148 = vmatprep.subr.mxu0 %v4103
    %4149 = vmatpush1.msra.mxu0 %v4102
    %4150 = vmatprep.subr.mxu0 %v4107
    %4151 = vmatpush1.msra.mxu0 %v4106
    %4152 = vmatprep.subr.mxu0 %v4111
    %4153 = vmatpush1.msra.mxu0 %v4110
    %4154 = vmatprep.subr.mxu0 %v4115
    %4155 = vmatpush1.msra.mxu0 %v4114
    %4156 = vmatprep.subr.mxu0 %v4119
    %4157 = vmatpush1.msra.mxu0 %v4118
    %4158 = vmatprep.subr.mxu0 %v4123
    %4159 = vmatpush1.msra.mxu0 %v4122
    %4160 = vmatprep.subr.mxu0 %v4127
    %4161 = vmatpush1.msra.mxu0 %v4126
    %4162 = vmatprep.subr.mxu0 0.0
    %4163 = vmatpush1.msra.mxu0 0.0
    %4164 = vmatprep.subr.mxu0 0.0
    %4165 = vmatpush1.msra.mxu0 0.0
    %4166 = vmatprep.subr.mxu0 0.0
    %4167 = vmatpush1.msra.mxu0 0.0
    %4168 = vmatprep.subr.mxu0 0.0
    %4169 = vmatpush1.msra.mxu0 0.0
    %4170 = vmatprep.subr.mxu0 0.0
    %4171 = vmatpush1.msra.mxu0 0.0
    %4172 = vmatprep.subr.mxu0 0.0
    %4173 = vmatpush1.msra.mxu0 0.0
    %4174 = vmatprep.subr.mxu0 0.0
    %4175 = vmatpush1.msra.mxu0 0.0
    %4176 = vmatprep.subr.mxu0 0.0
    %4177 = vmatpush1.msra.mxu0 0.0
    %4178 = vmatprep.subr.mxu0 0.0
    %4179 = vmatpush1.msra.mxu0 0.0
    %4180 = vmatprep.subr.mxu0 0.0
    %4181 = vmatpush1.msra.mxu0 0.0
    %4182 = vmatprep.subr.mxu0 0.0
    %4183 = vmatpush1.msra.mxu0 0.0
    %4184 = vmatprep.subr.mxu0 0.0
    %4185 = vmatpush1.msra.mxu0 0.0
    %4186 = vmatprep.subr.mxu0 0.0
    %4187 = vmatpush1.msra.mxu0 0.0
    %4188 = vmatprep.subr.mxu0 0.0
    %4189 = vmatpush1.msra.mxu0 0.0
    %4190 = vmatprep.subr.mxu0 0.0
    %4191 = vmatpush1.msra.mxu0 0.0
    %4192 = vmatprep.subr.mxu0 0.0
    %4193 = vmatpush1.msra.mxu0 0.0
    %4194 = vmatprep.mubr.f32.mxu0 0.0
    %4195 = vmatmul.mubr.f32.gmra.mrb[0].mxu0 %v950
    %v4196 = vpop.f32.mrb[0].mxu0
    %v4197 = vadd.f32 0.0, %v4196
    %v4198 = vpop.f32.mrb[0].mxu0
    %v4199 = vadd.f32 0.0, %v4198
    %4200 = vdwg.mxu0
    %4201 = vmatprep.subr.mxu0 %v4069
    %4202 = vmatpush1.msra.mxu0 %v4068
    %4203 = vmatprep.subr.mxu0 %v4073
    %4204 = vmatpush1.msra.mxu0 %v4072
    %4205 = vmatprep.subr.mxu0 %v4077
    %4206 = vmatpush1.msra.mxu0 %v4076
    %4207 = vmatprep.subr.mxu0 %v4081
    %4208 = vmatpush1.msra.mxu0 %v4080
    %4209 = vmatprep.subr.mxu0 %v4085
    %4210 = vmatpush1.msra.mxu0 %v4084
    %4211 = vmatprep.subr.mxu0 %v4089
    %4212 = vmatpush1.msra.mxu0 %v4088
    %4213 = vmatprep.subr.mxu0 %v4093
    %4214 = vmatpush1.msra.mxu0 %v4092
    %4215 = vmatprep.subr.mxu0 %v4097
    %4216 = vmatpush1.msra.mxu0 %v4096
    %4217 = vmatprep.subr.mxu0 %v4101
    %4218 = vmatpush1.msra.mxu0 %v4100
    %4219 = vmatprep.subr.mxu0 %v4105
    %4220 = vmatpush1.msra.mxu0 %v4104
    %4221 = vmatprep.subr.mxu0 %v4109
    %4222 = vmatpush1.msra.mxu0 %v4108
    %4223 = vmatprep.subr.mxu0 %v4113
    %4224 = vmatpush1.msra.mxu0 %v4112
    %4225 = vmatprep.subr.mxu0 %v4117
    %4226 = vmatpush1.msra.mxu0 %v4116
    %4227 = vmatprep.subr.mxu0 %v4121
    %4228 = vmatpush1.msra.mxu0 %v4120
    %4229 = vmatprep.subr.mxu0 %v4125
    %4230 = vmatpush1.msra.mxu0 %v4124
    %4231 = vmatprep.subr.mxu0 %v4129
    %4232 = vmatpush1.msra.mxu0 %v4128
    %4233 = vmatprep.subr.mxu0 0.0
    %4234 = vmatpush1.msra.mxu0 0.0
    %4235 = vmatprep.subr.mxu0 0.0
    %4236 = vmatpush1.msra.mxu0 0.0
    %4237 = vmatprep.subr.mxu0 0.0
    %4238 = vmatpush1.msra.mxu0 0.0
    %4239 = vmatprep.subr.mxu0 0.0
    %4240 = vmatpush1.msra.mxu0 0.0
    %4241 = vmatprep.subr.mxu0 0.0
    %4242 = vmatpush1.msra.mxu0 0.0
    %4243 = vmatprep.subr.mxu0 0.0
    %4244 = vmatpush1.msra.mxu0 0.0
    %4245 = vmatprep.subr.mxu0 0.0
    %4246 = vmatpush1.msra.mxu0 0.0
    %4247 = vmatprep.subr.mxu0 0.0
    %4248 = vmatpush1.msra.mxu0 0.0
    %4249 = vmatprep.subr.mxu0 0.0
    %4250 = vmatpush1.msra.mxu0 0.0
    %4251 = vmatprep.subr.mxu0 0.0
    %4252 = vmatpush1.msra.mxu0 0.0
    %4253 = vmatprep.subr.mxu0 0.0
    %4254 = vmatpush1.msra.mxu0 0.0
    %4255 = vmatprep.subr.mxu0 0.0
    %4256 = vmatpush1.msra.mxu0 0.0
    %4257 = vmatprep.subr.mxu0 0.0
    %4258 = vmatpush1.msra.mxu0 0.0
    %4259 = vmatprep.subr.mxu0 0.0
    %4260 = vmatpush1.msra.mxu0 0.0
    %4261 = vmatprep.subr.mxu0 0.0
    %4262 = vmatpush1.msra.mxu0 0.0
    %4263 = vmatprep.subr.mxu0 0.0
    %4264 = vmatpush1.msra.mxu0 0.0
    %4265 = vmatprep.mubr.f32.mxu0 0.0
    %4266 = vmatmul.mubr.f32.gmra.mrb[0].mxu0 %v950
    %v4267 = vpop.f32.mrb[0].mxu0
    %v4268 = vadd.f32 0.0, %v4267
    %v4269 = vpop.f32.mrb[0].mxu0
    %v4270 = vadd.f32 0.0, %v4269
    %4271 = vdwg.mxu0
    %v4272 = vadd.f32 %v3623, %v4197
    %v4273 = vadd.f32 %v3624, %v4199
    %v4274 = vadd.f32 %v3625, %v4268
    %v4275 = vadd.f32 %v3626, %v4270
    %4276 = vmatprep.subr.mxu0 %v4067
    %4277 = vmatpush1.msra.mxu0 %v4066
    %4278 = vmatprep.subr.mxu0 %v4071
    %4279 = vmatpush1.msra.mxu0 %v4070
    %4280 = vmatprep.subr.mxu0 %v4075
    %4281 = vmatpush1.msra.mxu0 %v4074
    %4282 = vmatprep.subr.mxu0 %v4079
    %4283 = vmatpush1.msra.mxu0 %v4078
    %4284 = vmatprep.subr.mxu0 %v4083
    %4285 = vmatpush1.msra.mxu0 %v4082
    %4286 = vmatprep.subr.mxu0 %v4087
    %4287 = vmatpush1.msra.mxu0 %v4086
    %4288 = vmatprep.subr.mxu0 %v4091
    %4289 = vmatpush1.msra.mxu0 %v4090
    %4290 = vmatprep.subr.mxu0 %v4095
    %4291 = vmatpush1.msra.mxu0 %v4094
    %4292 = vmatprep.subr.mxu0 %v4099
    %4293 = vmatpush1.msra.mxu0 %v4098
    %4294 = vmatprep.subr.mxu0 %v4103
    %4295 = vmatpush1.msra.mxu0 %v4102
    %4296 = vmatprep.subr.mxu0 %v4107
    %4297 = vmatpush1.msra.mxu0 %v4106
    %4298 = vmatprep.subr.mxu0 %v4111
    %4299 = vmatpush1.msra.mxu0 %v4110
    %4300 = vmatprep.subr.mxu0 %v4115
    %4301 = vmatpush1.msra.mxu0 %v4114
    %4302 = vmatprep.subr.mxu0 %v4119
    %4303 = vmatpush1.msra.mxu0 %v4118
    %4304 = vmatprep.subr.mxu0 %v4123
    %4305 = vmatpush1.msra.mxu0 %v4122
    %4306 = vmatprep.subr.mxu0 %v4127
    %4307 = vmatpush1.msra.mxu0 %v4126
    %4308 = vmatprep.subr.mxu0 0.0
    %4309 = vmatpush1.msra.mxu0 0.0
    %4310 = vmatprep.subr.mxu0 0.0
    %4311 = vmatpush1.msra.mxu0 0.0
    %4312 = vmatprep.subr.mxu0 0.0
    %4313 = vmatpush1.msra.mxu0 0.0
    %4314 = vmatprep.subr.mxu0 0.0
    %4315 = vmatpush1.msra.mxu0 0.0
    %4316 = vmatprep.subr.mxu0 0.0
    %4317 = vmatpush1.msra.mxu0 0.0
    %4318 = vmatprep.subr.mxu0 0.0
    %4319 = vmatpush1.msra.mxu0 0.0
    %4320 = vmatprep.subr.mxu0 0.0
    %4321 = vmatpush1.msra.mxu0 0.0
    %4322 = vmatprep.subr.mxu0 0.0
    %4323 = vmatpush1.msra.mxu0 0.0
    %4324 = vmatprep.subr.mxu0 0.0
    %4325 = vmatpush1.msra.mxu0 0.0
    %4326 = vmatprep.subr.mxu0 0.0
    %4327 = vmatpush1.msra.mxu0 0.0
    %4328 = vmatprep.subr.mxu0 0.0
    %4329 = vmatpush1.msra.mxu0 0.0
    %4330 = vmatprep.subr.mxu0 0.0
    %4331 = vmatpush1.msra.mxu0 0.0
    %4332 = vmatprep.subr.mxu0 0.0
    %4333 = vmatpush1.msra.mxu0 0.0
    %4334 = vmatprep.subr.mxu0 0.0
    %4335 = vmatpush1.msra.mxu0 0.0
    %4336 = vmatprep.subr.mxu0 0.0
    %4337 = vmatpush1.msra.mxu0 0.0
    %4338 = vmatprep.subr.mxu0 0.0
    %4339 = vmatpush1.msra.mxu0 0.0
    %4340 = vmatprep.mubr.f32.mxu0 0.0
    %4341 = vmatmul.mubr.f32.gmra.mrb[0].mxu0 %v1250
    %v4342 = vpop.f32.mrb[0].mxu0
    %v4343 = vadd.f32 0.0, %v4342
    %v4344 = vpop.f32.mrb[0].mxu0
    %v4345 = vadd.f32 0.0, %v4344
    %4346 = vdwg.mxu0
    %4347 = vmatprep.subr.mxu0 %v4069
    %4348 = vmatpush1.msra.mxu0 %v4068
    %4349 = vmatprep.subr.mxu0 %v4073
    %4350 = vmatpush1.msra.mxu0 %v4072
    %4351 = vmatprep.subr.mxu0 %v4077
    %4352 = vmatpush1.msra.mxu0 %v4076
    %4353 = vmatprep.subr.mxu0 %v4081
    %4354 = vmatpush1.msra.mxu0 %v4080
    %4355 = vmatprep.subr.mxu0 %v4085
    %4356 = vmatpush1.msra.mxu0 %v4084
    %4357 = vmatprep.subr.mxu0 %v4089
    %4358 = vmatpush1.msra.mxu0 %v4088
    %4359 = vmatprep.subr.mxu0 %v4093
    %4360 = vmatpush1.msra.mxu0 %v4092
    %4361 = vmatprep.subr.mxu0 %v4097
    %4362 = vmatpush1.msra.mxu0 %v4096
    %4363 = vmatprep.subr.mxu0 %v4101
    %4364 = vmatpush1.msra.mxu0 %v4100
    %4365 = vmatprep.subr.mxu0 %v4105
    %4366 = vmatpush1.msra.mxu0 %v4104
    %4367 = vmatprep.subr.mxu0 %v4109
    %4368 = vmatpush1.msra.mxu0 %v4108
    %4369 = vmatprep.subr.mxu0 %v4113
    %4370 = vmatpush1.msra.mxu0 %v4112
    %4371 = vmatprep.subr.mxu0 %v4117
    %4372 = vmatpush1.msra.mxu0 %v4116
    %4373 = vmatprep.subr.mxu0 %v4121
    %4374 = vmatpush1.msra.mxu0 %v4120
    %4375 = vmatprep.subr.mxu0 %v4125
    %4376 = vmatpush1.msra.mxu0 %v4124
    %4377 = vmatprep.subr.mxu0 %v4129
    %4378 = vmatpush1.msra.mxu0 %v4128
    %4379 = vmatprep.subr.mxu0 0.0
    %4380 = vmatpush1.msra.mxu0 0.0
    %4381 = vmatprep.subr.mxu0 0.0
    %4382 = vmatpush1.msra.mxu0 0.0
    %4383 = vmatprep.subr.mxu0 0.0
    %4384 = vmatpush1.msra.mxu0 0.0
    %4385 = vmatprep.subr.mxu0 0.0
    %4386 = vmatpush1.msra.mxu0 0.0
    %4387 = vmatprep.subr.mxu0 0.0
    %4388 = vmatpush1.msra.mxu0 0.0
    %4389 = vmatprep.subr.mxu0 0.0
    %4390 = vmatpush1.msra.mxu0 0.0
    %4391 = vmatprep.subr.mxu0 0.0
    %4392 = vmatpush1.msra.mxu0 0.0
    %4393 = vmatprep.subr.mxu0 0.0
    %4394 = vmatpush1.msra.mxu0 0.0
    %4395 = vmatprep.subr.mxu0 0.0
    %4396 = vmatpush1.msra.mxu0 0.0
    %4397 = vmatprep.subr.mxu0 0.0
    %4398 = vmatpush1.msra.mxu0 0.0
    %4399 = vmatprep.subr.mxu0 0.0
    %4400 = vmatpush1.msra.mxu0 0.0
    %4401 = vmatprep.subr.mxu0 0.0
    %4402 = vmatpush1.msra.mxu0 0.0
    %4403 = vmatprep.subr.mxu0 0.0
    %4404 = vmatpush1.msra.mxu0 0.0
    %4405 = vmatprep.subr.mxu0 0.0
    %4406 = vmatpush1.msra.mxu0 0.0
    %4407 = vmatprep.subr.mxu0 0.0
    %4408 = vmatpush1.msra.mxu0 0.0
    %4409 = vmatprep.subr.mxu0 0.0
    %4410 = vmatpush1.msra.mxu0 0.0
    %4411 = vmatprep.mubr.f32.mxu0 0.0
    %4412 = vmatmul.mubr.f32.gmra.mrb[0].mxu0 %v1250
    %v4413 = vpop.f32.mrb[0].mxu0
    %v4414 = vadd.f32 0.0, %v4413
    %v4415 = vpop.f32.mrb[0].mxu0
    %v4416 = vadd.f32 0.0, %v4415
    %4417 = vdwg.mxu0
    %v4418 = vadd.f32 %v3769, %v4343
    %v4419 = vadd.f32 %v3770, %v4345
    %v4420 = vadd.f32 %v3771, %v4414
    %v4421 = vadd.f32 %v3772, %v4416
    %4422 = vmatprep.subr.mxu0 %v4067
    %4423 = vmatpush1.msra.mxu0 %v4066
    %4424 = vmatprep.subr.mxu0 %v4071
    %4425 = vmatpush1.msra.mxu0 %v4070
    %4426 = vmatprep.subr.mxu0 %v4075
    %4427 = vmatpush1.msra.mxu0 %v4074
    %4428 = vmatprep.subr.mxu0 %v4079
    %4429 = vmatpush1.msra.mxu0 %v4078
    %4430 = vmatprep.subr.mxu0 %v4083
    %4431 = vmatpush1.msra.mxu0 %v4082
    %4432 = vmatprep.subr.mxu0 %v4087
    %4433 = vmatpush1.msra.mxu0 %v4086
    %4434 = vmatprep.subr.mxu0 %v4091
    %4435 = vmatpush1.msra.mxu0 %v4090
    %4436 = vmatprep.subr.mxu0 %v4095
    %4437 = vmatpush1.msra.mxu0 %v4094
    %4438 = vmatprep.subr.mxu0 %v4099
    %4439 = vmatpush1.msra.mxu0 %v4098
    %4440 = vmatprep.subr.mxu0 %v4103
    %4441 = vmatpush1.msra.mxu0 %v4102
    %4442 = vmatprep.subr.mxu0 %v4107
    %4443 = vmatpush1.msra.mxu0 %v4106
    %4444 = vmatprep.subr.mxu0 %v4111
    %4445 = vmatpush1.msra.mxu0 %v4110
    %4446 = vmatprep.subr.mxu0 %v4115
    %4447 = vmatpush1.msra.mxu0 %v4114
    %4448 = vmatprep.subr.mxu0 %v4119
    %4449 = vmatpush1.msra.mxu0 %v4118
    %4450 = vmatprep.subr.mxu0 %v4123
    %4451 = vmatpush1.msra.mxu0 %v4122
    %4452 = vmatprep.subr.mxu0 %v4127
    %4453 = vmatpush1.msra.mxu0 %v4126
    %4454 = vmatprep.subr.mxu0 0.0
    %4455 = vmatpush1.msra.mxu0 0.0
    %4456 = vmatprep.subr.mxu0 0.0
    %4457 = vmatpush1.msra.mxu0 0.0
    %4458 = vmatprep.subr.mxu0 0.0
    %4459 = vmatpush1.msra.mxu0 0.0
    %4460 = vmatprep.subr.mxu0 0.0
    %4461 = vmatpush1.msra.mxu0 0.0
    %4462 = vmatprep.subr.mxu0 0.0
    %4463 = vmatpush1.msra.mxu0 0.0
    %4464 = vmatprep.subr.mxu0 0.0
    %4465 = vmatpush1.msra.mxu0 0.0
    %4466 = vmatprep.subr.mxu0 0.0
    %4467 = vmatpush1.msra.mxu0 0.0
    %4468 = vmatprep.subr.mxu0 0.0
    %4469 = vmatpush1.msra.mxu0 0.0
    %4470 = vmatprep.subr.mxu0 0.0
    %4471 = vmatpush1.msra.mxu0 0.0
    %4472 = vmatprep.subr.mxu0 0.0
    %4473 = vmatpush1.msra.mxu0 0.0
    %4474 = vmatprep.subr.mxu0 0.0
    %4475 = vmatpush1.msra.mxu0 0.0
    %4476 = vmatprep.subr.mxu0 0.0
    %4477 = vmatpush1.msra.mxu0 0.0
    %4478 = vmatprep.subr.mxu0 0.0
    %4479 = vmatpush1.msra.mxu0 0.0
    %4480 = vmatprep.subr.mxu0 0.0
    %4481 = vmatpush1.msra.mxu0 0.0
    %4482 = vmatprep.subr.mxu0 0.0
    %4483 = vmatpush1.msra.mxu0 0.0
    %4484 = vmatprep.subr.mxu0 0.0
    %4485 = vmatpush1.msra.mxu0 0.0
    %4486 = vmatprep.mubr.f32.mxu0 0.0
    %4487 = vmatmul.mubr.f32.gmra.mrb[0].mxu0 %v1550
    %v4488 = vpop.f32.mrb[0].mxu0
    %v4489 = vadd.f32 0.0, %v4488
    %v4490 = vpop.f32.mrb[0].mxu0
    %v4491 = vadd.f32 0.0, %v4490
    %4492 = vdwg.mxu0
    %4493 = vmatprep.subr.mxu0 %v4069
    %4494 = vmatpush1.msra.mxu0 %v4068
    %4495 = vmatprep.subr.mxu0 %v4073
    %4496 = vmatpush1.msra.mxu0 %v4072
    %4497 = vmatprep.subr.mxu0 %v4077
    %4498 = vmatpush1.msra.mxu0 %v4076
    %4499 = vmatprep.subr.mxu0 %v4081
    %4500 = vmatpush1.msra.mxu0 %v4080
    %4501 = vmatprep.subr.mxu0 %v4085
    %4502 = vmatpush1.msra.mxu0 %v4084
    %4503 = vmatprep.subr.mxu0 %v4089
    %4504 = vmatpush1.msra.mxu0 %v4088
    %4505 = vmatprep.subr.mxu0 %v4093
    %4506 = vmatpush1.msra.mxu0 %v4092
    %4507 = vmatprep.subr.mxu0 %v4097
    %4508 = vmatpush1.msra.mxu0 %v4096
    %4509 = vmatprep.subr.mxu0 %v4101
    %4510 = vmatpush1.msra.mxu0 %v4100
    %4511 = vmatprep.subr.mxu0 %v4105
    %4512 = vmatpush1.msra.mxu0 %v4104
    %4513 = vmatprep.subr.mxu0 %v4109
    %4514 = vmatpush1.msra.mxu0 %v4108
    %4515 = vmatprep.subr.mxu0 %v4113
    %4516 = vmatpush1.msra.mxu0 %v4112
    %4517 = vmatprep.subr.mxu0 %v4117
    %4518 = vmatpush1.msra.mxu0 %v4116
    %4519 = vmatprep.subr.mxu0 %v4121
    %4520 = vmatpush1.msra.mxu0 %v4120
    %4521 = vmatprep.subr.mxu0 %v4125
    %4522 = vmatpush1.msra.mxu0 %v4124
    %4523 = vmatprep.subr.mxu0 %v4129
    %4524 = vmatpush1.msra.mxu0 %v4128
    %4525 = vmatprep.subr.mxu0 0.0
    %4526 = vmatpush1.msra.mxu0 0.0
    %4527 = vmatprep.subr.mxu0 0.0
    %4528 = vmatpush1.msra.mxu0 0.0
    %4529 = vmatprep.subr.mxu0 0.0
    %4530 = vmatpush1.msra.mxu0 0.0
    %4531 = vmatprep.subr.mxu0 0.0
    %4532 = vmatpush1.msra.mxu0 0.0
    %4533 = vmatprep.subr.mxu0 0.0
    %4534 = vmatpush1.msra.mxu0 0.0
    %4535 = vmatprep.subr.mxu0 0.0
    %4536 = vmatpush1.msra.mxu0 0.0
    %4537 = vmatprep.subr.mxu0 0.0
    %4538 = vmatpush1.msra.mxu0 0.0
    %4539 = vmatprep.subr.mxu0 0.0
    %4540 = vmatpush1.msra.mxu0 0.0
    %4541 = vmatprep.subr.mxu0 0.0
    %4542 = vmatpush1.msra.mxu0 0.0
    %4543 = vmatprep.subr.mxu0 0.0
    %4544 = vmatpush1.msra.mxu0 0.0
    %4545 = vmatprep.subr.mxu0 0.0
    %4546 = vmatpush1.msra.mxu0 0.0
    %4547 = vmatprep.subr.mxu0 0.0
    %4548 = vmatpush1.msra.mxu0 0.0
    %4549 = vmatprep.subr.mxu0 0.0
    %4550 = vmatpush1.msra.mxu0 0.0
    %4551 = vmatprep.subr.mxu0 0.0
    %4552 = vmatpush1.msra.mxu0 0.0
    %4553 = vmatprep.subr.mxu0 0.0
    %4554 = vmatpush1.msra.mxu0 0.0
    %4555 = vmatprep.subr.mxu0 0.0
    %4556 = vmatpush1.msra.mxu0 0.0
    %4557 = vmatprep.mubr.f32.mxu0 0.0
    %4558 = vmatmul.mubr.f32.gmra.mrb[0].mxu0 %v1550
    %v4559 = vpop.f32.mrb[0].mxu0
    %v4560 = vadd.f32 0.0, %v4559
    %v4561 = vpop.f32.mrb[0].mxu0
    %v4562 = vadd.f32 0.0, %v4561
    %4563 = vdwg.mxu0
    %v4564 = vadd.f32 %v3915, %v4489
    %v4565 = vadd.f32 %v3916, %v4491
    %v4566 = vadd.f32 %v3917, %v4560
    %v4567 = vadd.f32 %v3918, %v4562
    %4568 = vmatprep.subr.mxu0 %v4067
    %4569 = vmatpush1.msra.mxu0 %v4066
    %4570 = vmatprep.subr.mxu0 %v4071
    %4571 = vmatpush1.msra.mxu0 %v4070
    %4572 = vmatprep.subr.mxu0 %v4075
    %4573 = vmatpush1.msra.mxu0 %v4074
    %4574 = vmatprep.subr.mxu0 %v4079
    %4575 = vmatpush1.msra.mxu0 %v4078
    %4576 = vmatprep.subr.mxu0 %v4083
    %4577 = vmatpush1.msra.mxu0 %v4082
    %4578 = vmatprep.subr.mxu0 %v4087
    %4579 = vmatpush1.msra.mxu0 %v4086
    %4580 = vmatprep.subr.mxu0 %v4091
    %4581 = vmatpush1.msra.mxu0 %v4090
    %4582 = vmatprep.subr.mxu0 %v4095
    %4583 = vmatpush1.msra.mxu0 %v4094
    %4584 = vmatprep.subr.mxu0 %v4099
    %4585 = vmatpush1.msra.mxu0 %v4098
    %4586 = vmatprep.subr.mxu0 %v4103
    %4587 = vmatpush1.msra.mxu0 %v4102
    %4588 = vmatprep.subr.mxu0 %v4107
    %4589 = vmatpush1.msra.mxu0 %v4106
    %4590 = vmatprep.subr.mxu0 %v4111
    %4591 = vmatpush1.msra.mxu0 %v4110
    %4592 = vmatprep.subr.mxu0 %v4115
    %4593 = vmatpush1.msra.mxu0 %v4114
    %4594 = vmatprep.subr.mxu0 %v4119
    %4595 = vmatpush1.msra.mxu0 %v4118
    %4596 = vmatprep.subr.mxu0 %v4123
    %4597 = vmatpush1.msra.mxu0 %v4122
    %4598 = vmatprep.subr.mxu0 %v4127
    %4599 = vmatpush1.msra.mxu0 %v4126
    %4600 = vmatprep.subr.mxu0 0.0
    %4601 = vmatpush1.msra.mxu0 0.0
    %4602 = vmatprep.subr.mxu0 0.0
    %4603 = vmatpush1.msra.mxu0 0.0
    %4604 = vmatprep.subr.mxu0 0.0
    %4605 = vmatpush1.msra.mxu0 0.0
    %4606 = vmatprep.subr.mxu0 0.0
    %4607 = vmatpush1.msra.mxu0 0.0
    %4608 = vmatprep.subr.mxu0 0.0
    %4609 = vmatpush1.msra.mxu0 0.0
    %4610 = vmatprep.subr.mxu0 0.0
    %4611 = vmatpush1.msra.mxu0 0.0
    %4612 = vmatprep.subr.mxu0 0.0
    %4613 = vmatpush1.msra.mxu0 0.0
    %4614 = vmatprep.subr.mxu0 0.0
    %4615 = vmatpush1.msra.mxu0 0.0
    %4616 = vmatprep.subr.mxu0 0.0
    %4617 = vmatpush1.msra.mxu0 0.0
    %4618 = vmatprep.subr.mxu0 0.0
    %4619 = vmatpush1.msra.mxu0 0.0
    %4620 = vmatprep.subr.mxu0 0.0
    %4621 = vmatpush1.msra.mxu0 0.0
    %4622 = vmatprep.subr.mxu0 0.0
    %4623 = vmatpush1.msra.mxu0 0.0
    %4624 = vmatprep.subr.mxu0 0.0
    %4625 = vmatpush1.msra.mxu0 0.0
    %4626 = vmatprep.subr.mxu0 0.0
    %4627 = vmatpush1.msra.mxu0 0.0
    %4628 = vmatprep.subr.mxu0 0.0
    %4629 = vmatpush1.msra.mxu0 0.0
    %4630 = vmatprep.subr.mxu0 0.0
    %4631 = vmatpush1.msra.mxu0 0.0
    %4632 = vmatprep.mubr.f32.mxu0 0.0
    %4633 = vmatmul.mubr.f32.gmra.mrb[0].mxu0 %v1850
    %v4634 = vpop.f32.mrb[0].mxu0
    %v4635 = vadd.f32 0.0, %v4634
    %v4636 = vpop.f32.mrb[0].mxu0
    %v4637 = vadd.f32 0.0, %v4636
    %4638 = vdwg.mxu0
    %4639 = vmatprep.subr.mxu0 %v4069
    %4640 = vmatpush1.msra.mxu0 %v4068
    %4641 = vmatprep.subr.mxu0 %v4073
    %4642 = vmatpush1.msra.mxu0 %v4072
    %4643 = vmatprep.subr.mxu0 %v4077
    %4644 = vmatpush1.msra.mxu0 %v4076
    %4645 = vmatprep.subr.mxu0 %v4081
    %4646 = vmatpush1.msra.mxu0 %v4080
    %4647 = vmatprep.subr.mxu0 %v4085
    %4648 = vmatpush1.msra.mxu0 %v4084
    %4649 = vmatprep.subr.mxu0 %v4089
    %4650 = vmatpush1.msra.mxu0 %v4088
    %4651 = vmatprep.subr.mxu0 %v4093
    %4652 = vmatpush1.msra.mxu0 %v4092
    %4653 = vmatprep.subr.mxu0 %v4097
    %4654 = vmatpush1.msra.mxu0 %v4096
    %4655 = vmatprep.subr.mxu0 %v4101
    %4656 = vmatpush1.msra.mxu0 %v4100
    %4657 = vmatprep.subr.mxu0 %v4105
    %4658 = vmatpush1.msra.mxu0 %v4104
    %4659 = vmatprep.subr.mxu0 %v4109
    %4660 = vmatpush1.msra.mxu0 %v4108
    %4661 = vmatprep.subr.mxu0 %v4113
    %4662 = vmatpush1.msra.mxu0 %v4112
    %4663 = vmatprep.subr.mxu0 %v4117
    %4664 = vmatpush1.msra.mxu0 %v4116
    %4665 = vmatprep.subr.mxu0 %v4121
    %4666 = vmatpush1.msra.mxu0 %v4120
    %4667 = vmatprep.subr.mxu0 %v4125
    %4668 = vmatpush1.msra.mxu0 %v4124
    %4669 = vmatprep.subr.mxu0 %v4129
    %4670 = vmatpush1.msra.mxu0 %v4128
    %4671 = vmatprep.subr.mxu0 0.0
    %4672 = vmatpush1.msra.mxu0 0.0
    %4673 = vmatprep.subr.mxu0 0.0
    %4674 = vmatpush1.msra.mxu0 0.0
    %4675 = vmatprep.subr.mxu0 0.0
    %4676 = vmatpush1.msra.mxu0 0.0
    %4677 = vmatprep.subr.mxu0 0.0
    %4678 = vmatpush1.msra.mxu0 0.0
    %4679 = vmatprep.subr.mxu0 0.0
    %4680 = vmatpush1.msra.mxu0 0.0
    %4681 = vmatprep.subr.mxu0 0.0
    %4682 = vmatpush1.msra.mxu0 0.0
    %4683 = vmatprep.subr.mxu0 0.0
    %4684 = vmatpush1.msra.mxu0 0.0
    %4685 = vmatprep.subr.mxu0 0.0
    %4686 = vmatpush1.msra.mxu0 0.0
    %4687 = vmatprep.subr.mxu0 0.0
    %4688 = vmatpush1.msra.mxu0 0.0
    %4689 = vmatprep.subr.mxu0 0.0
    %4690 = vmatpush1.msra.mxu0 0.0
    %4691 = vmatprep.subr.mxu0 0.0
    %4692 = vmatpush1.msra.mxu0 0.0
    %4693 = vmatprep.subr.mxu0 0.0
    %4694 = vmatpush1.msra.mxu0 0.0
    %4695 = vmatprep.subr.mxu0 0.0
    %4696 = vmatpush1.msra.mxu0 0.0
    %4697 = vmatprep.subr.mxu0 0.0
    %4698 = vmatpush1.msra.mxu0 0.0
    %4699 = vmatprep.subr.mxu0 0.0
    %4700 = vmatpush1.msra.mxu0 0.0
    %4701 = vmatprep.subr.mxu0 0.0
    %4702 = vmatpush1.msra.mxu0 0.0
    %4703 = vmatprep.mubr.f32.mxu0 0.0
    %4704 = vmatmul.mubr.f32.gmra.mrb[0].mxu0 %v1850
    %v4705 = vpop.f32.mrb[0].mxu0
    %v4706 = vadd.f32 0.0, %v4705
    %v4707 = vpop.f32.mrb[0].mxu0
    %v4708 = vadd.f32 0.0, %v4707
    %4709 = vdwg.mxu0
    %v4710 = vadd.f32 %v4061, %v4635
    %v4711 = vadd.f32 %v4062, %v4637
    %v4712 = vadd.f32 %v4063, %v4706
    %v4713 = vadd.f32 %v4064, %v4708
    %s4714 = scalar_lea.vmem [#allocation4], 2048
    %v4715 = vld [vmem:[%s4714] sm:$0xff]
    %v4716 = vld [vmem:[%s4714 + $0x8] sm:$0xff]
    %v4717 = vld [vmem:[%s4714 + $0x10] sm:$0xff]
    %v4718 = vld [vmem:[%s4714 + $0x18] sm:$0xff]
    %v4719 = vld [vmem:[%s4714 + $0x20] sm:$0xff]
    %v4720 = vld [vmem:[%s4714 + $0x28] sm:$0xff]
    %v4721 = vld [vmem:[%s4714 + $0x30] sm:$0xff]
    %v4722 = vld [vmem:[%s4714 + $0x38] sm:$0xff]
    %v4723 = vld [vmem:[%s4714 + $0x40] sm:$0xff]
    %v4724 = vld [vmem:[%s4714 + $0x48] sm:$0xff]
    %v4725 = vld [vmem:[%s4714 + $0x50] sm:$0xff]
    %v4726 = vld [vmem:[%s4714 + $0x58] sm:$0xff]
    %v4727 = vld [vmem:[%s4714 + $0x60] sm:$0xff]
    %v4728 = vld [vmem:[%s4714 + $0x68] sm:$0xff]
    %v4729 = vld [vmem:[%s4714 + $0x70] sm:$0xff]
    %v4730 = vld [vmem:[%s4714 + $0x78] sm:$0xff]
    %v4731 = vld [vmem:[%s4714 + $0x80] sm:$0xff]
    %v4732 = vld [vmem:[%s4714 + $0x88] sm:$0xff]
    %v4733 = vld [vmem:[%s4714 + $0x90] sm:$0xff]
    %v4734 = vld [vmem:[%s4714 + $0x98] sm:$0xff]
    %v4735 = vld [vmem:[%s4714 + $0xa0] sm:$0xff]
    %v4736 = vld [vmem:[%s4714 + $0xa8] sm:$0xff]
    %v4737 = vld [vmem:[%s4714 + $0xb0] sm:$0xff]
    %v4738 = vld [vmem:[%s4714 + $0xb8] sm:$0xff]
    %v4739 = vld [vmem:[%s4714 + $0xc0] sm:$0xff]
    %v4740 = vld [vmem:[%s4714 + $0xc8] sm:$0xff]
    %v4741 = vld [vmem:[%s4714 + $0xd0] sm:$0xff]
    %v4742 = vld [vmem:[%s4714 + $0xd8] sm:$0xff]
    %v4743 = vld [vmem:[%s4714 + $0xe0] sm:$0xff]
    %v4744 = vld [vmem:[%s4714 + $0xe8] sm:$0xff]
    %v4745 = vld [vmem:[%s4714 + $0xf0] sm:$0xff]
    %v4746 = vld [vmem:[%s4714 + $0xf8] sm:$0xff]
    %v4747 = vld [vmem:[%s4714 + $0x100] sm:$0xff]
    %v4748 = vld [vmem:[%s4714 + $0x108] sm:$0xff]
    %v4749 = vld [vmem:[%s4714 + $0x110] sm:$0xff]
    %v4750 = vld [vmem:[%s4714 + $0x118] sm:$0xff]
    %v4751 = vld [vmem:[%s4714 + $0x120] sm:$0xff]
    %v4752 = vld [vmem:[%s4714 + $0x128] sm:$0xff]
    %v4753 = vld [vmem:[%s4714 + $0x130] sm:$0xff]
    %v4754 = vld [vmem:[%s4714 + $0x138] sm:$0xff]
    %v4755 = vld [vmem:[%s4714 + $0x140] sm:$0xff]
    %v4756 = vld [vmem:[%s4714 + $0x148] sm:$0xff]
    %v4757 = vld [vmem:[%s4714 + $0x150] sm:$0xff]
    %v4758 = vld [vmem:[%s4714 + $0x158] sm:$0xff]
    %v4759 = vld [vmem:[%s4714 + $0x160] sm:$0xff]
    %v4760 = vld [vmem:[%s4714 + $0x168] sm:$0xff]
    %v4761 = vld [vmem:[%s4714 + $0x170] sm:$0xff]
    %v4762 = vld [vmem:[%s4714 + $0x178] sm:$0xff]
    %v4763 = vld [vmem:[%s4714 + $0x180] sm:$0xff]
    %v4764 = vld [vmem:[%s4714 + $0x188] sm:$0xff]
    %v4765 = vld [vmem:[%s4714 + $0x190] sm:$0xff]
    %v4766 = vld [vmem:[%s4714 + $0x198] sm:$0xff]
    %v4767 = vld [vmem:[%s4714 + $0x1a0] sm:$0xff]
    %v4768 = vld [vmem:[%s4714 + $0x1a8] sm:$0xff]
    %v4769 = vld [vmem:[%s4714 + $0x1b0] sm:$0xff]
    %v4770 = vld [vmem:[%s4714 + $0x1b8] sm:$0xff]
    %v4771 = vld [vmem:[%s4714 + $0x1c0] sm:$0xff]
    %v4772 = vld [vmem:[%s4714 + $0x1c8] sm:$0xff]
    %v4773 = vld [vmem:[%s4714 + $0x1d0] sm:$0xff]
    %v4774 = vld [vmem:[%s4714 + $0x1d8] sm:$0xff]
    %v4775 = vld [vmem:[%s4714 + $0x1e0] sm:$0xff]
    %v4776 = vld [vmem:[%s4714 + $0x1e8] sm:$0xff]
    %v4777 = vld [vmem:[%s4714 + $0x1f0] sm:$0xff]
    %v4778 = vld [vmem:[%s4714 + $0x1f8] sm:$0xff]
    %4779 = vmatprep.subr.mxu0 %v4716
    %4780 = vmatpush1.msra.mxu0 %v4715
    %4781 = vmatprep.subr.mxu0 %v4720
    %4782 = vmatpush1.msra.mxu0 %v4719
    %4783 = vmatprep.subr.mxu0 %v4724
    %4784 = vmatpush1.msra.mxu0 %v4723
    %4785 = vmatprep.subr.mxu0 %v4728
    %4786 = vmatpush1.msra.mxu0 %v4727
    %4787 = vmatprep.subr.mxu0 %v4732
    %4788 = vmatpush1.msra.mxu0 %v4731
    %4789 = vmatprep.subr.mxu0 %v4736
    %4790 = vmatpush1.msra.mxu0 %v4735
    %4791 = vmatprep.subr.mxu0 %v4740
    %4792 = vmatpush1.msra.mxu0 %v4739
    %4793 = vmatprep.subr.mxu0 %v4744
    %4794 = vmatpush1.msra.mxu0 %v4743
    %4795 = vmatprep.subr.mxu0 %v4748
    %4796 = vmatpush1.msra.mxu0 %v4747
    %4797 = vmatprep.subr.mxu0 %v4752
    %4798 = vmatpush1.msra.mxu0 %v4751
    %4799 = vmatprep.subr.mxu0 %v4756
    %4800 = vmatpush1.msra.mxu0 %v4755
    %4801 = vmatprep.subr.mxu0 %v4760
    %4802 = vmatpush1.msra.mxu0 %v4759
    %4803 = vmatprep.subr.mxu0 %v4764
    %4804 = vmatpush1.msra.mxu0 %v4763
    %4805 = vmatprep.subr.mxu0 %v4768
    %4806 = vmatpush1.msra.mxu0 %v4767
    %4807 = vmatprep.subr.mxu0 %v4772
    %4808 = vmatpush1.msra.mxu0 %v4771
    %4809 = vmatprep.subr.mxu0 %v4776
    %4810 = vmatpush1.msra.mxu0 %v4775
    %4811 = vmatprep.subr.mxu0 0.0
    %4812 = vmatpush1.msra.mxu0 0.0
    %4813 = vmatprep.subr.mxu0 0.0
    %4814 = vmatpush1.msra.mxu0 0.0
    %4815 = vmatprep.subr.mxu0 0.0
    %4816 = vmatpush1.msra.mxu0 0.0
    %4817 = vmatprep.subr.mxu0 0.0
    %4818 = vmatpush1.msra.mxu0 0.0
    %4819 = vmatprep.subr.mxu0 0.0
    %4820 = vmatpush1.msra.mxu0 0.0
    %4821 = vmatprep.subr.mxu0 0.0
    %4822 = vmatpush1.msra.mxu0 0.0
    %4823 = vmatprep.subr.mxu0 0.0
    %4824 = vmatpush1.msra.mxu0 0.0
    %4825 = vmatprep.subr.mxu0 0.0
    %4826 = vmatpush1.msra.mxu0 0.0
    %4827 = vmatprep.subr.mxu0 0.0
    %4828 = vmatpush1.msra.mxu0 0.0
    %4829 = vmatprep.subr.mxu0 0.0
    %4830 = vmatpush1.msra.mxu0 0.0
    %4831 = vmatprep.subr.mxu0 0.0
    %4832 = vmatpush1.msra.mxu0 0.0
    %4833 = vmatprep.subr.mxu0 0.0
    %4834 = vmatpush1.msra.mxu0 0.0
    %4835 = vmatprep.subr.mxu0 0.0
    %4836 = vmatpush1.msra.mxu0 0.0
    %4837 = vmatprep.subr.mxu0 0.0
    %4838 = vmatpush1.msra.mxu0 0.0
    %4839 = vmatprep.subr.mxu0 0.0
    %4840 = vmatpush1.msra.mxu0 0.0
    %4841 = vmatprep.subr.mxu0 0.0
    %4842 = vmatpush1.msra.mxu0 0.0
    %4843 = vmatprep.mubr.f32.mxu0 0.0
    %4844 = vmatmul.mubr.f32.gmra.mrb[0].mxu0 %v1245
    %v4845 = vpop.f32.mrb[0].mxu0
    %v4846 = vadd.f32 0.0, %v4845
    %v4847 = vpop.f32.mrb[0].mxu0
    %v4848 = vadd.f32 0.0, %v4847
    %4849 = vdwg.mxu0
    %4850 = vmatprep.subr.mxu0 %v4718
    %4851 = vmatpush1.msra.mxu0 %v4717
    %4852 = vmatprep.subr.mxu0 %v4722
    %4853 = vmatpush1.msra.mxu0 %v4721
    %4854 = vmatprep.subr.mxu0 %v4726
    %4855 = vmatpush1.msra.mxu0 %v4725
    %4856 = vmatprep.subr.mxu0 %v4730
    %4857 = vmatpush1.msra.mxu0 %v4729
    %4858 = vmatprep.subr.mxu0 %v4734
    %4859 = vmatpush1.msra.mxu0 %v4733
    %4860 = vmatprep.subr.mxu0 %v4738
    %4861 = vmatpush1.msra.mxu0 %v4737
    %4862 = vmatprep.subr.mxu0 %v4742
    %4863 = vmatpush1.msra.mxu0 %v4741
    %4864 = vmatprep.subr.mxu0 %v4746
    %4865 = vmatpush1.msra.mxu0 %v4745
    %4866 = vmatprep.subr.mxu0 %v4750
    %4867 = vmatpush1.msra.mxu0 %v4749
    %4868 = vmatprep.subr.mxu0 %v4754
    %4869 = vmatpush1.msra.mxu0 %v4753
    %4870 = vmatprep.subr.mxu0 %v4758
    %4871 = vmatpush1.msra.mxu0 %v4757
    %4872 = vmatprep.subr.mxu0 %v4762
    %4873 = vmatpush1.msra.mxu0 %v4761
    %4874 = vmatprep.subr.mxu0 %v4766
    %4875 = vmatpush1.msra.mxu0 %v4765
    %4876 = vmatprep.subr.mxu0 %v4770
    %4877 = vmatpush1.msra.mxu0 %v4769
    %4878 = vmatprep.subr.mxu0 %v4774
    %4879 = vmatpush1.msra.mxu0 %v4773
    %4880 = vmatprep.subr.mxu0 %v4778
    %4881 = vmatpush1.msra.mxu0 %v4777
    %4882 = vmatprep.subr.mxu0 0.0
    %4883 = vmatpush1.msra.mxu0 0.0
    %4884 = vmatprep.subr.mxu0 0.0
    %4885 = vmatpush1.msra.mxu0 0.0
    %4886 = vmatprep.subr.mxu0 0.0
    %4887 = vmatpush1.msra.mxu0 0.0
    %4888 = vmatprep.subr.mxu0 0.0
    %4889 = vmatpush1.msra.mxu0 0.0
    %4890 = vmatprep.subr.mxu0 0.0
    %4891 = vmatpush1.msra.mxu0 0.0
    %4892 = vmatprep.subr.mxu0 0.0
    %4893 = vmatpush1.msra.mxu0 0.0
    %4894 = vmatprep.subr.mxu0 0.0
    %4895 = vmatpush1.msra.mxu0 0.0
    %4896 = vmatprep.subr.mxu0 0.0
    %4897 = vmatpush1.msra.mxu0 0.0
    %4898 = vmatprep.subr.mxu0 0.0
    %4899 = vmatpush1.msra.mxu0 0.0
    %4900 = vmatprep.subr.mxu0 0.0
    %4901 = vmatpush1.msra.mxu0 0.0
    %4902 = vmatprep.subr.mxu0 0.0
    %4903 = vmatpush1.msra.mxu0 0.0
    %4904 = vmatprep.subr.mxu0 0.0
    %4905 = vmatpush1.msra.mxu0 0.0
    %4906 = vmatprep.subr.mxu0 0.0
    %4907 = vmatpush1.msra.mxu0 0.0
    %4908 = vmatprep.subr.mxu0 0.0
    %4909 = vmatpush1.msra.mxu0 0.0
    %4910 = vmatprep.subr.mxu0 0.0
    %4911 = vmatpush1.msra.mxu0 0.0
    %4912 = vmatprep.subr.mxu0 0.0
    %4913 = vmatpush1.msra.mxu0 0.0
    %4914 = vmatprep.mubr.f32.mxu0 0.0
    %4915 = vmatmul.mubr.f32.gmra.mrb[0].mxu0 %v1245
    %v4916 = vpop.f32.mrb[0].mxu0
    %v4917 = vadd.f32 0.0, %v4916
    %v4918 = vpop.f32.mrb[0].mxu0
    %v4919 = vadd.f32 0.0, %v4918
    %4920 = vdwg.mxu0
    %v4921 = vadd.f32 %v4272, %v4846
    %v4922 = vadd.f32 %v4273, %v4848
    %v4923 = vadd.f32 %v4274, %v4917
    %v4924 = vadd.f32 %v4275, %v4919
    %4925 = vmatprep.subr.mxu0 %v4716
    %4926 = vmatpush1.msra.mxu0 %v4715
    %4927 = vmatprep.subr.mxu0 %v4720
    %4928 = vmatpush1.msra.mxu0 %v4719
    %4929 = vmatprep.subr.mxu0 %v4724
    %4930 = vmatpush1.msra.mxu0 %v4723
    %4931 = vmatprep.subr.mxu0 %v4728
    %4932 = vmatpush1.msra.mxu0 %v4727
    %4933 = vmatprep.subr.mxu0 %v4732
    %4934 = vmatpush1.msra.mxu0 %v4731
    %4935 = vmatprep.subr.mxu0 %v4736
    %4936 = vmatpush1.msra.mxu0 %v4735
    %4937 = vmatprep.subr.mxu0 %v4740
    %4938 = vmatpush1.msra.mxu0 %v4739
    %4939 = vmatprep.subr.mxu0 %v4744
    %4940 = vmatpush1.msra.mxu0 %v4743
    %4941 = vmatprep.subr.mxu0 %v4748
    %4942 = vmatpush1.msra.mxu0 %v4747
    %4943 = vmatprep.subr.mxu0 %v4752
    %4944 = vmatpush1.msra.mxu0 %v4751
    %4945 = vmatprep.subr.mxu0 %v4756
    %4946 = vmatpush1.msra.mxu0 %v4755
    %4947 = vmatprep.subr.mxu0 %v4760
    %4948 = vmatpush1.msra.mxu0 %v4759
    %4949 = vmatprep.subr.mxu0 %v4764
    %4950 = vmatpush1.msra.mxu0 %v4763
    %4951 = vmatprep.subr.mxu0 %v4768
    %4952 = vmatpush1.msra.mxu0 %v4767
    %4953 = vmatprep.subr.mxu0 %v4772
    %4954 = vmatpush1.msra.mxu0 %v4771
    %4955 = vmatprep.subr.mxu0 %v4776
    %4956 = vmatpush1.msra.mxu0 %v4775
    %4957 = vmatprep.subr.mxu0 0.0
    %4958 = vmatpush1.msra.mxu0 0.0
    %4959 = vmatprep.subr.mxu0 0.0
    %4960 = vmatpush1.msra.mxu0 0.0
    %4961 = vmatprep.subr.mxu0 0.0
    %4962 = vmatpush1.msra.mxu0 0.0
    %4963 = vmatprep.subr.mxu0 0.0
    %4964 = vmatpush1.msra.mxu0 0.0
    %4965 = vmatprep.subr.mxu0 0.0
    %4966 = vmatpush1.msra.mxu0 0.0
    %4967 = vmatprep.subr.mxu0 0.0
    %4968 = vmatpush1.msra.mxu0 0.0
    %4969 = vmatprep.subr.mxu0 0.0
    %4970 = vmatpush1.msra.mxu0 0.0
    %4971 = vmatprep.subr.mxu0 0.0
    %4972 = vmatpush1.msra.mxu0 0.0
    %4973 = vmatprep.subr.mxu0 0.0
    %4974 = vmatpush1.msra.mxu0 0.0
    %4975 = vmatprep.subr.mxu0 0.0
    %4976 = vmatpush1.msra.mxu0 0.0
    %4977 = vmatprep.subr.mxu0 0.0
    %4978 = vmatpush1.msra.mxu0 0.0
    %4979 = vmatprep.subr.mxu0 0.0
    %4980 = vmatpush1.msra.mxu0 0.0
    %4981 = vmatprep.subr.mxu0 0.0
    %4982 = vmatpush1.msra.mxu0 0.0
    %4983 = vmatprep.subr.mxu0 0.0
    %4984 = vmatpush1.msra.mxu0 0.0
    %4985 = vmatprep.subr.mxu0 0.0
    %4986 = vmatpush1.msra.mxu0 0.0
    %4987 = vmatprep.subr.mxu0 0.0
    %4988 = vmatpush1.msra.mxu0 0.0
    %4989 = vmatprep.mubr.f32.mxu0 0.0
    %4990 = vmatmul.mubr.f32.gmra.mrb[0].mxu0 %v1545
    %v4991 = vpop.f32.mrb[0].mxu0
    %v4992 = vadd.f32 0.0, %v4991
    %v4993 = vpop.f32.mrb[0].mxu0
    %v4994 = vadd.f32 0.0, %v4993
    %4995 = vdwg.mxu0
    %4996 = vmatprep.subr.mxu0 %v4718
    %4997 = vmatpush1.msra.mxu0 %v4717
    %4998 = vmatprep.subr.mxu0 %v4722
    %4999 = vmatpush1.msra.mxu0 %v4721
    %5000 = vmatprep.subr.mxu0 %v4726
    %5001 = vmatpush1.msra.mxu0 %v4725
    %5002 = vmatprep.subr.mxu0 %v4730
    %5003 = vmatpush1.msra.mxu0 %v4729
    %5004 = vmatprep.subr.mxu0 %v4734
    %5005 = vmatpush1.msra.mxu0 %v4733
    %5006 = vmatprep.subr.mxu0 %v4738
    %5007 = vmatpush1.msra.mxu0 %v4737
    %5008 = vmatprep.subr.mxu0 %v4742
    %5009 = vmatpush1.msra.mxu0 %v4741
    %5010 = vmatprep.subr.mxu0 %v4746
    %5011 = vmatpush1.msra.mxu0 %v4745
    %5012 = vmatprep.subr.mxu0 %v4750
    %5013 = vmatpush1.msra.mxu0 %v4749
    %5014 = vmatprep.subr.mxu0 %v4754
    %5015 = vmatpush1.msra.mxu0 %v4753
    %5016 = vmatprep.subr.mxu0 %v4758
    %5017 = vmatpush1.msra.mxu0 %v4757
    %5018 = vmatprep.subr.mxu0 %v4762
    %5019 = vmatpush1.msra.mxu0 %v4761
    %5020 = vmatprep.subr.mxu0 %v4766
    %5021 = vmatpush1.msra.mxu0 %v4765
    %5022 = vmatprep.subr.mxu0 %v4770
    %5023 = vmatpush1.msra.mxu0 %v4769
    %5024 = vmatprep.subr.mxu0 %v4774
    %5025 = vmatpush1.msra.mxu0 %v4773
    %5026 = vmatprep.subr.mxu0 %v4778
    %5027 = vmatpush1.msra.mxu0 %v4777
    %5028 = vmatprep.subr.mxu0 0.0
    %5029 = vmatpush1.msra.mxu0 0.0
    %5030 = vmatprep.subr.mxu0 0.0
    %5031 = vmatpush1.msra.mxu0 0.0
    %5032 = vmatprep.subr.mxu0 0.0
    %5033 = vmatpush1.msra.mxu0 0.0
    %5034 = vmatprep.subr.mxu0 0.0
    %5035 = vmatpush1.msra.mxu0 0.0
    %5036 = vmatprep.subr.mxu0 0.0
    %5037 = vmatpush1.msra.mxu0 0.0
    %5038 = vmatprep.subr.mxu0 0.0
    %5039 = vmatpush1.msra.mxu0 0.0
    %5040 = vmatprep.subr.mxu0 0.0
    %5041 = vmatpush1.msra.mxu0 0.0
    %5042 = vmatprep.subr.mxu0 0.0
    %5043 = vmatpush1.msra.mxu0 0.0
    %5044 = vmatprep.subr.mxu0 0.0
    %5045 = vmatpush1.msra.mxu0 0.0
    %5046 = vmatprep.subr.mxu0 0.0
    %5047 = vmatpush1.msra.mxu0 0.0
    %5048 = vmatprep.subr.mxu0 0.0
    %5049 = vmatpush1.msra.mxu0 0.0
    %5050 = vmatprep.subr.mxu0 0.0
    %5051 = vmatpush1.msra.mxu0 0.0
    %5052 = vmatprep.subr.mxu0 0.0
    %5053 = vmatpush1.msra.mxu0 0.0
    %5054 = vmatprep.subr.mxu0 0.0
    %5055 = vmatpush1.msra.mxu0 0.0
    %5056 = vmatprep.subr.mxu0 0.0
    %5057 = vmatpush1.msra.mxu0 0.0
    %5058 = vmatprep.subr.mxu0 0.0
    %5059 = vmatpush1.msra.mxu0 0.0
    %5060 = vmatprep.mubr.f32.mxu0 0.0
    %5061 = vmatmul.mubr.f32.gmra.mrb[0].mxu0 %v1545
    %v5062 = vpop.f32.mrb[0].mxu0
    %v5063 = vadd.f32 0.0, %v5062
    %v5064 = vpop.f32.mrb[0].mxu0
    %v5065 = vadd.f32 0.0, %v5064
    %5066 = vdwg.mxu0
    %v5067 = vadd.f32 %v4418, %v4992
    %v5068 = vadd.f32 %v4419, %v4994
    %v5069 = vadd.f32 %v4420, %v5063
    %v5070 = vadd.f32 %v4421, %v5065
    %5071 = vmatprep.subr.mxu0 %v4716
    %5072 = vmatpush1.msra.mxu0 %v4715
    %5073 = vmatprep.subr.mxu0 %v4720
    %5074 = vmatpush1.msra.mxu0 %v4719
    %5075 = vmatprep.subr.mxu0 %v4724
    %5076 = vmatpush1.msra.mxu0 %v4723
    %5077 = vmatprep.subr.mxu0 %v4728
    %5078 = vmatpush1.msra.mxu0 %v4727
    %5079 = vmatprep.subr.mxu0 %v4732
    %5080 = vmatpush1.msra.mxu0 %v4731
    %5081 = vmatprep.subr.mxu0 %v4736
    %5082 = vmatpush1.msra.mxu0 %v4735
    %5083 = vmatprep.subr.mxu0 %v4740
    %5084 = vmatpush1.msra.mxu0 %v4739
    %5085 = vmatprep.subr.mxu0 %v4744
    %5086 = vmatpush1.msra.mxu0 %v4743
    %5087 = vmatprep.subr.mxu0 %v4748
    %5088 = vmatpush1.msra.mxu0 %v4747
    %5089 = vmatprep.subr.mxu0 %v4752
    %5090 = vmatpush1.msra.mxu0 %v4751
    %5091 = vmatprep.subr.mxu0 %v4756
    %5092 = vmatpush1.msra.mxu0 %v4755
    %5093 = vmatprep.subr.mxu0 %v4760
    %5094 = vmatpush1.msra.mxu0 %v4759
    %5095 = vmatprep.subr.mxu0 %v4764
    %5096 = vmatpush1.msra.mxu0 %v4763
    %5097 = vmatprep.subr.mxu0 %v4768
    %5098 = vmatpush1.msra.mxu0 %v4767
    %5099 = vmatprep.subr.mxu0 %v4772
    %5100 = vmatpush1.msra.mxu0 %v4771
    %5101 = vmatprep.subr.mxu0 %v4776
    %5102 = vmatpush1.msra.mxu0 %v4775
    %5103 = vmatprep.subr.mxu0 0.0
    %5104 = vmatpush1.msra.mxu0 0.0
    %5105 = vmatprep.subr.mxu0 0.0
    %5106 = vmatpush1.msra.mxu0 0.0
    %5107 = vmatprep.subr.mxu0 0.0
    %5108 = vmatpush1.msra.mxu0 0.0
    %5109 = vmatprep.subr.mxu0 0.0
    %5110 = vmatpush1.msra.mxu0 0.0
    %5111 = vmatprep.subr.mxu0 0.0
    %5112 = vmatpush1.msra.mxu0 0.0
    %5113 = vmatprep.subr.mxu0 0.0
    %5114 = vmatpush1.msra.mxu0 0.0
    %5115 = vmatprep.subr.mxu0 0.0
    %5116 = vmatpush1.msra.mxu0 0.0
    %5117 = vmatprep.subr.mxu0 0.0
    %5118 = vmatpush1.msra.mxu0 0.0
    %5119 = vmatprep.subr.mxu0 0.0
    %5120 = vmatpush1.msra.mxu0 0.0
    %5121 = vmatprep.subr.mxu0 0.0
    %5122 = vmatpush1.msra.mxu0 0.0
    %5123 = vmatprep.subr.mxu0 0.0
    %5124 = vmatpush1.msra.mxu0 0.0
    %5125 = vmatprep.subr.mxu0 0.0
    %5126 = vmatpush1.msra.mxu0 0.0
    %5127 = vmatprep.subr.mxu0 0.0
    %5128 = vmatpush1.msra.mxu0 0.0
    %5129 = vmatprep.subr.mxu0 0.0
    %5130 = vmatpush1.msra.mxu0 0.0
    %5131 = vmatprep.subr.mxu0 0.0
    %5132 = vmatpush1.msra.mxu0 0.0
    %5133 = vmatprep.subr.mxu0 0.0
    %5134 = vmatpush1.msra.mxu0 0.0
    %5135 = vmatprep.mubr.f32.mxu0 0.0
    %5136 = vmatmul.mubr.f32.gmra.mrb[0].mxu0 %v1845
    %v5137 = vpop.f32.mrb[0].mxu0
    %v5138 = vadd.f32 0.0, %v5137
    %v5139 = vpop.f32.mrb[0].mxu0
    %v5140 = vadd.f32 0.0, %v5139
    %5141 = vdwg.mxu0
    %5142 = vmatprep.subr.mxu0 %v4718
    %5143 = vmatpush1.msra.mxu0 %v4717
    %5144 = vmatprep.subr.mxu0 %v4722
    %5145 = vmatpush1.msra.mxu0 %v4721
    %5146 = vmatprep.subr.mxu0 %v4726
    %5147 = vmatpush1.msra.mxu0 %v4725
    %5148 = vmatprep.subr.mxu0 %v4730
    %5149 = vmatpush1.msra.mxu0 %v4729
    %5150 = vmatprep.subr.mxu0 %v4734
    %5151 = vmatpush1.msra.mxu0 %v4733
    %5152 = vmatprep.subr.mxu0 %v4738
    %5153 = vmatpush1.msra.mxu0 %v4737
    %5154 = vmatprep.subr.mxu0 %v4742
    %5155 = vmatpush1.msra.mxu0 %v4741
    %5156 = vmatprep.subr.mxu0 %v4746
    %5157 = vmatpush1.msra.mxu0 %v4745
    %5158 = vmatprep.subr.mxu0 %v4750
    %5159 = vmatpush1.msra.mxu0 %v4749
    %5160 = vmatprep.subr.mxu0 %v4754
    %5161 = vmatpush1.msra.mxu0 %v4753
    %5162 = vmatprep.subr.mxu0 %v4758
    %5163 = vmatpush1.msra.mxu0 %v4757
    %5164 = vmatprep.subr.mxu0 %v4762
    %5165 = vmatpush1.msra.mxu0 %v4761
    %5166 = vmatprep.subr.mxu0 %v4766
    %5167 = vmatpush1.msra.mxu0 %v4765
    %5168 = vmatprep.subr.mxu0 %v4770
    %5169 = vmatpush1.msra.mxu0 %v4769
    %5170 = vmatprep.subr.mxu0 %v4774
    %5171 = vmatpush1.msra.mxu0 %v4773
    %5172 = vmatprep.subr.mxu0 %v4778
    %5173 = vmatpush1.msra.mxu0 %v4777
    %5174 = vmatprep.subr.mxu0 0.0
    %5175 = vmatpush1.msra.mxu0 0.0
    %5176 = vmatprep.subr.mxu0 0.0
    %5177 = vmatpush1.msra.mxu0 0.0
    %5178 = vmatprep.subr.mxu0 0.0
    %5179 = vmatpush1.msra.mxu0 0.0
    %5180 = vmatprep.subr.mxu0 0.0
    %5181 = vmatpush1.msra.mxu0 0.0
    %5182 = vmatprep.subr.mxu0 0.0
    %5183 = vmatpush1.msra.mxu0 0.0
    %5184 = vmatprep.subr.mxu0 0.0
    %5185 = vmatpush1.msra.mxu0 0.0
    %5186 = vmatprep.subr.mxu0 0.0
    %5187 = vmatpush1.msra.mxu0 0.0
    %5188 = vmatprep.subr.mxu0 0.0
    %5189 = vmatpush1.msra.mxu0 0.0
    %5190 = vmatprep.subr.mxu0 0.0
    %5191 = vmatpush1.msra.mxu0 0.0
    %5192 = vmatprep.subr.mxu0 0.0
    %5193 = vmatpush1.msra.mxu0 0.0
    %5194 = vmatprep.subr.mxu0 0.0
    %5195 = vmatpush1.msra.mxu0 0.0
    %5196 = vmatprep.subr.mxu0 0.0
    %5197 = vmatpush1.msra.mxu0 0.0
    %5198 = vmatprep.subr.mxu0 0.0
    %5199 = vmatpush1.msra.mxu0 0.0
    %5200 = vmatprep.subr.mxu0 0.0
    %5201 = vmatpush1.msra.mxu0 0.0
    %5202 = vmatprep.subr.mxu0 0.0
    %5203 = vmatpush1.msra.mxu0 0.0
    %5204 = vmatprep.subr.mxu0 0.0
    %5205 = vmatpush1.msra.mxu0 0.0
    %5206 = vmatprep.mubr.f32.mxu0 0.0
    %5207 = vmatmul.mubr.f32.gmra.mrb[0].mxu0 %v1845
    %v5208 = vpop.f32.mrb[0].mxu0
    %v5209 = vadd.f32 0.0, %v5208
    %v5210 = vpop.f32.mrb[0].mxu0
    %v5211 = vadd.f32 0.0, %v5210
    %5212 = vdwg.mxu0
    %v5213 = vadd.f32 %v4564, %v5138
    %v5214 = vadd.f32 %v4565, %v5140
    %v5215 = vadd.f32 %v4566, %v5209
    %v5216 = vadd.f32 %v4567, %v5211
    %5217 = vmatprep.subr.mxu0 %v4716
    %5218 = vmatpush1.msra.mxu0 %v4715
    %5219 = vmatprep.subr.mxu0 %v4720
    %5220 = vmatpush1.msra.mxu0 %v4719
    %5221 = vmatprep.subr.mxu0 %v4724
    %5222 = vmatpush1.msra.mxu0 %v4723
    %5223 = vmatprep.subr.mxu0 %v4728
    %5224 = vmatpush1.msra.mxu0 %v4727
    %5225 = vmatprep.subr.mxu0 %v4732
    %5226 = vmatpush1.msra.mxu0 %v4731
    %5227 = vmatprep.subr.mxu0 %v4736
    %5228 = vmatpush1.msra.mxu0 %v4735
    %5229 = vmatprep.subr.mxu0 %v4740
    %5230 = vmatpush1.msra.mxu0 %v4739
    %5231 = vmatprep.subr.mxu0 %v4744
    %5232 = vmatpush1.msra.mxu0 %v4743
    %5233 = vmatprep.subr.mxu0 %v4748
    %5234 = vmatpush1.msra.mxu0 %v4747
    %5235 = vmatprep.subr.mxu0 %v4752
    %5236 = vmatpush1.msra.mxu0 %v4751
    %5237 = vmatprep.subr.mxu0 %v4756
    %5238 = vmatpush1.msra.mxu0 %v4755
    %5239 = vmatprep.subr.mxu0 %v4760
    %5240 = vmatpush1.msra.mxu0 %v4759
    %5241 = vmatprep.subr.mxu0 %v4764
    %5242 = vmatpush1.msra.mxu0 %v4763
    %5243 = vmatprep.subr.mxu0 %v4768
    %5244 = vmatpush1.msra.mxu0 %v4767
    %5245 = vmatprep.subr.mxu0 %v4772
    %5246 = vmatpush1.msra.mxu0 %v4771
    %5247 = vmatprep.subr.mxu0 %v4776
    %5248 = vmatpush1.msra.mxu0 %v4775
    %5249 = vmatprep.subr.mxu0 0.0
    %5250 = vmatpush1.msra.mxu0 0.0
    %5251 = vmatprep.subr.mxu0 0.0
    %5252 = vmatpush1.msra.mxu0 0.0
    %5253 = vmatprep.subr.mxu0 0.0
    %5254 = vmatpush1.msra.mxu0 0.0
    %5255 = vmatprep.subr.mxu0 0.0
    %5256 = vmatpush1.msra.mxu0 0.0
    %5257 = vmatprep.subr.mxu0 0.0
    %5258 = vmatpush1.msra.mxu0 0.0
    %5259 = vmatprep.subr.mxu0 0.0
    %5260 = vmatpush1.msra.mxu0 0.0
    %5261 = vmatprep.subr.mxu0 0.0
    %5262 = vmatpush1.msra.mxu0 0.0
    %5263 = vmatprep.subr.mxu0 0.0
    %5264 = vmatpush1.msra.mxu0 0.0
    %5265 = vmatprep.subr.mxu0 0.0
    %5266 = vmatpush1.msra.mxu0 0.0
    %5267 = vmatprep.subr.mxu0 0.0
    %5268 = vmatpush1.msra.mxu0 0.0
    %5269 = vmatprep.subr.mxu0 0.0
    %5270 = vmatpush1.msra.mxu0 0.0
    %5271 = vmatprep.subr.mxu0 0.0
    %5272 = vmatpush1.msra.mxu0 0.0
    %5273 = vmatprep.subr.mxu0 0.0
    %5274 = vmatpush1.msra.mxu0 0.0
    %5275 = vmatprep.subr.mxu0 0.0
    %5276 = vmatpush1.msra.mxu0 0.0
    %5277 = vmatprep.subr.mxu0 0.0
    %5278 = vmatpush1.msra.mxu0 0.0
    %5279 = vmatprep.subr.mxu0 0.0
    %5280 = vmatpush1.msra.mxu0 0.0
    %5281 = vmatprep.mubr.f32.mxu0 0.0
    %5282 = vmatmul.mubr.f32.gmra.mrb[0].mxu0 %v2145
    %v5283 = vpop.f32.mrb[0].mxu0
    %v5284 = vadd.f32 0.0, %v5283
    %v5285 = vpop.f32.mrb[0].mxu0
    %v5286 = vadd.f32 0.0, %v5285
    %5287 = vdwg.mxu0
    %5288 = vmatprep.subr.mxu0 %v4718
    %5289 = vmatpush1.msra.mxu0 %v4717
    %5290 = vmatprep.subr.mxu0 %v4722
    %5291 = vmatpush1.msra.mxu0 %v4721
    %5292 = vmatprep.subr.mxu0 %v4726
    %5293 = vmatpush1.msra.mxu0 %v4725
    %5294 = vmatprep.subr.mxu0 %v4730
    %5295 = vmatpush1.msra.mxu0 %v4729
    %5296 = vmatprep.subr.mxu0 %v4734
    %5297 = vmatpush1.msra.mxu0 %v4733
    %5298 = vmatprep.subr.mxu0 %v4738
    %5299 = vmatpush1.msra.mxu0 %v4737
    %5300 = vmatprep.subr.mxu0 %v4742
    %5301 = vmatpush1.msra.mxu0 %v4741
    %5302 = vmatprep.subr.mxu0 %v4746
    %5303 = vmatpush1.msra.mxu0 %v4745
    %5304 = vmatprep.subr.mxu0 %v4750
    %5305 = vmatpush1.msra.mxu0 %v4749
    %5306 = vmatprep.subr.mxu0 %v4754
    %5307 = vmatpush1.msra.mxu0 %v4753
    %5308 = vmatprep.subr.mxu0 %v4758
    %5309 = vmatpush1.msra.mxu0 %v4757
    %5310 = vmatprep.subr.mxu0 %v4762
    %5311 = vmatpush1.msra.mxu0 %v4761
    %5312 = vmatprep.subr.mxu0 %v4766
    %5313 = vmatpush1.msra.mxu0 %v4765
    %5314 = vmatprep.subr.mxu0 %v4770
    %5315 = vmatpush1.msra.mxu0 %v4769
    %5316 = vmatprep.subr.mxu0 %v4774
    %5317 = vmatpush1.msra.mxu0 %v4773
    %5318 = vmatprep.subr.mxu0 %v4778
    %5319 = vmatpush1.msra.mxu0 %v4777
    %5320 = vmatprep.subr.mxu0 0.0
    %5321 = vmatpush1.msra.mxu0 0.0
    %5322 = vmatprep.subr.mxu0 0.0
    %5323 = vmatpush1.msra.mxu0 0.0
    %5324 = vmatprep.subr.mxu0 0.0
    %5325 = vmatpush1.msra.mxu0 0.0
    %5326 = vmatprep.subr.mxu0 0.0
    %5327 = vmatpush1.msra.mxu0 0.0
    %5328 = vmatprep.subr.mxu0 0.0
    %5329 = vmatpush1.msra.mxu0 0.0
    %5330 = vmatprep.subr.mxu0 0.0
    %5331 = vmatpush1.msra.mxu0 0.0
    %5332 = vmatprep.subr.mxu0 0.0
    %5333 = vmatpush1.msra.mxu0 0.0
    %5334 = vmatprep.subr.mxu0 0.0
    %5335 = vmatpush1.msra.mxu0 0.0
    %5336 = vmatprep.subr.mxu0 0.0
    %5337 = vmatpush1.msra.mxu0 0.0
    %5338 = vmatprep.subr.mxu0 0.0
    %5339 = vmatpush1.msra.mxu0 0.0
    %5340 = vmatprep.subr.mxu0 0.0
    %5341 = vmatpush1.msra.mxu0 0.0
    %5342 = vmatprep.subr.mxu0 0.0
    %5343 = vmatpush1.msra.mxu0 0.0
    %5344 = vmatprep.subr.mxu0 0.0
    %5345 = vmatpush1.msra.mxu0 0.0
    %5346 = vmatprep.subr.mxu0 0.0
    %5347 = vmatpush1.msra.mxu0 0.0
    %5348 = vmatprep.subr.mxu0 0.0
    %5349 = vmatpush1.msra.mxu0 0.0
    %5350 = vmatprep.subr.mxu0 0.0
    %5351 = vmatpush1.msra.mxu0 0.0
    %5352 = vmatprep.mubr.f32.mxu0 0.0
    %5353 = vmatmul.mubr.f32.gmra.mrb[0].mxu0 %v2145
    %v5354 = vpop.f32.mrb[0].mxu0
    %v5355 = vadd.f32 0.0, %v5354
    %v5356 = vpop.f32.mrb[0].mxu0
    %v5357 = vadd.f32 0.0, %v5356
    %5358 = vdwg.mxu0
    %v5359 = vadd.f32 %v4710, %v5284
    %v5360 = vadd.f32 %v4711, %v5286
    %v5361 = vadd.f32 %v4712, %v5355
    %v5362 = vadd.f32 %v4713, %v5357
    %s5363 = scalar_lea.vmem [#allocation4], 2560
    %v5364 = vld [vmem:[%s5363] sm:$0xff]
    %v5365 = vld [vmem:[%s5363 + $0x8] sm:$0xff]
    %v5366 = vld [vmem:[%s5363 + $0x10] sm:$0xff]
    %v5367 = vld [vmem:[%s5363 + $0x18] sm:$0xff]
    %v5368 = vld [vmem:[%s5363 + $0x20] sm:$0xff]
    %v5369 = vld [vmem:[%s5363 + $0x28] sm:$0xff]
    %v5370 = vld [vmem:[%s5363 + $0x30] sm:$0xff]
    %v5371 = vld [vmem:[%s5363 + $0x38] sm:$0xff]
    %v5372 = vld [vmem:[%s5363 + $0x40] sm:$0xff]
    %v5373 = vld [vmem:[%s5363 + $0x48] sm:$0xff]
    %v5374 = vld [vmem:[%s5363 + $0x50] sm:$0xff]
    %v5375 = vld [vmem:[%s5363 + $0x58] sm:$0xff]
    %v5376 = vld [vmem:[%s5363 + $0x60] sm:$0xff]
    %v5377 = vld [vmem:[%s5363 + $0x68] sm:$0xff]
    %v5378 = vld [vmem:[%s5363 + $0x70] sm:$0xff]
    %v5379 = vld [vmem:[%s5363 + $0x78] sm:$0xff]
    %v5380 = vld [vmem:[%s5363 + $0x80] sm:$0xff]
    %v5381 = vld [vmem:[%s5363 + $0x88] sm:$0xff]
    %v5382 = vld [vmem:[%s5363 + $0x90] sm:$0xff]
    %v5383 = vld [vmem:[%s5363 + $0x98] sm:$0xff]
    %v5384 = vld [vmem:[%s5363 + $0xa0] sm:$0xff]
    %v5385 = vld [vmem:[%s5363 + $0xa8] sm:$0xff]
    %v5386 = vld [vmem:[%s5363 + $0xb0] sm:$0xff]
    %v5387 = vld [vmem:[%s5363 + $0xb8] sm:$0xff]
    %v5388 = vld [vmem:[%s5363 + $0xc0] sm:$0xff]
    %v5389 = vld [vmem:[%s5363 + $0xc8] sm:$0xff]
    %v5390 = vld [vmem:[%s5363 + $0xd0] sm:$0xff]
    %v5391 = vld [vmem:[%s5363 + $0xd8] sm:$0xff]
    %v5392 = vld [vmem:[%s5363 + $0xe0] sm:$0xff]
    %v5393 = vld [vmem:[%s5363 + $0xe8] sm:$0xff]
    %v5394 = vld [vmem:[%s5363 + $0xf0] sm:$0xff]
    %v5395 = vld [vmem:[%s5363 + $0xf8] sm:$0xff]
    %v5396 = vld [vmem:[%s5363 + $0x100] sm:$0xff]
    %v5397 = vld [vmem:[%s5363 + $0x108] sm:$0xff]
    %v5398 = vld [vmem:[%s5363 + $0x110] sm:$0xff]
    %v5399 = vld [vmem:[%s5363 + $0x118] sm:$0xff]
    %v5400 = vld [vmem:[%s5363 + $0x120] sm:$0xff]
    %v5401 = vld [vmem:[%s5363 + $0x128] sm:$0xff]
    %v5402 = vld [vmem:[%s5363 + $0x130] sm:$0xff]
    %v5403 = vld [vmem:[%s5363 + $0x138] sm:$0xff]
    %v5404 = vld [vmem:[%s5363 + $0x140] sm:$0xff]
    %v5405 = vld [vmem:[%s5363 + $0x148] sm:$0xff]
    %v5406 = vld [vmem:[%s5363 + $0x150] sm:$0xff]
    %v5407 = vld [vmem:[%s5363 + $0x158] sm:$0xff]
    %v5408 = vld [vmem:[%s5363 + $0x160] sm:$0xff]
    %v5409 = vld [vmem:[%s5363 + $0x168] sm:$0xff]
    %v5410 = vld [vmem:[%s5363 + $0x170] sm:$0xff]
    %v5411 = vld [vmem:[%s5363 + $0x178] sm:$0xff]
    %v5412 = vld [vmem:[%s5363 + $0x180] sm:$0xff]
    %v5413 = vld [vmem:[%s5363 + $0x188] sm:$0xff]
    %v5414 = vld [vmem:[%s5363 + $0x190] sm:$0xff]
    %v5415 = vld [vmem:[%s5363 + $0x198] sm:$0xff]
    %v5416 = vld [vmem:[%s5363 + $0x1a0] sm:$0xff]
    %v5417 = vld [vmem:[%s5363 + $0x1a8] sm:$0xff]
    %v5418 = vld [vmem:[%s5363 + $0x1b0] sm:$0xff]
    %v5419 = vld [vmem:[%s5363 + $0x1b8] sm:$0xff]
    %v5420 = vld [vmem:[%s5363 + $0x1c0] sm:$0xff]
    %v5421 = vld [vmem:[%s5363 + $0x1c8] sm:$0xff]
    %v5422 = vld [vmem:[%s5363 + $0x1d0] sm:$0xff]
    %v5423 = vld [vmem:[%s5363 + $0x1d8] sm:$0xff]
    %v5424 = vld [vmem:[%s5363 + $0x1e0] sm:$0xff]
    %v5425 = vld [vmem:[%s5363 + $0x1e8] sm:$0xff]
    %v5426 = vld [vmem:[%s5363 + $0x1f0] sm:$0xff]
    %v5427 = vld [vmem:[%s5363 + $0x1f8] sm:$0xff]
    %5428 = vmatprep.subr.mxu0 %v5365
    %5429 = vmatpush1.msra.mxu0 %v5364
    %5430 = vmatprep.subr.mxu0 %v5369
    %5431 = vmatpush1.msra.mxu0 %v5368
    %5432 = vmatprep.subr.mxu0 %v5373
    %5433 = vmatpush1.msra.mxu0 %v5372
    %5434 = vmatprep.subr.mxu0 %v5377
    %5435 = vmatpush1.msra.mxu0 %v5376
    %5436 = vmatprep.subr.mxu0 %v5381
    %5437 = vmatpush1.msra.mxu0 %v5380
    %5438 = vmatprep.subr.mxu0 %v5385
    %5439 = vmatpush1.msra.mxu0 %v5384
    %5440 = vmatprep.subr.mxu0 %v5389
    %5441 = vmatpush1.msra.mxu0 %v5388
    %5442 = vmatprep.subr.mxu0 %v5393
    %5443 = vmatpush1.msra.mxu0 %v5392
    %5444 = vmatprep.subr.mxu0 %v5397
    %5445 = vmatpush1.msra.mxu0 %v5396
    %5446 = vmatprep.subr.mxu0 %v5401
    %5447 = vmatpush1.msra.mxu0 %v5400
    %5448 = vmatprep.subr.mxu0 %v5405
    %5449 = vmatpush1.msra.mxu0 %v5404
    %5450 = vmatprep.subr.mxu0 %v5409
    %5451 = vmatpush1.msra.mxu0 %v5408
    %5452 = vmatprep.subr.mxu0 %v5413
    %5453 = vmatpush1.msra.mxu0 %v5412
    %5454 = vmatprep.subr.mxu0 %v5417
    %5455 = vmatpush1.msra.mxu0 %v5416
    %5456 = vmatprep.subr.mxu0 %v5421
    %5457 = vmatpush1.msra.mxu0 %v5420
    %5458 = vmatprep.subr.mxu0 %v5425
    %5459 = vmatpush1.msra.mxu0 %v5424
    %5460 = vmatprep.subr.mxu0 0.0
    %5461 = vmatpush1.msra.mxu0 0.0
    %5462 = vmatprep.subr.mxu0 0.0
    %5463 = vmatpush1.msra.mxu0 0.0
    %5464 = vmatprep.subr.mxu0 0.0
    %5465 = vmatpush1.msra.mxu0 0.0
    %5466 = vmatprep.subr.mxu0 0.0
    %5467 = vmatpush1.msra.mxu0 0.0
    %5468 = vmatprep.subr.mxu0 0.0
    %5469 = vmatpush1.msra.mxu0 0.0
    %5470 = vmatprep.subr.mxu0 0.0
    %5471 = vmatpush1.msra.mxu0 0.0
    %5472 = vmatprep.subr.mxu0 0.0
    %5473 = vmatpush1.msra.mxu0 0.0
    %5474 = vmatprep.subr.mxu0 0.0
    %5475 = vmatpush1.msra.mxu0 0.0
    %5476 = vmatprep.subr.mxu0 0.0
    %5477 = vmatpush1.msra.mxu0 0.0
    %5478 = vmatprep.subr.mxu0 0.0
    %5479 = vmatpush1.msra.mxu0 0.0
    %5480 = vmatprep.subr.mxu0 0.0
    %5481 = vmatpush1.msra.mxu0 0.0
    %5482 = vmatprep.subr.mxu0 0.0
    %5483 = vmatpush1.msra.mxu0 0.0
    %5484 = vmatprep.subr.mxu0 0.0
    %5485 = vmatpush1.msra.mxu0 0.0
    %5486 = vmatprep.subr.mxu0 0.0
    %5487 = vmatpush1.msra.mxu0 0.0
    %5488 = vmatprep.subr.mxu0 0.0
    %5489 = vmatpush1.msra.mxu0 0.0
    %5490 = vmatprep.subr.mxu0 0.0
    %5491 = vmatpush1.msra.mxu0 0.0
    %5492 = vmatprep.mubr.f32.mxu0 0.0
    %5493 = vmatmul.mubr.f32.gmra.mrb[0].mxu0 %v1250
    %v5494 = vpop.f32.mrb[0].mxu0
    %v5495 = vadd.f32 0.0, %v5494
    %v5496 = vpop.f32.mrb[0].mxu0
    %v5497 = vadd.f32 0.0, %v5496
    %5498 = vdwg.mxu0
    %5499 = vmatprep.subr.mxu0 %v5367
    %5500 = vmatpush1.msra.mxu0 %v5366
    %5501 = vmatprep.subr.mxu0 %v5371
    %5502 = vmatpush1.msra.mxu0 %v5370
    %5503 = vmatprep.subr.mxu0 %v5375
    %5504 = vmatpush1.msra.mxu0 %v5374
    %5505 = vmatprep.subr.mxu0 %v5379
    %5506 = vmatpush1.msra.mxu0 %v5378
    %5507 = vmatprep.subr.mxu0 %v5383
    %5508 = vmatpush1.msra.mxu0 %v5382
    %5509 = vmatprep.subr.mxu0 %v5387
    %5510 = vmatpush1.msra.mxu0 %v5386
    %5511 = vmatprep.subr.mxu0 %v5391
    %5512 = vmatpush1.msra.mxu0 %v5390
    %5513 = vmatprep.subr.mxu0 %v5395
    %5514 = vmatpush1.msra.mxu0 %v5394
    %5515 = vmatprep.subr.mxu0 %v5399
    %5516 = vmatpush1.msra.mxu0 %v5398
    %5517 = vmatprep.subr.mxu0 %v5403
    %5518 = vmatpush1.msra.mxu0 %v5402
    %5519 = vmatprep.subr.mxu0 %v5407
    %5520 = vmatpush1.msra.mxu0 %v5406
    %5521 = vmatprep.subr.mxu0 %v5411
    %5522 = vmatpush1.msra.mxu0 %v5410
    %5523 = vmatprep.subr.mxu0 %v5415
    %5524 = vmatpush1.msra.mxu0 %v5414
    %5525 = vmatprep.subr.mxu0 %v5419
    %5526 = vmatpush1.msra.mxu0 %v5418
    %5527 = vmatprep.subr.mxu0 %v5423
    %5528 = vmatpush1.msra.mxu0 %v5422
    %5529 = vmatprep.subr.mxu0 %v5427
    %5530 = vmatpush1.msra.mxu0 %v5426
    %5531 = vmatprep.subr.mxu0 0.0
    %5532 = vmatpush1.msra.mxu0 0.0
    %5533 = vmatprep.subr.mxu0 0.0
    %5534 = vmatpush1.msra.mxu0 0.0
    %5535 = vmatprep.subr.mxu0 0.0
    %5536 = vmatpush1.msra.mxu0 0.0
    %5537 = vmatprep.subr.mxu0 0.0
    %5538 = vmatpush1.msra.mxu0 0.0
    %5539 = vmatprep.subr.mxu0 0.0
    %5540 = vmatpush1.msra.mxu0 0.0
    %5541 = vmatprep.subr.mxu0 0.0
    %5542 = vmatpush1.msra.mxu0 0.0
    %5543 = vmatprep.subr.mxu0 0.0
    %5544 = vmatpush1.msra.mxu0 0.0
    %5545 = vmatprep.subr.mxu0 0.0
    %5546 = vmatpush1.msra.mxu0 0.0
    %5547 = vmatprep.subr.mxu0 0.0
    %5548 = vmatpush1.msra.mxu0 0.0
    %5549 = vmatprep.subr.mxu0 0.0
    %5550 = vmatpush1.msra.mxu0 0.0
    %5551 = vmatprep.subr.mxu0 0.0
    %5552 = vmatpush1.msra.mxu0 0.0
    %5553 = vmatprep.subr.mxu0 0.0
    %5554 = vmatpush1.msra.mxu0 0.0
    %5555 = vmatprep.subr.mxu0 0.0
    %5556 = vmatpush1.msra.mxu0 0.0
    %5557 = vmatprep.subr.mxu0 0.0
    %5558 = vmatpush1.msra.mxu0 0.0
    %5559 = vmatprep.subr.mxu0 0.0
    %5560 = vmatpush1.msra.mxu0 0.0
    %5561 = vmatprep.subr.mxu0 0.0
    %5562 = vmatpush1.msra.mxu0 0.0
    %5563 = vmatprep.mubr.f32.mxu0 0.0
    %5564 = vmatmul.mubr.f32.gmra.mrb[0].mxu0 %v1250
    %v5565 = vpop.f32.mrb[0].mxu0
    %v5566 = vadd.f32 0.0, %v5565
    %v5567 = vpop.f32.mrb[0].mxu0
    %v5568 = vadd.f32 0.0, %v5567
    %5569 = vdwg.mxu0
    %v5570 = vadd.f32 %v4921, %v5495
    %v5571 = vadd.f32 %v4922, %v5497
    %v5572 = vadd.f32 %v4923, %v5566
    %v5573 = vadd.f32 %v4924, %v5568
    %5574 = vmatprep.subr.mxu0 %v5365
    %5575 = vmatpush1.msra.mxu0 %v5364
    %5576 = vmatprep.subr.mxu0 %v5369
    %5577 = vmatpush1.msra.mxu0 %v5368
    %5578 = vmatprep.subr.mxu0 %v5373
    %5579 = vmatpush1.msra.mxu0 %v5372
    %5580 = vmatprep.subr.mxu0 %v5377
    %5581 = vmatpush1.msra.mxu0 %v5376
    %5582 = vmatprep.subr.mxu0 %v5381
    %5583 = vmatpush1.msra.mxu0 %v5380
    %5584 = vmatprep.subr.mxu0 %v5385
    %5585 = vmatpush1.msra.mxu0 %v5384
    %5586 = vmatprep.subr.mxu0 %v5389
    %5587 = vmatpush1.msra.mxu0 %v5388
    %5588 = vmatprep.subr.mxu0 %v5393
    %5589 = vmatpush1.msra.mxu0 %v5392
    %5590 = vmatprep.subr.mxu0 %v5397
    %5591 = vmatpush1.msra.mxu0 %v5396
    %5592 = vmatprep.subr.mxu0 %v5401
    %5593 = vmatpush1.msra.mxu0 %v5400
    %5594 = vmatprep.subr.mxu0 %v5405
    %5595 = vmatpush1.msra.mxu0 %v5404
    %5596 = vmatprep.subr.mxu0 %v5409
    %5597 = vmatpush1.msra.mxu0 %v5408
    %5598 = vmatprep.subr.mxu0 %v5413
    %5599 = vmatpush1.msra.mxu0 %v5412
    %5600 = vmatprep.subr.mxu0 %v5417
    %5601 = vmatpush1.msra.mxu0 %v5416
    %5602 = vmatprep.subr.mxu0 %v5421
    %5603 = vmatpush1.msra.mxu0 %v5420
    %5604 = vmatprep.subr.mxu0 %v5425
    %5605 = vmatpush1.msra.mxu0 %v5424
    %5606 = vmatprep.subr.mxu0 0.0
    %5607 = vmatpush1.msra.mxu0 0.0
    %5608 = vmatprep.subr.mxu0 0.0
    %5609 = vmatpush1.msra.mxu0 0.0
    %5610 = vmatprep.subr.mxu0 0.0
    %5611 = vmatpush1.msra.mxu0 0.0
    %5612 = vmatprep.subr.mxu0 0.0
    %5613 = vmatpush1.msra.mxu0 0.0
    %5614 = vmatprep.subr.mxu0 0.0
    %5615 = vmatpush1.msra.mxu0 0.0
    %5616 = vmatprep.subr.mxu0 0.0
    %5617 = vmatpush1.msra.mxu0 0.0
    %5618 = vmatprep.subr.mxu0 0.0
    %5619 = vmatpush1.msra.mxu0 0.0
    %5620 = vmatprep.subr.mxu0 0.0
    %5621 = vmatpush1.msra.mxu0 0.0
    %5622 = vmatprep.subr.mxu0 0.0
    %5623 = vmatpush1.msra.mxu0 0.0
    %5624 = vmatprep.subr.mxu0 0.0
    %5625 = vmatpush1.msra.mxu0 0.0
    %5626 = vmatprep.subr.mxu0 0.0
    %5627 = vmatpush1.msra.mxu0 0.0
    %5628 = vmatprep.subr.mxu0 0.0
    %5629 = vmatpush1.msra.mxu0 0.0
    %5630 = vmatprep.subr.mxu0 0.0
    %5631 = vmatpush1.msra.mxu0 0.0
    %5632 = vmatprep.subr.mxu0 0.0
    %5633 = vmatpush1.msra.mxu0 0.0
    %5634 = vmatprep.subr.mxu0 0.0
    %5635 = vmatpush1.msra.mxu0 0.0
    %5636 = vmatprep.subr.mxu0 0.0
    %5637 = vmatpush1.msra.mxu0 0.0
    %5638 = vmatprep.mubr.f32.mxu0 0.0
    %5639 = vmatmul.mubr.f32.gmra.mrb[0].mxu0 %v1550
    %v5640 = vpop.f32.mrb[0].mxu0
    %v5641 = vadd.f32 0.0, %v5640
    %v5642 = vpop.f32.mrb[0].mxu0
    %v5643 = vadd.f32 0.0, %v5642
    %5644 = vdwg.mxu0
    %5645 = vmatprep.subr.mxu0 %v5367
    %5646 = vmatpush1.msra.mxu0 %v5366
    %5647 = vmatprep.subr.mxu0 %v5371
    %5648 = vmatpush1.msra.mxu0 %v5370
    %5649 = vmatprep.subr.mxu0 %v5375
    %5650 = vmatpush1.msra.mxu0 %v5374
    %5651 = vmatprep.subr.mxu0 %v5379
    %5652 = vmatpush1.msra.mxu0 %v5378
    %5653 = vmatprep.subr.mxu0 %v5383
    %5654 = vmatpush1.msra.mxu0 %v5382
    %5655 = vmatprep.subr.mxu0 %v5387
    %5656 = vmatpush1.msra.mxu0 %v5386
    %5657 = vmatprep.subr.mxu0 %v5391
    %5658 = vmatpush1.msra.mxu0 %v5390
    %5659 = vmatprep.subr.mxu0 %v5395
    %5660 = vmatpush1.msra.mxu0 %v5394
    %5661 = vmatprep.subr.mxu0 %v5399
    %5662 = vmatpush1.msra.mxu0 %v5398
    %5663 = vmatprep.subr.mxu0 %v5403
    %5664 = vmatpush1.msra.mxu0 %v5402
    %5665 = vmatprep.subr.mxu0 %v5407
    %5666 = vmatpush1.msra.mxu0 %v5406
    %5667 = vmatprep.subr.mxu0 %v5411
    %5668 = vmatpush1.msra.mxu0 %v5410
    %5669 = vmatprep.subr.mxu0 %v5415
    %5670 = vmatpush1.msra.mxu0 %v5414
    %5671 = vmatprep.subr.mxu0 %v5419
    %5672 = vmatpush1.msra.mxu0 %v5418
    %5673 = vmatprep.subr.mxu0 %v5423
    %5674 = vmatpush1.msra.mxu0 %v5422
    %5675 = vmatprep.subr.mxu0 %v5427
    %5676 = vmatpush1.msra.mxu0 %v5426
    %5677 = vmatprep.subr.mxu0 0.0
    %5678 = vmatpush1.msra.mxu0 0.0
    %5679 = vmatprep.subr.mxu0 0.0
    %5680 = vmatpush1.msra.mxu0 0.0
    %5681 = vmatprep.subr.mxu0 0.0
    %5682 = vmatpush1.msra.mxu0 0.0
    %5683 = vmatprep.subr.mxu0 0.0
    %5684 = vmatpush1.msra.mxu0 0.0
    %5685 = vmatprep.subr.mxu0 0.0
    %5686 = vmatpush1.msra.mxu0 0.0
    %5687 = vmatprep.subr.mxu0 0.0
    %5688 = vmatpush1.msra.mxu0 0.0
    %5689 = vmatprep.subr.mxu0 0.0
    %5690 = vmatpush1.msra.mxu0 0.0
    %5691 = vmatprep.subr.mxu0 0.0
    %5692 = vmatpush1.msra.mxu0 0.0
    %5693 = vmatprep.subr.mxu0 0.0
    %5694 = vmatpush1.msra.mxu0 0.0
    %5695 = vmatprep.subr.mxu0 0.0
    %5696 = vmatpush1.msra.mxu0 0.0
    %5697 = vmatprep.subr.mxu0 0.0
    %5698 = vmatpush1.msra.mxu0 0.0
    %5699 = vmatprep.subr.mxu0 0.0
    %5700 = vmatpush1.msra.mxu0 0.0
    %5701 = vmatprep.subr.mxu0 0.0
    %5702 = vmatpush1.msra.mxu0 0.0
    %5703 = vmatprep.subr.mxu0 0.0
    %5704 = vmatpush1.msra.mxu0 0.0
    %5705 = vmatprep.subr.mxu0 0.0
    %5706 = vmatpush1.msra.mxu0 0.0
    %5707 = vmatprep.subr.mxu0 0.0
    %5708 = vmatpush1.msra.mxu0 0.0
    %5709 = vmatprep.mubr.f32.mxu0 0.0
    %5710 = vmatmul.mubr.f32.gmra.mrb[0].mxu0 %v1550
    %v5711 = vpop.f32.mrb[0].mxu0
    %v5712 = vadd.f32 0.0, %v5711
    %v5713 = vpop.f32.mrb[0].mxu0
    %v5714 = vadd.f32 0.0, %v5713
    %5715 = vdwg.mxu0
    %v5716 = vadd.f32 %v5067, %v5641
    %v5717 = vadd.f32 %v5068, %v5643
    %v5718 = vadd.f32 %v5069, %v5712
    %v5719 = vadd.f32 %v5070, %v5714
    %5720 = vmatprep.subr.mxu0 %v5365
    %5721 = vmatpush1.msra.mxu0 %v5364
    %5722 = vmatprep.subr.mxu0 %v5369
    %5723 = vmatpush1.msra.mxu0 %v5368
    %5724 = vmatprep.subr.mxu0 %v5373
    %5725 = vmatpush1.msra.mxu0 %v5372
    %5726 = vmatprep.subr.mxu0 %v5377
    %5727 = vmatpush1.msra.mxu0 %v5376
    %5728 = vmatprep.subr.mxu0 %v5381
    %5729 = vmatpush1.msra.mxu0 %v5380
    %5730 = vmatprep.subr.mxu0 %v5385
    %5731 = vmatpush1.msra.mxu0 %v5384
    %5732 = vmatprep.subr.mxu0 %v5389
    %5733 = vmatpush1.msra.mxu0 %v5388
    %5734 = vmatprep.subr.mxu0 %v5393
    %5735 = vmatpush1.msra.mxu0 %v5392
    %5736 = vmatprep.subr.mxu0 %v5397
    %5737 = vmatpush1.msra.mxu0 %v5396
    %5738 = vmatprep.subr.mxu0 %v5401
    %5739 = vmatpush1.msra.mxu0 %v5400
    %5740 = vmatprep.subr.mxu0 %v5405
    %5741 = vmatpush1.msra.mxu0 %v5404
    %5742 = vmatprep.subr.mxu0 %v5409
    %5743 = vmatpush1.msra.mxu0 %v5408
    %5744 = vmatprep.subr.mxu0 %v5413
    %5745 = vmatpush1.msra.mxu0 %v5412
    %5746 = vmatprep.subr.mxu0 %v5417
    %5747 = vmatpush1.msra.mxu0 %v5416
    %5748 = vmatprep.subr.mxu0 %v5421
    %5749 = vmatpush1.msra.mxu0 %v5420
    %5750 = vmatprep.subr.mxu0 %v5425
    %5751 = vmatpush1.msra.mxu0 %v5424
    %5752 = vmatprep.subr.mxu0 0.0
    %5753 = vmatpush1.msra.mxu0 0.0
    %5754 = vmatprep.subr.mxu0 0.0
    %5755 = vmatpush1.msra.mxu0 0.0
    %5756 = vmatprep.subr.mxu0 0.0
    %5757 = vmatpush1.msra.mxu0 0.0
    %5758 = vmatprep.subr.mxu0 0.0
    %5759 = vmatpush1.msra.mxu0 0.0
    %5760 = vmatprep.subr.mxu0 0.0
    %5761 = vmatpush1.msra.mxu0 0.0
    %5762 = vmatprep.subr.mxu0 0.0
    %5763 = vmatpush1.msra.mxu0 0.0
    %5764 = vmatprep.subr.mxu0 0.0
    %5765 = vmatpush1.msra.mxu0 0.0
    %5766 = vmatprep.subr.mxu0 0.0
    %5767 = vmatpush1.msra.mxu0 0.0
    %5768 = vmatprep.subr.mxu0 0.0
    %5769 = vmatpush1.msra.mxu0 0.0
    %5770 = vmatprep.subr.mxu0 0.0
    %5771 = vmatpush1.msra.mxu0 0.0
    %5772 = vmatprep.subr.mxu0 0.0
    %5773 = vmatpush1.msra.mxu0 0.0
    %5774 = vmatprep.subr.mxu0 0.0
    %5775 = vmatpush1.msra.mxu0 0.0
    %5776 = vmatprep.subr.mxu0 0.0
    %5777 = vmatpush1.msra.mxu0 0.0
    %5778 = vmatprep.subr.mxu0 0.0
    %5779 = vmatpush1.msra.mxu0 0.0
    %5780 = vmatprep.subr.mxu0 0.0
    %5781 = vmatpush1.msra.mxu0 0.0
    %5782 = vmatprep.subr.mxu0 0.0
    %5783 = vmatpush1.msra.mxu0 0.0
    %5784 = vmatprep.mubr.f32.mxu0 0.0
    %5785 = vmatmul.mubr.f32.gmra.mrb[0].mxu0 %v1850
    %v5786 = vpop.f32.mrb[0].mxu0
    %v5787 = vadd.f32 0.0, %v5786
    %v5788 = vpop.f32.mrb[0].mxu0
    %v5789 = vadd.f32 0.0, %v5788
    %5790 = vdwg.mxu0
    %5791 = vmatprep.subr.mxu0 %v5367
    %5792 = vmatpush1.msra.mxu0 %v5366
    %5793 = vmatprep.subr.mxu0 %v5371
    %5794 = vmatpush1.msra.mxu0 %v5370
    %5795 = vmatprep.subr.mxu0 %v5375
    %5796 = vmatpush1.msra.mxu0 %v5374
    %5797 = vmatprep.subr.mxu0 %v5379
    %5798 = vmatpush1.msra.mxu0 %v5378
    %5799 = vmatprep.subr.mxu0 %v5383
    %5800 = vmatpush1.msra.mxu0 %v5382
    %5801 = vmatprep.subr.mxu0 %v5387
    %5802 = vmatpush1.msra.mxu0 %v5386
    %5803 = vmatprep.subr.mxu0 %v5391
    %5804 = vmatpush1.msra.mxu0 %v5390
    %5805 = vmatprep.subr.mxu0 %v5395
    %5806 = vmatpush1.msra.mxu0 %v5394
    %5807 = vmatprep.subr.mxu0 %v5399
    %5808 = vmatpush1.msra.mxu0 %v5398
    %5809 = vmatprep.subr.mxu0 %v5403
    %5810 = vmatpush1.msra.mxu0 %v5402
    %5811 = vmatprep.subr.mxu0 %v5407
    %5812 = vmatpush1.msra.mxu0 %v5406
    %5813 = vmatprep.subr.mxu0 %v5411
    %5814 = vmatpush1.msra.mxu0 %v5410
    %5815 = vmatprep.subr.mxu0 %v5415
    %5816 = vmatpush1.msra.mxu0 %v5414
    %5817 = vmatprep.subr.mxu0 %v5419
    %5818 = vmatpush1.msra.mxu0 %v5418
    %5819 = vmatprep.subr.mxu0 %v5423
    %5820 = vmatpush1.msra.mxu0 %v5422
    %5821 = vmatprep.subr.mxu0 %v5427
    %5822 = vmatpush1.msra.mxu0 %v5426
    %5823 = vmatprep.subr.mxu0 0.0
    %5824 = vmatpush1.msra.mxu0 0.0
    %5825 = vmatprep.subr.mxu0 0.0
    %5826 = vmatpush1.msra.mxu0 0.0
    %5827 = vmatprep.subr.mxu0 0.0
    %5828 = vmatpush1.msra.mxu0 0.0
    %5829 = vmatprep.subr.mxu0 0.0
    %5830 = vmatpush1.msra.mxu0 0.0
    %5831 = vmatprep.subr.mxu0 0.0
    %5832 = vmatpush1.msra.mxu0 0.0
    %5833 = vmatprep.subr.mxu0 0.0
    %5834 = vmatpush1.msra.mxu0 0.0
    %5835 = vmatprep.subr.mxu0 0.0
    %5836 = vmatpush1.msra.mxu0 0.0
    %5837 = vmatprep.subr.mxu0 0.0
    %5838 = vmatpush1.msra.mxu0 0.0
    %5839 = vmatprep.subr.mxu0 0.0
    %5840 = vmatpush1.msra.mxu0 0.0
    %5841 = vmatprep.subr.mxu0 0.0
    %5842 = vmatpush1.msra.mxu0 0.0
    %5843 = vmatprep.subr.mxu0 0.0
    %5844 = vmatpush1.msra.mxu0 0.0
    %5845 = vmatprep.subr.mxu0 0.0
    %5846 = vmatpush1.msra.mxu0 0.0
    %5847 = vmatprep.subr.mxu0 0.0
    %5848 = vmatpush1.msra.mxu0 0.0
    %5849 = vmatprep.subr.mxu0 0.0
    %5850 = vmatpush1.msra.mxu0 0.0
    %5851 = vmatprep.subr.mxu0 0.0
    %5852 = vmatpush1.msra.mxu0 0.0
    %5853 = vmatprep.subr.mxu0 0.0
    %5854 = vmatpush1.msra.mxu0 0.0
    %5855 = vmatprep.mubr.f32.mxu0 0.0
    %5856 = vmatmul.mubr.f32.gmra.mrb[0].mxu0 %v1850
    %v5857 = vpop.f32.mrb[0].mxu0
    %v5858 = vadd.f32 0.0, %v5857
    %v5859 = vpop.f32.mrb[0].mxu0
    %v5860 = vadd.f32 0.0, %v5859
    %5861 = vdwg.mxu0
    %v5862 = vadd.f32 %v5213, %v5787
    %v5863 = vadd.f32 %v5214, %v5789
    %v5864 = vadd.f32 %v5215, %v5858
    %v5865 = vadd.f32 %v5216, %v5860
    %5866 = vmatprep.subr.mxu0 %v5365
    %5867 = vmatpush1.msra.mxu0 %v5364
    %5868 = vmatprep.subr.mxu0 %v5369
    %5869 = vmatpush1.msra.mxu0 %v5368
    %5870 = vmatprep.subr.mxu0 %v5373
    %5871 = vmatpush1.msra.mxu0 %v5372
    %5872 = vmatprep.subr.mxu0 %v5377
    %5873 = vmatpush1.msra.mxu0 %v5376
    %5874 = vmatprep.subr.mxu0 %v5381
    %5875 = vmatpush1.msra.mxu0 %v5380
    %5876 = vmatprep.subr.mxu0 %v5385
    %5877 = vmatpush1.msra.mxu0 %v5384
    %5878 = vmatprep.subr.mxu0 %v5389
    %5879 = vmatpush1.msra.mxu0 %v5388
    %5880 = vmatprep.subr.mxu0 %v5393
    %5881 = vmatpush1.msra.mxu0 %v5392
    %5882 = vmatprep.subr.mxu0 %v5397
    %5883 = vmatpush1.msra.mxu0 %v5396
    %5884 = vmatprep.subr.mxu0 %v5401
    %5885 = vmatpush1.msra.mxu0 %v5400
    %5886 = vmatprep.subr.mxu0 %v5405
    %5887 = vmatpush1.msra.mxu0 %v5404
    %5888 = vmatprep.subr.mxu0 %v5409
    %5889 = vmatpush1.msra.mxu0 %v5408
    %5890 = vmatprep.subr.mxu0 %v5413
    %5891 = vmatpush1.msra.mxu0 %v5412
    %5892 = vmatprep.subr.mxu0 %v5417
    %5893 = vmatpush1.msra.mxu0 %v5416
    %5894 = vmatprep.subr.mxu0 %v5421
    %5895 = vmatpush1.msra.mxu0 %v5420
    %5896 = vmatprep.subr.mxu0 %v5425
    %5897 = vmatpush1.msra.mxu0 %v5424
    %5898 = vmatprep.subr.mxu0 0.0
    %5899 = vmatpush1.msra.mxu0 0.0
    %5900 = vmatprep.subr.mxu0 0.0
    %5901 = vmatpush1.msra.mxu0 0.0
    %5902 = vmatprep.subr.mxu0 0.0
    %5903 = vmatpush1.msra.mxu0 0.0
    %5904 = vmatprep.subr.mxu0 0.0
    %5905 = vmatpush1.msra.mxu0 0.0
    %5906 = vmatprep.subr.mxu0 0.0
    %5907 = vmatpush1.msra.mxu0 0.0
    %5908 = vmatprep.subr.mxu0 0.0
    %5909 = vmatpush1.msra.mxu0 0.0
    %5910 = vmatprep.subr.mxu0 0.0
    %5911 = vmatpush1.msra.mxu0 0.0
    %5912 = vmatprep.subr.mxu0 0.0
    %5913 = vmatpush1.msra.mxu0 0.0
    %5914 = vmatprep.subr.mxu0 0.0
    %5915 = vmatpush1.msra.mxu0 0.0
    %5916 = vmatprep.subr.mxu0 0.0
    %5917 = vmatpush1.msra.mxu0 0.0
    %5918 = vmatprep.subr.mxu0 0.0
    %5919 = vmatpush1.msra.mxu0 0.0
    %5920 = vmatprep.subr.mxu0 0.0
    %5921 = vmatpush1.msra.mxu0 0.0
    %5922 = vmatprep.subr.mxu0 0.0
    %5923 = vmatpush1.msra.mxu0 0.0
    %5924 = vmatprep.subr.mxu0 0.0
    %5925 = vmatpush1.msra.mxu0 0.0
    %5926 = vmatprep.subr.mxu0 0.0
    %5927 = vmatpush1.msra.mxu0 0.0
    %5928 = vmatprep.subr.mxu0 0.0
    %5929 = vmatpush1.msra.mxu0 0.0
    %5930 = vmatprep.mubr.f32.mxu0 0.0
    %5931 = vmatmul.mubr.f32.gmra.mrb[0].mxu0 %v2150
    %v5932 = vpop.f32.mrb[0].mxu0
    %v5933 = vadd.f32 0.0, %v5932
    %v5934 = vpop.f32.mrb[0].mxu0
    %v5935 = vadd.f32 0.0, %v5934
    %5936 = vdwg.mxu0
    %5937 = vmatprep.subr.mxu0 %v5367
    %5938 = vmatpush1.msra.mxu0 %v5366
    %5939 = vmatprep.subr.mxu0 %v5371
    %5940 = vmatpush1.msra.mxu0 %v5370
    %5941 = vmatprep.subr.mxu0 %v5375
    %5942 = vmatpush1.msra.mxu0 %v5374
    %5943 = vmatprep.subr.mxu0 %v5379
    %5944 = vmatpush1.msra.mxu0 %v5378
    %5945 = vmatprep.subr.mxu0 %v5383
    %5946 = vmatpush1.msra.mxu0 %v5382
    %5947 = vmatprep.subr.mxu0 %v5387
    %5948 = vmatpush1.msra.mxu0 %v5386
    %5949 = vmatprep.subr.mxu0 %v5391
    %5950 = vmatpush1.msra.mxu0 %v5390
    %5951 = vmatprep.subr.mxu0 %v5395
    %5952 = vmatpush1.msra.mxu0 %v5394
    %5953 = vmatprep.subr.mxu0 %v5399
    %5954 = vmatpush1.msra.mxu0 %v5398
    %5955 = vmatprep.subr.mxu0 %v5403
    %5956 = vmatpush1.msra.mxu0 %v5402
    %5957 = vmatprep.subr.mxu0 %v5407
    %5958 = vmatpush1.msra.mxu0 %v5406
    %5959 = vmatprep.subr.mxu0 %v5411
    %5960 = vmatpush1.msra.mxu0 %v5410
    %5961 = vmatprep.subr.mxu0 %v5415
    %5962 = vmatpush1.msra.mxu0 %v5414
    %5963 = vmatprep.subr.mxu0 %v5419
    %5964 = vmatpush1.msra.mxu0 %v5418
    %5965 = vmatprep.subr.mxu0 %v5423
    %5966 = vmatpush1.msra.mxu0 %v5422
    %5967 = vmatprep.subr.mxu0 %v5427
    %5968 = vmatpush1.msra.mxu0 %v5426
    %5969 = vmatprep.subr.mxu0 0.0
    %5970 = vmatpush1.msra.mxu0 0.0
    %5971 = vmatprep.subr.mxu0 0.0
    %5972 = vmatpush1.msra.mxu0 0.0
    %5973 = vmatprep.subr.mxu0 0.0
    %5974 = vmatpush1.msra.mxu0 0.0
    %5975 = vmatprep.subr.mxu0 0.0
    %5976 = vmatpush1.msra.mxu0 0.0
    %5977 = vmatprep.subr.mxu0 0.0
    %5978 = vmatpush1.msra.mxu0 0.0
    %5979 = vmatprep.subr.mxu0 0.0
    %5980 = vmatpush1.msra.mxu0 0.0
    %5981 = vmatprep.subr.mxu0 0.0
    %5982 = vmatpush1.msra.mxu0 0.0
    %5983 = vmatprep.subr.mxu0 0.0
    %5984 = vmatpush1.msra.mxu0 0.0
    %5985 = vmatprep.subr.mxu0 0.0
    %5986 = vmatpush1.msra.mxu0 0.0
    %5987 = vmatprep.subr.mxu0 0.0
    %5988 = vmatpush1.msra.mxu0 0.0
    %5989 = vmatprep.subr.mxu0 0.0
    %5990 = vmatpush1.msra.mxu0 0.0
    %5991 = vmatprep.subr.mxu0 0.0
    %5992 = vmatpush1.msra.mxu0 0.0
    %5993 = vmatprep.subr.mxu0 0.0
    %5994 = vmatpush1.msra.mxu0 0.0
    %5995 = vmatprep.subr.mxu0 0.0
    %5996 = vmatpush1.msra.mxu0 0.0
    %5997 = vmatprep.subr.mxu0 0.0
    %5998 = vmatpush1.msra.mxu0 0.0
    %5999 = vmatprep.subr.mxu0 0.0
    %6000 = vmatpush1.msra.mxu0 0.0
    %6001 = vmatprep.mubr.f32.mxu0 0.0
    %6002 = vmatmul.mubr.f32.gmra.mrb[0].mxu0 %v2150
    %v6003 = vpop.f32.mrb[0].mxu0
    %v6004 = vadd.f32 0.0, %v6003
    %v6005 = vpop.f32.mrb[0].mxu0
    %v6006 = vadd.f32 0.0, %v6005
    %6007 = vdwg.mxu0
    %v6008 = vadd.f32 %v5359, %v5933
    %v6009 = vadd.f32 %v5360, %v5935
    %v6010 = vadd.f32 %v5361, %v6004
    %v6011 = vadd.f32 %v5362, %v6006
    %v6012 = vmax.f32 %v5570, %v5571
    %v6013 = vmax.f32 %v6012, %v5572
    %v6014 = vmax.f32 %v6013, %v5573
    %v6016 = vlaneseq
    %v6017 = vshrl.u32 %v6016, 7
    %v6018 = vsub.s32 0, %v6017
    %v6019 = vrot.slane %v344, %v6018
    %v6021 = vadd.f32 %v6014, %v6019
    %v6022 = vmax.f32 %v6021, 0.0
    %v6023 = vmax.f32 %v5716, %v5717
    %v6024 = vmax.f32 %v6023, %v5718
    %v6025 = vmax.f32 %v6024, %v5719
    %v6026 = vadd.f32 %v6025, %v6019
    %v6027 = vmax.f32 %v6026, 0.0
    %v6028 = vmax.f32 %v5862, %v5863
    %v6029 = vmax.f32 %v6028, %v5864
    %v6030 = vmax.f32 %v6029, %v5865
    %v6031 = vadd.f32 %v6030, %v6019
    %v6032 = vmax.f32 %v6031, 0.0
    %v6033 = vmax.f32 %v6008, %v6009
    %v6034 = vmax.f32 %v6033, %v6010
    %v6035 = vmax.f32 %v6034, %v6011
    %v6036 = vadd.f32 %v6035, %v6019
    %v6037 = vmax.f32 %v6036, 0.0
    %v6038 = vld [vmem:[#allocation7] sm:$0xff]
    %v6039 = vld [vmem:[#allocation7 + $0x8] sm:$0xff]
    %v6040 = vld [vmem:[#allocation7 + $0x10] sm:$0xff]
    %v6041 = vld [vmem:[#allocation7 + $0x18] sm:$0xff]
    %v6042 = vld [vmem:[#allocation7 + $0x20] sm:$0xff]
    %v6043 = vld [vmem:[#allocation7 + $0x28] sm:$0xff]
    %v6044 = vld [vmem:[#allocation7 + $0x30] sm:$0xff]
    %v6045 = vld [vmem:[#allocation7 + $0x38] sm:$0xff]
    %v6046 = vld [vmem:[#allocation7 + $0x40] sm:$0xff]
    %v6047 = vld [vmem:[#allocation7 + $0x48] sm:$0xff]
    %v6048 = vld [vmem:[#allocation7 + $0x50] sm:$0xff]
    %v6049 = vld [vmem:[#allocation7 + $0x58] sm:$0xff]
    %v6050 = vld [vmem:[#allocation7 + $0x60] sm:$0xff]
    %v6051 = vld [vmem:[#allocation7 + $0x68] sm:$0xff]
    %v6052 = vld [vmem:[#allocation7 + $0x70] sm:$0xff]
    %v6053 = vld [vmem:[#allocation7 + $0x78] sm:$0xff]
    %s6054 = scalar_lea.vmem [#allocation7], 128
    %v6055 = vld [vmem:[%s6054] sm:$0xff]
    %v6056 = vld [vmem:[%s6054 + $0x8] sm:$0xff]
    %v6057 = vld [vmem:[%s6054 + $0x10] sm:$0xff]
    %v6058 = vld [vmem:[%s6054 + $0x18] sm:$0xff]
    %v6059 = vld [vmem:[%s6054 + $0x20] sm:$0xff]
    %v6060 = vld [vmem:[%s6054 + $0x28] sm:$0xff]
    %v6061 = vld [vmem:[%s6054 + $0x30] sm:$0xff]
    %v6062 = vld [vmem:[%s6054 + $0x38] sm:$0xff]
    %v6063 = vld [vmem:[%s6054 + $0x40] sm:$0xff]
    %v6064 = vld [vmem:[%s6054 + $0x48] sm:$0xff]
    %v6065 = vld [vmem:[%s6054 + $0x50] sm:$0xff]
    %v6066 = vld [vmem:[%s6054 + $0x58] sm:$0xff]
    %v6067 = vld [vmem:[%s6054 + $0x60] sm:$0xff]
    %v6068 = vld [vmem:[%s6054 + $0x68] sm:$0xff]
    %v6069 = vld [vmem:[%s6054 + $0x70] sm:$0xff]
    %v6070 = vld [vmem:[%s6054 + $0x78] sm:$0xff]
    %6071 = vmatprep.subr.mxu0 0.0
    %6072 = vmatpush1.msra.mxu0 %v6055
    %6073 = vmatprep.subr.mxu0 0.0
    %6074 = vmatpush1.msra.mxu0 %v6056
    %6075 = vmatprep.subr.mxu0 0.0
    %6076 = vmatpush1.msra.mxu0 %v6057
    %6077 = vmatprep.subr.mxu0 0.0
    %6078 = vmatpush1.msra.mxu0 %v6058
    %6079 = vmatprep.subr.mxu0 0.0
    %6080 = vmatpush1.msra.mxu0 %v6059
    %6081 = vmatprep.subr.mxu0 0.0
    %6082 = vmatpush1.msra.mxu0 %v6060
    %6083 = vmatprep.subr.mxu0 0.0
    %6084 = vmatpush1.msra.mxu0 %v6061
    %6085 = vmatprep.subr.mxu0 0.0
    %6086 = vmatpush1.msra.mxu0 %v6062
    %6087 = vmatprep.subr.mxu0 0.0
    %6088 = vmatpush1.msra.mxu0 %v6063
    %6089 = vmatprep.subr.mxu0 0.0
    %6090 = vmatpush1.msra.mxu0 %v6064
    %6091 = vmatprep.subr.mxu0 0.0
    %6092 = vmatpush1.msra.mxu0 %v6065
    %6093 = vmatprep.subr.mxu0 0.0
    %6094 = vmatpush1.msra.mxu0 %v6066
    %6095 = vmatprep.subr.mxu0 0.0
    %6096 = vmatpush1.msra.mxu0 %v6067
    %6097 = vmatprep.subr.mxu0 0.0
    %6098 = vmatpush1.msra.mxu0 %v6068
    %6099 = vmatprep.subr.mxu0 0.0
    %6100 = vmatpush1.msra.mxu0 %v6069
    %6101 = vmatprep.subr.mxu0 0.0
    %6102 = vmatpush1.msra.mxu0 %v6070
    %6103 = vmatprep.subr.mxu0 0.0
    %6104 = vmatpush1.msra.mxu0 0.0
    %6105 = vmatprep.subr.mxu0 0.0
    %6106 = vmatpush1.msra.mxu0 0.0
    %6107 = vmatprep.subr.mxu0 0.0
    %6108 = vmatpush1.msra.mxu0 0.0
    %6109 = vmatprep.subr.mxu0 0.0
    %6110 = vmatpush1.msra.mxu0 0.0
    %6111 = vmatprep.subr.mxu0 0.0
    %6112 = vmatpush1.msra.mxu0 0.0
    %6113 = vmatprep.subr.mxu0 0.0
    %6114 = vmatpush1.msra.mxu0 0.0
    %6115 = vmatprep.subr.mxu0 0.0
    %6116 = vmatpush1.msra.mxu0 0.0
    %6117 = vmatprep.subr.mxu0 0.0
    %6118 = vmatpush1.msra.mxu0 0.0
    %6119 = vmatprep.subr.mxu0 0.0
    %6120 = vmatpush1.msra.mxu0 0.0
    %6121 = vmatprep.subr.mxu0 0.0
    %6122 = vmatpush1.msra.mxu0 0.0
    %6123 = vmatprep.subr.mxu0 0.0
    %6124 = vmatpush1.msra.mxu0 0.0
    %6125 = vmatprep.subr.mxu0 0.0
    %6126 = vmatpush1.msra.mxu0 0.0
    %6127 = vmatprep.subr.mxu0 0.0
    %6128 = vmatpush1.msra.mxu0 0.0
    %6129 = vmatprep.subr.mxu0 0.0
    %6130 = vmatpush1.msra.mxu0 0.0
    %6131 = vmatprep.subr.mxu0 0.0
    %6132 = vmatpush1.msra.mxu0 0.0
    %6133 = vmatprep.subr.mxu0 0.0
    %6134 = vmatpush1.msra.mxu0 0.0
    %6135 = vmatprep.mubr.f32.mxu0 0.0
    %6136 = vmatmul.mubr.f32.gmra.mrb[0].mxu0 %v6027
    %v6137 = vpop.f32.mrb[0].mxu0
    %v6138 = vadd.f32 0.0, %v6137
    %v6139 = vpop.f32.mrb[0].mxu0
    %6140 = vdwg.mxu0
    %6141 = vmatprep.subr.mxu0 0.0
    %6142 = vmatpush1.msra.mxu0 %v6038
    %6143 = vmatprep.subr.mxu0 0.0
    %6144 = vmatpush1.msra.mxu0 %v6039
    %6145 = vmatprep.subr.mxu0 0.0
    %6146 = vmatpush1.msra.mxu0 %v6040
    %6147 = vmatprep.subr.mxu0 0.0
    %6148 = vmatpush1.msra.mxu0 %v6041
    %6149 = vmatprep.subr.mxu0 0.0
    %6150 = vmatpush1.msra.mxu0 %v6042
    %6151 = vmatprep.subr.mxu0 0.0
    %6152 = vmatpush1.msra.mxu0 %v6043
    %6153 = vmatprep.subr.mxu0 0.0
    %6154 = vmatpush1.msra.mxu0 %v6044
    %6155 = vmatprep.subr.mxu0 0.0
    %6156 = vmatpush1.msra.mxu0 %v6045
    %6157 = vmatprep.subr.mxu0 0.0
    %6158 = vmatpush1.msra.mxu0 %v6046
    %6159 = vmatprep.subr.mxu0 0.0
    %6160 = vmatpush1.msra.mxu0 %v6047
    %6161 = vmatprep.subr.mxu0 0.0
    %6162 = vmatpush1.msra.mxu0 %v6048
    %6163 = vmatprep.subr.mxu0 0.0
    %6164 = vmatpush1.msra.mxu0 %v6049
    %6165 = vmatprep.subr.mxu0 0.0
    %6166 = vmatpush1.msra.mxu0 %v6050
    %6167 = vmatprep.subr.mxu0 0.0
    %6168 = vmatpush1.msra.mxu0 %v6051
    %6169 = vmatprep.subr.mxu0 0.0
    %6170 = vmatpush1.msra.mxu0 %v6052
    %6171 = vmatprep.subr.mxu0 0.0
    %6172 = vmatpush1.msra.mxu0 %v6053
    %6173 = vmatprep.subr.mxu0 0.0
    %6174 = vmatpush1.msra.mxu0 0.0
    %6175 = vmatprep.subr.mxu0 0.0
    %6176 = vmatpush1.msra.mxu0 0.0
    %6177 = vmatprep.subr.mxu0 0.0
    %6178 = vmatpush1.msra.mxu0 0.0
    %6179 = vmatprep.subr.mxu0 0.0
    %6180 = vmatpush1.msra.mxu0 0.0
    %6181 = vmatprep.subr.mxu0 0.0
    %6182 = vmatpush1.msra.mxu0 0.0
    %6183 = vmatprep.subr.mxu0 0.0
    %6184 = vmatpush1.msra.mxu0 0.0
    %6185 = vmatprep.subr.mxu0 0.0
    %6186 = vmatpush1.msra.mxu0 0.0
    %6187 = vmatprep.subr.mxu0 0.0
    %6188 = vmatpush1.msra.mxu0 0.0
    %6189 = vmatprep.subr.mxu0 0.0
    %6190 = vmatpush1.msra.mxu0 0.0
    %6191 = vmatprep.subr.mxu0 0.0
    %6192 = vmatpush1.msra.mxu0 0.0
    %6193 = vmatprep.subr.mxu0 0.0
    %6194 = vmatpush1.msra.mxu0 0.0
    %6195 = vmatprep.subr.mxu0 0.0
    %6196 = vmatpush1.msra.mxu0 0.0
    %6197 = vmatprep.subr.mxu0 0.0
    %6198 = vmatpush1.msra.mxu0 0.0
    %6199 = vmatprep.subr.mxu0 0.0
    %6200 = vmatpush1.msra.mxu0 0.0
    %6201 = vmatprep.subr.mxu0 0.0
    %6202 = vmatpush1.msra.mxu0 0.0
    %6203 = vmatprep.subr.mxu0 0.0
    %6204 = vmatpush1.msra.mxu0 0.0
    %6205 = vmatprep.mubr.f32.mxu0 0.0
    %6206 = vmatmul.mubr.f32.gmra.mrb[0].mxu0 %v6022
    %v6207 = vpop.f32.mrb[0].mxu0
    %v6208 = vadd.f32 %v6138, %v6207
    %v6209 = vpop.f32.mrb[0].mxu0
    %6210 = vdwg.mxu0
    %s6211 = scalar_lea.vmem [#allocation7], 256
    %v6212 = vld [vmem:[%s6211] sm:$0xff]
    %v6213 = vld [vmem:[%s6211 + $0x8] sm:$0xff]
    %v6214 = vld [vmem:[%s6211 + $0x10] sm:$0xff]
    %v6215 = vld [vmem:[%s6211 + $0x18] sm:$0xff]
    %v6216 = vld [vmem:[%s6211 + $0x20] sm:$0xff]
    %v6217 = vld [vmem:[%s6211 + $0x28] sm:$0xff]
    %v6218 = vld [vmem:[%s6211 + $0x30] sm:$0xff]
    %v6219 = vld [vmem:[%s6211 + $0x38] sm:$0xff]
    %v6220 = vld [vmem:[%s6211 + $0x40] sm:$0xff]
    %v6221 = vld [vmem:[%s6211 + $0x48] sm:$0xff]
    %v6222 = vld [vmem:[%s6211 + $0x50] sm:$0xff]
    %v6223 = vld [vmem:[%s6211 + $0x58] sm:$0xff]
    %v6224 = vld [vmem:[%s6211 + $0x60] sm:$0xff]
    %v6225 = vld [vmem:[%s6211 + $0x68] sm:$0xff]
    %v6226 = vld [vmem:[%s6211 + $0x70] sm:$0xff]
    %v6227 = vld [vmem:[%s6211 + $0x78] sm:$0xff]
    %6228 = vmatprep.subr.mxu0 0.0
    %6229 = vmatpush1.msra.mxu0 %v6212
    %6230 = vmatprep.subr.mxu0 0.0
    %6231 = vmatpush1.msra.mxu0 %v6213
    %6232 = vmatprep.subr.mxu0 0.0
    %6233 = vmatpush1.msra.mxu0 %v6214
    %6234 = vmatprep.subr.mxu0 0.0
    %6235 = vmatpush1.msra.mxu0 %v6215
    %6236 = vmatprep.subr.mxu0 0.0
    %6237 = vmatpush1.msra.mxu0 %v6216
    %6238 = vmatprep.subr.mxu0 0.0
    %6239 = vmatpush1.msra.mxu0 %v6217
    %6240 = vmatprep.subr.mxu0 0.0
    %6241 = vmatpush1.msra.mxu0 %v6218
    %6242 = vmatprep.subr.mxu0 0.0
    %6243 = vmatpush1.msra.mxu0 %v6219
    %6244 = vmatprep.subr.mxu0 0.0
    %6245 = vmatpush1.msra.mxu0 %v6220
    %6246 = vmatprep.subr.mxu0 0.0
    %6247 = vmatpush1.msra.mxu0 %v6221
    %6248 = vmatprep.subr.mxu0 0.0
    %6249 = vmatpush1.msra.mxu0 %v6222
    %6250 = vmatprep.subr.mxu0 0.0
    %6251 = vmatpush1.msra.mxu0 %v6223
    %6252 = vmatprep.subr.mxu0 0.0
    %6253 = vmatpush1.msra.mxu0 %v6224
    %6254 = vmatprep.subr.mxu0 0.0
    %6255 = vmatpush1.msra.mxu0 %v6225
    %6256 = vmatprep.subr.mxu0 0.0
    %6257 = vmatpush1.msra.mxu0 %v6226
    %6258 = vmatprep.subr.mxu0 0.0
    %6259 = vmatpush1.msra.mxu0 %v6227
    %6260 = vmatprep.subr.mxu0 0.0
    %6261 = vmatpush1.msra.mxu0 0.0
    %6262 = vmatprep.subr.mxu0 0.0
    %6263 = vmatpush1.msra.mxu0 0.0
    %6264 = vmatprep.subr.mxu0 0.0
    %6265 = vmatpush1.msra.mxu0 0.0
    %6266 = vmatprep.subr.mxu0 0.0
    %6267 = vmatpush1.msra.mxu0 0.0
    %6268 = vmatprep.subr.mxu0 0.0
    %6269 = vmatpush1.msra.mxu0 0.0
    %6270 = vmatprep.subr.mxu0 0.0
    %6271 = vmatpush1.msra.mxu0 0.0
    %6272 = vmatprep.subr.mxu0 0.0
    %6273 = vmatpush1.msra.mxu0 0.0
    %6274 = vmatprep.subr.mxu0 0.0
    %6275 = vmatpush1.msra.mxu0 0.0
    %6276 = vmatprep.subr.mxu0 0.0
    %6277 = vmatpush1.msra.mxu0 0.0
    %6278 = vmatprep.subr.mxu0 0.0
    %6279 = vmatpush1.msra.mxu0 0.0
    %6280 = vmatprep.subr.mxu0 0.0
    %6281 = vmatpush1.msra.mxu0 0.0
    %6282 = vmatprep.subr.mxu0 0.0
    %6283 = vmatpush1.msra.mxu0 0.0
    %6284 = vmatprep.subr.mxu0 0.0
    %6285 = vmatpush1.msra.mxu0 0.0
    %6286 = vmatprep.subr.mxu0 0.0
    %6287 = vmatpush1.msra.mxu0 0.0
    %6288 = vmatprep.subr.mxu0 0.0
    %6289 = vmatpush1.msra.mxu0 0.0
    %6290 = vmatprep.subr.mxu0 0.0
    %6291 = vmatpush1.msra.mxu0 0.0
    %6292 = vmatprep.mubr.f32.mxu0 0.0
    %6293 = vmatmul.mubr.f32.gmra.mrb[0].mxu0 %v6032
    %v6294 = vpop.f32.mrb[0].mxu0
    %v6295 = vadd.f32 0.0, %v6294
    %v6296 = vpop.f32.mrb[0].mxu0
    %6297 = vdwg.mxu0
    %v6298 = vadd.f32 %v6208, %v6295
    %s6299 = scalar_lea.vmem [#allocation7], 384
    %v6300 = vld [vmem:[%s6299] sm:$0xff]
    %v6301 = vld [vmem:[%s6299 + $0x8] sm:$0xff]
    %v6302 = vld [vmem:[%s6299 + $0x10] sm:$0xff]
    %v6303 = vld [vmem:[%s6299 + $0x18] sm:$0xff]
    %v6304 = vld [vmem:[%s6299 + $0x20] sm:$0xff]
    %v6305 = vld [vmem:[%s6299 + $0x28] sm:$0xff]
    %v6306 = vld [vmem:[%s6299 + $0x30] sm:$0xff]
    %v6307 = vld [vmem:[%s6299 + $0x38] sm:$0xff]
    %v6308 = vld [vmem:[%s6299 + $0x40] sm:$0xff]
    %v6309 = vld [vmem:[%s6299 + $0x48] sm:$0xff]
    %v6310 = vld [vmem:[%s6299 + $0x50] sm:$0xff]
    %v6311 = vld [vmem:[%s6299 + $0x58] sm:$0xff]
    %v6312 = vld [vmem:[%s6299 + $0x60] sm:$0xff]
    %v6313 = vld [vmem:[%s6299 + $0x68] sm:$0xff]
    %v6314 = vld [vmem:[%s6299 + $0x70] sm:$0xff]
    %v6315 = vld [vmem:[%s6299 + $0x78] sm:$0xff]
    %6316 = vmatprep.subr.mxu0 0.0
    %6317 = vmatpush1.msra.mxu0 %v6300
    %6318 = vmatprep.subr.mxu0 0.0
    %6319 = vmatpush1.msra.mxu0 %v6301
    %6320 = vmatprep.subr.mxu0 0.0
    %6321 = vmatpush1.msra.mxu0 %v6302
    %6322 = vmatprep.subr.mxu0 0.0
    %6323 = vmatpush1.msra.mxu0 %v6303
    %6324 = vmatprep.subr.mxu0 0.0
    %6325 = vmatpush1.msra.mxu0 %v6304
    %6326 = vmatprep.subr.mxu0 0.0
    %6327 = vmatpush1.msra.mxu0 %v6305
    %6328 = vmatprep.subr.mxu0 0.0
    %6329 = vmatpush1.msra.mxu0 %v6306
    %6330 = vmatprep.subr.mxu0 0.0
    %6331 = vmatpush1.msra.mxu0 %v6307
    %6332 = vmatprep.subr.mxu0 0.0
    %6333 = vmatpush1.msra.mxu0 %v6308
    %6334 = vmatprep.subr.mxu0 0.0
    %6335 = vmatpush1.msra.mxu0 %v6309
    %6336 = vmatprep.subr.mxu0 0.0
    %6337 = vmatpush1.msra.mxu0 %v6310
    %6338 = vmatprep.subr.mxu0 0.0
    %6339 = vmatpush1.msra.mxu0 %v6311
    %6340 = vmatprep.subr.mxu0 0.0
    %6341 = vmatpush1.msra.mxu0 %v6312
    %6342 = vmatprep.subr.mxu0 0.0
    %6343 = vmatpush1.msra.mxu0 %v6313
    %6344 = vmatprep.subr.mxu0 0.0
    %6345 = vmatpush1.msra.mxu0 %v6314
    %6346 = vmatprep.subr.mxu0 0.0
    %6347 = vmatpush1.msra.mxu0 %v6315
    %6348 = vmatprep.subr.mxu0 0.0
    %6349 = vmatpush1.msra.mxu0 0.0
    %6350 = vmatprep.subr.mxu0 0.0
    %6351 = vmatpush1.msra.mxu0 0.0
    %6352 = vmatprep.subr.mxu0 0.0
    %6353 = vmatpush1.msra.mxu0 0.0
    %6354 = vmatprep.subr.mxu0 0.0
    %6355 = vmatpush1.msra.mxu0 0.0
    %6356 = vmatprep.subr.mxu0 0.0
    %6357 = vmatpush1.msra.mxu0 0.0
    %6358 = vmatprep.subr.mxu0 0.0
    %6359 = vmatpush1.msra.mxu0 0.0
    %6360 = vmatprep.subr.mxu0 0.0
    %6361 = vmatpush1.msra.mxu0 0.0
    %6362 = vmatprep.subr.mxu0 0.0
    %6363 = vmatpush1.msra.mxu0 0.0
    %6364 = vmatprep.subr.mxu0 0.0
    %6365 = vmatpush1.msra.mxu0 0.0
    %6366 = vmatprep.subr.mxu0 0.0
    %6367 = vmatpush1.msra.mxu0 0.0
    %6368 = vmatprep.subr.mxu0 0.0
    %6369 = vmatpush1.msra.mxu0 0.0
    %6370 = vmatprep.subr.mxu0 0.0
    %6371 = vmatpush1.msra.mxu0 0.0
    %6372 = vmatprep.subr.mxu0 0.0
    %6373 = vmatpush1.msra.mxu0 0.0
    %6374 = vmatprep.subr.mxu0 0.0
    %6375 = vmatpush1.msra.mxu0 0.0
    %6376 = vmatprep.subr.mxu0 0.0
    %6377 = vmatpush1.msra.mxu0 0.0
    %6378 = vmatprep.subr.mxu0 0.0
    %6379 = vmatpush1.msra.mxu0 0.0
    %6380 = vmatprep.mubr.f32.mxu0 0.0
    %6381 = vmatmul.mubr.f32.gmra.mrb[0].mxu0 %v6037
    %v6382 = vpop.f32.mrb[0].mxu0
    %v6383 = vadd.f32 0.0, %v6382
    %v6384 = vpop.f32.mrb[0].mxu0
    %6385 = vdwg.mxu0
    %v6386 = vadd.f32 %v6298, %v6383
    %v6387 = vld [vmem:[#allocation9] sm:$0x1]
    %v6389 = vlaneseq
    %v6390 = vshrl.u32 %v6389, 7
    %v6391 = vsub.s32 0, %v6390
    %v6392 = vrot.slane %v6387, %v6391
    %v6394 = vadd.f32 %v6386, %v6392
    %v6395 = vmax.f32 %v6394, 0.0
    %v6396 = vld [vmem:[#allocation10] sm:$0xff]
    %v6397 = vld [vmem:[#allocation10 + $0x8] sm:$0xff]
    %v6398 = vld [vmem:[#allocation10 + $0x10] sm:$0xff]
    %v6399 = vld [vmem:[#allocation10 + $0x18] sm:$0xff]
    %v6400 = vld [vmem:[#allocation10 + $0x20] sm:$0xff]
    %v6401 = vld [vmem:[#allocation10 + $0x28] sm:$0xff]
    %v6402 = vld [vmem:[#allocation10 + $0x30] sm:$0xff]
    %v6403 = vld [vmem:[#allocation10 + $0x38] sm:$0xff]
    %v6404 = vld [vmem:[#allocation10 + $0x40] sm:$0xff]
    %v6405 = vld [vmem:[#allocation10 + $0x48] sm:$0xff]
    %v6406 = vld [vmem:[#allocation10 + $0x50] sm:$0xff]
    %v6407 = vld [vmem:[#allocation10 + $0x58] sm:$0xff]
    %v6408 = vld [vmem:[#allocation10 + $0x60] sm:$0xff]
    %v6409 = vld [vmem:[#allocation10 + $0x68] sm:$0xff]
    %v6410 = vld [vmem:[#allocation10 + $0x70] sm:$0xff]
    %v6411 = vld [vmem:[#allocation10 + $0x78] sm:$0xff]
    %v6412 = vld [vmem:[#allocation12] sm:$0x1]
    %v6414 = vlaneseq
    %v6415 = vshrl.u32 %v6414, 7
    %v6416 = vsub.s32 0, %v6415
    %v6417 = vrot.slane %v6412, %v6416
    %6419 = vmatprep.subr.mxu0 0.0
    %6420 = vmatpush1.msra.mxu0 %v6396
    %6421 = vmatprep.subr.mxu0 0.0
    %6422 = vmatpush1.msra.mxu0 %v6397
    %6423 = vmatprep.subr.mxu0 0.0
    %6424 = vmatpush1.msra.mxu0 %v6398
    %6425 = vmatprep.subr.mxu0 0.0
    %6426 = vmatpush1.msra.mxu0 %v6399
    %6427 = vmatprep.subr.mxu0 0.0
    %6428 = vmatpush1.msra.mxu0 %v6400
    %6429 = vmatprep.subr.mxu0 0.0
    %6430 = vmatpush1.msra.mxu0 %v6401
    %6431 = vmatprep.subr.mxu0 0.0
    %6432 = vmatpush1.msra.mxu0 %v6402
    %6433 = vmatprep.subr.mxu0 0.0
    %6434 = vmatpush1.msra.mxu0 %v6403
    %6435 = vmatprep.subr.mxu0 0.0
    %6436 = vmatpush1.msra.mxu0 %v6404
    %6437 = vmatprep.subr.mxu0 0.0
    %6438 = vmatpush1.msra.mxu0 %v6405
    %6439 = vmatprep.subr.mxu0 0.0
    %6440 = vmatpush1.msra.mxu0 %v6406
    %6441 = vmatprep.subr.mxu0 0.0
    %6442 = vmatpush1.msra.mxu0 %v6407
    %6443 = vmatprep.subr.mxu0 0.0
    %6444 = vmatpush1.msra.mxu0 %v6408
    %6445 = vmatprep.subr.mxu0 0.0
    %6446 = vmatpush1.msra.mxu0 %v6409
    %6447 = vmatprep.subr.mxu0 0.0
    %6448 = vmatpush1.msra.mxu0 %v6410
    %6449 = vmatprep.subr.mxu0 0.0
    %6450 = vmatpush1.msra.mxu0 %v6411
    %6451 = vmatprep.subr.mxu0 0.0
    %6452 = vmatpush1.msra.mxu0 0.0
    %6453 = vmatprep.subr.mxu0 0.0
    %6454 = vmatpush1.msra.mxu0 0.0
    %6455 = vmatprep.subr.mxu0 0.0
    %6456 = vmatpush1.msra.mxu0 0.0
    %6457 = vmatprep.subr.mxu0 0.0
    %6458 = vmatpush1.msra.mxu0 0.0
    %6459 = vmatprep.subr.mxu0 0.0
    %6460 = vmatpush1.msra.mxu0 0.0
    %6461 = vmatprep.subr.mxu0 0.0
    %6462 = vmatpush1.msra.mxu0 0.0
    %6463 = vmatprep.subr.mxu0 0.0
    %6464 = vmatpush1.msra.mxu0 0.0
    %6465 = vmatprep.subr.mxu0 0.0
    %6466 = vmatpush1.msra.mxu0 0.0
    %6467 = vmatprep.subr.mxu0 0.0
    %6468 = vmatpush1.msra.mxu0 0.0
    %6469 = vmatprep.subr.mxu0 0.0
    %6470 = vmatpush1.msra.mxu0 0.0
    %6471 = vmatprep.subr.mxu0 0.0
    %6472 = vmatpush1.msra.mxu0 0.0
    %6473 = vmatprep.subr.mxu0 0.0
    %6474 = vmatpush1.msra.mxu0 0.0
    %6475 = vmatprep.subr.mxu0 0.0
    %6476 = vmatpush1.msra.mxu0 0.0
    %6477 = vmatprep.subr.mxu0 0.0
    %6478 = vmatpush1.msra.mxu0 0.0
    %6479 = vmatprep.subr.mxu0 0.0
    %6480 = vmatpush1.msra.mxu0 0.0
    %6481 = vmatprep.subr.mxu0 0.0
    %6482 = vmatpush1.msra.mxu0 0.0
    %6483 = vmatprep.mubr.f32.mxu0 0.0
    %6484 = vmatmul.mubr.f32.gmra.mrb[0].mxu0 %v6395
    %v6485 = vpop.f32.mrb[0].mxu0
    %v6486 = vadd.f32 %v6417, %v6485
    %v6487 = vpop.f32.mrb[0].mxu0
    %6488 = vdwg.mxu0
    %6489 = vmax.xlane.f32.xlu0 %v6486
    %v6490 = vpop.xlane.xlu0 %6489
    %v6491 = vsub.f32 %v6486, %v6490
    %v6492 = vmul.f32 %v6491, 1.442695
    %v6493 = vpow.pop %v6492
    %6494 = vadd.xlane.f32.xlu0 %v6493
    %v6495 = vpop.xlane.xlu0 %6494
    %v6496 = vlog2.pop %v6495
    %v6497 = vmul.f32 %v6496, 0.6931472
    %v6498 = vsub.f32 %v6491, %v6497
    %6499 = vst [vmem:[%s9] sm:$0xff] %v6498
    // Predicated region
    $region66: #{net_forward.1} parent=1 // pred_check
      _
    $region67: #{net_forward.1} parent=1 // pred_check_branch
      %6501 = sbr.rel (0) target = $region69
    $region68: #{net_forward.1} parent=1 // pred_region
      _
    $region69: #{net_forward.1} parent=1 // pred_fallthru
      _
    // Predicated region
    $region70: #{net_forward.1} parent=1 // pred_check
      _
    $region71: #{net_forward.1} parent=1 // pred_check_branch
      %6503 = sbr.rel (0) target = $region73
    $region72: #{net_forward.1} parent=1 // pred_region
      _
    $region73: #{net_forward.1} parent=1 // pred_fallthru
      _
    %6504 = vsyncpa [#allocation3], 1
    %6505 = vsyncpa [#allocation5], 1
    %6506 = vsyncpa [#allocation8], 1
    %6507 = vsyncpa [#allocation11], 1

</llo_original>
